<compile_context>
chip_gen: v5e
topology: v5e:2x2
jax: 0.10.0
libtpu: 0.0.40
codegen_flags: <defaults>
</compile_context>

<pallas_src>
import numpy as np

import jax
import jax.numpy as jnp
from jax import lax
from jax.experimental import pallas as pl
from jax.experimental.pallas import tpu as pltpu

# network geometry for 32x32 inputs
_H0, _W0, _C0 = 32, 32, 3   # input (channels padded to 4 for lane density)
_C0P = 4
_H1, _C1 = 28, 6            # after conv1
_HP1 = 14                   # after maxpool1
_H2, _C2 = 10, 12           # after encoder1 conv
_HP2 = 5                    # after maxpool2
_C3 = 16                    # bottleneck channels (1x1 spatial)

_BIAS_W = 168               # widest bias row (conv1: 28*6)


# --------------------------------------------------------------------------
# In-kernel building blocks.
# Activations are (H, B, W*C) with B (multiple of 8) on the sublane axis.
# --------------------------------------------------------------------------
def _conv5(x3, t_ref, bias_row, h_out):
    """Valid conv over rows on a batched slab.

    x3: (h_in, B, Win*Cin) in the MXU dtype; t_ref: (5, Win*Cin, Wout*Cout);
    bias_row: (1, Wout*Cout) f32.  Returns (h_out, B, Wout*Cout) f32.
    Each kh tap is one matmul with M = B*h_out (batch folded into M).
    """
    b = x3.shape[1]
    k = x3.shape[2]
    m = h_out * b
    acc = jnp.dot(x3[0:h_out].reshape(m, k), t_ref[0],
                  preferred_element_type=jnp.float32)
    for kh in range(1, 5):
        acc = acc + jnp.dot(x3[kh:kh + h_out].reshape(m, k), t_ref[kh],
                            preferred_element_type=jnp.float32)
    acc = acc + bias_row
    return acc.reshape(h_out, b, -1)


def _pool(h3, pe_ref, po_ref):
    """2x2/stride-2 max pool.  Row (H) parity via free sublane reshapes,
    column (W) parity via tiny 0/1 matmuls kept in f32 (value pass-through is
    exact, so pool-argmax matches the reference)."""
    hh = h3.shape[0] // 2
    b = h3.shape[1]
    wc = h3.shape[2]
    h4 = h3.reshape(hh, 2, b, wc)
    re = h4[:, 0].reshape(hh * b, wc)          # even rows
    ro = h4[:, 1].reshape(hh * b, wc)          # odd rows
    pe = pe_ref[...]
    po = po_ref[...]
    a00 = jnp.dot(re, pe, preferred_element_type=jnp.float32)
    a01 = jnp.dot(re, po, preferred_element_type=jnp.float32)
    a10 = jnp.dot(ro, pe, preferred_element_type=jnp.float32)
    a11 = jnp.dot(ro, po, preferred_element_type=jnp.float32)
    m00 = (a00 >= a01) & (a00 >= a10) & (a00 >= a11)
    m01 = jnp.logical_not(m00) & (a01 >= a10) & (a01 >= a11)
    m10 = jnp.logical_not(m00 | m01) & (a10 >= a11)
    m11 = jnp.logical_not(m00 | m01 | m10)
    pooled = jnp.maximum(jnp.maximum(a00, a01), jnp.maximum(a10, a11))
    return pooled.reshape(hh, b, -1), (m00, m01, m10, m11)


def _unpool(y3, masks, pet_ref, pot_ref):
    """Scatter y back to recorded argmax positions (zeros elsewhere)."""
    hh, b, wch = y3.shape
    m00, m01, m10, m11 = masks
    y = y3.reshape(hh * b, wch)
    zero = jnp.zeros_like(y)
    pet = pet_ref[...]
    pot = pot_ref[...]
    we = (jnp.dot(jnp.where(m00, y, zero), pet, preferred_element_type=jnp.float32)
          + jnp.dot(jnp.where(m01, y, zero), pot, preferred_element_type=jnp.float32))
    wo = (jnp.dot(jnp.where(m10, y, zero), pet, preferred_element_type=jnp.float32)
          + jnp.dot(jnp.where(m11, y, zero), pot, preferred_element_type=jnp.float32))
    wc = we.shape[1]
    out4 = jnp.concatenate(
        [we.reshape(hh, 1, b, wc), wo.reshape(hh, 1, b, wc)], axis=1)
    return out4.reshape(2 * hh, b, wc)


def _pad4rows(x3):
    """Zero-pad 4 rows (H dim) at each end (leading-dim concat, no matmul)."""
    z = jnp.zeros((4, x3.shape[1], x3.shape[2]), x3.dtype)
    return jnp.concatenate([z, x3, z], axis=0)


def _autoencoder_kernel(x_ref, t1, t2, t3, t4, t5, t6, b_ref,
                        pe1, po1, pe1t, po1t, pe2, po2, pe2t, po2t,
                        o_ref):
    mdt = t1.dtype

    def bias(i, n):
        return b_ref[i:i + 1, 0:n]                          # (1, n) f32

    x0 = x_ref[...].astype(mdt)                              # (32, B, 128)

    # ---- encode ----
    h1 = _conv5(x0, t1, bias(0, _H1 * _C1), _H1)             # (28, B, 168) f32
    p1, masks1 = _pool(h1, pe1, po1)                         # (14, B, 84)
    e1 = _conv5(jnp.tanh(p1).astype(mdt), t2,
                bias(1, _H2 * _C2), _H2)                     # (10, B, 120)
    p2, masks2 = _pool(e1, pe2, po2)                         # (5, B, 60)
    z = jnp.tanh(_conv5(jnp.tanh(p2).astype(mdt), t3,
                        bias(2, _C3), 1))                    # (1, B, 16)

    # ---- decode ----
    d2 = jnp.tanh(_conv5(_pad4rows(z).astype(mdt), t4,
                         bias(3, _HP2 * _C2), _HP2))         # (5, B, 60)
    u2 = _unpool(d2, masks2, pe2t, po2t)                     # (10, B, 120)
    d1 = jnp.tanh(_conv5(_pad4rows(u2).astype(mdt), t5,
                         bias(4, _HP1 * _C1), _HP1))         # (14, B, 84)
    u1 = _unpool(d1, masks1, pe1t, po1t)                     # (28, B, 168)
    y = _conv5(_pad4rows(u1).astype(mdt), t6,
               bias(5, _H0 * _C0P), _H0)                     # (32, B, 128)

    o_ref[...] = jnp.maximum(y, 0.0).astype(o_ref.dtype)


# --------------------------------------------------------------------------
# Wrapper-side constant builders (weight-derived, run on weights at trace time)
# --------------------------------------------------------------------------
def _conv_w_hwio(w_oihw):
    # PyTorch Conv2d weight (Cout, Cin, kh, kw) -> HWIO
    return jnp.transpose(w_oihw, (2, 3, 1, 0))


def _convt_w_hwio(w_iohw):
    # PyTorch ConvTranspose2d weight (Cin, Cout, kh, kw) -> equivalent direct-conv HWIO
    return jnp.transpose(w_iohw[:, :, ::-1, ::-1], (2, 3, 0, 1))


def _pad_cin(w_hwio, c):
    return jnp.pad(w_hwio, ((0, 0), (0, 0), (0, c - w_hwio.shape[2]), (0, 0)))


def _pad_cout(w_hwio, c):
    return jnp.pad(w_hwio, ((0, 0), (0, 0), (0, 0), (0, c - w_hwio.shape[3])))


def _build_toeplitz(w_hwio, w_in, full):
    """Banded matrices T[kh] (w_in*cin, w_out*cout) so that the W-direction of a
    5x5 conv ('valid' if full=False, 'full'/pad-4 if full=True) is a matmul."""
    cin, cout = int(w_hwio.shape[2]), int(w_hwio.shape[3])
    if full:
        w_out, offset = w_in + 4, -4
    else:
        w_out, offset = w_in - 4, 0
    wi = np.arange(w_in)[:, None]
    wo = np.arange(w_out)[None, :]
    kw = wi - wo - offset                                    # (w_in, w_out)
    valid = (kw >= 0) & (kw <= 4)
    kw_c = np.clip(kw, 0, 4)
    t = w_hwio[:, kw_c, :, :]                                # (5, w_in, w_out, cin, cout)
    t = t * jnp.asarray(valid, w_hwio.dtype)[None, :, :, None, None]
    t = jnp.transpose(t, (0, 1, 3, 2, 4))                    # (5, w_in, cin, w_out, cout)
    return t.reshape(5, w_in * cin, w_out * cout)


def _bias_slab(b_list_with_wout):
    """Pack all six bias rows (layout [wo*cout + co] -> b[co]) into one (8, 168)."""
    rows = []
    for b, w_out in b_list_with_wout:
        row = jnp.tile(b, (w_out,))
        rows.append(jnp.pad(row, (0, _BIAS_W - row.shape[0])))
    while len(rows) < 8:
        rows.append(jnp.zeros((_BIAS_W,), jnp.float32))
    return jnp.stack(rows, axis=0).astype(jnp.float32)


def _lane_pool_matrices(w, c):
    """0/1 selection matrices for the W (lane) direction of 2x2/stride-2 pooling."""
    hw = w // 2
    pe = np.zeros((w * c, hw * c), np.float32)
    po = np.zeros((w * c, hw * c), np.float32)
    cols = np.arange(hw * c)
    wo_idx, ci_idx = cols // c, cols % c
    pe[2 * wo_idx * c + ci_idx, cols] = 1.0
    po[(2 * wo_idx + 1) * c + ci_idx, cols] = 1.0
    return pe, po


# --------------------------------------------------------------------------
# Forward pass: single fused pallas_call, grid over batch blocks
# --------------------------------------------------------------------------
def autoencoder_forward(x_nchw, params, *, batch_block=16,
                        mxu_dtype=jnp.bfloat16):
    assert x_nchw.shape[1:] == (_C0, _H0, _W0), x_nchw.shape
    n = x_nchw.shape[0]
    f32 = jnp.float32

    # batch block size: multiple of 8 (keeps all (H,B)->H*B reshapes free)
    bb = max(8, ((min(batch_block, max(n, 1)) + 7) // 8) * 8)
    npad = ((n + bb - 1) // bb) * bb
    grid = npad // bb

    # NCHW -> (H, N, W, C) with C padded 3->4 -> lane-dense (H, Npad, 128)
    # TODO(synk): accept NHWC (or this packed layout) at the API boundary to
    # drop the wrapper-side transpose HBM passes.
    xt = jnp.transpose(x_nchw.astype(f32), (2, 0, 3, 1))     # (32, N, 32, 3)
    xt = jnp.pad(xt, ((0, 0), (0, npad - n), (0, 0), (0, _C0P - _C0)))
    x_prep = xt.reshape(_H0, npad, _W0 * _C0P)               # (32, Npad, 128)

    w1, bb1 = params["conv1"]
    w2, bb2 = params["encoder1"]
    w3, bb3 = params["encoder2"]
    w4, bb4 = params["decoder2"]
    w5, bb5 = params["decoder1"]
    w6, bb6 = params["unconv1"]

    # Toeplitz (conv) weights -> MXU dtype; selection matrices / biases stay f32.
    t1 = _build_toeplitz(_pad_cin(_conv_w_hwio(w1), _C0P), _W0, False).astype(mxu_dtype)
    t2 = _build_toeplitz(_conv_w_hwio(w2), _HP1, False).astype(mxu_dtype)
    t3 = _build_toeplitz(_conv_w_hwio(w3), _HP2, False).astype(mxu_dtype)
    t4 = _build_toeplitz(_convt_w_hwio(w4), 1, True).astype(mxu_dtype)
    t5 = _build_toeplitz(_convt_w_hwio(w5), _H2, True).astype(mxu_dtype)
    t6 = _build_toeplitz(_pad_cout(_convt_w_hwio(w6), _C0P), _H1, True).astype(mxu_dtype)

    bias_slab = _bias_slab([
        (bb1, _H1), (bb2, _H2), (bb3, 1), (bb4, _HP2), (bb5, _HP1),
        (jnp.pad(bb6, (0, _C0P - _C0)), _W0),
    ])

    pe1_np, po1_np = _lane_pool_matrices(_H1, _C1)           # (168, 84)
    pe2_np, po2_np = _lane_pool_matrices(_H2, _C2)           # (120, 60)
    pool_consts = [jnp.asarray(m) for m in
                   (pe1_np, po1_np, pe1_np.T, po1_np.T,
                    pe2_np, po2_np, pe2_np.T, po2_np.T)]

    consts = [t1, t2, t3, t4, t5, t6, bias_slab] + pool_consts

    def _const_spec(a):
        nd = a.ndim
        return pl.BlockSpec(a.shape, lambda g, _nd=nd: (0,) * _nd)

    in_specs = [pl.BlockSpec((_H0, bb, _W0 * _C0P), lambda g: (0, g, 0))]
    in_specs += [_const_spec(a) for a in consts]
    out_specs = pl.BlockSpec((_H0, bb, _W0 * _C0P), lambda g: (0, g, 0))

    y2d = pl.pallas_call(
        _autoencoder_kernel,
        out_shape=jax.ShapeDtypeStruct((_H0, npad, _W0 * _C0P), f32),
        grid_spec=pltpu.PrefetchScalarGridSpec(
            num_scalar_prefetch=0,
            grid=(grid,),
            in_specs=in_specs,
            out_specs=out_specs,
        ),
        compiler_params=pltpu.CompilerParams(
            dimension_semantics=("parallel",),
            vmem_limit_bytes=32 * 1024 * 1024,
        ),
    )(x_prep, *consts)

    y4 = y2d.reshape(_H0, npad, _W0, _C0P)[:, :n, :, :_C0]   # drop pad batch/chan
    return jnp.transpose(y4, (1, 3, 0, 2))                   # (N, 3, 32, 32)


# --------------------------------------------------------------------------
# Pure-JAX (XLA) reference with matched MXU-operand precision
# --------------------------------------------------------------------------
def _ref_conv(x, w_hwio, b, pad, dt):
    y = lax.conv_general_dilated(
        x.astype(dt), w_hwio.astype(dt), window_strides=(1, 1), padding=pad,
        dimension_numbers=("NHWC", "HWIO", "NHWC"),
        preferred_element_type=jnp.float32,
        precision=lax.Precision.HIGHEST)
    return y + b


def _ref_maxpool(x):
    a00 = x[:, 0::2, 0::2, :]
    a01 = x[:, 0::2, 1::2, :]
    a10 = x[:, 1::2, 0::2, :]
    a11 = x[:, 1::2, 1::2, :]
    m00 = (a00 >= a01) & (a00 >= a10) & (a00 >= a11)
    m01 = jnp.logical_not(m00) & (a01 >= a10) & (a01 >= a11)
    m10 = jnp.logical_not(m00 | m01) & (a10 >= a11)
    m11 = jnp.logical_not(m00 | m01 | m10)
    p = jnp.maximum(jnp.maximum(a00, a01), jnp.maximum(a10, a11))
    return p, (m00, m01, m10, m11)


def _ref_maxunpool(y, masks):
    m00, m01, m10, m11 = masks
    n, h, w, c = y.shape
    zero = jnp.zeros_like(y)
    out = jnp.zeros((n, 2 * h, 2 * w, c), y.dtype)
    out = out.at[:, 0::2, 0::2, :].set(jnp.where(m00, y, zero))
    out = out.at[:, 0::2, 1::2, :].set(jnp.where(m01, y, zero))
    out = out.at[:, 1::2, 0::2, :].set(jnp.where(m10, y, zero))
    out = out.at[:, 1::2, 1::2, :].set(jnp.where(m11, y, zero))
    return out


def autoencoder_reference(x_nchw, params, *, mxu_dtype=jnp.bfloat16):
    dt = mxu_dtype
    x = jnp.transpose(x_nchw, (0, 2, 3, 1)).astype(jnp.float32)
    w1, b1 = params["conv1"]
    w2, b2 = params["encoder1"]
    w3, b3 = params["encoder2"]
    w4, b4 = params["decoder2"]
    w5, b5 = params["decoder1"]
    w6, b6 = params["unconv1"]

    valid = ((0, 0), (0, 0))
    full = ((4, 4), (4, 4))

    h1 = _ref_conv(x, _conv_w_hwio(w1), b1, valid, dt)
    p1, masks1 = _ref_maxpool(h1)
    e1 = _ref_conv(jnp.tanh(p1), _conv_w_hwio(w2), b2, valid, dt)
    p2, masks2 = _ref_maxpool(e1)
    z = jnp.tanh(_ref_conv(jnp.tanh(p2), _conv_w_hwio(w3), b3, valid, dt))
    d2 = jnp.tanh(_ref_conv(z, _convt_w_hwio(w4), b4, full, dt))
    u2 = _ref_maxunpool(d2, masks2)
    d1 = jnp.tanh(_ref_conv(u2, _convt_w_hwio(w5), b5, full, dt))
    u1 = _ref_maxunpool(d1, masks1)
    y = jnp.maximum(_ref_conv(u1, _convt_w_hwio(w6), b6, full, dt), 0.0)
    return jnp.transpose(y, (0, 3, 1, 2))


# --------------------------------------------------------------------------
# Deterministic synthetic parameters (PyTorch layouts, uniform init)
# --------------------------------------------------------------------------
def init_autoencoder_params(key):
    def conv_init(k, c_out, c_in):
        kw, kb = jax.random.split(k)
        bound = 1.0 / float(np.sqrt(c_in * 25.0))
        w = jax.random.uniform(kw, (c_out, c_in, 5, 5), jnp.float32, -bound, bound)
        b = jax.random.uniform(kb, (c_out,), jnp.float32, -bound, bound)
        return w, b

    def convt_init(k, c_in, c_out):
        kw, kb = jax.random.split(k)
        bound = 1.0 / float(np.sqrt(c_in * 25.0))
        w = jax.random.uniform(kw, (c_in, c_out, 5, 5), jnp.float32, -bound, bound)
        b = jax.random.uniform(kb, (c_out,), jnp.float32, -bound, bound)
        return w, b

    ks = jax.random.split(key, 6)
    return {
        "conv1":    conv_init(ks[0], 6, 3),
        "encoder1": conv_init(ks[1], 12, 6),
        "encoder2": conv_init(ks[2], 16, 12),
        "decoder2": convt_init(ks[3], 16, 12),
        "decoder1": convt_init(ks[4], 12, 6),
        "unconv1":  convt_init(ks[5], 6, 3),
    }


def _check(y, y_ref):
    # A small fraction of elements may legitimately differ when a max-pool
    # window holds two nearly-equal values and the two implementations resolve
    # the argmax differently; a real kernel bug corrupts essentially everything.
    err = jnp.abs(y - y_ref)
    tol = 2e-3 + 2e-3 * jnp.abs(y_ref)
    frac_bad = float(jnp.mean((err > tol).astype(jnp.float32)))
    mean_err = float(jnp.mean(err))
    assert frac_bad < 0.15, (frac_bad, float(jnp.max(err)))
    assert mean_err < 5e-3, mean_err


if __name__ == "__main__":
    key = jax.random.PRNGKey(0)
    kx, kp, kx2 = jax.random.split(key, 3)
    params = init_autoencoder_params(kp)

    fwd = jax.jit(autoencoder_forward)
    ref = jax.jit(autoencoder_reference)

    # Small batch (pads to one 8-image block, grid=1).
    x = jax.random.normal(kx, (2, 3, 32, 32), jnp.float32)
    y = jax.block_until_ready(fwd(x, params))
    assert y.shape == (2, 3, 32, 32), y.shape
    assert bool(jnp.isfinite(y).all())
    y_ref = jax.block_until_ready(ref(x, params))
    _check(y, y_ref)

    # Larger batch: exercises multi-block grid (grid=2) and batch padding.
    x2 = jax.random.normal(kx2, (18, 3, 32, 32), jnp.float32)
    y2 = jax.block_until_ready(fwd(x2, params))
    assert y2.shape == (18, 3, 32, 32), y2.shape
    assert bool(jnp.isfinite(y2).all())
    y2_ref = jax.block_until_ready(ref(x2, params))
    _check(y2, y2_ref)

    print("KERNEL_OK")
</pallas_src>

<mosaic_0001>
module attributes {stable_mosaic.version = 11 : i64} {
  func.func @_autoencoder_kernel(%arg0: i32, %arg1: memref<32x8x128xf32, #tpu.memory_space<vmem>>, %arg2: memref<5x128x168xbf16, #tpu.memory_space<vmem>>, %arg3: memref<5x84x120xbf16, #tpu.memory_space<vmem>>, %arg4: memref<5x60x16xbf16, #tpu.memory_space<vmem>>, %arg5: memref<5x16x60xbf16, #tpu.memory_space<vmem>>, %arg6: memref<5x120x84xbf16, #tpu.memory_space<vmem>>, %arg7: memref<5x168x128xbf16, #tpu.memory_space<vmem>>, %arg8: memref<8x168xf32, #tpu.memory_space<vmem>>, %arg9: memref<168x84xf32, #tpu.memory_space<vmem>>, %arg10: memref<168x84xf32, #tpu.memory_space<vmem>>, %arg11: memref<84x168xf32, #tpu.memory_space<vmem>>, %arg12: memref<84x168xf32, #tpu.memory_space<vmem>>, %arg13: memref<120x60xf32, #tpu.memory_space<vmem>>, %arg14: memref<120x60xf32, #tpu.memory_space<vmem>>, %arg15: memref<60x120xf32, #tpu.memory_space<vmem>>, %arg16: memref<60x120xf32, #tpu.memory_space<vmem>>, %arg17: memref<32x8x128xf32, #tpu.memory_space<vmem>>) attributes {dimension_semantics = [#tpu.dimension_semantics<parallel>], iteration_bounds = array<i64: 1>, scalar_prefetch = 0 : i64, scratch_operands = 0 : i64, tpu.core_type = #tpu.core_type<tc>, window_params = [{transform_indices = @transform_0, window_bounds = array<i64: 32, 8, 128>}, {pipeline_mode = #tpu.pipeline_mode<synchronous>, transform_indices = @transform_1, window_bounds = array<i64: 5, 128, 168>}, {pipeline_mode = #tpu.pipeline_mode<synchronous>, transform_indices = @transform_2, window_bounds = array<i64: 5, 84, 120>}, {pipeline_mode = #tpu.pipeline_mode<synchronous>, transform_indices = @transform_3, window_bounds = array<i64: 5, 60, 16>}, {pipeline_mode = #tpu.pipeline_mode<synchronous>, transform_indices = @transform_4, window_bounds = array<i64: 5, 16, 60>}, {pipeline_mode = #tpu.pipeline_mode<synchronous>, transform_indices = @transform_5, window_bounds = array<i64: 5, 120, 84>}, {pipeline_mode = #tpu.pipeline_mode<synchronous>, transform_indices = @transform_6, window_bounds = array<i64: 5, 168, 128>}, {pipeline_mode = #tpu.pipeline_mode<synchronous>, transform_indices = @transform_7, window_bounds = array<i64: 8, 168>}, {pipeline_mode = #tpu.pipeline_mode<synchronous>, transform_indices = @transform_8, window_bounds = array<i64: 168, 84>}, {pipeline_mode = #tpu.pipeline_mode<synchronous>, transform_indices = @transform_9, window_bounds = array<i64: 168, 84>}, {pipeline_mode = #tpu.pipeline_mode<synchronous>, transform_indices = @transform_10, window_bounds = array<i64: 84, 168>}, {pipeline_mode = #tpu.pipeline_mode<synchronous>, transform_indices = @transform_11, window_bounds = array<i64: 84, 168>}, {pipeline_mode = #tpu.pipeline_mode<synchronous>, transform_indices = @transform_12, window_bounds = array<i64: 120, 60>}, {pipeline_mode = #tpu.pipeline_mode<synchronous>, transform_indices = @transform_13, window_bounds = array<i64: 120, 60>}, {pipeline_mode = #tpu.pipeline_mode<synchronous>, transform_indices = @transform_14, window_bounds = array<i64: 60, 120>}, {pipeline_mode = #tpu.pipeline_mode<synchronous>, transform_indices = @transform_15, window_bounds = array<i64: 60, 120>}, {transform_indices = @transform_16, window_bounds = array<i64: 32, 8, 128>}]} {
    %c0 = arith.constant 0 : index
    %c0_0 = arith.constant 0 : index
    %c0_1 = arith.constant 0 : index
    %0 = vector.load %arg1[%c0, %c0_0, %c0_1] : memref<32x8x128xf32, #tpu.memory_space<vmem>>, vector<32x8x128xf32>
    %1 = arith.truncf %0 : vector<32x8x128xf32> to vector<32x8x128xbf16>
    %c0_2 = arith.constant 0 : index
    %c0_3 = arith.constant 0 : index
    %2 = vector.load %arg8[%c0_2, %c0_3] : memref<8x168xf32, #tpu.memory_space<vmem>>, vector<1x168xf32>
    %3 = vector.extract_strided_slice %1 {offsets = [0, 0, 0], sizes = [28, 8, 128], strides = [1, 1, 1]} : vector<32x8x128xbf16> to vector<28x8x128xbf16>
    %4 = vector.shape_cast %3 : vector<28x8x128xbf16> to vector<224x128xbf16>
    %c0_4 = arith.constant 0 : index
    %c0_5 = arith.constant 0 : index
    %c0_6 = arith.constant 0 : index
    %5 = vector.load %arg2[%c0_4, %c0_5, %c0_6] : memref<5x128x168xbf16, #tpu.memory_space<vmem>>, vector<1x128x168xbf16>
    %6 = vector.shape_cast %5 : vector<1x128x168xbf16> to vector<128x168xbf16>
    %cst = arith.constant dense<0.000000e+00> : vector<224x168xf32>
    %7 = tpu.matmul %4, %6, %cst {dimension_numbers = #tpu.dot_dimension_numbers<[1], [0], [0], [1], [0, 0, 1, 1], [], []>} : vector<224x128xbf16>, vector<128x168xbf16>, vector<224x168xf32> -> vector<224x168xf32>
    %8 = vector.extract_strided_slice %1 {offsets = [1, 0, 0], sizes = [28, 8, 128], strides = [1, 1, 1]} : vector<32x8x128xbf16> to vector<28x8x128xbf16>
    %9 = vector.shape_cast %8 : vector<28x8x128xbf16> to vector<224x128xbf16>
    %c1 = arith.constant 1 : index
    %c0_7 = arith.constant 0 : index
    %c0_8 = arith.constant 0 : index
    %10 = vector.load %arg2[%c1, %c0_7, %c0_8] : memref<5x128x168xbf16, #tpu.memory_space<vmem>>, vector<1x128x168xbf16>
    %11 = vector.shape_cast %10 : vector<1x128x168xbf16> to vector<128x168xbf16>
    %cst_9 = arith.constant dense<0.000000e+00> : vector<224x168xf32>
    %12 = tpu.matmul %9, %11, %cst_9 {dimension_numbers = #tpu.dot_dimension_numbers<[1], [0], [0], [1], [0, 0, 1, 1], [], []>} : vector<224x128xbf16>, vector<128x168xbf16>, vector<224x168xf32> -> vector<224x168xf32>
    %13 = arith.addf %7, %12 : vector<224x168xf32>
    %14 = vector.extract_strided_slice %1 {offsets = [2, 0, 0], sizes = [28, 8, 128], strides = [1, 1, 1]} : vector<32x8x128xbf16> to vector<28x8x128xbf16>
    %15 = vector.shape_cast %14 : vector<28x8x128xbf16> to vector<224x128xbf16>
    %c2 = arith.constant 2 : index
    %c0_10 = arith.constant 0 : index
    %c0_11 = arith.constant 0 : index
    %16 = vector.load %arg2[%c2, %c0_10, %c0_11] : memref<5x128x168xbf16, #tpu.memory_space<vmem>>, vector<1x128x168xbf16>
    %17 = vector.shape_cast %16 : vector<1x128x168xbf16> to vector<128x168xbf16>
    %cst_12 = arith.constant dense<0.000000e+00> : vector<224x168xf32>
    %18 = tpu.matmul %15, %17, %cst_12 {dimension_numbers = #tpu.dot_dimension_numbers<[1], [0], [0], [1], [0, 0, 1, 1], [], []>} : vector<224x128xbf16>, vector<128x168xbf16>, vector<224x168xf32> -> vector<224x168xf32>
    %19 = arith.addf %13, %18 : vector<224x168xf32>
    %20 = vector.extract_strided_slice %1 {offsets = [3, 0, 0], sizes = [28, 8, 128], strides = [1, 1, 1]} : vector<32x8x128xbf16> to vector<28x8x128xbf16>
    %21 = vector.shape_cast %20 : vector<28x8x128xbf16> to vector<224x128xbf16>
    %c3 = arith.constant 3 : index
    %c0_13 = arith.constant 0 : index
    %c0_14 = arith.constant 0 : index
    %22 = vector.load %arg2[%c3, %c0_13, %c0_14] : memref<5x128x168xbf16, #tpu.memory_space<vmem>>, vector<1x128x168xbf16>
    %23 = vector.shape_cast %22 : vector<1x128x168xbf16> to vector<128x168xbf16>
    %cst_15 = arith.constant dense<0.000000e+00> : vector<224x168xf32>
    %24 = tpu.matmul %21, %23, %cst_15 {dimension_numbers = #tpu.dot_dimension_numbers<[1], [0], [0], [1], [0, 0, 1, 1], [], []>} : vector<224x128xbf16>, vector<128x168xbf16>, vector<224x168xf32> -> vector<224x168xf32>
    %25 = arith.addf %19, %24 : vector<224x168xf32>
    %26 = vector.extract_strided_slice %1 {offsets = [4, 0, 0], sizes = [28, 8, 128], strides = [1, 1, 1]} : vector<32x8x128xbf16> to vector<28x8x128xbf16>
    %27 = vector.shape_cast %26 : vector<28x8x128xbf16> to vector<224x128xbf16>
    %c4 = arith.constant 4 : index
    %c0_16 = arith.constant 0 : index
    %c0_17 = arith.constant 0 : index
    %28 = vector.load %arg2[%c4, %c0_16, %c0_17] : memref<5x128x168xbf16, #tpu.memory_space<vmem>>, vector<1x128x168xbf16>
    %29 = vector.shape_cast %28 : vector<1x128x168xbf16> to vector<128x168xbf16>
    %cst_18 = arith.constant dense<0.000000e+00> : vector<224x168xf32>
    %30 = tpu.matmul %27, %29, %cst_18 {dimension_numbers = #tpu.dot_dimension_numbers<[1], [0], [0], [1], [0, 0, 1, 1], [], []>} : vector<224x128xbf16>, vector<128x168xbf16>, vector<224x168xf32> -> vector<224x168xf32>
    %31 = arith.addf %25, %30 : vector<224x168xf32>
    %32 = vector.broadcast %2 : vector<1x168xf32> to vector<224x168xf32>
    %33 = arith.addf %31, %32 : vector<224x168xf32>
    %34 = vector.shape_cast %33 : vector<224x168xf32> to vector<28x8x168xf32>
    %35 = vector.shape_cast %34 : vector<28x8x168xf32> to vector<14x2x8x168xf32>
    %36 = vector.extract_strided_slice %35 {offsets = [0, 0, 0, 0], sizes = [14, 1, 8, 168], strides = [1, 1, 1, 1]} : vector<14x2x8x168xf32> to vector<14x1x8x168xf32>
    %37 = vector.shape_cast %36 : vector<14x1x8x168xf32> to vector<14x8x168xf32>
    %38 = vector.shape_cast %37 : vector<14x8x168xf32> to vector<112x168xf32>
    %39 = vector.extract_strided_slice %35 {offsets = [0, 1, 0, 0], sizes = [14, 1, 8, 168], strides = [1, 1, 1, 1]} : vector<14x2x8x168xf32> to vector<14x1x8x168xf32>
    %40 = vector.shape_cast %39 : vector<14x1x8x168xf32> to vector<14x8x168xf32>
    %41 = vector.shape_cast %40 : vector<14x8x168xf32> to vector<112x168xf32>
    %c0_19 = arith.constant 0 : index
    %c0_20 = arith.constant 0 : index
    %42 = vector.load %arg9[%c0_19, %c0_20] : memref<168x84xf32, #tpu.memory_space<vmem>>, vector<168x84xf32>
    %c0_21 = arith.constant 0 : index
    %c0_22 = arith.constant 0 : index
    %43 = vector.load %arg10[%c0_21, %c0_22] : memref<168x84xf32, #tpu.memory_space<vmem>>, vector<168x84xf32>
    %cst_23 = arith.constant dense<0.000000e+00> : vector<112x84xf32>
    %44 = tpu.matmul %38, %42, %cst_23 {dimension_numbers = #tpu.dot_dimension_numbers<[1], [0], [0], [1], [0, 0, 1, 1], [], []>} : vector<112x168xf32>, vector<168x84xf32>, vector<112x84xf32> -> vector<112x84xf32>
    %cst_24 = arith.constant dense<0.000000e+00> : vector<112x84xf32>
    %45 = tpu.matmul %38, %43, %cst_24 {dimension_numbers = #tpu.dot_dimension_numbers<[1], [0], [0], [1], [0, 0, 1, 1], [], []>} : vector<112x168xf32>, vector<168x84xf32>, vector<112x84xf32> -> vector<112x84xf32>
    %cst_25 = arith.constant dense<0.000000e+00> : vector<112x84xf32>
    %46 = tpu.matmul %41, %42, %cst_25 {dimension_numbers = #tpu.dot_dimension_numbers<[1], [0], [0], [1], [0, 0, 1, 1], [], []>} : vector<112x168xf32>, vector<168x84xf32>, vector<112x84xf32> -> vector<112x84xf32>
    %cst_26 = arith.constant dense<0.000000e+00> : vector<112x84xf32>
    %47 = tpu.matmul %41, %43, %cst_26 {dimension_numbers = #tpu.dot_dimension_numbers<[1], [0], [0], [1], [0, 0, 1, 1], [], []>} : vector<112x168xf32>, vector<168x84xf32>, vector<112x84xf32> -> vector<112x84xf32>
    %48 = arith.cmpf oge, %44, %45 : vector<112x84xf32>
    %49 = arith.cmpf oge, %44, %46 : vector<112x84xf32>
    %50 = arith.andi %48, %49 : vector<112x84xi1>
    %51 = arith.cmpf oge, %44, %47 : vector<112x84xf32>
    %52 = arith.andi %50, %51 : vector<112x84xi1>
    %cst_27 = arith.constant dense<true> : vector<112x84xi1>
    %53 = arith.xori %52, %cst_27 : vector<112x84xi1>
    %54 = arith.cmpf oge, %45, %46 : vector<112x84xf32>
    %55 = arith.andi %53, %54 : vector<112x84xi1>
    %56 = arith.cmpf oge, %45, %47 : vector<112x84xf32>
    %57 = arith.andi %55, %56 : vector<112x84xi1>
    %58 = arith.ori %52, %57 : vector<112x84xi1>
    %cst_28 = arith.constant dense<true> : vector<112x84xi1>
    %59 = arith.xori %58, %cst_28 : vector<112x84xi1>
    %60 = arith.cmpf oge, %46, %47 : vector<112x84xf32>
    %61 = arith.andi %59, %60 : vector<112x84xi1>
    %62 = arith.ori %52, %57 : vector<112x84xi1>
    %63 = arith.ori %62, %61 : vector<112x84xi1>
    %cst_29 = arith.constant dense<true> : vector<112x84xi1>
    %64 = arith.xori %63, %cst_29 : vector<112x84xi1>
    %65 = arith.maximumf %44, %45 : vector<112x84xf32>
    %66 = arith.maximumf %46, %47 : vector<112x84xf32>
    %67 = arith.maximumf %65, %66 : vector<112x84xf32>
    %68 = vector.shape_cast %67 : vector<112x84xf32> to vector<14x8x84xf32>
    %69 = math.tanh %68 : vector<14x8x84xf32>
    %70 = arith.truncf %69 : vector<14x8x84xf32> to vector<14x8x84xbf16>
    %c1_30 = arith.constant 1 : index
    %c0_31 = arith.constant 0 : index
    %71 = vector.load %arg8[%c1_30, %c0_31] : memref<8x168xf32, #tpu.memory_space<vmem>>, vector<1x120xf32>
    %72 = vector.extract_strided_slice %70 {offsets = [0, 0, 0], sizes = [10, 8, 84], strides = [1, 1, 1]} : vector<14x8x84xbf16> to vector<10x8x84xbf16>
    %73 = vector.shape_cast %72 : vector<10x8x84xbf16> to vector<80x84xbf16>
    %c0_32 = arith.constant 0 : index
    %c0_33 = arith.constant 0 : index
    %c0_34 = arith.constant 0 : index
    %74 = vector.load %arg3[%c0_32, %c0_33, %c0_34] : memref<5x84x120xbf16, #tpu.memory_space<vmem>>, vector<1x84x120xbf16>
    %75 = vector.shape_cast %74 : vector<1x84x120xbf16> to vector<84x120xbf16>
    %cst_35 = arith.constant dense<0.000000e+00> : vector<80x120xf32>
    %76 = tpu.matmul %73, %75, %cst_35 {dimension_numbers = #tpu.dot_dimension_numbers<[1], [0], [0], [1], [0, 0, 1, 1], [], []>} : vector<80x84xbf16>, vector<84x120xbf16>, vector<80x120xf32> -> vector<80x120xf32>
    %77 = vector.extract_strided_slice %70 {offsets = [1, 0, 0], sizes = [10, 8, 84], strides = [1, 1, 1]} : vector<14x8x84xbf16> to vector<10x8x84xbf16>
    %78 = vector.shape_cast %77 : vector<10x8x84xbf16> to vector<80x84xbf16>
    %c1_36 = arith.constant 1 : index
    %c0_37 = arith.constant 0 : index
    %c0_38 = arith.constant 0 : index
    %79 = vector.load %arg3[%c1_36, %c0_37, %c0_38] : memref<5x84x120xbf16, #tpu.memory_space<vmem>>, vector<1x84x120xbf16>
    %80 = vector.shape_cast %79 : vector<1x84x120xbf16> to vector<84x120xbf16>
    %cst_39 = arith.constant dense<0.000000e+00> : vector<80x120xf32>
    %81 = tpu.matmul %78, %80, %cst_39 {dimension_numbers = #tpu.dot_dimension_numbers<[1], [0], [0], [1], [0, 0, 1, 1], [], []>} : vector<80x84xbf16>, vector<84x120xbf16>, vector<80x120xf32> -> vector<80x120xf32>
    %82 = arith.addf %76, %81 : vector<80x120xf32>
    %83 = vector.extract_strided_slice %70 {offsets = [2, 0, 0], sizes = [10, 8, 84], strides = [1, 1, 1]} : vector<14x8x84xbf16> to vector<10x8x84xbf16>
    %84 = vector.shape_cast %83 : vector<10x8x84xbf16> to vector<80x84xbf16>
    %c2_40 = arith.constant 2 : index
    %c0_41 = arith.constant 0 : index
    %c0_42 = arith.constant 0 : index
    %85 = vector.load %arg3[%c2_40, %c0_41, %c0_42] : memref<5x84x120xbf16, #tpu.memory_space<vmem>>, vector<1x84x120xbf16>
    %86 = vector.shape_cast %85 : vector<1x84x120xbf16> to vector<84x120xbf16>
    %cst_43 = arith.constant dense<0.000000e+00> : vector<80x120xf32>
    %87 = tpu.matmul %84, %86, %cst_43 {dimension_numbers = #tpu.dot_dimension_numbers<[1], [0], [0], [1], [0, 0, 1, 1], [], []>} : vector<80x84xbf16>, vector<84x120xbf16>, vector<80x120xf32> -> vector<80x120xf32>
    %88 = arith.addf %82, %87 : vector<80x120xf32>
    %89 = vector.extract_strided_slice %70 {offsets = [3, 0, 0], sizes = [10, 8, 84], strides = [1, 1, 1]} : vector<14x8x84xbf16> to vector<10x8x84xbf16>
    %90 = vector.shape_cast %89 : vector<10x8x84xbf16> to vector<80x84xbf16>
    %c3_44 = arith.constant 3 : index
    %c0_45 = arith.constant 0 : index
    %c0_46 = arith.constant 0 : index
    %91 = vector.load %arg3[%c3_44, %c0_45, %c0_46] : memref<5x84x120xbf16, #tpu.memory_space<vmem>>, vector<1x84x120xbf16>
    %92 = vector.shape_cast %91 : vector<1x84x120xbf16> to vector<84x120xbf16>
    %cst_47 = arith.constant dense<0.000000e+00> : vector<80x120xf32>
    %93 = tpu.matmul %90, %92, %cst_47 {dimension_numbers = #tpu.dot_dimension_numbers<[1], [0], [0], [1], [0, 0, 1, 1], [], []>} : vector<80x84xbf16>, vector<84x120xbf16>, vector<80x120xf32> -> vector<80x120xf32>
    %94 = arith.addf %88, %93 : vector<80x120xf32>
    %95 = vector.extract_strided_slice %70 {offsets = [4, 0, 0], sizes = [10, 8, 84], strides = [1, 1, 1]} : vector<14x8x84xbf16> to vector<10x8x84xbf16>
    %96 = vector.shape_cast %95 : vector<10x8x84xbf16> to vector<80x84xbf16>
    %c4_48 = arith.constant 4 : index
    %c0_49 = arith.constant 0 : index
    %c0_50 = arith.constant 0 : index
    %97 = vector.load %arg3[%c4_48, %c0_49, %c0_50] : memref<5x84x120xbf16, #tpu.memory_space<vmem>>, vector<1x84x120xbf16>
    %98 = vector.shape_cast %97 : vector<1x84x120xbf16> to vector<84x120xbf16>
    %cst_51 = arith.constant dense<0.000000e+00> : vector<80x120xf32>
    %99 = tpu.matmul %96, %98, %cst_51 {dimension_numbers = #tpu.dot_dimension_numbers<[1], [0], [0], [1], [0, 0, 1, 1], [], []>} : vector<80x84xbf16>, vector<84x120xbf16>, vector<80x120xf32> -> vector<80x120xf32>
    %100 = arith.addf %94, %99 : vector<80x120xf32>
    %101 = vector.broadcast %71 : vector<1x120xf32> to vector<80x120xf32>
    %102 = arith.addf %100, %101 : vector<80x120xf32>
    %103 = vector.shape_cast %102 : vector<80x120xf32> to vector<10x8x120xf32>
    %104 = vector.shape_cast %103 : vector<10x8x120xf32> to vector<5x2x8x120xf32>
    %105 = vector.extract_strided_slice %104 {offsets = [0, 0, 0, 0], sizes = [5, 1, 8, 120], strides = [1, 1, 1, 1]} : vector<5x2x8x120xf32> to vector<5x1x8x120xf32>
    %106 = vector.shape_cast %105 : vector<5x1x8x120xf32> to vector<5x8x120xf32>
    %107 = vector.shape_cast %106 : vector<5x8x120xf32> to vector<40x120xf32>
    %108 = vector.extract_strided_slice %104 {offsets = [0, 1, 0, 0], sizes = [5, 1, 8, 120], strides = [1, 1, 1, 1]} : vector<5x2x8x120xf32> to vector<5x1x8x120xf32>
    %109 = vector.shape_cast %108 : vector<5x1x8x120xf32> to vector<5x8x120xf32>
    %110 = vector.shape_cast %109 : vector<5x8x120xf32> to vector<40x120xf32>
    %c0_52 = arith.constant 0 : index
    %c0_53 = arith.constant 0 : index
    %111 = vector.load %arg13[%c0_52, %c0_53] : memref<120x60xf32, #tpu.memory_space<vmem>>, vector<120x60xf32>
    %c0_54 = arith.constant 0 : index
    %c0_55 = arith.constant 0 : index
    %112 = vector.load %arg14[%c0_54, %c0_55] : memref<120x60xf32, #tpu.memory_space<vmem>>, vector<120x60xf32>
    %cst_56 = arith.constant dense<0.000000e+00> : vector<40x60xf32>
    %113 = tpu.matmul %107, %111, %cst_56 {dimension_numbers = #tpu.dot_dimension_numbers<[1], [0], [0], [1], [0, 0, 1, 1], [], []>} : vector<40x120xf32>, vector<120x60xf32>, vector<40x60xf32> -> vector<40x60xf32>
    %cst_57 = arith.constant dense<0.000000e+00> : vector<40x60xf32>
    %114 = tpu.matmul %107, %112, %cst_57 {dimension_numbers = #tpu.dot_dimension_numbers<[1], [0], [0], [1], [0, 0, 1, 1], [], []>} : vector<40x120xf32>, vector<120x60xf32>, vector<40x60xf32> -> vector<40x60xf32>
    %cst_58 = arith.constant dense<0.000000e+00> : vector<40x60xf32>
    %115 = tpu.matmul %110, %111, %cst_58 {dimension_numbers = #tpu.dot_dimension_numbers<[1], [0], [0], [1], [0, 0, 1, 1], [], []>} : vector<40x120xf32>, vector<120x60xf32>, vector<40x60xf32> -> vector<40x60xf32>
    %cst_59 = arith.constant dense<0.000000e+00> : vector<40x60xf32>
    %116 = tpu.matmul %110, %112, %cst_59 {dimension_numbers = #tpu.dot_dimension_numbers<[1], [0], [0], [1], [0, 0, 1, 1], [], []>} : vector<40x120xf32>, vector<120x60xf32>, vector<40x60xf32> -> vector<40x60xf32>
    %117 = arith.cmpf oge, %113, %114 : vector<40x60xf32>
    %118 = arith.cmpf oge, %113, %115 : vector<40x60xf32>
    %119 = arith.andi %117, %118 : vector<40x60xi1>
    %120 = arith.cmpf oge, %113, %116 : vector<40x60xf32>
    %121 = arith.andi %119, %120 : vector<40x60xi1>
    %cst_60 = arith.constant dense<true> : vector<40x60xi1>
    %122 = arith.xori %121, %cst_60 : vector<40x60xi1>
    %123 = arith.cmpf oge, %114, %115 : vector<40x60xf32>
    %124 = arith.andi %122, %123 : vector<40x60xi1>
    %125 = arith.cmpf oge, %114, %116 : vector<40x60xf32>
    %126 = arith.andi %124, %125 : vector<40x60xi1>
    %127 = arith.ori %121, %126 : vector<40x60xi1>
    %cst_61 = arith.constant dense<true> : vector<40x60xi1>
    %128 = arith.xori %127, %cst_61 : vector<40x60xi1>
    %129 = arith.cmpf oge, %115, %116 : vector<40x60xf32>
    %130 = arith.andi %128, %129 : vector<40x60xi1>
    %131 = arith.ori %121, %126 : vector<40x60xi1>
    %132 = arith.ori %131, %130 : vector<40x60xi1>
    %cst_62 = arith.constant dense<true> : vector<40x60xi1>
    %133 = arith.xori %132, %cst_62 : vector<40x60xi1>
    %134 = arith.maximumf %113, %114 : vector<40x60xf32>
    %135 = arith.maximumf %115, %116 : vector<40x60xf32>
    %136 = arith.maximumf %134, %135 : vector<40x60xf32>
    %137 = vector.shape_cast %136 : vector<40x60xf32> to vector<5x8x60xf32>
    %138 = math.tanh %137 : vector<5x8x60xf32>
    %139 = arith.truncf %138 : vector<5x8x60xf32> to vector<5x8x60xbf16>
    %c2_63 = arith.constant 2 : index
    %c0_64 = arith.constant 0 : index
    %140 = vector.load %arg8[%c2_63, %c0_64] : memref<8x168xf32, #tpu.memory_space<vmem>>, vector<1x16xf32>
    %141 = vector.extract_strided_slice %139 {offsets = [0, 0, 0], sizes = [1, 8, 60], strides = [1, 1, 1]} : vector<5x8x60xbf16> to vector<1x8x60xbf16>
    %142 = vector.shape_cast %141 : vector<1x8x60xbf16> to vector<8x60xbf16>
    %c0_65 = arith.constant 0 : index
    %c0_66 = arith.constant 0 : index
    %c0_67 = arith.constant 0 : index
    %143 = vector.load %arg4[%c0_65, %c0_66, %c0_67] : memref<5x60x16xbf16, #tpu.memory_space<vmem>>, vector<1x60x16xbf16>
    %144 = vector.shape_cast %143 : vector<1x60x16xbf16> to vector<60x16xbf16>
    %cst_68 = arith.constant dense<0.000000e+00> : vector<8x16xf32>
    %145 = tpu.matmul %142, %144, %cst_68 {dimension_numbers = #tpu.dot_dimension_numbers<[1], [0], [0], [1], [0, 0, 1, 1], [], []>} : vector<8x60xbf16>, vector<60x16xbf16>, vector<8x16xf32> -> vector<8x16xf32>
    %146 = vector.extract_strided_slice %139 {offsets = [1, 0, 0], sizes = [1, 8, 60], strides = [1, 1, 1]} : vector<5x8x60xbf16> to vector<1x8x60xbf16>
    %147 = vector.shape_cast %146 : vector<1x8x60xbf16> to vector<8x60xbf16>
    %c1_69 = arith.constant 1 : index
    %c0_70 = arith.constant 0 : index
    %c0_71 = arith.constant 0 : index
    %148 = vector.load %arg4[%c1_69, %c0_70, %c0_71] : memref<5x60x16xbf16, #tpu.memory_space<vmem>>, vector<1x60x16xbf16>
    %149 = vector.shape_cast %148 : vector<1x60x16xbf16> to vector<60x16xbf16>
    %cst_72 = arith.constant dense<0.000000e+00> : vector<8x16xf32>
    %150 = tpu.matmul %147, %149, %cst_72 {dimension_numbers = #tpu.dot_dimension_numbers<[1], [0], [0], [1], [0, 0, 1, 1], [], []>} : vector<8x60xbf16>, vector<60x16xbf16>, vector<8x16xf32> -> vector<8x16xf32>
    %151 = arith.addf %145, %150 : vector<8x16xf32>
    %152 = vector.extract_strided_slice %139 {offsets = [2, 0, 0], sizes = [1, 8, 60], strides = [1, 1, 1]} : vector<5x8x60xbf16> to vector<1x8x60xbf16>
    %153 = vector.shape_cast %152 : vector<1x8x60xbf16> to vector<8x60xbf16>
    %c2_73 = arith.constant 2 : index
    %c0_74 = arith.constant 0 : index
    %c0_75 = arith.constant 0 : index
    %154 = vector.load %arg4[%c2_73, %c0_74, %c0_75] : memref<5x60x16xbf16, #tpu.memory_space<vmem>>, vector<1x60x16xbf16>
    %155 = vector.shape_cast %154 : vector<1x60x16xbf16> to vector<60x16xbf16>
    %cst_76 = arith.constant dense<0.000000e+00> : vector<8x16xf32>
    %156 = tpu.matmul %153, %155, %cst_76 {dimension_numbers = #tpu.dot_dimension_numbers<[1], [0], [0], [1], [0, 0, 1, 1], [], []>} : vector<8x60xbf16>, vector<60x16xbf16>, vector<8x16xf32> -> vector<8x16xf32>
    %157 = arith.addf %151, %156 : vector<8x16xf32>
    %158 = vector.extract_strided_slice %139 {offsets = [3, 0, 0], sizes = [1, 8, 60], strides = [1, 1, 1]} : vector<5x8x60xbf16> to vector<1x8x60xbf16>
    %159 = vector.shape_cast %158 : vector<1x8x60xbf16> to vector<8x60xbf16>
    %c3_77 = arith.constant 3 : index
    %c0_78 = arith.constant 0 : index
    %c0_79 = arith.constant 0 : index
    %160 = vector.load %arg4[%c3_77, %c0_78, %c0_79] : memref<5x60x16xbf16, #tpu.memory_space<vmem>>, vector<1x60x16xbf16>
    %161 = vector.shape_cast %160 : vector<1x60x16xbf16> to vector<60x16xbf16>
    %cst_80 = arith.constant dense<0.000000e+00> : vector<8x16xf32>
    %162 = tpu.matmul %159, %161, %cst_80 {dimension_numbers = #tpu.dot_dimension_numbers<[1], [0], [0], [1], [0, 0, 1, 1], [], []>} : vector<8x60xbf16>, vector<60x16xbf16>, vector<8x16xf32> -> vector<8x16xf32>
    %163 = arith.addf %157, %162 : vector<8x16xf32>
    %164 = vector.extract_strided_slice %139 {offsets = [4, 0, 0], sizes = [1, 8, 60], strides = [1, 1, 1]} : vector<5x8x60xbf16> to vector<1x8x60xbf16>
    %165 = vector.shape_cast %164 : vector<1x8x60xbf16> to vector<8x60xbf16>
    %c4_81 = arith.constant 4 : index
    %c0_82 = arith.constant 0 : index
    %c0_83 = arith.constant 0 : index
    %166 = vector.load %arg4[%c4_81, %c0_82, %c0_83] : memref<5x60x16xbf16, #tpu.memory_space<vmem>>, vector<1x60x16xbf16>
    %167 = vector.shape_cast %166 : vector<1x60x16xbf16> to vector<60x16xbf16>
    %cst_84 = arith.constant dense<0.000000e+00> : vector<8x16xf32>
    %168 = tpu.matmul %165, %167, %cst_84 {dimension_numbers = #tpu.dot_dimension_numbers<[1], [0], [0], [1], [0, 0, 1, 1], [], []>} : vector<8x60xbf16>, vector<60x16xbf16>, vector<8x16xf32> -> vector<8x16xf32>
    %169 = arith.addf %163, %168 : vector<8x16xf32>
    %170 = vector.broadcast %140 : vector<1x16xf32> to vector<8x16xf32>
    %171 = arith.addf %169, %170 : vector<8x16xf32>
    %172 = vector.shape_cast %171 : vector<8x16xf32> to vector<1x8x16xf32>
    %173 = math.tanh %172 : vector<1x8x16xf32>
    %cst_85 = arith.constant 0.000000e+00 : f32
    %174 = vector.broadcast %cst_85 : f32 to vector<4x8x16xf32>
    %175 = tpu.concatenate %174, %173, %174 in 0 : vector<4x8x16xf32>, vector<1x8x16xf32>, vector<4x8x16xf32> -> vector<9x8x16xf32>
    %176 = arith.truncf %175 : vector<9x8x16xf32> to vector<9x8x16xbf16>
    %c3_86 = arith.constant 3 : index
    %c0_87 = arith.constant 0 : index
    %177 = vector.load %arg8[%c3_86, %c0_87] : memref<8x168xf32, #tpu.memory_space<vmem>>, vector<1x60xf32>
    %178 = vector.extract_strided_slice %176 {offsets = [0, 0, 0], sizes = [5, 8, 16], strides = [1, 1, 1]} : vector<9x8x16xbf16> to vector<5x8x16xbf16>
    %179 = vector.shape_cast %178 : vector<5x8x16xbf16> to vector<40x16xbf16>
    %c0_88 = arith.constant 0 : index
    %c0_89 = arith.constant 0 : index
    %c0_90 = arith.constant 0 : index
    %180 = vector.load %arg5[%c0_88, %c0_89, %c0_90] : memref<5x16x60xbf16, #tpu.memory_space<vmem>>, vector<1x16x60xbf16>
    %181 = vector.shape_cast %180 : vector<1x16x60xbf16> to vector<16x60xbf16>
    %cst_91 = arith.constant dense<0.000000e+00> : vector<40x60xf32>
    %182 = tpu.matmul %179, %181, %cst_91 {dimension_numbers = #tpu.dot_dimension_numbers<[1], [0], [0], [1], [0, 0, 1, 1], [], []>} : vector<40x16xbf16>, vector<16x60xbf16>, vector<40x60xf32> -> vector<40x60xf32>
    %183 = vector.extract_strided_slice %176 {offsets = [1, 0, 0], sizes = [5, 8, 16], strides = [1, 1, 1]} : vector<9x8x16xbf16> to vector<5x8x16xbf16>
    %184 = vector.shape_cast %183 : vector<5x8x16xbf16> to vector<40x16xbf16>
    %c1_92 = arith.constant 1 : index
    %c0_93 = arith.constant 0 : index
    %c0_94 = arith.constant 0 : index
    %185 = vector.load %arg5[%c1_92, %c0_93, %c0_94] : memref<5x16x60xbf16, #tpu.memory_space<vmem>>, vector<1x16x60xbf16>
    %186 = vector.shape_cast %185 : vector<1x16x60xbf16> to vector<16x60xbf16>
    %cst_95 = arith.constant dense<0.000000e+00> : vector<40x60xf32>
    %187 = tpu.matmul %184, %186, %cst_95 {dimension_numbers = #tpu.dot_dimension_numbers<[1], [0], [0], [1], [0, 0, 1, 1], [], []>} : vector<40x16xbf16>, vector<16x60xbf16>, vector<40x60xf32> -> vector<40x60xf32>
    %188 = arith.addf %182, %187 : vector<40x60xf32>
    %189 = vector.extract_strided_slice %176 {offsets = [2, 0, 0], sizes = [5, 8, 16], strides = [1, 1, 1]} : vector<9x8x16xbf16> to vector<5x8x16xbf16>
    %190 = vector.shape_cast %189 : vector<5x8x16xbf16> to vector<40x16xbf16>
    %c2_96 = arith.constant 2 : index
    %c0_97 = arith.constant 0 : index
    %c0_98 = arith.constant 0 : index
    %191 = vector.load %arg5[%c2_96, %c0_97, %c0_98] : memref<5x16x60xbf16, #tpu.memory_space<vmem>>, vector<1x16x60xbf16>
    %192 = vector.shape_cast %191 : vector<1x16x60xbf16> to vector<16x60xbf16>
    %cst_99 = arith.constant dense<0.000000e+00> : vector<40x60xf32>
    %193 = tpu.matmul %190, %192, %cst_99 {dimension_numbers = #tpu.dot_dimension_numbers<[1], [0], [0], [1], [0, 0, 1, 1], [], []>} : vector<40x16xbf16>, vector<16x60xbf16>, vector<40x60xf32> -> vector<40x60xf32>
    %194 = arith.addf %188, %193 : vector<40x60xf32>
    %195 = vector.extract_strided_slice %176 {offsets = [3, 0, 0], sizes = [5, 8, 16], strides = [1, 1, 1]} : vector<9x8x16xbf16> to vector<5x8x16xbf16>
    %196 = vector.shape_cast %195 : vector<5x8x16xbf16> to vector<40x16xbf16>
    %c3_100 = arith.constant 3 : index
    %c0_101 = arith.constant 0 : index
    %c0_102 = arith.constant 0 : index
    %197 = vector.load %arg5[%c3_100, %c0_101, %c0_102] : memref<5x16x60xbf16, #tpu.memory_space<vmem>>, vector<1x16x60xbf16>
    %198 = vector.shape_cast %197 : vector<1x16x60xbf16> to vector<16x60xbf16>
    %cst_103 = arith.constant dense<0.000000e+00> : vector<40x60xf32>
    %199 = tpu.matmul %196, %198, %cst_103 {dimension_numbers = #tpu.dot_dimension_numbers<[1], [0], [0], [1], [0, 0, 1, 1], [], []>} : vector<40x16xbf16>, vector<16x60xbf16>, vector<40x60xf32> -> vector<40x60xf32>
    %200 = arith.addf %194, %199 : vector<40x60xf32>
    %201 = vector.extract_strided_slice %176 {offsets = [4, 0, 0], sizes = [5, 8, 16], strides = [1, 1, 1]} : vector<9x8x16xbf16> to vector<5x8x16xbf16>
    %202 = vector.shape_cast %201 : vector<5x8x16xbf16> to vector<40x16xbf16>
    %c4_104 = arith.constant 4 : index
    %c0_105 = arith.constant 0 : index
    %c0_106 = arith.constant 0 : index
    %203 = vector.load %arg5[%c4_104, %c0_105, %c0_106] : memref<5x16x60xbf16, #tpu.memory_space<vmem>>, vector<1x16x60xbf16>
    %204 = vector.shape_cast %203 : vector<1x16x60xbf16> to vector<16x60xbf16>
    %cst_107 = arith.constant dense<0.000000e+00> : vector<40x60xf32>
    %205 = tpu.matmul %202, %204, %cst_107 {dimension_numbers = #tpu.dot_dimension_numbers<[1], [0], [0], [1], [0, 0, 1, 1], [], []>} : vector<40x16xbf16>, vector<16x60xbf16>, vector<40x60xf32> -> vector<40x60xf32>
    %206 = arith.addf %200, %205 : vector<40x60xf32>
    %207 = vector.broadcast %177 : vector<1x60xf32> to vector<40x60xf32>
    %208 = arith.addf %206, %207 : vector<40x60xf32>
    %209 = vector.shape_cast %208 : vector<40x60xf32> to vector<5x8x60xf32>
    %210 = math.tanh %209 : vector<5x8x60xf32>
    %211 = vector.shape_cast %210 : vector<5x8x60xf32> to vector<40x60xf32>
    %cst_108 = arith.constant 0.000000e+00 : f32
    %212 = vector.broadcast %cst_108 : f32 to vector<40x60xf32>
    %c0_109 = arith.constant 0 : index
    %c0_110 = arith.constant 0 : index
    %213 = vector.load %arg15[%c0_109, %c0_110] : memref<60x120xf32, #tpu.memory_space<vmem>>, vector<60x120xf32>
    %c0_111 = arith.constant 0 : index
    %c0_112 = arith.constant 0 : index
    %214 = vector.load %arg16[%c0_111, %c0_112] : memref<60x120xf32, #tpu.memory_space<vmem>>, vector<60x120xf32>
    %215 = arith.select %121, %211, %212 : vector<40x60xi1>, vector<40x60xf32>
    %cst_113 = arith.constant dense<0.000000e+00> : vector<40x120xf32>
    %216 = tpu.matmul %215, %213, %cst_113 {dimension_numbers = #tpu.dot_dimension_numbers<[1], [0], [0], [1], [0, 0, 1, 1], [], []>} : vector<40x60xf32>, vector<60x120xf32>, vector<40x120xf32> -> vector<40x120xf32>
    %217 = arith.select %126, %211, %212 : vector<40x60xi1>, vector<40x60xf32>
    %cst_114 = arith.constant dense<0.000000e+00> : vector<40x120xf32>
    %218 = tpu.matmul %217, %214, %cst_114 {dimension_numbers = #tpu.dot_dimension_numbers<[1], [0], [0], [1], [0, 0, 1, 1], [], []>} : vector<40x60xf32>, vector<60x120xf32>, vector<40x120xf32> -> vector<40x120xf32>
    %219 = arith.addf %216, %218 : vector<40x120xf32>
    %220 = arith.select %130, %211, %212 : vector<40x60xi1>, vector<40x60xf32>
    %cst_115 = arith.constant dense<0.000000e+00> : vector<40x120xf32>
    %221 = tpu.matmul %220, %213, %cst_115 {dimension_numbers = #tpu.dot_dimension_numbers<[1], [0], [0], [1], [0, 0, 1, 1], [], []>} : vector<40x60xf32>, vector<60x120xf32>, vector<40x120xf32> -> vector<40x120xf32>
    %222 = arith.select %133, %211, %212 : vector<40x60xi1>, vector<40x60xf32>
    %cst_116 = arith.constant dense<0.000000e+00> : vector<40x120xf32>
    %223 = tpu.matmul %222, %214, %cst_116 {dimension_numbers = #tpu.dot_dimension_numbers<[1], [0], [0], [1], [0, 0, 1, 1], [], []>} : vector<40x60xf32>, vector<60x120xf32>, vector<40x120xf32> -> vector<40x120xf32>
    %224 = arith.addf %221, %223 : vector<40x120xf32>
    %225 = vector.shape_cast %219 : vector<40x120xf32> to vector<5x1x8x120xf32>
    %226 = vector.shape_cast %224 : vector<40x120xf32> to vector<5x1x8x120xf32>
    %227 = tpu.concatenate %225, %226 in 1 : vector<5x1x8x120xf32>, vector<5x1x8x120xf32> -> vector<5x2x8x120xf32>
    %228 = vector.shape_cast %227 : vector<5x2x8x120xf32> to vector<10x8x120xf32>
    %cst_117 = arith.constant 0.000000e+00 : f32
    %229 = vector.broadcast %cst_117 : f32 to vector<4x8x120xf32>
    %230 = tpu.concatenate %229, %228, %229 in 0 : vector<4x8x120xf32>, vector<10x8x120xf32>, vector<4x8x120xf32> -> vector<18x8x120xf32>
    %231 = arith.truncf %230 : vector<18x8x120xf32> to vector<18x8x120xbf16>
    %c4_118 = arith.constant 4 : index
    %c0_119 = arith.constant 0 : index
    %232 = vector.load %arg8[%c4_118, %c0_119] : memref<8x168xf32, #tpu.memory_space<vmem>>, vector<1x84xf32>
    %233 = vector.extract_strided_slice %231 {offsets = [0, 0, 0], sizes = [14, 8, 120], strides = [1, 1, 1]} : vector<18x8x120xbf16> to vector<14x8x120xbf16>
    %234 = vector.shape_cast %233 : vector<14x8x120xbf16> to vector<112x120xbf16>
    %c0_120 = arith.constant 0 : index
    %c0_121 = arith.constant 0 : index
    %c0_122 = arith.constant 0 : index
    %235 = vector.load %arg6[%c0_120, %c0_121, %c0_122] : memref<5x120x84xbf16, #tpu.memory_space<vmem>>, vector<1x120x84xbf16>
    %236 = vector.shape_cast %235 : vector<1x120x84xbf16> to vector<120x84xbf16>
    %cst_123 = arith.constant dense<0.000000e+00> : vector<112x84xf32>
    %237 = tpu.matmul %234, %236, %cst_123 {dimension_numbers = #tpu.dot_dimension_numbers<[1], [0], [0], [1], [0, 0, 1, 1], [], []>} : vector<112x120xbf16>, vector<120x84xbf16>, vector<112x84xf32> -> vector<112x84xf32>
    %238 = vector.extract_strided_slice %231 {offsets = [1, 0, 0], sizes = [14, 8, 120], strides = [1, 1, 1]} : vector<18x8x120xbf16> to vector<14x8x120xbf16>
    %239 = vector.shape_cast %238 : vector<14x8x120xbf16> to vector<112x120xbf16>
    %c1_124 = arith.constant 1 : index
    %c0_125 = arith.constant 0 : index
    %c0_126 = arith.constant 0 : index
    %240 = vector.load %arg6[%c1_124, %c0_125, %c0_126] : memref<5x120x84xbf16, #tpu.memory_space<vmem>>, vector<1x120x84xbf16>
    %241 = vector.shape_cast %240 : vector<1x120x84xbf16> to vector<120x84xbf16>
    %cst_127 = arith.constant dense<0.000000e+00> : vector<112x84xf32>
    %242 = tpu.matmul %239, %241, %cst_127 {dimension_numbers = #tpu.dot_dimension_numbers<[1], [0], [0], [1], [0, 0, 1, 1], [], []>} : vector<112x120xbf16>, vector<120x84xbf16>, vector<112x84xf32> -> vector<112x84xf32>
    %243 = arith.addf %237, %242 : vector<112x84xf32>
    %244 = vector.extract_strided_slice %231 {offsets = [2, 0, 0], sizes = [14, 8, 120], strides = [1, 1, 1]} : vector<18x8x120xbf16> to vector<14x8x120xbf16>
    %245 = vector.shape_cast %244 : vector<14x8x120xbf16> to vector<112x120xbf16>
    %c2_128 = arith.constant 2 : index
    %c0_129 = arith.constant 0 : index
    %c0_130 = arith.constant 0 : index
    %246 = vector.load %arg6[%c2_128, %c0_129, %c0_130] : memref<5x120x84xbf16, #tpu.memory_space<vmem>>, vector<1x120x84xbf16>
    %247 = vector.shape_cast %246 : vector<1x120x84xbf16> to vector<120x84xbf16>
    %cst_131 = arith.constant dense<0.000000e+00> : vector<112x84xf32>
    %248 = tpu.matmul %245, %247, %cst_131 {dimension_numbers = #tpu.dot_dimension_numbers<[1], [0], [0], [1], [0, 0, 1, 1], [], []>} : vector<112x120xbf16>, vector<120x84xbf16>, vector<112x84xf32> -> vector<112x84xf32>
    %249 = arith.addf %243, %248 : vector<112x84xf32>
    %250 = vector.extract_strided_slice %231 {offsets = [3, 0, 0], sizes = [14, 8, 120], strides = [1, 1, 1]} : vector<18x8x120xbf16> to vector<14x8x120xbf16>
    %251 = vector.shape_cast %250 : vector<14x8x120xbf16> to vector<112x120xbf16>
    %c3_132 = arith.constant 3 : index
    %c0_133 = arith.constant 0 : index
    %c0_134 = arith.constant 0 : index
    %252 = vector.load %arg6[%c3_132, %c0_133, %c0_134] : memref<5x120x84xbf16, #tpu.memory_space<vmem>>, vector<1x120x84xbf16>
    %253 = vector.shape_cast %252 : vector<1x120x84xbf16> to vector<120x84xbf16>
    %cst_135 = arith.constant dense<0.000000e+00> : vector<112x84xf32>
    %254 = tpu.matmul %251, %253, %cst_135 {dimension_numbers = #tpu.dot_dimension_numbers<[1], [0], [0], [1], [0, 0, 1, 1], [], []>} : vector<112x120xbf16>, vector<120x84xbf16>, vector<112x84xf32> -> vector<112x84xf32>
    %255 = arith.addf %249, %254 : vector<112x84xf32>
    %256 = vector.extract_strided_slice %231 {offsets = [4, 0, 0], sizes = [14, 8, 120], strides = [1, 1, 1]} : vector<18x8x120xbf16> to vector<14x8x120xbf16>
    %257 = vector.shape_cast %256 : vector<14x8x120xbf16> to vector<112x120xbf16>
    %c4_136 = arith.constant 4 : index
    %c0_137 = arith.constant 0 : index
    %c0_138 = arith.constant 0 : index
    %258 = vector.load %arg6[%c4_136, %c0_137, %c0_138] : memref<5x120x84xbf16, #tpu.memory_space<vmem>>, vector<1x120x84xbf16>
    %259 = vector.shape_cast %258 : vector<1x120x84xbf16> to vector<120x84xbf16>
    %cst_139 = arith.constant dense<0.000000e+00> : vector<112x84xf32>
    %260 = tpu.matmul %257, %259, %cst_139 {dimension_numbers = #tpu.dot_dimension_numbers<[1], [0], [0], [1], [0, 0, 1, 1], [], []>} : vector<112x120xbf16>, vector<120x84xbf16>, vector<112x84xf32> -> vector<112x84xf32>
    %261 = arith.addf %255, %260 : vector<112x84xf32>
    %262 = vector.broadcast %232 : vector<1x84xf32> to vector<112x84xf32>
    %263 = arith.addf %261, %262 : vector<112x84xf32>
    %264 = vector.shape_cast %263 : vector<112x84xf32> to vector<14x8x84xf32>
    %265 = math.tanh %264 : vector<14x8x84xf32>
    %266 = vector.shape_cast %265 : vector<14x8x84xf32> to vector<112x84xf32>
    %cst_140 = arith.constant 0.000000e+00 : f32
    %267 = vector.broadcast %cst_140 : f32 to vector<112x84xf32>
    %c0_141 = arith.constant 0 : index
    %c0_142 = arith.constant 0 : index
    %268 = vector.load %arg11[%c0_141, %c0_142] : memref<84x168xf32, #tpu.memory_space<vmem>>, vector<84x168xf32>
    %c0_143 = arith.constant 0 : index
    %c0_144 = arith.constant 0 : index
    %269 = vector.load %arg12[%c0_143, %c0_144] : memref<84x168xf32, #tpu.memory_space<vmem>>, vector<84x168xf32>
    %270 = arith.select %52, %266, %267 : vector<112x84xi1>, vector<112x84xf32>
    %cst_145 = arith.constant dense<0.000000e+00> : vector<112x168xf32>
    %271 = tpu.matmul %270, %268, %cst_145 {dimension_numbers = #tpu.dot_dimension_numbers<[1], [0], [0], [1], [0, 0, 1, 1], [], []>} : vector<112x84xf32>, vector<84x168xf32>, vector<112x168xf32> -> vector<112x168xf32>
    %272 = arith.select %57, %266, %267 : vector<112x84xi1>, vector<112x84xf32>
    %cst_146 = arith.constant dense<0.000000e+00> : vector<112x168xf32>
    %273 = tpu.matmul %272, %269, %cst_146 {dimension_numbers = #tpu.dot_dimension_numbers<[1], [0], [0], [1], [0, 0, 1, 1], [], []>} : vector<112x84xf32>, vector<84x168xf32>, vector<112x168xf32> -> vector<112x168xf32>
    %274 = arith.addf %271, %273 : vector<112x168xf32>
    %275 = arith.select %61, %266, %267 : vector<112x84xi1>, vector<112x84xf32>
    %cst_147 = arith.constant dense<0.000000e+00> : vector<112x168xf32>
    %276 = tpu.matmul %275, %268, %cst_147 {dimension_numbers = #tpu.dot_dimension_numbers<[1], [0], [0], [1], [0, 0, 1, 1], [], []>} : vector<112x84xf32>, vector<84x168xf32>, vector<112x168xf32> -> vector<112x168xf32>
    %277 = arith.select %64, %266, %267 : vector<112x84xi1>, vector<112x84xf32>
    %cst_148 = arith.constant dense<0.000000e+00> : vector<112x168xf32>
    %278 = tpu.matmul %277, %269, %cst_148 {dimension_numbers = #tpu.dot_dimension_numbers<[1], [0], [0], [1], [0, 0, 1, 1], [], []>} : vector<112x84xf32>, vector<84x168xf32>, vector<112x168xf32> -> vector<112x168xf32>
    %279 = arith.addf %276, %278 : vector<112x168xf32>
    %280 = vector.shape_cast %274 : vector<112x168xf32> to vector<14x1x8x168xf32>
    %281 = vector.shape_cast %279 : vector<112x168xf32> to vector<14x1x8x168xf32>
    %282 = tpu.concatenate %280, %281 in 1 : vector<14x1x8x168xf32>, vector<14x1x8x168xf32> -> vector<14x2x8x168xf32>
    %283 = vector.shape_cast %282 : vector<14x2x8x168xf32> to vector<28x8x168xf32>
    %cst_149 = arith.constant 0.000000e+00 : f32
    %284 = vector.broadcast %cst_149 : f32 to vector<4x8x168xf32>
    %285 = tpu.concatenate %284, %283, %284 in 0 : vector<4x8x168xf32>, vector<28x8x168xf32>, vector<4x8x168xf32> -> vector<36x8x168xf32>
    %286 = arith.truncf %285 : vector<36x8x168xf32> to vector<36x8x168xbf16>
    %c5 = arith.constant 5 : index
    %c0_150 = arith.constant 0 : index
    %287 = vector.load %arg8[%c5, %c0_150] : memref<8x168xf32, #tpu.memory_space<vmem>>, vector<1x128xf32>
    %288 = vector.extract_strided_slice %286 {offsets = [0, 0, 0], sizes = [32, 8, 168], strides = [1, 1, 1]} : vector<36x8x168xbf16> to vector<32x8x168xbf16>
    %289 = vector.shape_cast %288 : vector<32x8x168xbf16> to vector<256x168xbf16>
    %c0_151 = arith.constant 0 : index
    %c0_152 = arith.constant 0 : index
    %c0_153 = arith.constant 0 : index
    %290 = vector.load %arg7[%c0_151, %c0_152, %c0_153] : memref<5x168x128xbf16, #tpu.memory_space<vmem>>, vector<1x168x128xbf16>
    %291 = vector.shape_cast %290 : vector<1x168x128xbf16> to vector<168x128xbf16>
    %cst_154 = arith.constant dense<0.000000e+00> : vector<256x128xf32>
    %292 = tpu.matmul %289, %291, %cst_154 {dimension_numbers = #tpu.dot_dimension_numbers<[1], [0], [0], [1], [0, 0, 1, 1], [], []>} : vector<256x168xbf16>, vector<168x128xbf16>, vector<256x128xf32> -> vector<256x128xf32>
    %293 = vector.extract_strided_slice %286 {offsets = [1, 0, 0], sizes = [32, 8, 168], strides = [1, 1, 1]} : vector<36x8x168xbf16> to vector<32x8x168xbf16>
    %294 = vector.shape_cast %293 : vector<32x8x168xbf16> to vector<256x168xbf16>
    %c1_155 = arith.constant 1 : index
    %c0_156 = arith.constant 0 : index
    %c0_157 = arith.constant 0 : index
    %295 = vector.load %arg7[%c1_155, %c0_156, %c0_157] : memref<5x168x128xbf16, #tpu.memory_space<vmem>>, vector<1x168x128xbf16>
    %296 = vector.shape_cast %295 : vector<1x168x128xbf16> to vector<168x128xbf16>
    %cst_158 = arith.constant dense<0.000000e+00> : vector<256x128xf32>
    %297 = tpu.matmul %294, %296, %cst_158 {dimension_numbers = #tpu.dot_dimension_numbers<[1], [0], [0], [1], [0, 0, 1, 1], [], []>} : vector<256x168xbf16>, vector<168x128xbf16>, vector<256x128xf32> -> vector<256x128xf32>
    %298 = arith.addf %292, %297 : vector<256x128xf32>
    %299 = vector.extract_strided_slice %286 {offsets = [2, 0, 0], sizes = [32, 8, 168], strides = [1, 1, 1]} : vector<36x8x168xbf16> to vector<32x8x168xbf16>
    %300 = vector.shape_cast %299 : vector<32x8x168xbf16> to vector<256x168xbf16>
    %c2_159 = arith.constant 2 : index
    %c0_160 = arith.constant 0 : index
    %c0_161 = arith.constant 0 : index
    %301 = vector.load %arg7[%c2_159, %c0_160, %c0_161] : memref<5x168x128xbf16, #tpu.memory_space<vmem>>, vector<1x168x128xbf16>
    %302 = vector.shape_cast %301 : vector<1x168x128xbf16> to vector<168x128xbf16>
    %cst_162 = arith.constant dense<0.000000e+00> : vector<256x128xf32>
    %303 = tpu.matmul %300, %302, %cst_162 {dimension_numbers = #tpu.dot_dimension_numbers<[1], [0], [0], [1], [0, 0, 1, 1], [], []>} : vector<256x168xbf16>, vector<168x128xbf16>, vector<256x128xf32> -> vector<256x128xf32>
    %304 = arith.addf %298, %303 : vector<256x128xf32>
    %305 = vector.extract_strided_slice %286 {offsets = [3, 0, 0], sizes = [32, 8, 168], strides = [1, 1, 1]} : vector<36x8x168xbf16> to vector<32x8x168xbf16>
    %306 = vector.shape_cast %305 : vector<32x8x168xbf16> to vector<256x168xbf16>
    %c3_163 = arith.constant 3 : index
    %c0_164 = arith.constant 0 : index
    %c0_165 = arith.constant 0 : index
    %307 = vector.load %arg7[%c3_163, %c0_164, %c0_165] : memref<5x168x128xbf16, #tpu.memory_space<vmem>>, vector<1x168x128xbf16>
    %308 = vector.shape_cast %307 : vector<1x168x128xbf16> to vector<168x128xbf16>
    %cst_166 = arith.constant dense<0.000000e+00> : vector<256x128xf32>
    %309 = tpu.matmul %306, %308, %cst_166 {dimension_numbers = #tpu.dot_dimension_numbers<[1], [0], [0], [1], [0, 0, 1, 1], [], []>} : vector<256x168xbf16>, vector<168x128xbf16>, vector<256x128xf32> -> vector<256x128xf32>
    %310 = arith.addf %304, %309 : vector<256x128xf32>
    %311 = vector.extract_strided_slice %286 {offsets = [4, 0, 0], sizes = [32, 8, 168], strides = [1, 1, 1]} : vector<36x8x168xbf16> to vector<32x8x168xbf16>
    %312 = vector.shape_cast %311 : vector<32x8x168xbf16> to vector<256x168xbf16>
    %c4_167 = arith.constant 4 : index
    %c0_168 = arith.constant 0 : index
    %c0_169 = arith.constant 0 : index
    %313 = vector.load %arg7[%c4_167, %c0_168, %c0_169] : memref<5x168x128xbf16, #tpu.memory_space<vmem>>, vector<1x168x128xbf16>
    %314 = vector.shape_cast %313 : vector<1x168x128xbf16> to vector<168x128xbf16>
    %cst_170 = arith.constant dense<0.000000e+00> : vector<256x128xf32>
    %315 = tpu.matmul %312, %314, %cst_170 {dimension_numbers = #tpu.dot_dimension_numbers<[1], [0], [0], [1], [0, 0, 1, 1], [], []>} : vector<256x168xbf16>, vector<168x128xbf16>, vector<256x128xf32> -> vector<256x128xf32>
    %316 = arith.addf %310, %315 : vector<256x128xf32>
    %317 = vector.broadcast %287 : vector<1x128xf32> to vector<256x128xf32>
    %318 = arith.addf %316, %317 : vector<256x128xf32>
    %319 = vector.shape_cast %318 : vector<256x128xf32> to vector<32x8x128xf32>
    %cst_171 = arith.constant 0.000000e+00 : f32
    %320 = vector.broadcast %cst_171 : f32 to vector<32x8x128xf32>
    %321 = arith.maximumf %319, %320 : vector<32x8x128xf32>
    %c0_172 = arith.constant 0 : index
    %c0_173 = arith.constant 0 : index
    %c0_174 = arith.constant 0 : index
    %322 = vector.load %arg17[%c0_172, %c0_173, %c0_174] : memref<32x8x128xf32, #tpu.memory_space<vmem>>, vector<32x8x128xf32>
    tpu.vector_store %arg17[%c0_172, %c0_173, %c0_174], %321 {strides = array<i32>} : memref<32x8x128xf32, #tpu.memory_space<vmem>>, vector<32x8x128xf32>,
    return
  }
  func.func @transform_0(%arg0: i32) -> (i32, i32, i32) {
    %c0_i32 = arith.constant 0 : i32
    %c0_i32_0 = arith.constant 0 : i32
    %c0_i32_1 = arith.constant 0 : i32
    return %c0_i32, %arg0, %c0_i32_0 : i32, i32, i32
  }
  func.func @transform_1(%arg0: i32) -> (i32, i32, i32) {
    %c0_i32 = arith.constant 0 : i32
    %c0_i32_0 = arith.constant 0 : i32
    %c0_i32_1 = arith.constant 0 : i32
    %c0_i32_2 = arith.constant 0 : i32
    return %c0_i32, %c0_i32_0, %c0_i32_1 : i32, i32, i32
  }
  func.func @transform_2(%arg0: i32) -> (i32, i32, i32) {
    %c0_i32 = arith.constant 0 : i32
    %c0_i32_0 = arith.constant 0 : i32
    %c0_i32_1 = arith.constant 0 : i32
    %c0_i32_2 = arith.constant 0 : i32
    return %c0_i32, %c0_i32_0, %c0_i32_1 : i32, i32, i32
  }
  func.func @transform_3(%arg0: i32) -> (i32, i32, i32) {
    %c0_i32 = arith.constant 0 : i32
    %c0_i32_0 = arith.constant 0 : i32
    %c0_i32_1 = arith.constant 0 : i32
    %c0_i32_2 = arith.constant 0 : i32
    return %c0_i32, %c0_i32_0, %c0_i32_1 : i32, i32, i32
  }
  func.func @transform_4(%arg0: i32) -> (i32, i32, i32) {
    %c0_i32 = arith.constant 0 : i32
    %c0_i32_0 = arith.constant 0 : i32
    %c0_i32_1 = arith.constant 0 : i32
    %c0_i32_2 = arith.constant 0 : i32
    return %c0_i32, %c0_i32_0, %c0_i32_1 : i32, i32, i32
  }
  func.func @transform_5(%arg0: i32) -> (i32, i32, i32) {
    %c0_i32 = arith.constant 0 : i32
    %c0_i32_0 = arith.constant 0 : i32
    %c0_i32_1 = arith.constant 0 : i32
    %c0_i32_2 = arith.constant 0 : i32
    return %c0_i32, %c0_i32_0, %c0_i32_1 : i32, i32, i32
  }
  func.func @transform_6(%arg0: i32) -> (i32, i32, i32) {
    %c0_i32 = arith.constant 0 : i32
    %c0_i32_0 = arith.constant 0 : i32
    %c0_i32_1 = arith.constant 0 : i32
    %c0_i32_2 = arith.constant 0 : i32
    return %c0_i32, %c0_i32_0, %c0_i32_1 : i32, i32, i32
  }
  func.func @transform_7(%arg0: i32) -> (i32, i32) {
    %c0_i32 = arith.constant 0 : i32
    %c0_i32_0 = arith.constant 0 : i32
    %c0_i32_1 = arith.constant 0 : i32
    return %c0_i32, %c0_i32_0 : i32, i32
  }
  func.func @transform_8(%arg0: i32) -> (i32, i32) {
    %c0_i32 = arith.constant 0 : i32
    %c0_i32_0 = arith.constant 0 : i32
    %c0_i32_1 = arith.constant 0 : i32
    return %c0_i32, %c0_i32_0 : i32, i32
  }
  func.func @transform_9(%arg0: i32) -> (i32, i32) {
    %c0_i32 = arith.constant 0 : i32
    %c0_i32_0 = arith.constant 0 : i32
    %c0_i32_1 = arith.constant 0 : i32
    return %c0_i32, %c0_i32_0 : i32, i32
  }
  func.func @transform_10(%arg0: i32) -> (i32, i32) {
    %c0_i32 = arith.constant 0 : i32
    %c0_i32_0 = arith.constant 0 : i32
    %c0_i32_1 = arith.constant 0 : i32
    return %c0_i32, %c0_i32_0 : i32, i32
  }
  func.func @transform_11(%arg0: i32) -> (i32, i32) {
    %c0_i32 = arith.constant 0 : i32
    %c0_i32_0 = arith.constant 0 : i32
    %c0_i32_1 = arith.constant 0 : i32
    return %c0_i32, %c0_i32_0 : i32, i32
  }
  func.func @transform_12(%arg0: i32) -> (i32, i32) {
    %c0_i32 = arith.constant 0 : i32
    %c0_i32_0 = arith.constant 0 : i32
    %c0_i32_1 = arith.constant 0 : i32
    return %c0_i32, %c0_i32_0 : i32, i32
  }
  func.func @transform_13(%arg0: i32) -> (i32, i32) {
    %c0_i32 = arith.constant 0 : i32
    %c0_i32_0 = arith.constant 0 : i32
    %c0_i32_1 = arith.constant 0 : i32
    return %c0_i32, %c0_i32_0 : i32, i32
  }
  func.func @transform_14(%arg0: i32) -> (i32, i32) {
    %c0_i32 = arith.constant 0 : i32
    %c0_i32_0 = arith.constant 0 : i32
    %c0_i32_1 = arith.constant 0 : i32
    return %c0_i32, %c0_i32_0 : i32, i32
  }
  func.func @transform_15(%arg0: i32) -> (i32, i32) {
    %c0_i32 = arith.constant 0 : i32
    %c0_i32_0 = arith.constant 0 : i32
    %c0_i32_1 = arith.constant 0 : i32
    return %c0_i32, %c0_i32_0 : i32, i32
  }
  func.func @transform_16(%arg0: i32) -> (i32, i32, i32) {
    %c0_i32 = arith.constant 0 : i32
    %c0_i32_0 = arith.constant 0 : i32
    %c0_i32_1 = arith.constant 0 : i32
    return %c0_i32, %arg0, %c0_i32_0 : i32, i32, i32
  }
}

</mosaic_0001>

<llo_original>
// kernel: tile.48
$region0: #{tile.48}
  #allocation0 [shape = 's32[1]{0}', space=sflag, size = 0x4, scoped, tag = 'scoped memory for tile.48']
  %s0 = inlined_call_operand.vmem [shape: f32[4], index: 0, kind: input, shape index: {}]
  %s1 = inlined_call_operand.vmem [shape: f32[32,4], index: 1, kind: output, shape index: {}]
  // Predicated region
  $region2: #{tile.48} parent=0 // pred_check
    _
  $region3: #{tile.48} parent=0 // pred_check_branch
    %3 = sbr.rel (0) target = $region5
  $region4: #{tile.48} parent=0 // pred_region
    _
  $region5: #{tile.48} parent=0 // pred_fallthru
    _
  %v4 = vld [vmem:[%s0] ss:$0 sm:$0xff]
  %5 = vst [vmem:[%s1] sm:$0xff] %v4
  %s6 = scalar_lea.vmem %s1, 8
  %7 = vst [vmem:[%s6] sm:$0xff] %v4
  %s8 = scalar_lea.vmem %s1, 16
  %9 = vst [vmem:[%s8] sm:$0xff] %v4
  %s10 = scalar_lea.vmem %s1, 24
  %11 = vst [vmem:[%s10] sm:$0xff] %v4

// kernel: tile.49
$region0: #{tile.49}
  %s0 = inlined_call_operand.vmem [shape: f32[32,4], index: 0, kind: input, shape index: {}]
  %s1 = inlined_call_operand.vmem [shape: f32[128], index: 1, kind: output, shape index: {}]
  $region1: #{tile.49} parent=0
    #allocation0 [shape = 'u8[4096]{0}', space=vmem, size = 0x1000, scoped, tag = 'scoped mem for output reshape']
    %v2 = vld [vmem:[%s0] sm:$0x1]
    %vm3 = vcmask 31744
    %4 = vst.msk [vmem:[#allocation0] sm:$0x1] %vm3, %v2
    %s5 = scalar_lea.vmem %s0, 31
    %v6 = vld [vmem:[%s5] sm:$0x1]
    %7 = vrot.lane.b32.xlu0 %v6, 124
    %v8 = vpop.permute.xlu0 %7
    %vm9 = vcmask 1048544
    %10 = vst.msk [vmem:[#allocation0] sm:$0x1] %vm9, %v8
    %s11 = scalar_lea.vmem %s0, 30
    %v12 = vld [vmem:[%s11] sm:$0x1]
    %13 = vrot.lane.b32.xlu0 %v12, 120
    %v14 = vpop.permute.xlu0 %13
    %vm15 = vcmask 1015744
    %16 = vst.msk [vmem:[#allocation0] sm:$0x1] %vm15, %v14
    %s17 = scalar_lea.vmem %s0, 29
    %v18 = vld [vmem:[%s17] sm:$0x1]
    %19 = vrot.lane.b32.xlu0 %v18, 116
    %v20 = vpop.permute.xlu0 %19
    %vm21 = vcmask 982944
    %22 = vst.msk [vmem:[#allocation0] sm:$0x1] %vm21, %v20
    %s23 = scalar_lea.vmem %s0, 28
    %v24 = vld [vmem:[%s23] sm:$0x1]
    %25 = vrot.lane.b32.xlu0 %v24, 112
    %v26 = vpop.permute.xlu0 %25
    %vm27 = vcmask 950144
    %28 = vst.msk [vmem:[#allocation0] sm:$0x1] %vm27, %v26
    %s29 = scalar_lea.vmem %s0, 27
    %v30 = vld [vmem:[%s29] sm:$0x1]
    %31 = vrot.lane.b32.xlu0 %v30, 108
    %v32 = vpop.permute.xlu0 %31
    %vm33 = vcmask 917344
    %34 = vst.msk [vmem:[#allocation0] sm:$0x1] %vm33, %v32
    %s35 = scalar_lea.vmem %s0, 26
    %v36 = vld [vmem:[%s35] sm:$0x1]
    %37 = vrot.lane.b32.xlu0 %v36, 104
    %v38 = vpop.permute.xlu0 %37
    %vm39 = vcmask 884544
    %40 = vst.msk [vmem:[#allocation0] sm:$0x1] %vm39, %v38
    %s41 = scalar_lea.vmem %s0, 25
    %v42 = vld [vmem:[%s41] sm:$0x1]
    %43 = vrot.lane.b32.xlu0 %v42, 100
    %v44 = vpop.permute.xlu0 %43
    %vm45 = vcmask 851744
    %46 = vst.msk [vmem:[#allocation0] sm:$0x1] %vm45, %v44
    %s47 = scalar_lea.vmem %s0, 24
    %v48 = vld [vmem:[%s47] sm:$0x1]
    %49 = vrot.lane.b32.xlu0 %v48, 96
    %v50 = vpop.permute.xlu0 %49
    %vm51 = vcmask 818944
    %52 = vst.msk [vmem:[#allocation0] sm:$0x1] %vm51, %v50
    %s53 = scalar_lea.vmem %s0, 23
    %v54 = vld [vmem:[%s53] sm:$0x1]
    %55 = vrot.lane.b32.xlu0 %v54, 92
    %v56 = vpop.permute.xlu0 %55
    %vm57 = vcmask 786144
    %58 = vst.msk [vmem:[#allocation0] sm:$0x1] %vm57, %v56
    %s59 = scalar_lea.vmem %s0, 22
    %v60 = vld [vmem:[%s59] sm:$0x1]
    %61 = vrot.lane.b32.xlu0 %v60, 88
    %v62 = vpop.permute.xlu0 %61
    %vm63 = vcmask 753344
    %64 = vst.msk [vmem:[#allocation0] sm:$0x1] %vm63, %v62
    %s65 = scalar_lea.vmem %s0, 21
    %v66 = vld [vmem:[%s65] sm:$0x1]
    %67 = vrot.lane.b32.xlu0 %v66, 84
    %v68 = vpop.permute.xlu0 %67
    %vm69 = vcmask 720544
    %70 = vst.msk [vmem:[#allocation0] sm:$0x1] %vm69, %v68
    %s71 = scalar_lea.vmem %s0, 20
    %v72 = vld [vmem:[%s71] sm:$0x1]
    %73 = vrot.lane.b32.xlu0 %v72, 80
    %v74 = vpop.permute.xlu0 %73
    %vm75 = vcmask 687744
    %76 = vst.msk [vmem:[#allocation0] sm:$0x1] %vm75, %v74
    %s77 = scalar_lea.vmem %s0, 19
    %v78 = vld [vmem:[%s77] sm:$0x1]
    %79 = vrot.lane.b32.xlu0 %v78, 76
    %v80 = vpop.permute.xlu0 %79
    %vm81 = vcmask 654944
    %82 = vst.msk [vmem:[#allocation0] sm:$0x1] %vm81, %v80
    %s83 = scalar_lea.vmem %s0, 18
    %v84 = vld [vmem:[%s83] sm:$0x1]
    %85 = vrot.lane.b32.xlu0 %v84, 72
    %v86 = vpop.permute.xlu0 %85
    %vm87 = vcmask 622144
    %88 = vst.msk [vmem:[#allocation0] sm:$0x1] %vm87, %v86
    %s89 = scalar_lea.vmem %s0, 17
    %v90 = vld [vmem:[%s89] sm:$0x1]
    %91 = vrot.lane.b32.xlu0 %v90, 68
    %v92 = vpop.permute.xlu0 %91
    %vm93 = vcmask 589344
    %94 = vst.msk [vmem:[#allocation0] sm:$0x1] %vm93, %v92
    %s95 = scalar_lea.vmem %s0, 16
    %v96 = vld [vmem:[%s95] sm:$0x1]
    %97 = vrot.lane.b32.xlu0 %v96, 64
    %v98 = vpop.permute.xlu0 %97
    %vm99 = vcmask 556544
    %100 = vst.msk [vmem:[#allocation0] sm:$0x1] %vm99, %v98
    %s101 = scalar_lea.vmem %s0, 15
    %v102 = vld [vmem:[%s101] sm:$0x1]
    %103 = vrot.lane.b32.xlu0 %v102, 60
    %v104 = vpop.permute.xlu0 %103
    %vm105 = vcmask 523744
    %106 = vst.msk [vmem:[#allocation0] sm:$0x1] %vm105, %v104
    %s107 = scalar_lea.vmem %s0, 14
    %v108 = vld [vmem:[%s107] sm:$0x1]
    %109 = vrot.lane.b32.xlu0 %v108, 56
    %v110 = vpop.permute.xlu0 %109
    %vm111 = vcmask 490944
    %112 = vst.msk [vmem:[#allocation0] sm:$0x1] %vm111, %v110
    %s113 = scalar_lea.vmem %s0, 13
    %v114 = vld [vmem:[%s113] sm:$0x1]
    %115 = vrot.lane.b32.xlu0 %v114, 52
    %v116 = vpop.permute.xlu0 %115
    %vm117 = vcmask 458144
    %118 = vst.msk [vmem:[#allocation0] sm:$0x1] %vm117, %v116
    %s119 = scalar_lea.vmem %s0, 12
    %v120 = vld [vmem:[%s119] sm:$0x1]
    %121 = vrot.lane.b32.xlu0 %v120, 48
    %v122 = vpop.permute.xlu0 %121
    %vm123 = vcmask 425344
    %124 = vst.msk [vmem:[#allocation0] sm:$0x1] %vm123, %v122
    %s125 = scalar_lea.vmem %s0, 11
    %v126 = vld [vmem:[%s125] sm:$0x1]
    %127 = vrot.lane.b32.xlu0 %v126, 44
    %v128 = vpop.permute.xlu0 %127
    %vm129 = vcmask 392544
    %130 = vst.msk [vmem:[#allocation0] sm:$0x1] %vm129, %v128
    %s131 = scalar_lea.vmem %s0, 10
    %v132 = vld [vmem:[%s131] sm:$0x1]
    %133 = vrot.lane.b32.xlu0 %v132, 40
    %v134 = vpop.permute.xlu0 %133
    %vm135 = vcmask 359744
    %136 = vst.msk [vmem:[#allocation0] sm:$0x1] %vm135, %v134
    %s137 = scalar_lea.vmem %s0, 9
    %v138 = vld [vmem:[%s137] sm:$0x1]
    %139 = vrot.lane.b32.xlu0 %v138, 36
    %v140 = vpop.permute.xlu0 %139
    %vm141 = vcmask 326944
    %142 = vst.msk [vmem:[#allocation0] sm:$0x1] %vm141, %v140
    %s143 = scalar_lea.vmem %s0, 8
    %v144 = vld [vmem:[%s143] sm:$0x1]
    %145 = vrot.lane.b32.xlu0 %v144, 32
    %v146 = vpop.permute.xlu0 %145
    %vm147 = vcmask 294144
    %148 = vst.msk [vmem:[#allocation0] sm:$0x1] %vm147, %v146
    %s149 = scalar_lea.vmem %s0, 7
    %v150 = vld [vmem:[%s149] sm:$0x1]
    %151 = vrot.lane.b32.xlu0 %v150, 28
    %v152 = vpop.permute.xlu0 %151
    %vm153 = vcmask 261344
    %154 = vst.msk [vmem:[#allocation0] sm:$0x1] %vm153, %v152
    %s155 = scalar_lea.vmem %s0, 6
    %v156 = vld [vmem:[%s155] sm:$0x1]
    %157 = vrot.lane.b32.xlu0 %v156, 24
    %v158 = vpop.permute.xlu0 %157
    %vm159 = vcmask 228544
    %160 = vst.msk [vmem:[#allocation0] sm:$0x1] %vm159, %v158
    %s161 = scalar_lea.vmem %s0, 5
    %v162 = vld [vmem:[%s161] sm:$0x1]
    %163 = vrot.lane.b32.xlu0 %v162, 20
    %v164 = vpop.permute.xlu0 %163
    %vm165 = vcmask 195744
    %166 = vst.msk [vmem:[#allocation0] sm:$0x1] %vm165, %v164
    %s167 = scalar_lea.vmem %s0, 4
    %v168 = vld [vmem:[%s167] sm:$0x1]
    %169 = vrot.lane.b32.xlu0 %v168, 16
    %v170 = vpop.permute.xlu0 %169
    %vm171 = vcmask 162944
    %172 = vst.msk [vmem:[#allocation0] sm:$0x1] %vm171, %v170
    %s173 = scalar_lea.vmem %s0, 3
    %v174 = vld [vmem:[%s173] sm:$0x1]
    %175 = vrot.lane.b32.xlu0 %v174, 12
    %v176 = vpop.permute.xlu0 %175
    %vm177 = vcmask 130144
    %178 = vst.msk [vmem:[#allocation0] sm:$0x1] %vm177, %v176
    %s179 = scalar_lea.vmem %s0, 2
    %v180 = vld [vmem:[%s179] sm:$0x1]
    %181 = vrot.lane.b32.xlu0 %v180, 8
    %v182 = vpop.permute.xlu0 %181
    %vm183 = vcmask 97344
    %184 = vst.msk [vmem:[#allocation0] sm:$0x1] %vm183, %v182
    %s185 = scalar_lea.vmem %s0, 1
    %v186 = vld [vmem:[%s185] sm:$0x1]
    %187 = vrot.lane.b32.xlu0 %v186, 4
    %v188 = vpop.permute.xlu0 %187
    %vm189 = vcmask 64544
    %190 = vst.msk [vmem:[#allocation0] sm:$0x1] %vm189, %v188
    %s192 = ssub.s32 2, 1
    %v193 = vld [vmem:[#allocation0] sm:%s192]
    %s195 = ssub.s32 2, 1
    %196 = vst [vmem:[%s1] sm:%s195] %v193

// kernel: tile.28
$region0: #{tile.28}
  #allocation0 [shape = 's32[1]{0}', space=sflag, size = 0x4, scoped, tag = 'scoped memory for tile.28']
  %s0 = inlined_call_operand.vmem [shape: f32[6], index: 0, kind: input, shape index: {}]
  %s1 = inlined_call_operand.vmem [shape: f32[28,6], index: 1, kind: output, shape index: {}]
  // Predicated region
  $region2: #{tile.28} parent=0 // pred_check
    _
  $region3: #{tile.28} parent=0 // pred_check_branch
    %3 = sbr.rel (0) target = $region5
  $region4: #{tile.28} parent=0 // pred_region
    _
  $region5: #{tile.28} parent=0 // pred_fallthru
    _
  %v4 = vld [vmem:[%s0] ss:$0 sm:$0xff]
  %5 = vst [vmem:[%s1] sm:$0xff] %v4
  %s6 = scalar_lea.vmem %s1, 8
  %7 = vst [vmem:[%s6] sm:$0xff] %v4
  %s8 = scalar_lea.vmem %s1, 16
  %9 = vst [vmem:[%s8] sm:$0xff] %v4
  %s10 = scalar_lea.vmem %s1, 24
  %11 = vst [vmem:[%s10] sm:$0xff] %v4

// kernel: tile.33
$region0: #{tile.33}
  #allocation0 [shape = 's32[1]{0}', space=sflag, size = 0x4, scoped, tag = 'scoped memory for tile.33']
  %s0 = inlined_call_operand.vmem [shape: f32[12], index: 0, kind: input, shape index: {}]
  %s1 = inlined_call_operand.vmem [shape: f32[10,12], index: 1, kind: output, shape index: {}]
  // Predicated region
  $region2: #{tile.33} parent=0 // pred_check
    _
  $region3: #{tile.33} parent=0 // pred_check_branch
    %3 = sbr.rel (0) target = $region5
  $region4: #{tile.33} parent=0 // pred_region
    _
  $region5: #{tile.33} parent=0 // pred_fallthru
    _
  %v4 = vld [vmem:[%s0] ss:$0 sm:$0xff]
  %5 = vst [vmem:[%s1] sm:$0xff] %v4
  %s6 = scalar_lea.vmem %s1, 8
  %7 = vst [vmem:[%s6] sm:$0xff] %v4

// kernel: tile.34
$region0: #{tile.34}
  %s0 = inlined_call_operand.vmem [shape: f32[10,12], index: 0, kind: input, shape index: {}]
  %s1 = inlined_call_operand.vmem [shape: f32[120], index: 1, kind: output, shape index: {}]
  $region1: #{tile.34} parent=0
    #allocation0 [shape = 'u8[4096]{0}', space=vmem, size = 0x1000, scoped, tag = 'scoped mem for output reshape']
    %v2 = vld [vmem:[%s0] sm:$0x1]
    %vm3 = vcmask 97280
    %4 = vst.msk [vmem:[#allocation0] sm:$0x1] %vm3, %v2
    %s5 = scalar_lea.vmem %s0, 9
    %v6 = vld [vmem:[%s5] sm:$0x1]
    %7 = vrot.lane.b32.xlu0 %v6, 108
    %v8 = vpop.permute.xlu0 %7
    %vm9 = vcmask 982880
    %10 = vst.msk [vmem:[#allocation0] sm:$0x1] %vm9, %v8
    %s11 = scalar_lea.vmem %s0, 8
    %v12 = vld [vmem:[%s11] sm:$0x1]
    %13 = vrot.lane.b32.xlu0 %v12, 96
    %v14 = vpop.permute.xlu0 %13
    %vm15 = vcmask 884480
    %16 = vst.msk [vmem:[#allocation0] sm:$0x1] %vm15, %v14
    %s17 = scalar_lea.vmem %s0, 7
    %v18 = vld [vmem:[%s17] sm:$0x1]
    %19 = vrot.lane.b32.xlu0 %v18, 84
    %v20 = vpop.permute.xlu0 %19
    %vm21 = vcmask 786080
    %22 = vst.msk [vmem:[#allocation0] sm:$0x1] %vm21, %v20
    %s23 = scalar_lea.vmem %s0, 6
    %v24 = vld [vmem:[%s23] sm:$0x1]
    %25 = vrot.lane.b32.xlu0 %v24, 72
    %v26 = vpop.permute.xlu0 %25
    %vm27 = vcmask 687680
    %28 = vst.msk [vmem:[#allocation0] sm:$0x1] %vm27, %v26
    %s29 = scalar_lea.vmem %s0, 5
    %v30 = vld [vmem:[%s29] sm:$0x1]
    %31 = vrot.lane.b32.xlu0 %v30, 60
    %v32 = vpop.permute.xlu0 %31
    %vm33 = vcmask 589280
    %34 = vst.msk [vmem:[#allocation0] sm:$0x1] %vm33, %v32
    %s35 = scalar_lea.vmem %s0, 4
    %v36 = vld [vmem:[%s35] sm:$0x1]
    %37 = vrot.lane.b32.xlu0 %v36, 48
    %v38 = vpop.permute.xlu0 %37
    %vm39 = vcmask 490880
    %40 = vst.msk [vmem:[#allocation0] sm:$0x1] %vm39, %v38
    %s41 = scalar_lea.vmem %s0, 3
    %v42 = vld [vmem:[%s41] sm:$0x1]
    %43 = vrot.lane.b32.xlu0 %v42, 36
    %v44 = vpop.permute.xlu0 %43
    %vm45 = vcmask 392480
    %46 = vst.msk [vmem:[#allocation0] sm:$0x1] %vm45, %v44
    %s47 = scalar_lea.vmem %s0, 2
    %v48 = vld [vmem:[%s47] sm:$0x1]
    %49 = vrot.lane.b32.xlu0 %v48, 24
    %v50 = vpop.permute.xlu0 %49
    %vm51 = vcmask 294080
    %52 = vst.msk [vmem:[#allocation0] sm:$0x1] %vm51, %v50
    %s53 = scalar_lea.vmem %s0, 1
    %v54 = vld [vmem:[%s53] sm:$0x1]
    %55 = vrot.lane.b32.xlu0 %v54, 12
    %v56 = vpop.permute.xlu0 %55
    %vm57 = vcmask 195680
    %58 = vst.msk [vmem:[#allocation0] sm:$0x1] %vm57, %v56
    %s60 = ssub.s32 2, 1
    %v61 = vld [vmem:[#allocation0] sm:%s60]
    %s63 = ssub.s32 2, 1
    %64 = vst [vmem:[%s1] sm:%s63] %v61

// kernel: tile.43
$region0: #{tile.43}
  #allocation0 [shape = 's32[1]{0}', space=sflag, size = 0x4, scoped, tag = 'scoped memory for tile.43']
  %s0 = inlined_call_operand.vmem [shape: f32[6], index: 0, kind: input, shape index: {}]
  %s1 = inlined_call_operand.vmem [shape: f32[14,6], index: 1, kind: output, shape index: {}]
  // Predicated region
  $region2: #{tile.43} parent=0 // pred_check
    _
  $region3: #{tile.43} parent=0 // pred_check_branch
    %3 = sbr.rel (0) target = $region5
  $region4: #{tile.43} parent=0 // pred_region
    _
  $region5: #{tile.43} parent=0 // pred_fallthru
    _
  %v4 = vld [vmem:[%s0] ss:$0 sm:$0xff]
  %5 = vst [vmem:[%s1] sm:$0xff] %v4
  %s6 = scalar_lea.vmem %s1, 8
  %7 = vst [vmem:[%s6] sm:$0xff] %v4

// kernel: tile.44
$region0: #{tile.44}
  %s0 = inlined_call_operand.vmem [shape: f32[14,6], index: 0, kind: input, shape index: {}]
  %s1 = inlined_call_operand.vmem [shape: f32[84], index: 1, kind: output, shape index: {}]
  $region1: #{tile.44} parent=0
    #allocation0 [shape = 'u8[4096]{0}', space=vmem, size = 0x1000, scoped, tag = 'scoped mem for output reshape']
    %v2 = vld [vmem:[%s0] sm:$0x1]
    %vm3 = vcmask 48128
    %4 = vst.msk [vmem:[#allocation0] sm:$0x1] %vm3, %v2
    %s5 = scalar_lea.vmem %s0, 13
    %v6 = vld [vmem:[%s5] sm:$0x1]
    %7 = vrot.lane.b32.xlu0 %v6, 78
    %v8 = vpop.permute.xlu0 %7
    %vm9 = vcmask 687728
    %10 = vst.msk [vmem:[#allocation0] sm:$0x1] %vm9, %v8
    %s11 = scalar_lea.vmem %s0, 12
    %v12 = vld [vmem:[%s11] sm:$0x1]
    %13 = vrot.lane.b32.xlu0 %v12, 72
    %v14 = vpop.permute.xlu0 %13
    %vm15 = vcmask 638528
    %16 = vst.msk [vmem:[#allocation0] sm:$0x1] %vm15, %v14
    %s17 = scalar_lea.vmem %s0, 11
    %v18 = vld [vmem:[%s17] sm:$0x1]
    %19 = vrot.lane.b32.xlu0 %v18, 66
    %v20 = vpop.permute.xlu0 %19
    %vm21 = vcmask 589328
    %22 = vst.msk [vmem:[#allocation0] sm:$0x1] %vm21, %v20
    %s23 = scalar_lea.vmem %s0, 10
    %v24 = vld [vmem:[%s23] sm:$0x1]
    %25 = vrot.lane.b32.xlu0 %v24, 60
    %v26 = vpop.permute.xlu0 %25
    %vm27 = vcmask 540128
    %28 = vst.msk [vmem:[#allocation0] sm:$0x1] %vm27, %v26
    %s29 = scalar_lea.vmem %s0, 9
    %v30 = vld [vmem:[%s29] sm:$0x1]
    %31 = vrot.lane.b32.xlu0 %v30, 54
    %v32 = vpop.permute.xlu0 %31
    %vm33 = vcmask 490928
    %34 = vst.msk [vmem:[#allocation0] sm:$0x1] %vm33, %v32
    %s35 = scalar_lea.vmem %s0, 8
    %v36 = vld [vmem:[%s35] sm:$0x1]
    %37 = vrot.lane.b32.xlu0 %v36, 48
    %v38 = vpop.permute.xlu0 %37
    %vm39 = vcmask 441728
    %40 = vst.msk [vmem:[#allocation0] sm:$0x1] %vm39, %v38
    %s41 = scalar_lea.vmem %s0, 7
    %v42 = vld [vmem:[%s41] sm:$0x1]
    %43 = vrot.lane.b32.xlu0 %v42, 42
    %v44 = vpop.permute.xlu0 %43
    %vm45 = vcmask 392528
    %46 = vst.msk [vmem:[#allocation0] sm:$0x1] %vm45, %v44
    %s47 = scalar_lea.vmem %s0, 6
    %v48 = vld [vmem:[%s47] sm:$0x1]
    %49 = vrot.lane.b32.xlu0 %v48, 36
    %v50 = vpop.permute.xlu0 %49
    %vm51 = vcmask 343328
    %52 = vst.msk [vmem:[#allocation0] sm:$0x1] %vm51, %v50
    %s53 = scalar_lea.vmem %s0, 5
    %v54 = vld [vmem:[%s53] sm:$0x1]
    %55 = vrot.lane.b32.xlu0 %v54, 30
    %v56 = vpop.permute.xlu0 %55
    %vm57 = vcmask 294128
    %58 = vst.msk [vmem:[#allocation0] sm:$0x1] %vm57, %v56
    %s59 = scalar_lea.vmem %s0, 4
    %v60 = vld [vmem:[%s59] sm:$0x1]
    %61 = vrot.lane.b32.xlu0 %v60, 24
    %v62 = vpop.permute.xlu0 %61
    %vm63 = vcmask 244928
    %64 = vst.msk [vmem:[#allocation0] sm:$0x1] %vm63, %v62
    %s65 = scalar_lea.vmem %s0, 3
    %v66 = vld [vmem:[%s65] sm:$0x1]
    %67 = vrot.lane.b32.xlu0 %v66, 18
    %v68 = vpop.permute.xlu0 %67
    %vm69 = vcmask 195728
    %70 = vst.msk [vmem:[#allocation0] sm:$0x1] %vm69, %v68
    %s71 = scalar_lea.vmem %s0, 2
    %v72 = vld [vmem:[%s71] sm:$0x1]
    %73 = vrot.lane.b32.xlu0 %v72, 12
    %v74 = vpop.permute.xlu0 %73
    %vm75 = vcmask 146528
    %76 = vst.msk [vmem:[#allocation0] sm:$0x1] %vm75, %v74
    %s77 = scalar_lea.vmem %s0, 1
    %v78 = vld [vmem:[%s77] sm:$0x1]
    %79 = vrot.lane.b32.xlu0 %v78, 6
    %v80 = vpop.permute.xlu0 %79
    %vm81 = vcmask 97328
    %82 = vst.msk [vmem:[#allocation0] sm:$0x1] %vm81, %v80
    %s84 = ssub.s32 2, 1
    %v85 = vld [vmem:[#allocation0] sm:%s84]
    %s87 = ssub.s32 2, 1
    %88 = vst [vmem:[%s1] sm:%s87] %v85

// kernel: tile.38
$region0: #{tile.38}
  #allocation0 [shape = 's32[1]{0}', space=sflag, size = 0x4, scoped, tag = 'scoped memory for tile.38']
  %s0 = inlined_call_operand.vmem [shape: f32[12], index: 0, kind: input, shape index: {}]
  %s1 = inlined_call_operand.vmem [shape: f32[5,12], index: 1, kind: output, shape index: {}]
  // Predicated region
  $region2: #{tile.38} parent=0 // pred_check
    _
  $region3: #{tile.38} parent=0 // pred_check_branch
    %3 = sbr.rel (0) target = $region5
  $region4: #{tile.38} parent=0 // pred_region
    _
  $region5: #{tile.38} parent=0 // pred_fallthru
    _
  %v4 = vld [vmem:[%s0] ss:$0 sm:$0xff]
  %5 = vst [vmem:[%s1] sm:$0xff] %v4

// kernel: tile.39
$region0: #{tile.39}
  %s0 = inlined_call_operand.vmem [shape: f32[5,12], index: 0, kind: input, shape index: {}]
  %s1 = inlined_call_operand.vmem [shape: f32[60], index: 1, kind: output, shape index: {}]
  $region1: #{tile.39} parent=0
    #allocation0 [shape = 'u8[4096]{0}', space=vmem, size = 0x1000, scoped, tag = 'scoped mem for output reshape']
    %v2 = vld [vmem:[%s0] sm:$0x1]
    %vm3 = vcmask 97280
    %4 = vst.msk [vmem:[#allocation0] sm:$0x1] %vm3, %v2
    %s5 = scalar_lea.vmem %s0, 4
    %v6 = vld [vmem:[%s5] sm:$0x1]
    %7 = vrot.lane.b32.xlu0 %v6, 48
    %v8 = vpop.permute.xlu0 %7
    %vm9 = vcmask 490880
    %10 = vst.msk [vmem:[#allocation0] sm:$0x1] %vm9, %v8
    %s11 = scalar_lea.vmem %s0, 3
    %v12 = vld [vmem:[%s11] sm:$0x1]
    %13 = vrot.lane.b32.xlu0 %v12, 36
    %v14 = vpop.permute.xlu0 %13
    %vm15 = vcmask 392480
    %16 = vst.msk [vmem:[#allocation0] sm:$0x1] %vm15, %v14
    %s17 = scalar_lea.vmem %s0, 2
    %v18 = vld [vmem:[%s17] sm:$0x1]
    %19 = vrot.lane.b32.xlu0 %v18, 24
    %v20 = vpop.permute.xlu0 %19
    %vm21 = vcmask 294080
    %22 = vst.msk [vmem:[#allocation0] sm:$0x1] %vm21, %v20
    %s23 = scalar_lea.vmem %s0, 1
    %v24 = vld [vmem:[%s23] sm:$0x1]
    %25 = vrot.lane.b32.xlu0 %v24, 12
    %v26 = vpop.permute.xlu0 %25
    %vm27 = vcmask 195680
    %28 = vst.msk [vmem:[#allocation0] sm:$0x1] %vm27, %v26
    %s30 = ssub.s32 2, 1
    %v31 = vld [vmem:[#allocation0] sm:%s30]
    %s33 = ssub.s32 2, 1
    %34 = vst [vmem:[%s1] sm:%s33] %v31

// kernel: autoencoder_forward.1
$region0: #{autoencoder_forward.1}
  #allocation0 [shape = 'u32[]', space=smem, size = 0x4, offset = 0x4, fixed_abs, tag = 'smem constant byte address 0x4 - core index']
  #allocation1 [shape = 'u32[72,128]{1,0:T(1,128)}', space=vmem, size = 0x9000, scoped, tag = 'internal scratch']
  %s0 = inlined_call_operand.vmem [shape: f32[32,8,128], index: 0, kind: input, shape index: {}]
  %s1 = inlined_call_operand.vmem [shape: bf16[5,128,168], index: 1, kind: input, shape index: {}]
  %s2 = inlined_call_operand.vmem [shape: bf16[5,84,120], index: 2, kind: input, shape index: {}]
  %s3 = inlined_call_operand.vmem [shape: bf16[5,60,16], index: 3, kind: input, shape index: {}]
  %s4 = inlined_call_operand.vmem [shape: bf16[5,16,60], index: 4, kind: input, shape index: {}]
  %s5 = inlined_call_operand.vmem [shape: bf16[5,120,84], index: 5, kind: input, shape index: {}]
  %s6 = inlined_call_operand.vmem [shape: bf16[5,168,128], index: 6, kind: input, shape index: {}]
  %s7 = inlined_call_operand.vmem [shape: f32[8,168], index: 7, kind: input, shape index: {}]
  %s8 = inlined_call_operand.vmem [shape: f32[168,84], index: 8, kind: input, shape index: {}]
  %s9 = inlined_call_operand.vmem [shape: f32[168,84], index: 9, kind: input, shape index: {}]
  %s10 = inlined_call_operand.vmem [shape: f32[84,168], index: 10, kind: input, shape index: {}]
  %s11 = inlined_call_operand.vmem [shape: f32[84,168], index: 11, kind: input, shape index: {}]
  %s12 = inlined_call_operand.vmem [shape: f32[120,60], index: 12, kind: input, shape index: {}]
  %s13 = inlined_call_operand.vmem [shape: f32[120,60], index: 13, kind: input, shape index: {}]
  %s14 = inlined_call_operand.vmem [shape: f32[60,120], index: 14, kind: input, shape index: {}]
  %s15 = inlined_call_operand.vmem [shape: f32[60,120], index: 15, kind: input, shape index: {}]
  %s16 = inlined_call_operand.vmem [shape: f32[32,8,128], index: 16, kind: output, shape index: {}]
  %s17 = sld [smem:[#allocation0]]
  $region74: #{autoencoder_forward.1} parent=0
    _
  %s19 = ssub.s32 1, %s17
  %s20 = scalar_select 0, %s19, %s17
  // Predicated region
  $region2: #{autoencoder_forward.1} parent=0 // pred_check
    _
  $region3: #{autoencoder_forward.1} parent=0 // pred_check_branch
    %22 = sbr.rel (0) target = $region5
  $region4: #{autoencoder_forward.1} parent=0 // pred_region
    _
  $region5: #{autoencoder_forward.1} parent=0 // pred_fallthru
    _
  // Predicated region
  $region6: #{autoencoder_forward.1} parent=0 // pred_check
    _
  $region7: #{autoencoder_forward.1} parent=0 // pred_check_branch
    %24 = sbr.rel (0) target = $region9
  $region8: #{autoencoder_forward.1} parent=0 // pred_region
    _
  $region9: #{autoencoder_forward.1} parent=0 // pred_fallthru
    _
  // Predicated region
  $region10: #{autoencoder_forward.1} parent=0 // pred_check
    _
  $region11: #{autoencoder_forward.1} parent=0 // pred_check_branch
    %26 = sbr.rel (0) target = $region13
  $region12: #{autoencoder_forward.1} parent=0 // pred_region
    _
  $region13: #{autoencoder_forward.1} parent=0 // pred_fallthru
    _
  // Predicated region
  $region14: #{autoencoder_forward.1} parent=0 // pred_check
    _
  $region15: #{autoencoder_forward.1} parent=0 // pred_check_branch
    %28 = sbr.rel (0) target = $region17
  $region16: #{autoencoder_forward.1} parent=0 // pred_region
    _
  $region17: #{autoencoder_forward.1} parent=0 // pred_fallthru
    _
  // Predicated region
  $region18: #{autoencoder_forward.1} parent=0 // pred_check
    _
  $region19: #{autoencoder_forward.1} parent=0 // pred_check_branch
    %30 = sbr.rel (0) target = $region21
  $region20: #{autoencoder_forward.1} parent=0 // pred_region
    _
  $region21: #{autoencoder_forward.1} parent=0 // pred_fallthru
    _
  // Predicated region
  $region22: #{autoencoder_forward.1} parent=0 // pred_check
    _
  $region23: #{autoencoder_forward.1} parent=0 // pred_check_branch
    %32 = sbr.rel (0) target = $region25
  $region24: #{autoencoder_forward.1} parent=0 // pred_region
    _
  $region25: #{autoencoder_forward.1} parent=0 // pred_fallthru
    _
  // Predicated region
  $region26: #{autoencoder_forward.1} parent=0 // pred_check
    _
  $region27: #{autoencoder_forward.1} parent=0 // pred_check_branch
    %34 = sbr.rel (0) target = $region29
  $region28: #{autoencoder_forward.1} parent=0 // pred_region
    _
  $region29: #{autoencoder_forward.1} parent=0 // pred_fallthru
    _
  // Predicated region
  $region30: #{autoencoder_forward.1} parent=0 // pred_check
    _
  $region31: #{autoencoder_forward.1} parent=0 // pred_check_branch
    %36 = sbr.rel (0) target = $region33
  $region32: #{autoencoder_forward.1} parent=0 // pred_region
    _
  $region33: #{autoencoder_forward.1} parent=0 // pred_fallthru
    _
  // Predicated region
  $region34: #{autoencoder_forward.1} parent=0 // pred_check
    _
  $region35: #{autoencoder_forward.1} parent=0 // pred_check_branch
    %38 = sbr.rel (0) target = $region37
  $region36: #{autoencoder_forward.1} parent=0 // pred_region
    _
  $region37: #{autoencoder_forward.1} parent=0 // pred_fallthru
    _
  // Predicated region
  $region38: #{autoencoder_forward.1} parent=0 // pred_check
    _
  $region39: #{autoencoder_forward.1} parent=0 // pred_check_branch
    %40 = sbr.rel (0) target = $region41
  $region40: #{autoencoder_forward.1} parent=0 // pred_region
    _
  $region41: #{autoencoder_forward.1} parent=0 // pred_fallthru
    _
  // Predicated region
  $region42: #{autoencoder_forward.1} parent=0 // pred_check
    _
  $region43: #{autoencoder_forward.1} parent=0 // pred_check_branch
    %42 = sbr.rel (0) target = $region45
  $region44: #{autoencoder_forward.1} parent=0 // pred_region
    _
  $region45: #{autoencoder_forward.1} parent=0 // pred_fallthru
    _
  // Predicated region
  $region46: #{autoencoder_forward.1} parent=0 // pred_check
    _
  $region47: #{autoencoder_forward.1} parent=0 // pred_check_branch
    %44 = sbr.rel (0) target = $region49
  $region48: #{autoencoder_forward.1} parent=0 // pred_region
    _
  $region49: #{autoencoder_forward.1} parent=0 // pred_fallthru
    _
  // Predicated region
  $region50: #{autoencoder_forward.1} parent=0 // pred_check
    _
  $region51: #{autoencoder_forward.1} parent=0 // pred_check_branch
    %46 = sbr.rel (0) target = $region53
  $region52: #{autoencoder_forward.1} parent=0 // pred_region
    _
  $region53: #{autoencoder_forward.1} parent=0 // pred_fallthru
    _
  // Predicated region
  $region54: #{autoencoder_forward.1} parent=0 // pred_check
    _
  $region55: #{autoencoder_forward.1} parent=0 // pred_check_branch
    %48 = sbr.rel (0) target = $region57
  $region56: #{autoencoder_forward.1} parent=0 // pred_region
    _
  $region57: #{autoencoder_forward.1} parent=0 // pred_fallthru
    _
  // Predicated region
  $region58: #{autoencoder_forward.1} parent=0 // pred_check
    _
  $region59: #{autoencoder_forward.1} parent=0 // pred_check_branch
    %50 = sbr.rel (0) target = $region61
  $region60: #{autoencoder_forward.1} parent=0 // pred_region
    _
  $region61: #{autoencoder_forward.1} parent=0 // pred_fallthru
    _
  // Predicated region
  $region62: #{autoencoder_forward.1} parent=0 // pred_check
    _
  $region63: #{autoencoder_forward.1} parent=0 // pred_check_branch
    %52 = sbr.rel (0) target = $region65
  $region64: #{autoencoder_forward.1} parent=0 // pred_region
    _
  $region65: #{autoencoder_forward.1} parent=0 // pred_fallthru
    _
  %v54 = vld [vmem:[%s0] sm:$0xff]
  %v55 = vld [vmem:[%s0 + $0x8] sm:$0xff]
  %v56 = vld [vmem:[%s0 + $0x10] sm:$0xff]
  %v57 = vld [vmem:[%s0 + $0x18] sm:$0xff]
  %v58 = vld [vmem:[%s0 + $0x20] sm:$0xff]
  %v59 = vld [vmem:[%s0 + $0x28] sm:$0xff]
  %v60 = vld [vmem:[%s0 + $0x30] sm:$0xff]
  %v61 = vld [vmem:[%s0 + $0x38] sm:$0xff]
  %v62 = vld [vmem:[%s0 + $0x40] sm:$0xff]
  %v63 = vld [vmem:[%s0 + $0x48] sm:$0xff]
  %v64 = vld [vmem:[%s0 + $0x50] sm:$0xff]
  %v65 = vld [vmem:[%s0 + $0x58] sm:$0xff]
  %v66 = vld [vmem:[%s0 + $0x60] sm:$0xff]
  %v67 = vld [vmem:[%s0 + $0x68] sm:$0xff]
  %v68 = vld [vmem:[%s0 + $0x70] sm:$0xff]
  %v69 = vld [vmem:[%s0 + $0x78] sm:$0xff]
  %v70 = vld [vmem:[%s0 + $0x80] sm:$0xff]
  %v71 = vld [vmem:[%s0 + $0x88] sm:$0xff]
  %v72 = vld [vmem:[%s0 + $0x90] sm:$0xff]
  %v73 = vld [vmem:[%s0 + $0x98] sm:$0xff]
  %v74 = vld [vmem:[%s0 + $0xa0] sm:$0xff]
  %v75 = vld [vmem:[%s0 + $0xa8] sm:$0xff]
  %v76 = vld [vmem:[%s0 + $0xb0] sm:$0xff]
  %v77 = vld [vmem:[%s0 + $0xb8] sm:$0xff]
  %v78 = vld [vmem:[%s0 + $0xc0] sm:$0xff]
  %v79 = vld [vmem:[%s0 + $0xc8] sm:$0xff]
  %v80 = vld [vmem:[%s0 + $0xd0] sm:$0xff]
  %v81 = vld [vmem:[%s0 + $0xd8] sm:$0xff]
  %v82 = vld [vmem:[%s0 + $0xe0] sm:$0xff]
  %v83 = vld [vmem:[%s0 + $0xe8] sm:$0xff]
  %v84 = vld [vmem:[%s0 + $0xf0] sm:$0xff]
  %v85 = vld [vmem:[%s0 + $0xf8] sm:$0xff]
  %v86 = vpack.c.bf16 %v54, %v54
  %v87 = vpack.c.bf16 %v55, %v55
  %v88 = vpack.c.bf16 %v56, %v56
  %v89 = vpack.c.bf16 %v57, %v57
  %v90 = vpack.c.bf16 %v58, %v58
  %v91 = vpack.c.bf16 %v59, %v59
  %v92 = vpack.c.bf16 %v60, %v60
  %v93 = vpack.c.bf16 %v61, %v61
  %v94 = vpack.c.bf16 %v62, %v62
  %v95 = vpack.c.bf16 %v63, %v63
  %v96 = vpack.c.bf16 %v64, %v64
  %v97 = vpack.c.bf16 %v65, %v65
  %v98 = vpack.c.bf16 %v66, %v66
  %v99 = vpack.c.bf16 %v67, %v67
  %v100 = vpack.c.bf16 %v68, %v68
  %v101 = vpack.c.bf16 %v69, %v69
  %v102 = vpack.c.bf16 %v70, %v70
  %v103 = vpack.c.bf16 %v71, %v71
  %v104 = vpack.c.bf16 %v72, %v72
  %v105 = vpack.c.bf16 %v73, %v73
  %v106 = vpack.c.bf16 %v74, %v74
  %v107 = vpack.c.bf16 %v75, %v75
  %v108 = vpack.c.bf16 %v76, %v76
  %v109 = vpack.c.bf16 %v77, %v77
  %v110 = vpack.c.bf16 %v78, %v78
  %v111 = vpack.c.bf16 %v79, %v79
  %v112 = vpack.c.bf16 %v80, %v80
  %v113 = vpack.c.bf16 %v81, %v81
  %v114 = vpack.c.bf16 %v82, %v82
  %v115 = vpack.c.bf16 %v83, %v83
  %v116 = vpack.c.bf16 %v84, %v84
  %v117 = vpack.c.bf16 %v85, %v85
  %v118 = vld [vmem:[%s7] ss:$8 sm:$0x3]
  %v119 = vld [vmem:[%s1] sm:$0xff]
  %v120 = vld [vmem:[%s1 + $0x8] sm:$0xff]
  %v121 = vld [vmem:[%s1 + $0x10] sm:$0xff]
  %v122 = vld [vmem:[%s1 + $0x18] sm:$0xff]
  %v123 = vld [vmem:[%s1 + $0x20] sm:$0xff]
  %v124 = vld [vmem:[%s1 + $0x28] sm:$0xff]
  %v125 = vld [vmem:[%s1 + $0x30] sm:$0xff]
  %v126 = vld [vmem:[%s1 + $0x38] sm:$0xff]
  %v127 = vld [vmem:[%s1 + $0x40] sm:$0xff]
  %v128 = vld [vmem:[%s1 + $0x48] sm:$0xff]
  %v129 = vld [vmem:[%s1 + $0x50] sm:$0xff]
  %v130 = vld [vmem:[%s1 + $0x58] sm:$0xff]
  %v131 = vld [vmem:[%s1 + $0x60] sm:$0xff]
  %v132 = vld [vmem:[%s1 + $0x68] sm:$0xff]
  %v133 = vld [vmem:[%s1 + $0x70] sm:$0xff]
  %v134 = vld [vmem:[%s1 + $0x78] sm:$0xff]
  %s135 = scalar_lea.vmem %s1, 128
  %v136 = vld [vmem:[%s135] sm:$0xff]
  %v137 = vld [vmem:[%s135 + $0x8] sm:$0xff]
  %v138 = vld [vmem:[%s135 + $0x10] sm:$0xff]
  %v139 = vld [vmem:[%s135 + $0x18] sm:$0xff]
  %v140 = vld [vmem:[%s135 + $0x20] sm:$0xff]
  %v141 = vld [vmem:[%s135 + $0x28] sm:$0xff]
  %v142 = vld [vmem:[%s135 + $0x30] sm:$0xff]
  %v143 = vld [vmem:[%s135 + $0x38] sm:$0xff]
  %v144 = vld [vmem:[%s135 + $0x40] sm:$0xff]
  %v145 = vld [vmem:[%s135 + $0x48] sm:$0xff]
  %v146 = vld [vmem:[%s135 + $0x50] sm:$0xff]
  %v147 = vld [vmem:[%s135 + $0x58] sm:$0xff]
  %v148 = vld [vmem:[%s135 + $0x60] sm:$0xff]
  %v149 = vld [vmem:[%s135 + $0x68] sm:$0xff]
  %v150 = vld [vmem:[%s135 + $0x70] sm:$0xff]
  %v151 = vld [vmem:[%s135 + $0x78] sm:$0xff]
  %v180 = vunpack.c.l.b16 %v87
  %v181 = vunpack.c.l.b16 %v88
  %v182 = vunpack.c.l.b16 %v89
  %v183 = vunpack.c.l.b16 %v90
  %v184 = vunpack.c.l.b16 %v91
  %v185 = vunpack.c.l.b16 %v92
  %v186 = vunpack.c.l.b16 %v93
  %v187 = vunpack.c.l.b16 %v94
  %v188 = vunpack.c.l.b16 %v95
  %v189 = vunpack.c.l.b16 %v96
  %v190 = vunpack.c.l.b16 %v97
  %v191 = vunpack.c.l.b16 %v98
  %v192 = vunpack.c.l.b16 %v99
  %v193 = vunpack.c.l.b16 %v100
  %v194 = vunpack.c.l.b16 %v101
  %v195 = vunpack.c.l.b16 %v102
  %v196 = vunpack.c.l.b16 %v103
  %v197 = vunpack.c.l.b16 %v104
  %v198 = vunpack.c.l.b16 %v105
  %v199 = vunpack.c.l.b16 %v106
  %v200 = vunpack.c.l.b16 %v107
  %v201 = vunpack.c.l.b16 %v108
  %v202 = vunpack.c.l.b16 %v109
  %v203 = vunpack.c.l.b16 %v110
  %v204 = vunpack.c.l.b16 %v111
  %v205 = vunpack.c.l.b16 %v112
  %v206 = vunpack.c.l.b16 %v113
  %v207 = vunpack.c.l.b16 %v114
  %v208 = vpack.c.b16 %v181, %v180
  %v209 = vpack.c.b16 %v183, %v182
  %v210 = vpack.c.b16 %v185, %v184
  %v211 = vpack.c.b16 %v187, %v186
  %v212 = vpack.c.b16 %v189, %v188
  %v213 = vpack.c.b16 %v191, %v190
  %v214 = vpack.c.b16 %v193, %v192
  %v215 = vpack.c.b16 %v195, %v194
  %v216 = vpack.c.b16 %v197, %v196
  %v217 = vpack.c.b16 %v199, %v198
  %v218 = vpack.c.b16 %v201, %v200
  %v219 = vpack.c.b16 %v203, %v202
  %v220 = vpack.c.b16 %v205, %v204
  %v221 = vpack.c.b16 %v207, %v206
  %v252 = vunpack.c.l.b16 %v136
  %v253 = vunpack.c.h.b16 %v136
  %v254 = vunpack.c.l.b16 %v137
  %v255 = vunpack.c.h.b16 %v137
  %v256 = vunpack.c.l.b16 %v138
  %v257 = vunpack.c.h.b16 %v138
  %v258 = vunpack.c.l.b16 %v139
  %v259 = vunpack.c.h.b16 %v139
  %v260 = vunpack.c.l.b16 %v140
  %v261 = vunpack.c.h.b16 %v140
  %v262 = vunpack.c.l.b16 %v141
  %v263 = vunpack.c.h.b16 %v141
  %v264 = vunpack.c.l.b16 %v142
  %v265 = vunpack.c.h.b16 %v142
  %v266 = vunpack.c.l.b16 %v143
  %v267 = vunpack.c.h.b16 %v143
  %v268 = vunpack.c.l.b16 %v144
  %v269 = vunpack.c.h.b16 %v144
  %v270 = vunpack.c.l.b16 %v145
  %v271 = vunpack.c.h.b16 %v145
  %v272 = vunpack.c.l.b16 %v146
  %v273 = vunpack.c.h.b16 %v146
  %v274 = vunpack.c.l.b16 %v147
  %v275 = vunpack.c.h.b16 %v147
  %v276 = vunpack.c.l.b16 %v148
  %v277 = vunpack.c.h.b16 %v148
  %v278 = vunpack.c.l.b16 %v149
  %v279 = vunpack.c.h.b16 %v149
  %v280 = vunpack.c.l.b16 %v150
  %v281 = vunpack.c.h.b16 %v150
  %v282 = vunpack.c.l.b16 %v151
  %v283 = vunpack.c.h.b16 %v151
  %v284 = vpack.c.b16 %v254, %v252
  %v285 = vpack.c.b16 %v255, %v253
  %v286 = vpack.c.b16 %v258, %v256
  %v287 = vpack.c.b16 %v259, %v257
  %v288 = vpack.c.b16 %v262, %v260
  %v289 = vpack.c.b16 %v263, %v261
  %v290 = vpack.c.b16 %v266, %v264
  %v291 = vpack.c.b16 %v267, %v265
  %v292 = vpack.c.b16 %v270, %v268
  %v293 = vpack.c.b16 %v271, %v269
  %v294 = vpack.c.b16 %v274, %v272
  %v295 = vpack.c.b16 %v275, %v273
  %v296 = vpack.c.b16 %v278, %v276
  %v297 = vpack.c.b16 %v279, %v277
  %v298 = vpack.c.b16 %v282, %v280
  %v299 = vpack.c.b16 %v283, %v281
  %316 = vmatpush.bf16.msra.mxu0 %v298
  %317 = vmatpush.bf16.msra.mxu0 %v296
  %318 = vmatpush.bf16.msra.mxu0 %v294
  %319 = vmatpush.bf16.msra.mxu0 %v292
  %320 = vmatpush.bf16.msra.mxu0 %v290
  %321 = vmatpush.bf16.msra.mxu0 %v288
  %322 = vmatpush.bf16.msra.mxu0 %v286
  %323 = vmatpush.bf16.msra.mxu0 %v284
  %324 = vmatmul.bf16.gmra.mxu0 %v208
  %v325 = vpop.f32.mrf.mxu0
  %v326 = vadd.f32 0.0, %v325
  %v327 = vpop.f32.mrf.mxu0
  %v328 = vadd.f32 0.0, %v327
  %329 = vmatmul.bf16.gmra.mxu0 %v209
  %v330 = vpop.f32.mrf.mxu0
  %v331 = vadd.f32 0.0, %v330
  %v332 = vpop.f32.mrf.mxu0
  %v333 = vadd.f32 0.0, %v332
  %334 = vmatmul.bf16.gmra.mxu0 %v210
  %v335 = vpop.f32.mrf.mxu0
  %v336 = vadd.f32 0.0, %v335
  %v337 = vpop.f32.mrf.mxu0
  %v338 = vadd.f32 0.0, %v337
  %339 = vmatmul.bf16.gmra.mxu0 %v211
  %v340 = vpop.f32.mrf.mxu0
  %v341 = vadd.f32 0.0, %v340
  %v342 = vpop.f32.mrf.mxu0
  %v343 = vadd.f32 0.0, %v342
  %344 = vmatmul.bf16.gmra.mxu0 %v212
  %v345 = vpop.f32.mrf.mxu0
  %v346 = vadd.f32 0.0, %v345
  %v347 = vpop.f32.mrf.mxu0
  %v348 = vadd.f32 0.0, %v347
  %349 = vmatmul.bf16.gmra.mxu0 %v213
  %v350 = vpop.f32.mrf.mxu0
  %v351 = vadd.f32 0.0, %v350
  %v352 = vpop.f32.mrf.mxu0
  %v353 = vadd.f32 0.0, %v352
  %354 = vmatmul.bf16.gmra.mxu0 %v214
  %v355 = vpop.f32.mrf.mxu0
  %v356 = vadd.f32 0.0, %v355
  %v357 = vpop.f32.mrf.mxu0
  %v358 = vadd.f32 0.0, %v357
  %359 = vmatmul.bf16.gmra.mxu0 %v215
  %v360 = vpop.f32.mrf.mxu0
  %v361 = vadd.f32 0.0, %v360
  %v362 = vpop.f32.mrf.mxu0
  %v363 = vadd.f32 0.0, %v362
  %364 = vmatmul.bf16.gmra.mxu0 %v216
  %v365 = vpop.f32.mrf.mxu0
  %v366 = vadd.f32 0.0, %v365
  %v367 = vpop.f32.mrf.mxu0
  %v368 = vadd.f32 0.0, %v367
  %369 = vmatmul.bf16.gmra.mxu0 %v217
  %v370 = vpop.f32.mrf.mxu0
  %v371 = vadd.f32 0.0, %v370
  %v372 = vpop.f32.mrf.mxu0
  %v373 = vadd.f32 0.0, %v372
  %374 = vmatmul.bf16.gmra.mxu0 %v218
  %v375 = vpop.f32.mrf.mxu0
  %v376 = vadd.f32 0.0, %v375
  %v377 = vpop.f32.mrf.mxu0
  %v378 = vadd.f32 0.0, %v377
  %379 = vmatmul.bf16.gmra.mxu0 %v219
  %v380 = vpop.f32.mrf.mxu0
  %v381 = vadd.f32 0.0, %v380
  %v382 = vpop.f32.mrf.mxu0
  %v383 = vadd.f32 0.0, %v382
  %384 = vmatmul.bf16.gmra.mxu0 %v220
  %v385 = vpop.f32.mrf.mxu0
  %v386 = vadd.f32 0.0, %v385
  %v387 = vpop.f32.mrf.mxu0
  %v388 = vadd.f32 0.0, %v387
  %389 = vmatmul.bf16.gmra.mxu0 %v221
  %v390 = vpop.f32.mrf.mxu0
  %v391 = vadd.f32 0.0, %v390
  %v392 = vpop.f32.mrf.mxu0
  %v393 = vadd.f32 0.0, %v392
  %394 = vdwg.mxu0
  %395 = vmatpush.bf16.msra.mxu0 %v299
  %396 = vmatpush.bf16.msra.mxu0 %v297
  %397 = vmatpush.bf16.msra.mxu0 %v295
  %398 = vmatpush.bf16.msra.mxu0 %v293
  %399 = vmatpush.bf16.msra.mxu0 %v291
  %400 = vmatpush.bf16.msra.mxu0 %v289
  %401 = vmatpush.bf16.msra.mxu0 %v287
  %402 = vmatpush.bf16.msra.mxu0 %v285
  %403 = vmatmul.bf16.gmra.mxu0 %v208
  %v404 = vpop.f32.mrf.mxu0
  %v405 = vadd.f32 0.0, %v404
  %v406 = vpop.f32.mrf.mxu0
  %v407 = vadd.f32 0.0, %v406
  %408 = vmatmul.bf16.gmra.mxu0 %v209
  %v409 = vpop.f32.mrf.mxu0
  %v410 = vadd.f32 0.0, %v409
  %v411 = vpop.f32.mrf.mxu0
  %v412 = vadd.f32 0.0, %v411
  %413 = vmatmul.bf16.gmra.mxu0 %v210
  %v414 = vpop.f32.mrf.mxu0
  %v415 = vadd.f32 0.0, %v414
  %v416 = vpop.f32.mrf.mxu0
  %v417 = vadd.f32 0.0, %v416
  %418 = vmatmul.bf16.gmra.mxu0 %v211
  %v419 = vpop.f32.mrf.mxu0
  %v420 = vadd.f32 0.0, %v419
  %v421 = vpop.f32.mrf.mxu0
  %v422 = vadd.f32 0.0, %v421
  %423 = vmatmul.bf16.gmra.mxu0 %v212
  %v424 = vpop.f32.mrf.mxu0
  %v425 = vadd.f32 0.0, %v424
  %v426 = vpop.f32.mrf.mxu0
  %v427 = vadd.f32 0.0, %v426
  %428 = vmatmul.bf16.gmra.mxu0 %v213
  %v429 = vpop.f32.mrf.mxu0
  %v430 = vadd.f32 0.0, %v429
  %v431 = vpop.f32.mrf.mxu0
  %v432 = vadd.f32 0.0, %v431
  %433 = vmatmul.bf16.gmra.mxu0 %v214
  %v434 = vpop.f32.mrf.mxu0
  %v435 = vadd.f32 0.0, %v434
  %v436 = vpop.f32.mrf.mxu0
  %v437 = vadd.f32 0.0, %v436
  %438 = vmatmul.bf16.gmra.mxu0 %v215
  %v439 = vpop.f32.mrf.mxu0
  %v440 = vadd.f32 0.0, %v439
  %v441 = vpop.f32.mrf.mxu0
  %v442 = vadd.f32 0.0, %v441
  %443 = vmatmul.bf16.gmra.mxu0 %v216
  %v444 = vpop.f32.mrf.mxu0
  %v445 = vadd.f32 0.0, %v444
  %v446 = vpop.f32.mrf.mxu0
  %v447 = vadd.f32 0.0, %v446
  %448 = vmatmul.bf16.gmra.mxu0 %v217
  %v449 = vpop.f32.mrf.mxu0
  %v450 = vadd.f32 0.0, %v449
  %v451 = vpop.f32.mrf.mxu0
  %v452 = vadd.f32 0.0, %v451
  %453 = vmatmul.bf16.gmra.mxu0 %v218
  %v454 = vpop.f32.mrf.mxu0
  %v455 = vadd.f32 0.0, %v454
  %v456 = vpop.f32.mrf.mxu0
  %v457 = vadd.f32 0.0, %v456
  %458 = vmatmul.bf16.gmra.mxu0 %v219
  %v459 = vpop.f32.mrf.mxu0
  %v460 = vadd.f32 0.0, %v459
  %v461 = vpop.f32.mrf.mxu0
  %v462 = vadd.f32 0.0, %v461
  %463 = vmatmul.bf16.gmra.mxu0 %v220
  %v464 = vpop.f32.mrf.mxu0
  %v465 = vadd.f32 0.0, %v464
  %v466 = vpop.f32.mrf.mxu0
  %v467 = vadd.f32 0.0, %v466
  %468 = vmatmul.bf16.gmra.mxu0 %v221
  %v469 = vpop.f32.mrf.mxu0
  %v470 = vadd.f32 0.0, %v469
  %v471 = vpop.f32.mrf.mxu0
  %v472 = vadd.f32 0.0, %v471
  %473 = vdwg.mxu0
  %v475 = vunpack.c.l.b16 %v86
  %v476 = vpack.c.b16 %v180, %v475
  %v477 = vpack.c.b16 %v182, %v181
  %v478 = vpack.c.b16 %v184, %v183
  %v479 = vpack.c.b16 %v186, %v185
  %v480 = vpack.c.b16 %v188, %v187
  %v481 = vpack.c.b16 %v190, %v189
  %v482 = vpack.c.b16 %v192, %v191
  %v483 = vpack.c.b16 %v194, %v193
  %v484 = vpack.c.b16 %v196, %v195
  %v485 = vpack.c.b16 %v198, %v197
  %v486 = vpack.c.b16 %v200, %v199
  %v487 = vpack.c.b16 %v202, %v201
  %v488 = vpack.c.b16 %v204, %v203
  %v489 = vpack.c.b16 %v206, %v205
  %v520 = vunpack.c.l.b16 %v119
  %v521 = vunpack.c.h.b16 %v119
  %v522 = vunpack.c.l.b16 %v120
  %v523 = vunpack.c.h.b16 %v120
  %v524 = vunpack.c.l.b16 %v121
  %v525 = vunpack.c.h.b16 %v121
  %v526 = vunpack.c.l.b16 %v122
  %v527 = vunpack.c.h.b16 %v122
  %v528 = vunpack.c.l.b16 %v123
  %v529 = vunpack.c.h.b16 %v123
  %v530 = vunpack.c.l.b16 %v124
  %v531 = vunpack.c.h.b16 %v124
  %v532 = vunpack.c.l.b16 %v125
  %v533 = vunpack.c.h.b16 %v125
  %v534 = vunpack.c.l.b16 %v126
  %v535 = vunpack.c.h.b16 %v126
  %v536 = vunpack.c.l.b16 %v127
  %v537 = vunpack.c.h.b16 %v127
  %v538 = vunpack.c.l.b16 %v128
  %v539 = vunpack.c.h.b16 %v128
  %v540 = vunpack.c.l.b16 %v129
  %v541 = vunpack.c.h.b16 %v129
  %v542 = vunpack.c.l.b16 %v130
  %v543 = vunpack.c.h.b16 %v130
  %v544 = vunpack.c.l.b16 %v131
  %v545 = vunpack.c.h.b16 %v131
  %v546 = vunpack.c.l.b16 %v132
  %v547 = vunpack.c.h.b16 %v132
  %v548 = vunpack.c.l.b16 %v133
  %v549 = vunpack.c.h.b16 %v133
  %v550 = vunpack.c.l.b16 %v134
  %v551 = vunpack.c.h.b16 %v134
  %v552 = vpack.c.b16 %v522, %v520
  %v553 = vpack.c.b16 %v523, %v521
  %v554 = vpack.c.b16 %v526, %v524
  %v555 = vpack.c.b16 %v527, %v525
  %v556 = vpack.c.b16 %v530, %v528
  %v557 = vpack.c.b16 %v531, %v529
  %v558 = vpack.c.b16 %v534, %v532
  %v559 = vpack.c.b16 %v535, %v533
  %v560 = vpack.c.b16 %v538, %v536
  %v561 = vpack.c.b16 %v539, %v537
  %v562 = vpack.c.b16 %v542, %v540
  %v563 = vpack.c.b16 %v543, %v541
  %v564 = vpack.c.b16 %v546, %v544
  %v565 = vpack.c.b16 %v547, %v545
  %v566 = vpack.c.b16 %v550, %v548
  %v567 = vpack.c.b16 %v551, %v549
  %584 = vmatpush.bf16.msra.mxu0 %v566
  %585 = vmatpush.bf16.msra.mxu0 %v564
  %586 = vmatpush.bf16.msra.mxu0 %v562
  %587 = vmatpush.bf16.msra.mxu0 %v560
  %588 = vmatpush.bf16.msra.mxu0 %v558
  %589 = vmatpush.bf16.msra.mxu0 %v556
  %590 = vmatpush.bf16.msra.mxu0 %v554
  %591 = vmatpush.bf16.msra.mxu0 %v552
  %592 = vmatmul.bf16.gmra.mxu0 %v476
  %v593 = vpop.f32.mrf.mxu0
  %v594 = vadd.f32 %v326, %v593
  %v595 = vpop.f32.mrf.mxu0
  %v596 = vadd.f32 %v328, %v595
  %597 = vmatmul.bf16.gmra.mxu0 %v477
  %v598 = vpop.f32.mrf.mxu0
  %v599 = vadd.f32 %v331, %v598
  %v600 = vpop.f32.mrf.mxu0
  %v601 = vadd.f32 %v333, %v600
  %602 = vmatmul.bf16.gmra.mxu0 %v478
  %v603 = vpop.f32.mrf.mxu0
  %v604 = vadd.f32 %v336, %v603
  %v605 = vpop.f32.mrf.mxu0
  %v606 = vadd.f32 %v338, %v605
  %607 = vmatmul.bf16.gmra.mxu0 %v479
  %v608 = vpop.f32.mrf.mxu0
  %v609 = vadd.f32 %v341, %v608
  %v610 = vpop.f32.mrf.mxu0
  %v611 = vadd.f32 %v343, %v610
  %612 = vmatmul.bf16.gmra.mxu0 %v480
  %v613 = vpop.f32.mrf.mxu0
  %v614 = vadd.f32 %v346, %v613
  %v615 = vpop.f32.mrf.mxu0
  %v616 = vadd.f32 %v348, %v615
  %617 = vmatmul.bf16.gmra.mxu0 %v481
  %v618 = vpop.f32.mrf.mxu0
  %v619 = vadd.f32 %v351, %v618
  %v620 = vpop.f32.mrf.mxu0
  %v621 = vadd.f32 %v353, %v620
  %622 = vmatmul.bf16.gmra.mxu0 %v482
  %v623 = vpop.f32.mrf.mxu0
  %v624 = vadd.f32 %v356, %v623
  %v625 = vpop.f32.mrf.mxu0
  %v626 = vadd.f32 %v358, %v625
  %627 = vmatmul.bf16.gmra.mxu0 %v483
  %v628 = vpop.f32.mrf.mxu0
  %v629 = vadd.f32 %v361, %v628
  %v630 = vpop.f32.mrf.mxu0
  %v631 = vadd.f32 %v363, %v630
  %632 = vmatmul.bf16.gmra.mxu0 %v484
  %v633 = vpop.f32.mrf.mxu0
  %v634 = vadd.f32 %v366, %v633
  %v635 = vpop.f32.mrf.mxu0
  %v636 = vadd.f32 %v368, %v635
  %637 = vmatmul.bf16.gmra.mxu0 %v485
  %v638 = vpop.f32.mrf.mxu0
  %v639 = vadd.f32 %v371, %v638
  %v640 = vpop.f32.mrf.mxu0
  %v641 = vadd.f32 %v373, %v640
  %642 = vmatmul.bf16.gmra.mxu0 %v486
  %v643 = vpop.f32.mrf.mxu0
  %v644 = vadd.f32 %v376, %v643
  %v645 = vpop.f32.mrf.mxu0
  %v646 = vadd.f32 %v378, %v645
  %647 = vmatmul.bf16.gmra.mxu0 %v487
  %v648 = vpop.f32.mrf.mxu0
  %v649 = vadd.f32 %v381, %v648
  %v650 = vpop.f32.mrf.mxu0
  %v651 = vadd.f32 %v383, %v650
  %652 = vmatmul.bf16.gmra.mxu0 %v488
  %v653 = vpop.f32.mrf.mxu0
  %v654 = vadd.f32 %v386, %v653
  %v655 = vpop.f32.mrf.mxu0
  %v656 = vadd.f32 %v388, %v655
  %657 = vmatmul.bf16.gmra.mxu0 %v489
  %v658 = vpop.f32.mrf.mxu0
  %v659 = vadd.f32 %v391, %v658
  %v660 = vpop.f32.mrf.mxu0
  %v661 = vadd.f32 %v393, %v660
  %662 = vdwg.mxu0
  %663 = vmatpush.bf16.msra.mxu0 %v567
  %664 = vmatpush.bf16.msra.mxu0 %v565
  %665 = vmatpush.bf16.msra.mxu0 %v563
  %666 = vmatpush.bf16.msra.mxu0 %v561
  %667 = vmatpush.bf16.msra.mxu0 %v559
  %668 = vmatpush.bf16.msra.mxu0 %v557
  %669 = vmatpush.bf16.msra.mxu0 %v555
  %670 = vmatpush.bf16.msra.mxu0 %v553
  %671 = vmatmul.bf16.gmra.mxu0 %v476
  %v672 = vpop.f32.mrf.mxu0
  %v673 = vadd.f32 %v405, %v672
  %v674 = vpop.f32.mrf.mxu0
  %v675 = vadd.f32 %v407, %v674
  %676 = vmatmul.bf16.gmra.mxu0 %v477
  %v677 = vpop.f32.mrf.mxu0
  %v678 = vadd.f32 %v410, %v677
  %v679 = vpop.f32.mrf.mxu0
  %v680 = vadd.f32 %v412, %v679
  %681 = vmatmul.bf16.gmra.mxu0 %v478
  %v682 = vpop.f32.mrf.mxu0
  %v683 = vadd.f32 %v415, %v682
  %v684 = vpop.f32.mrf.mxu0
  %v685 = vadd.f32 %v417, %v684
  %686 = vmatmul.bf16.gmra.mxu0 %v479
  %v687 = vpop.f32.mrf.mxu0
  %v688 = vadd.f32 %v420, %v687
  %v689 = vpop.f32.mrf.mxu0
  %v690 = vadd.f32 %v422, %v689
  %691 = vmatmul.bf16.gmra.mxu0 %v480
  %v692 = vpop.f32.mrf.mxu0
  %v693 = vadd.f32 %v425, %v692
  %v694 = vpop.f32.mrf.mxu0
  %v695 = vadd.f32 %v427, %v694
  %696 = vmatmul.bf16.gmra.mxu0 %v481
  %v697 = vpop.f32.mrf.mxu0
  %v698 = vadd.f32 %v430, %v697
  %v699 = vpop.f32.mrf.mxu0
  %v700 = vadd.f32 %v432, %v699
  %701 = vmatmul.bf16.gmra.mxu0 %v482
  %v702 = vpop.f32.mrf.mxu0
  %v703 = vadd.f32 %v435, %v702
  %v704 = vpop.f32.mrf.mxu0
  %v705 = vadd.f32 %v437, %v704
  %706 = vmatmul.bf16.gmra.mxu0 %v483
  %v707 = vpop.f32.mrf.mxu0
  %v708 = vadd.f32 %v440, %v707
  %v709 = vpop.f32.mrf.mxu0
  %v710 = vadd.f32 %v442, %v709
  %711 = vmatmul.bf16.gmra.mxu0 %v484
  %v712 = vpop.f32.mrf.mxu0
  %v713 = vadd.f32 %v445, %v712
  %v714 = vpop.f32.mrf.mxu0
  %v715 = vadd.f32 %v447, %v714
  %716 = vmatmul.bf16.gmra.mxu0 %v485
  %v717 = vpop.f32.mrf.mxu0
  %v718 = vadd.f32 %v450, %v717
  %v719 = vpop.f32.mrf.mxu0
  %v720 = vadd.f32 %v452, %v719
  %721 = vmatmul.bf16.gmra.mxu0 %v486
  %v722 = vpop.f32.mrf.mxu0
  %v723 = vadd.f32 %v455, %v722
  %v724 = vpop.f32.mrf.mxu0
  %v725 = vadd.f32 %v457, %v724
  %726 = vmatmul.bf16.gmra.mxu0 %v487
  %v727 = vpop.f32.mrf.mxu0
  %v728 = vadd.f32 %v460, %v727
  %v729 = vpop.f32.mrf.mxu0
  %v730 = vadd.f32 %v462, %v729
  %731 = vmatmul.bf16.gmra.mxu0 %v488
  %v732 = vpop.f32.mrf.mxu0
  %v733 = vadd.f32 %v465, %v732
  %v734 = vpop.f32.mrf.mxu0
  %v735 = vadd.f32 %v467, %v734
  %736 = vmatmul.bf16.gmra.mxu0 %v489
  %v737 = vpop.f32.mrf.mxu0
  %v738 = vadd.f32 %v470, %v737
  %v739 = vpop.f32.mrf.mxu0
  %v740 = vadd.f32 %v472, %v739
  %741 = vdwg.mxu0
  %s742 = scalar_lea.vmem %s1, 256
  %v743 = vld [vmem:[%s742] sm:$0xff]
  %v744 = vld [vmem:[%s742 + $0x8] sm:$0xff]
  %v745 = vld [vmem:[%s742 + $0x10] sm:$0xff]
  %v746 = vld [vmem:[%s742 + $0x18] sm:$0xff]
  %v747 = vld [vmem:[%s742 + $0x20] sm:$0xff]
  %v748 = vld [vmem:[%s742 + $0x28] sm:$0xff]
  %v749 = vld [vmem:[%s742 + $0x30] sm:$0xff]
  %v750 = vld [vmem:[%s742 + $0x38] sm:$0xff]
  %v751 = vld [vmem:[%s742 + $0x40] sm:$0xff]
  %v752 = vld [vmem:[%s742 + $0x48] sm:$0xff]
  %v753 = vld [vmem:[%s742 + $0x50] sm:$0xff]
  %v754 = vld [vmem:[%s742 + $0x58] sm:$0xff]
  %v755 = vld [vmem:[%s742 + $0x60] sm:$0xff]
  %v756 = vld [vmem:[%s742 + $0x68] sm:$0xff]
  %v757 = vld [vmem:[%s742 + $0x70] sm:$0xff]
  %v758 = vld [vmem:[%s742 + $0x78] sm:$0xff]
  %v760 = vunpack.c.l.b16 %v115
  %v761 = vpack.c.b16 %v760, %v207
  %v779 = vunpack.c.l.b16 %v743
  %v780 = vunpack.c.h.b16 %v743
  %v781 = vunpack.c.l.b16 %v744
  %v782 = vunpack.c.h.b16 %v744
  %v783 = vunpack.c.l.b16 %v745
  %v784 = vunpack.c.h.b16 %v745
  %v785 = vunpack.c.l.b16 %v746
  %v786 = vunpack.c.h.b16 %v746
  %v787 = vunpack.c.l.b16 %v747
  %v788 = vunpack.c.h.b16 %v747
  %v789 = vunpack.c.l.b16 %v748
  %v790 = vunpack.c.h.b16 %v748
  %v791 = vunpack.c.l.b16 %v749
  %v792 = vunpack.c.h.b16 %v749
  %v793 = vunpack.c.l.b16 %v750
  %v794 = vunpack.c.h.b16 %v750
  %v795 = vunpack.c.l.b16 %v751
  %v796 = vunpack.c.h.b16 %v751
  %v797 = vunpack.c.l.b16 %v752
  %v798 = vunpack.c.h.b16 %v752
  %v799 = vunpack.c.l.b16 %v753
  %v800 = vunpack.c.h.b16 %v753
  %v801 = vunpack.c.l.b16 %v754
  %v802 = vunpack.c.h.b16 %v754
  %v803 = vunpack.c.l.b16 %v755
  %v804 = vunpack.c.h.b16 %v755
  %v805 = vunpack.c.l.b16 %v756
  %v806 = vunpack.c.h.b16 %v756
  %v807 = vunpack.c.l.b16 %v757
  %v808 = vunpack.c.h.b16 %v757
  %v809 = vunpack.c.l.b16 %v758
  %v810 = vunpack.c.h.b16 %v758
  %v811 = vpack.c.b16 %v781, %v779
  %v812 = vpack.c.b16 %v782, %v780
  %v813 = vpack.c.b16 %v785, %v783
  %v814 = vpack.c.b16 %v786, %v784
  %v815 = vpack.c.b16 %v789, %v787
  %v816 = vpack.c.b16 %v790, %v788
  %v817 = vpack.c.b16 %v793, %v791
  %v818 = vpack.c.b16 %v794, %v792
  %v819 = vpack.c.b16 %v797, %v795
  %v820 = vpack.c.b16 %v798, %v796
  %v821 = vpack.c.b16 %v801, %v799
  %v822 = vpack.c.b16 %v802, %v800
  %v823 = vpack.c.b16 %v805, %v803
  %v824 = vpack.c.b16 %v806, %v804
  %v825 = vpack.c.b16 %v809, %v807
  %v826 = vpack.c.b16 %v810, %v808
  %843 = vmatpush.bf16.msra.mxu0 %v825
  %844 = vmatpush.bf16.msra.mxu0 %v823
  %845 = vmatpush.bf16.msra.mxu0 %v821
  %846 = vmatpush.bf16.msra.mxu0 %v819
  %847 = vmatpush.bf16.msra.mxu0 %v817
  %848 = vmatpush.bf16.msra.mxu0 %v815
  %849 = vmatpush.bf16.msra.mxu0 %v813
  %850 = vmatpush.bf16.msra.mxu0 %v811
  %851 = vmatmul.bf16.gmra.mxu0 %v477
  %v852 = vpop.f32.mrf.mxu0
  %v853 = vadd.f32 0.0, %v852
  %v854 = vpop.f32.mrf.mxu0
  %v855 = vadd.f32 0.0, %v854
  %856 = vmatmul.bf16.gmra.mxu0 %v478
  %v857 = vpop.f32.mrf.mxu0
  %v858 = vadd.f32 0.0, %v857
  %v859 = vpop.f32.mrf.mxu0
  %v860 = vadd.f32 0.0, %v859
  %861 = vmatmul.bf16.gmra.mxu0 %v479
  %v862 = vpop.f32.mrf.mxu0
  %v863 = vadd.f32 0.0, %v862
  %v864 = vpop.f32.mrf.mxu0
  %v865 = vadd.f32 0.0, %v864
  %866 = vmatmul.bf16.gmra.mxu0 %v480
  %v867 = vpop.f32.mrf.mxu0
  %v868 = vadd.f32 0.0, %v867
  %v869 = vpop.f32.mrf.mxu0
  %v870 = vadd.f32 0.0, %v869
  %871 = vmatmul.bf16.gmra.mxu0 %v481
  %v872 = vpop.f32.mrf.mxu0
  %v873 = vadd.f32 0.0, %v872
  %v874 = vpop.f32.mrf.mxu0
  %v875 = vadd.f32 0.0, %v874
  %876 = vmatmul.bf16.gmra.mxu0 %v482
  %v877 = vpop.f32.mrf.mxu0
  %v878 = vadd.f32 0.0, %v877
  %v879 = vpop.f32.mrf.mxu0
  %v880 = vadd.f32 0.0, %v879
  %881 = vmatmul.bf16.gmra.mxu0 %v483
  %v882 = vpop.f32.mrf.mxu0
  %v883 = vadd.f32 0.0, %v882
  %v884 = vpop.f32.mrf.mxu0
  %v885 = vadd.f32 0.0, %v884
  %886 = vmatmul.bf16.gmra.mxu0 %v484
  %v887 = vpop.f32.mrf.mxu0
  %v888 = vadd.f32 0.0, %v887
  %v889 = vpop.f32.mrf.mxu0
  %v890 = vadd.f32 0.0, %v889
  %891 = vmatmul.bf16.gmra.mxu0 %v485
  %v892 = vpop.f32.mrf.mxu0
  %v893 = vadd.f32 0.0, %v892
  %v894 = vpop.f32.mrf.mxu0
  %v895 = vadd.f32 0.0, %v894
  %896 = vmatmul.bf16.gmra.mxu0 %v486
  %v897 = vpop.f32.mrf.mxu0
  %v898 = vadd.f32 0.0, %v897
  %v899 = vpop.f32.mrf.mxu0
  %v900 = vadd.f32 0.0, %v899
  %901 = vmatmul.bf16.gmra.mxu0 %v487
  %v902 = vpop.f32.mrf.mxu0
  %v903 = vadd.f32 0.0, %v902
  %v904 = vpop.f32.mrf.mxu0
  %v905 = vadd.f32 0.0, %v904
  %906 = vmatmul.bf16.gmra.mxu0 %v488
  %v907 = vpop.f32.mrf.mxu0
  %v908 = vadd.f32 0.0, %v907
  %v909 = vpop.f32.mrf.mxu0
  %v910 = vadd.f32 0.0, %v909
  %911 = vmatmul.bf16.gmra.mxu0 %v489
  %v912 = vpop.f32.mrf.mxu0
  %v913 = vadd.f32 0.0, %v912
  %v914 = vpop.f32.mrf.mxu0
  %v915 = vadd.f32 0.0, %v914
  %916 = vmatmul.bf16.gmra.mxu0 %v761
  %v917 = vpop.f32.mrf.mxu0
  %v918 = vadd.f32 0.0, %v917
  %v919 = vpop.f32.mrf.mxu0
  %v920 = vadd.f32 0.0, %v919
  %921 = vdwg.mxu0
  %922 = vmatpush.bf16.msra.mxu0 %v826
  %923 = vmatpush.bf16.msra.mxu0 %v824
  %924 = vmatpush.bf16.msra.mxu0 %v822
  %925 = vmatpush.bf16.msra.mxu0 %v820
  %926 = vmatpush.bf16.msra.mxu0 %v818
  %927 = vmatpush.bf16.msra.mxu0 %v816
  %928 = vmatpush.bf16.msra.mxu0 %v814
  %929 = vmatpush.bf16.msra.mxu0 %v812
  %930 = vmatmul.bf16.gmra.mxu0 %v477
  %v931 = vpop.f32.mrf.mxu0
  %v932 = vadd.f32 0.0, %v931
  %v933 = vpop.f32.mrf.mxu0
  %v934 = vadd.f32 0.0, %v933
  %935 = vmatmul.bf16.gmra.mxu0 %v478
  %v936 = vpop.f32.mrf.mxu0
  %v937 = vadd.f32 0.0, %v936
  %v938 = vpop.f32.mrf.mxu0
  %v939 = vadd.f32 0.0, %v938
  %940 = vmatmul.bf16.gmra.mxu0 %v479
  %v941 = vpop.f32.mrf.mxu0
  %v942 = vadd.f32 0.0, %v941
  %v943 = vpop.f32.mrf.mxu0
  %v944 = vadd.f32 0.0, %v943
  %945 = vmatmul.bf16.gmra.mxu0 %v480
  %v946 = vpop.f32.mrf.mxu0
  %v947 = vadd.f32 0.0, %v946
  %v948 = vpop.f32.mrf.mxu0
  %v949 = vadd.f32 0.0, %v948
  %950 = vmatmul.bf16.gmra.mxu0 %v481
  %v951 = vpop.f32.mrf.mxu0
  %v952 = vadd.f32 0.0, %v951
  %v953 = vpop.f32.mrf.mxu0
  %v954 = vadd.f32 0.0, %v953
  %955 = vmatmul.bf16.gmra.mxu0 %v482
  %v956 = vpop.f32.mrf.mxu0
  %v957 = vadd.f32 0.0, %v956
  %v958 = vpop.f32.mrf.mxu0
  %v959 = vadd.f32 0.0, %v958
  %960 = vmatmul.bf16.gmra.mxu0 %v483
  %v961 = vpop.f32.mrf.mxu0
  %v962 = vadd.f32 0.0, %v961
  %v963 = vpop.f32.mrf.mxu0
  %v964 = vadd.f32 0.0, %v963
  %965 = vmatmul.bf16.gmra.mxu0 %v484
  %v966 = vpop.f32.mrf.mxu0
  %v967 = vadd.f32 0.0, %v966
  %v968 = vpop.f32.mrf.mxu0
  %v969 = vadd.f32 0.0, %v968
  %970 = vmatmul.bf16.gmra.mxu0 %v485
  %v971 = vpop.f32.mrf.mxu0
  %v972 = vadd.f32 0.0, %v971
  %v973 = vpop.f32.mrf.mxu0
  %v974 = vadd.f32 0.0, %v973
  %975 = vmatmul.bf16.gmra.mxu0 %v486
  %v976 = vpop.f32.mrf.mxu0
  %v977 = vadd.f32 0.0, %v976
  %v978 = vpop.f32.mrf.mxu0
  %v979 = vadd.f32 0.0, %v978
  %980 = vmatmul.bf16.gmra.mxu0 %v487
  %v981 = vpop.f32.mrf.mxu0
  %v982 = vadd.f32 0.0, %v981
  %v983 = vpop.f32.mrf.mxu0
  %v984 = vadd.f32 0.0, %v983
  %985 = vmatmul.bf16.gmra.mxu0 %v488
  %v986 = vpop.f32.mrf.mxu0
  %v987 = vadd.f32 0.0, %v986
  %v988 = vpop.f32.mrf.mxu0
  %v989 = vadd.f32 0.0, %v988
  %990 = vmatmul.bf16.gmra.mxu0 %v489
  %v991 = vpop.f32.mrf.mxu0
  %v992 = vadd.f32 0.0, %v991
  %v993 = vpop.f32.mrf.mxu0
  %v994 = vadd.f32 0.0, %v993
  %995 = vmatmul.bf16.gmra.mxu0 %v761
  %v996 = vpop.f32.mrf.mxu0
  %v997 = vadd.f32 0.0, %v996
  %v998 = vpop.f32.mrf.mxu0
  %v999 = vadd.f32 0.0, %v998
  %1000 = vdwg.mxu0
  %v1001 = vadd.f32 %v594, %v853
  %v1002 = vadd.f32 %v673, %v932
  %v1003 = vadd.f32 %v596, %v855
  %v1004 = vadd.f32 %v675, %v934
  %v1005 = vadd.f32 %v599, %v858
  %v1006 = vadd.f32 %v678, %v937
  %v1007 = vadd.f32 %v601, %v860
  %v1008 = vadd.f32 %v680, %v939
  %v1009 = vadd.f32 %v604, %v863
  %v1010 = vadd.f32 %v683, %v942
  %v1011 = vadd.f32 %v606, %v865
  %v1012 = vadd.f32 %v685, %v944
  %v1013 = vadd.f32 %v609, %v868
  %v1014 = vadd.f32 %v688, %v947
  %v1015 = vadd.f32 %v611, %v870
  %v1016 = vadd.f32 %v690, %v949
  %v1017 = vadd.f32 %v614, %v873
  %v1018 = vadd.f32 %v693, %v952
  %v1019 = vadd.f32 %v616, %v875
  %v1020 = vadd.f32 %v695, %v954
  %v1021 = vadd.f32 %v619, %v878
  %v1022 = vadd.f32 %v698, %v957
  %v1023 = vadd.f32 %v621, %v880
  %v1024 = vadd.f32 %v700, %v959
  %v1025 = vadd.f32 %v624, %v883
  %v1026 = vadd.f32 %v703, %v962
  %v1027 = vadd.f32 %v626, %v885
  %v1028 = vadd.f32 %v705, %v964
  %v1029 = vadd.f32 %v629, %v888
  %v1030 = vadd.f32 %v708, %v967
  %v1031 = vadd.f32 %v631, %v890
  %v1032 = vadd.f32 %v710, %v969
  %v1033 = vadd.f32 %v634, %v893
  %v1034 = vadd.f32 %v713, %v972
  %v1035 = vadd.f32 %v636, %v895
  %v1036 = vadd.f32 %v715, %v974
  %v1037 = vadd.f32 %v639, %v898
  %v1038 = vadd.f32 %v718, %v977
  %v1039 = vadd.f32 %v641, %v900
  %v1040 = vadd.f32 %v720, %v979
  %v1041 = vadd.f32 %v644, %v903
  %v1042 = vadd.f32 %v723, %v982
  %v1043 = vadd.f32 %v646, %v905
  %v1044 = vadd.f32 %v725, %v984
  %v1045 = vadd.f32 %v649, %v908
  %v1046 = vadd.f32 %v728, %v987
  %v1047 = vadd.f32 %v651, %v910
  %v1048 = vadd.f32 %v730, %v989
  %v1049 = vadd.f32 %v654, %v913
  %v1050 = vadd.f32 %v733, %v992
  %v1051 = vadd.f32 %v656, %v915
  %v1052 = vadd.f32 %v735, %v994
  %v1053 = vadd.f32 %v659, %v918
  %v1054 = vadd.f32 %v738, %v997
  %v1055 = vadd.f32 %v661, %v920
  %v1056 = vadd.f32 %v740, %v999
  %s1057 = scalar_lea.vmem %s1, 384
  %v1058 = vld [vmem:[%s1057] sm:$0xff]
  %v1059 = vld [vmem:[%s1057 + $0x8] sm:$0xff]
  %v1060 = vld [vmem:[%s1057 + $0x10] sm:$0xff]
  %v1061 = vld [vmem:[%s1057 + $0x18] sm:$0xff]
  %v1062 = vld [vmem:[%s1057 + $0x20] sm:$0xff]
  %v1063 = vld [vmem:[%s1057 + $0x28] sm:$0xff]
  %v1064 = vld [vmem:[%s1057 + $0x30] sm:$0xff]
  %v1065 = vld [vmem:[%s1057 + $0x38] sm:$0xff]
  %v1066 = vld [vmem:[%s1057 + $0x40] sm:$0xff]
  %v1067 = vld [vmem:[%s1057 + $0x48] sm:$0xff]
  %v1068 = vld [vmem:[%s1057 + $0x50] sm:$0xff]
  %v1069 = vld [vmem:[%s1057 + $0x58] sm:$0xff]
  %v1070 = vld [vmem:[%s1057 + $0x60] sm:$0xff]
  %v1071 = vld [vmem:[%s1057 + $0x68] sm:$0xff]
  %v1072 = vld [vmem:[%s1057 + $0x70] sm:$0xff]
  %v1073 = vld [vmem:[%s1057 + $0x78] sm:$0xff]
  %v1075 = vunpack.c.l.b16 %v116
  %v1076 = vpack.c.b16 %v1075, %v760
  %v1094 = vunpack.c.l.b16 %v1058
  %v1095 = vunpack.c.h.b16 %v1058
  %v1096 = vunpack.c.l.b16 %v1059
  %v1097 = vunpack.c.h.b16 %v1059
  %v1098 = vunpack.c.l.b16 %v1060
  %v1099 = vunpack.c.h.b16 %v1060
  %v1100 = vunpack.c.l.b16 %v1061
  %v1101 = vunpack.c.h.b16 %v1061
  %v1102 = vunpack.c.l.b16 %v1062
  %v1103 = vunpack.c.h.b16 %v1062
  %v1104 = vunpack.c.l.b16 %v1063
  %v1105 = vunpack.c.h.b16 %v1063
  %v1106 = vunpack.c.l.b16 %v1064
  %v1107 = vunpack.c.h.b16 %v1064
  %v1108 = vunpack.c.l.b16 %v1065
  %v1109 = vunpack.c.h.b16 %v1065
  %v1110 = vunpack.c.l.b16 %v1066
  %v1111 = vunpack.c.h.b16 %v1066
  %v1112 = vunpack.c.l.b16 %v1067
  %v1113 = vunpack.c.h.b16 %v1067
  %v1114 = vunpack.c.l.b16 %v1068
  %v1115 = vunpack.c.h.b16 %v1068
  %v1116 = vunpack.c.l.b16 %v1069
  %v1117 = vunpack.c.h.b16 %v1069
  %v1118 = vunpack.c.l.b16 %v1070
  %v1119 = vunpack.c.h.b16 %v1070
  %v1120 = vunpack.c.l.b16 %v1071
  %v1121 = vunpack.c.h.b16 %v1071
  %v1122 = vunpack.c.l.b16 %v1072
  %v1123 = vunpack.c.h.b16 %v1072
  %v1124 = vunpack.c.l.b16 %v1073
  %v1125 = vunpack.c.h.b16 %v1073
  %v1126 = vpack.c.b16 %v1096, %v1094
  %v1127 = vpack.c.b16 %v1097, %v1095
  %v1128 = vpack.c.b16 %v1100, %v1098
  %v1129 = vpack.c.b16 %v1101, %v1099
  %v1130 = vpack.c.b16 %v1104, %v1102
  %v1131 = vpack.c.b16 %v1105, %v1103
  %v1132 = vpack.c.b16 %v1108, %v1106
  %v1133 = vpack.c.b16 %v1109, %v1107
  %v1134 = vpack.c.b16 %v1112, %v1110
  %v1135 = vpack.c.b16 %v1113, %v1111
  %v1136 = vpack.c.b16 %v1116, %v1114
  %v1137 = vpack.c.b16 %v1117, %v1115
  %v1138 = vpack.c.b16 %v1120, %v1118
  %v1139 = vpack.c.b16 %v1121, %v1119
  %v1140 = vpack.c.b16 %v1124, %v1122
  %v1141 = vpack.c.b16 %v1125, %v1123
  %1158 = vmatpush.bf16.msra.mxu0 %v1140
  %1159 = vmatpush.bf16.msra.mxu0 %v1138
  %1160 = vmatpush.bf16.msra.mxu0 %v1136
  %1161 = vmatpush.bf16.msra.mxu0 %v1134
  %1162 = vmatpush.bf16.msra.mxu0 %v1132
  %1163 = vmatpush.bf16.msra.mxu0 %v1130
  %1164 = vmatpush.bf16.msra.mxu0 %v1128
  %1165 = vmatpush.bf16.msra.mxu0 %v1126
  %1166 = vmatmul.bf16.gmra.mxu0 %v209
  %v1167 = vpop.f32.mrf.mxu0
  %v1168 = vadd.f32 0.0, %v1167
  %v1169 = vpop.f32.mrf.mxu0
  %v1170 = vadd.f32 0.0, %v1169
  %1171 = vmatmul.bf16.gmra.mxu0 %v210
  %v1172 = vpop.f32.mrf.mxu0
  %v1173 = vadd.f32 0.0, %v1172
  %v1174 = vpop.f32.mrf.mxu0
  %v1175 = vadd.f32 0.0, %v1174
  %1176 = vmatmul.bf16.gmra.mxu0 %v211
  %v1177 = vpop.f32.mrf.mxu0
  %v1178 = vadd.f32 0.0, %v1177
  %v1179 = vpop.f32.mrf.mxu0
  %v1180 = vadd.f32 0.0, %v1179
  %1181 = vmatmul.bf16.gmra.mxu0 %v212
  %v1182 = vpop.f32.mrf.mxu0
  %v1183 = vadd.f32 0.0, %v1182
  %v1184 = vpop.f32.mrf.mxu0
  %v1185 = vadd.f32 0.0, %v1184
  %1186 = vmatmul.bf16.gmra.mxu0 %v213
  %v1187 = vpop.f32.mrf.mxu0
  %v1188 = vadd.f32 0.0, %v1187
  %v1189 = vpop.f32.mrf.mxu0
  %v1190 = vadd.f32 0.0, %v1189
  %1191 = vmatmul.bf16.gmra.mxu0 %v214
  %v1192 = vpop.f32.mrf.mxu0
  %v1193 = vadd.f32 0.0, %v1192
  %v1194 = vpop.f32.mrf.mxu0
  %v1195 = vadd.f32 0.0, %v1194
  %1196 = vmatmul.bf16.gmra.mxu0 %v215
  %v1197 = vpop.f32.mrf.mxu0
  %v1198 = vadd.f32 0.0, %v1197
  %v1199 = vpop.f32.mrf.mxu0
  %v1200 = vadd.f32 0.0, %v1199
  %1201 = vmatmul.bf16.gmra.mxu0 %v216
  %v1202 = vpop.f32.mrf.mxu0
  %v1203 = vadd.f32 0.0, %v1202
  %v1204 = vpop.f32.mrf.mxu0
  %v1205 = vadd.f32 0.0, %v1204
  %1206 = vmatmul.bf16.gmra.mxu0 %v217
  %v1207 = vpop.f32.mrf.mxu0
  %v1208 = vadd.f32 0.0, %v1207
  %v1209 = vpop.f32.mrf.mxu0
  %v1210 = vadd.f32 0.0, %v1209
  %1211 = vmatmul.bf16.gmra.mxu0 %v218
  %v1212 = vpop.f32.mrf.mxu0
  %v1213 = vadd.f32 0.0, %v1212
  %v1214 = vpop.f32.mrf.mxu0
  %v1215 = vadd.f32 0.0, %v1214
  %1216 = vmatmul.bf16.gmra.mxu0 %v219
  %v1217 = vpop.f32.mrf.mxu0
  %v1218 = vadd.f32 0.0, %v1217
  %v1219 = vpop.f32.mrf.mxu0
  %v1220 = vadd.f32 0.0, %v1219
  %1221 = vmatmul.bf16.gmra.mxu0 %v220
  %v1222 = vpop.f32.mrf.mxu0
  %v1223 = vadd.f32 0.0, %v1222
  %v1224 = vpop.f32.mrf.mxu0
  %v1225 = vadd.f32 0.0, %v1224
  %1226 = vmatmul.bf16.gmra.mxu0 %v221
  %v1227 = vpop.f32.mrf.mxu0
  %v1228 = vadd.f32 0.0, %v1227
  %v1229 = vpop.f32.mrf.mxu0
  %v1230 = vadd.f32 0.0, %v1229
  %1231 = vmatmul.bf16.gmra.mxu0 %v1076
  %v1232 = vpop.f32.mrf.mxu0
  %v1233 = vadd.f32 0.0, %v1232
  %v1234 = vpop.f32.mrf.mxu0
  %v1235 = vadd.f32 0.0, %v1234
  %1236 = vdwg.mxu0
  %1237 = vmatpush.bf16.msra.mxu0 %v1141
  %1238 = vmatpush.bf16.msra.mxu0 %v1139
  %1239 = vmatpush.bf16.msra.mxu0 %v1137
  %1240 = vmatpush.bf16.msra.mxu0 %v1135
  %1241 = vmatpush.bf16.msra.mxu0 %v1133
  %1242 = vmatpush.bf16.msra.mxu0 %v1131
  %1243 = vmatpush.bf16.msra.mxu0 %v1129
  %1244 = vmatpush.bf16.msra.mxu0 %v1127
  %1245 = vmatmul.bf16.gmra.mxu0 %v209
  %v1246 = vpop.f32.mrf.mxu0
  %v1247 = vadd.f32 0.0, %v1246
  %v1248 = vpop.f32.mrf.mxu0
  %v1249 = vadd.f32 0.0, %v1248
  %1250 = vmatmul.bf16.gmra.mxu0 %v210
  %v1251 = vpop.f32.mrf.mxu0
  %v1252 = vadd.f32 0.0, %v1251
  %v1253 = vpop.f32.mrf.mxu0
  %v1254 = vadd.f32 0.0, %v1253
  %1255 = vmatmul.bf16.gmra.mxu0 %v211
  %v1256 = vpop.f32.mrf.mxu0
  %v1257 = vadd.f32 0.0, %v1256
  %v1258 = vpop.f32.mrf.mxu0
  %v1259 = vadd.f32 0.0, %v1258
  %1260 = vmatmul.bf16.gmra.mxu0 %v212
  %v1261 = vpop.f32.mrf.mxu0
  %v1262 = vadd.f32 0.0, %v1261
  %v1263 = vpop.f32.mrf.mxu0
  %v1264 = vadd.f32 0.0, %v1263
  %1265 = vmatmul.bf16.gmra.mxu0 %v213
  %v1266 = vpop.f32.mrf.mxu0
  %v1267 = vadd.f32 0.0, %v1266
  %v1268 = vpop.f32.mrf.mxu0
  %v1269 = vadd.f32 0.0, %v1268
  %1270 = vmatmul.bf16.gmra.mxu0 %v214
  %v1271 = vpop.f32.mrf.mxu0
  %v1272 = vadd.f32 0.0, %v1271
  %v1273 = vpop.f32.mrf.mxu0
  %v1274 = vadd.f32 0.0, %v1273
  %1275 = vmatmul.bf16.gmra.mxu0 %v215
  %v1276 = vpop.f32.mrf.mxu0
  %v1277 = vadd.f32 0.0, %v1276
  %v1278 = vpop.f32.mrf.mxu0
  %v1279 = vadd.f32 0.0, %v1278
  %1280 = vmatmul.bf16.gmra.mxu0 %v216
  %v1281 = vpop.f32.mrf.mxu0
  %v1282 = vadd.f32 0.0, %v1281
  %v1283 = vpop.f32.mrf.mxu0
  %v1284 = vadd.f32 0.0, %v1283
  %1285 = vmatmul.bf16.gmra.mxu0 %v217
  %v1286 = vpop.f32.mrf.mxu0
  %v1287 = vadd.f32 0.0, %v1286
  %v1288 = vpop.f32.mrf.mxu0
  %v1289 = vadd.f32 0.0, %v1288
  %1290 = vmatmul.bf16.gmra.mxu0 %v218
  %v1291 = vpop.f32.mrf.mxu0
  %v1292 = vadd.f32 0.0, %v1291
  %v1293 = vpop.f32.mrf.mxu0
  %v1294 = vadd.f32 0.0, %v1293
  %1295 = vmatmul.bf16.gmra.mxu0 %v219
  %v1296 = vpop.f32.mrf.mxu0
  %v1297 = vadd.f32 0.0, %v1296
  %v1298 = vpop.f32.mrf.mxu0
  %v1299 = vadd.f32 0.0, %v1298
  %1300 = vmatmul.bf16.gmra.mxu0 %v220
  %v1301 = vpop.f32.mrf.mxu0
  %v1302 = vadd.f32 0.0, %v1301
  %v1303 = vpop.f32.mrf.mxu0
  %v1304 = vadd.f32 0.0, %v1303
  %1305 = vmatmul.bf16.gmra.mxu0 %v221
  %v1306 = vpop.f32.mrf.mxu0
  %v1307 = vadd.f32 0.0, %v1306
  %v1308 = vpop.f32.mrf.mxu0
  %v1309 = vadd.f32 0.0, %v1308
  %1310 = vmatmul.bf16.gmra.mxu0 %v1076
  %v1311 = vpop.f32.mrf.mxu0
  %v1312 = vadd.f32 0.0, %v1311
  %v1313 = vpop.f32.mrf.mxu0
  %v1314 = vadd.f32 0.0, %v1313
  %1315 = vdwg.mxu0
  %v1316 = vadd.f32 %v1001, %v1168
  %v1317 = vadd.f32 %v1002, %v1247
  %v1318 = vadd.f32 %v1003, %v1170
  %v1319 = vadd.f32 %v1004, %v1249
  %v1320 = vadd.f32 %v1005, %v1173
  %v1321 = vadd.f32 %v1006, %v1252
  %v1322 = vadd.f32 %v1007, %v1175
  %v1323 = vadd.f32 %v1008, %v1254
  %v1324 = vadd.f32 %v1009, %v1178
  %v1325 = vadd.f32 %v1010, %v1257
  %v1326 = vadd.f32 %v1011, %v1180
  %v1327 = vadd.f32 %v1012, %v1259
  %v1328 = vadd.f32 %v1013, %v1183
  %v1329 = vadd.f32 %v1014, %v1262
  %v1330 = vadd.f32 %v1015, %v1185
  %v1331 = vadd.f32 %v1016, %v1264
  %v1332 = vadd.f32 %v1017, %v1188
  %v1333 = vadd.f32 %v1018, %v1267
  %v1334 = vadd.f32 %v1019, %v1190
  %v1335 = vadd.f32 %v1020, %v1269
  %v1336 = vadd.f32 %v1021, %v1193
  %v1337 = vadd.f32 %v1022, %v1272
  %v1338 = vadd.f32 %v1023, %v1195
  %v1339 = vadd.f32 %v1024, %v1274
  %v1340 = vadd.f32 %v1025, %v1198
  %v1341 = vadd.f32 %v1026, %v1277
  %v1342 = vadd.f32 %v1027, %v1200
  %v1343 = vadd.f32 %v1028, %v1279
  %v1344 = vadd.f32 %v1029, %v1203
  %v1345 = vadd.f32 %v1030, %v1282
  %v1346 = vadd.f32 %v1031, %v1205
  %v1347 = vadd.f32 %v1032, %v1284
  %v1348 = vadd.f32 %v1033, %v1208
  %v1349 = vadd.f32 %v1034, %v1287
  %v1350 = vadd.f32 %v1035, %v1210
  %v1351 = vadd.f32 %v1036, %v1289
  %v1352 = vadd.f32 %v1037, %v1213
  %v1353 = vadd.f32 %v1038, %v1292
  %v1354 = vadd.f32 %v1039, %v1215
  %v1355 = vadd.f32 %v1040, %v1294
  %v1356 = vadd.f32 %v1041, %v1218
  %v1357 = vadd.f32 %v1042, %v1297
  %v1358 = vadd.f32 %v1043, %v1220
  %v1359 = vadd.f32 %v1044, %v1299
  %v1360 = vadd.f32 %v1045, %v1223
  %v1361 = vadd.f32 %v1046, %v1302
  %v1362 = vadd.f32 %v1047, %v1225
  %v1363 = vadd.f32 %v1048, %v1304
  %v1364 = vadd.f32 %v1049, %v1228
  %v1365 = vadd.f32 %v1050, %v1307
  %v1366 = vadd.f32 %v1051, %v1230
  %v1367 = vadd.f32 %v1052, %v1309
  %v1368 = vadd.f32 %v1053, %v1233
  %v1369 = vadd.f32 %v1054, %v1312
  %v1370 = vadd.f32 %v1055, %v1235
  %v1371 = vadd.f32 %v1056, %v1314
  %s1372 = scalar_lea.vmem %s1, 512
  %v1373 = vld [vmem:[%s1372] sm:$0xff]
  %v1374 = vld [vmem:[%s1372 + $0x8] sm:$0xff]
  %v1375 = vld [vmem:[%s1372 + $0x10] sm:$0xff]
  %v1376 = vld [vmem:[%s1372 + $0x18] sm:$0xff]
  %v1377 = vld [vmem:[%s1372 + $0x20] sm:$0xff]
  %v1378 = vld [vmem:[%s1372 + $0x28] sm:$0xff]
  %v1379 = vld [vmem:[%s1372 + $0x30] sm:$0xff]
  %v1380 = vld [vmem:[%s1372 + $0x38] sm:$0xff]
  %v1381 = vld [vmem:[%s1372 + $0x40] sm:$0xff]
  %v1382 = vld [vmem:[%s1372 + $0x48] sm:$0xff]
  %v1383 = vld [vmem:[%s1372 + $0x50] sm:$0xff]
  %v1384 = vld [vmem:[%s1372 + $0x58] sm:$0xff]
  %v1385 = vld [vmem:[%s1372 + $0x60] sm:$0xff]
  %v1386 = vld [vmem:[%s1372 + $0x68] sm:$0xff]
  %v1387 = vld [vmem:[%s1372 + $0x70] sm:$0xff]
  %v1388 = vld [vmem:[%s1372 + $0x78] sm:$0xff]
  %v1390 = vunpack.c.l.b16 %v117
  %v1391 = vpack.c.b16 %v1390, %v1075
  %v1409 = vunpack.c.l.b16 %v1373
  %v1410 = vunpack.c.h.b16 %v1373
  %v1411 = vunpack.c.l.b16 %v1374
  %v1412 = vunpack.c.h.b16 %v1374
  %v1413 = vunpack.c.l.b16 %v1375
  %v1414 = vunpack.c.h.b16 %v1375
  %v1415 = vunpack.c.l.b16 %v1376
  %v1416 = vunpack.c.h.b16 %v1376
  %v1417 = vunpack.c.l.b16 %v1377
  %v1418 = vunpack.c.h.b16 %v1377
  %v1419 = vunpack.c.l.b16 %v1378
  %v1420 = vunpack.c.h.b16 %v1378
  %v1421 = vunpack.c.l.b16 %v1379
  %v1422 = vunpack.c.h.b16 %v1379
  %v1423 = vunpack.c.l.b16 %v1380
  %v1424 = vunpack.c.h.b16 %v1380
  %v1425 = vunpack.c.l.b16 %v1381
  %v1426 = vunpack.c.h.b16 %v1381
  %v1427 = vunpack.c.l.b16 %v1382
  %v1428 = vunpack.c.h.b16 %v1382
  %v1429 = vunpack.c.l.b16 %v1383
  %v1430 = vunpack.c.h.b16 %v1383
  %v1431 = vunpack.c.l.b16 %v1384
  %v1432 = vunpack.c.h.b16 %v1384
  %v1433 = vunpack.c.l.b16 %v1385
  %v1434 = vunpack.c.h.b16 %v1385
  %v1435 = vunpack.c.l.b16 %v1386
  %v1436 = vunpack.c.h.b16 %v1386
  %v1437 = vunpack.c.l.b16 %v1387
  %v1438 = vunpack.c.h.b16 %v1387
  %v1439 = vunpack.c.l.b16 %v1388
  %v1440 = vunpack.c.h.b16 %v1388
  %v1441 = vpack.c.b16 %v1411, %v1409
  %v1442 = vpack.c.b16 %v1412, %v1410
  %v1443 = vpack.c.b16 %v1415, %v1413
  %v1444 = vpack.c.b16 %v1416, %v1414
  %v1445 = vpack.c.b16 %v1419, %v1417
  %v1446 = vpack.c.b16 %v1420, %v1418
  %v1447 = vpack.c.b16 %v1423, %v1421
  %v1448 = vpack.c.b16 %v1424, %v1422
  %v1449 = vpack.c.b16 %v1427, %v1425
  %v1450 = vpack.c.b16 %v1428, %v1426
  %v1451 = vpack.c.b16 %v1431, %v1429
  %v1452 = vpack.c.b16 %v1432, %v1430
  %v1453 = vpack.c.b16 %v1435, %v1433
  %v1454 = vpack.c.b16 %v1436, %v1434
  %v1455 = vpack.c.b16 %v1439, %v1437
  %v1456 = vpack.c.b16 %v1440, %v1438
  %1473 = vmatpush.bf16.msra.mxu0 %v1455
  %1474 = vmatpush.bf16.msra.mxu0 %v1453
  %1475 = vmatpush.bf16.msra.mxu0 %v1451
  %1476 = vmatpush.bf16.msra.mxu0 %v1449
  %1477 = vmatpush.bf16.msra.mxu0 %v1447
  %1478 = vmatpush.bf16.msra.mxu0 %v1445
  %1479 = vmatpush.bf16.msra.mxu0 %v1443
  %1480 = vmatpush.bf16.msra.mxu0 %v1441
  %1481 = vmatmul.bf16.gmra.mxu0 %v478
  %v1482 = vpop.f32.mrf.mxu0
  %v1483 = vadd.f32 0.0, %v1482
  %v1484 = vpop.f32.mrf.mxu0
  %v1485 = vadd.f32 0.0, %v1484
  %1486 = vmatmul.bf16.gmra.mxu0 %v479
  %v1487 = vpop.f32.mrf.mxu0
  %v1488 = vadd.f32 0.0, %v1487
  %v1489 = vpop.f32.mrf.mxu0
  %v1490 = vadd.f32 0.0, %v1489
  %1491 = vmatmul.bf16.gmra.mxu0 %v480
  %v1492 = vpop.f32.mrf.mxu0
  %v1493 = vadd.f32 0.0, %v1492
  %v1494 = vpop.f32.mrf.mxu0
  %v1495 = vadd.f32 0.0, %v1494
  %1496 = vmatmul.bf16.gmra.mxu0 %v481
  %v1497 = vpop.f32.mrf.mxu0
  %v1498 = vadd.f32 0.0, %v1497
  %v1499 = vpop.f32.mrf.mxu0
  %v1500 = vadd.f32 0.0, %v1499
  %1501 = vmatmul.bf16.gmra.mxu0 %v482
  %v1502 = vpop.f32.mrf.mxu0
  %v1503 = vadd.f32 0.0, %v1502
  %v1504 = vpop.f32.mrf.mxu0
  %v1505 = vadd.f32 0.0, %v1504
  %1506 = vmatmul.bf16.gmra.mxu0 %v483
  %v1507 = vpop.f32.mrf.mxu0
  %v1508 = vadd.f32 0.0, %v1507
  %v1509 = vpop.f32.mrf.mxu0
  %v1510 = vadd.f32 0.0, %v1509
  %1511 = vmatmul.bf16.gmra.mxu0 %v484
  %v1512 = vpop.f32.mrf.mxu0
  %v1513 = vadd.f32 0.0, %v1512
  %v1514 = vpop.f32.mrf.mxu0
  %v1515 = vadd.f32 0.0, %v1514
  %1516 = vmatmul.bf16.gmra.mxu0 %v485
  %v1517 = vpop.f32.mrf.mxu0
  %v1518 = vadd.f32 0.0, %v1517
  %v1519 = vpop.f32.mrf.mxu0
  %v1520 = vadd.f32 0.0, %v1519
  %1521 = vmatmul.bf16.gmra.mxu0 %v486
  %v1522 = vpop.f32.mrf.mxu0
  %v1523 = vadd.f32 0.0, %v1522
  %v1524 = vpop.f32.mrf.mxu0
  %v1525 = vadd.f32 0.0, %v1524
  %1526 = vmatmul.bf16.gmra.mxu0 %v487
  %v1527 = vpop.f32.mrf.mxu0
  %v1528 = vadd.f32 0.0, %v1527
  %v1529 = vpop.f32.mrf.mxu0
  %v1530 = vadd.f32 0.0, %v1529
  %1531 = vmatmul.bf16.gmra.mxu0 %v488
  %v1532 = vpop.f32.mrf.mxu0
  %v1533 = vadd.f32 0.0, %v1532
  %v1534 = vpop.f32.mrf.mxu0
  %v1535 = vadd.f32 0.0, %v1534
  %1536 = vmatmul.bf16.gmra.mxu0 %v489
  %v1537 = vpop.f32.mrf.mxu0
  %v1538 = vadd.f32 0.0, %v1537
  %v1539 = vpop.f32.mrf.mxu0
  %v1540 = vadd.f32 0.0, %v1539
  %1541 = vmatmul.bf16.gmra.mxu0 %v761
  %v1542 = vpop.f32.mrf.mxu0
  %v1543 = vadd.f32 0.0, %v1542
  %v1544 = vpop.f32.mrf.mxu0
  %v1545 = vadd.f32 0.0, %v1544
  %1546 = vmatmul.bf16.gmra.mxu0 %v1391
  %v1547 = vpop.f32.mrf.mxu0
  %v1548 = vadd.f32 0.0, %v1547
  %v1549 = vpop.f32.mrf.mxu0
  %v1550 = vadd.f32 0.0, %v1549
  %1551 = vdwg.mxu0
  %1552 = vmatpush.bf16.msra.mxu0 %v1456
  %1553 = vmatpush.bf16.msra.mxu0 %v1454
  %1554 = vmatpush.bf16.msra.mxu0 %v1452
  %1555 = vmatpush.bf16.msra.mxu0 %v1450
  %1556 = vmatpush.bf16.msra.mxu0 %v1448
  %1557 = vmatpush.bf16.msra.mxu0 %v1446
  %1558 = vmatpush.bf16.msra.mxu0 %v1444
  %1559 = vmatpush.bf16.msra.mxu0 %v1442
  %1560 = vmatmul.bf16.gmra.mxu0 %v478
  %v1561 = vpop.f32.mrf.mxu0
  %v1562 = vadd.f32 0.0, %v1561
  %v1563 = vpop.f32.mrf.mxu0
  %v1564 = vadd.f32 0.0, %v1563
  %1565 = vmatmul.bf16.gmra.mxu0 %v479
  %v1566 = vpop.f32.mrf.mxu0
  %v1567 = vadd.f32 0.0, %v1566
  %v1568 = vpop.f32.mrf.mxu0
  %v1569 = vadd.f32 0.0, %v1568
  %1570 = vmatmul.bf16.gmra.mxu0 %v480
  %v1571 = vpop.f32.mrf.mxu0
  %v1572 = vadd.f32 0.0, %v1571
  %v1573 = vpop.f32.mrf.mxu0
  %v1574 = vadd.f32 0.0, %v1573
  %1575 = vmatmul.bf16.gmra.mxu0 %v481
  %v1576 = vpop.f32.mrf.mxu0
  %v1577 = vadd.f32 0.0, %v1576
  %v1578 = vpop.f32.mrf.mxu0
  %v1579 = vadd.f32 0.0, %v1578
  %1580 = vmatmul.bf16.gmra.mxu0 %v482
  %v1581 = vpop.f32.mrf.mxu0
  %v1582 = vadd.f32 0.0, %v1581
  %v1583 = vpop.f32.mrf.mxu0
  %v1584 = vadd.f32 0.0, %v1583
  %1585 = vmatmul.bf16.gmra.mxu0 %v483
  %v1586 = vpop.f32.mrf.mxu0
  %v1587 = vadd.f32 0.0, %v1586
  %v1588 = vpop.f32.mrf.mxu0
  %v1589 = vadd.f32 0.0, %v1588
  %1590 = vmatmul.bf16.gmra.mxu0 %v484
  %v1591 = vpop.f32.mrf.mxu0
  %v1592 = vadd.f32 0.0, %v1591
  %v1593 = vpop.f32.mrf.mxu0
  %v1594 = vadd.f32 0.0, %v1593
  %1595 = vmatmul.bf16.gmra.mxu0 %v485
  %v1596 = vpop.f32.mrf.mxu0
  %v1597 = vadd.f32 0.0, %v1596
  %v1598 = vpop.f32.mrf.mxu0
  %v1599 = vadd.f32 0.0, %v1598
  %1600 = vmatmul.bf16.gmra.mxu0 %v486
  %v1601 = vpop.f32.mrf.mxu0
  %v1602 = vadd.f32 0.0, %v1601
  %v1603 = vpop.f32.mrf.mxu0
  %v1604 = vadd.f32 0.0, %v1603
  %1605 = vmatmul.bf16.gmra.mxu0 %v487
  %v1606 = vpop.f32.mrf.mxu0
  %v1607 = vadd.f32 0.0, %v1606
  %v1608 = vpop.f32.mrf.mxu0
  %v1609 = vadd.f32 0.0, %v1608
  %1610 = vmatmul.bf16.gmra.mxu0 %v488
  %v1611 = vpop.f32.mrf.mxu0
  %v1612 = vadd.f32 0.0, %v1611
  %v1613 = vpop.f32.mrf.mxu0
  %v1614 = vadd.f32 0.0, %v1613
  %1615 = vmatmul.bf16.gmra.mxu0 %v489
  %v1616 = vpop.f32.mrf.mxu0
  %v1617 = vadd.f32 0.0, %v1616
  %v1618 = vpop.f32.mrf.mxu0
  %v1619 = vadd.f32 0.0, %v1618
  %1620 = vmatmul.bf16.gmra.mxu0 %v761
  %v1621 = vpop.f32.mrf.mxu0
  %v1622 = vadd.f32 0.0, %v1621
  %v1623 = vpop.f32.mrf.mxu0
  %v1624 = vadd.f32 0.0, %v1623
  %1625 = vmatmul.bf16.gmra.mxu0 %v1391
  %v1626 = vpop.f32.mrf.mxu0
  %v1627 = vadd.f32 0.0, %v1626
  %v1628 = vpop.f32.mrf.mxu0
  %v1629 = vadd.f32 0.0, %v1628
  %1630 = vdwg.mxu0
  %v1631 = vadd.f32 %v1316, %v1483
  %v1632 = vadd.f32 %v1317, %v1562
  %v1633 = vadd.f32 %v1318, %v1485
  %v1634 = vadd.f32 %v1319, %v1564
  %v1635 = vadd.f32 %v1320, %v1488
  %v1636 = vadd.f32 %v1321, %v1567
  %v1637 = vadd.f32 %v1322, %v1490
  %v1638 = vadd.f32 %v1323, %v1569
  %v1639 = vadd.f32 %v1324, %v1493
  %v1640 = vadd.f32 %v1325, %v1572
  %v1641 = vadd.f32 %v1326, %v1495
  %v1642 = vadd.f32 %v1327, %v1574
  %v1643 = vadd.f32 %v1328, %v1498
  %v1644 = vadd.f32 %v1329, %v1577
  %v1645 = vadd.f32 %v1330, %v1500
  %v1646 = vadd.f32 %v1331, %v1579
  %v1647 = vadd.f32 %v1332, %v1503
  %v1648 = vadd.f32 %v1333, %v1582
  %v1649 = vadd.f32 %v1334, %v1505
  %v1650 = vadd.f32 %v1335, %v1584
  %v1651 = vadd.f32 %v1336, %v1508
  %v1652 = vadd.f32 %v1337, %v1587
  %v1653 = vadd.f32 %v1338, %v1510
  %v1654 = vadd.f32 %v1339, %v1589
  %v1655 = vadd.f32 %v1340, %v1513
  %v1656 = vadd.f32 %v1341, %v1592
  %v1657 = vadd.f32 %v1342, %v1515
  %v1658 = vadd.f32 %v1343, %v1594
  %v1659 = vadd.f32 %v1344, %v1518
  %v1660 = vadd.f32 %v1345, %v1597
  %v1661 = vadd.f32 %v1346, %v1520
  %v1662 = vadd.f32 %v1347, %v1599
  %v1663 = vadd.f32 %v1348, %v1523
  %v1664 = vadd.f32 %v1349, %v1602
  %v1665 = vadd.f32 %v1350, %v1525
  %v1666 = vadd.f32 %v1351, %v1604
  %v1667 = vadd.f32 %v1352, %v1528
  %v1668 = vadd.f32 %v1353, %v1607
  %v1669 = vadd.f32 %v1354, %v1530
  %v1670 = vadd.f32 %v1355, %v1609
  %v1671 = vadd.f32 %v1356, %v1533
  %v1672 = vadd.f32 %v1357, %v1612
  %v1673 = vadd.f32 %v1358, %v1535
  %v1674 = vadd.f32 %v1359, %v1614
  %v1675 = vadd.f32 %v1360, %v1538
  %v1676 = vadd.f32 %v1361, %v1617
  %v1677 = vadd.f32 %v1362, %v1540
  %v1678 = vadd.f32 %v1363, %v1619
  %v1679 = vadd.f32 %v1364, %v1543
  %v1680 = vadd.f32 %v1365, %v1622
  %v1681 = vadd.f32 %v1366, %v1545
  %v1682 = vadd.f32 %v1367, %v1624
  %v1683 = vadd.f32 %v1368, %v1548
  %v1684 = vadd.f32 %v1369, %v1627
  %v1685 = vadd.f32 %v1370, %v1550
  %v1686 = vadd.f32 %v1371, %v1629
  %v1688 = vperm.slane %v118, 0
  %v1689 = vperm.slane %v118, 1
  %v1692 = vadd.f32 %v1631, %v1688
  %v1693 = vadd.f32 %v1632, %v1689
  %v1694 = vadd.f32 %v1633, %v1688
  %v1695 = vadd.f32 %v1634, %v1689
  %v1696 = vadd.f32 %v1635, %v1688
  %v1697 = vadd.f32 %v1636, %v1689
  %v1698 = vadd.f32 %v1637, %v1688
  %v1699 = vadd.f32 %v1638, %v1689
  %v1700 = vadd.f32 %v1639, %v1688
  %v1701 = vadd.f32 %v1640, %v1689
  %v1702 = vadd.f32 %v1641, %v1688
  %v1703 = vadd.f32 %v1642, %v1689
  %v1704 = vadd.f32 %v1643, %v1688
  %v1705 = vadd.f32 %v1644, %v1689
  %v1706 = vadd.f32 %v1645, %v1688
  %v1707 = vadd.f32 %v1646, %v1689
  %v1708 = vadd.f32 %v1647, %v1688
  %v1709 = vadd.f32 %v1648, %v1689
  %v1710 = vadd.f32 %v1649, %v1688
  %v1711 = vadd.f32 %v1650, %v1689
  %v1712 = vadd.f32 %v1651, %v1688
  %v1713 = vadd.f32 %v1652, %v1689
  %v1714 = vadd.f32 %v1653, %v1688
  %v1715 = vadd.f32 %v1654, %v1689
  %v1716 = vadd.f32 %v1655, %v1688
  %v1717 = vadd.f32 %v1656, %v1689
  %v1718 = vadd.f32 %v1657, %v1688
  %v1719 = vadd.f32 %v1658, %v1689
  %v1720 = vadd.f32 %v1659, %v1688
  %v1721 = vadd.f32 %v1660, %v1689
  %v1722 = vadd.f32 %v1661, %v1688
  %v1723 = vadd.f32 %v1662, %v1689
  %v1724 = vadd.f32 %v1663, %v1688
  %v1725 = vadd.f32 %v1664, %v1689
  %v1726 = vadd.f32 %v1665, %v1688
  %v1727 = vadd.f32 %v1666, %v1689
  %v1728 = vadd.f32 %v1667, %v1688
  %v1729 = vadd.f32 %v1668, %v1689
  %v1730 = vadd.f32 %v1669, %v1688
  %v1731 = vadd.f32 %v1670, %v1689
  %v1732 = vadd.f32 %v1671, %v1688
  %v1733 = vadd.f32 %v1672, %v1689
  %v1734 = vadd.f32 %v1673, %v1688
  %v1735 = vadd.f32 %v1674, %v1689
  %v1736 = vadd.f32 %v1675, %v1688
  %v1737 = vadd.f32 %v1676, %v1689
  %v1738 = vadd.f32 %v1677, %v1688
  %v1739 = vadd.f32 %v1678, %v1689
  %v1740 = vadd.f32 %v1679, %v1688
  %v1741 = vadd.f32 %v1680, %v1689
  %v1742 = vadd.f32 %v1681, %v1688
  %v1743 = vadd.f32 %v1682, %v1689
  %v1744 = vadd.f32 %v1683, %v1688
  %v1745 = vadd.f32 %v1684, %v1689
  %v1746 = vadd.f32 %v1685, %v1688
  %v1747 = vadd.f32 %v1686, %v1689
  %v1748 = vld [vmem:[%s8] sm:$0xff]
  %v1749 = vld [vmem:[%s8 + $0x8] sm:$0xff]
  %v1750 = vld [vmem:[%s8 + $0x10] sm:$0xff]
  %v1751 = vld [vmem:[%s8 + $0x18] sm:$0xff]
  %v1752 = vld [vmem:[%s8 + $0x20] sm:$0xff]
  %v1753 = vld [vmem:[%s8 + $0x28] sm:$0xff]
  %v1754 = vld [vmem:[%s8 + $0x30] sm:$0xff]
  %v1755 = vld [vmem:[%s8 + $0x38] sm:$0xff]
  %v1756 = vld [vmem:[%s8 + $0x40] sm:$0xff]
  %v1757 = vld [vmem:[%s8 + $0x48] sm:$0xff]
  %v1758 = vld [vmem:[%s8 + $0x50] sm:$0xff]
  %v1759 = vld [vmem:[%s8 + $0x58] sm:$0xff]
  %v1760 = vld [vmem:[%s8 + $0x60] sm:$0xff]
  %v1761 = vld [vmem:[%s8 + $0x68] sm:$0xff]
  %v1762 = vld [vmem:[%s8 + $0x70] sm:$0xff]
  %v1763 = vld [vmem:[%s8 + $0x78] sm:$0xff]
  %v1764 = vld [vmem:[%s8 + $0x80] sm:$0xff]
  %v1765 = vld [vmem:[%s8 + $0x88] sm:$0xff]
  %v1766 = vld [vmem:[%s8 + $0x90] sm:$0xff]
  %v1767 = vld [vmem:[%s8 + $0x98] sm:$0xff]
  %v1768 = vld [vmem:[%s8 + $0xa0] sm:$0xff]
  %v1769 = vld [vmem:[%s9] sm:$0xff]
  %v1770 = vld [vmem:[%s9 + $0x8] sm:$0xff]
  %v1771 = vld [vmem:[%s9 + $0x10] sm:$0xff]
  %v1772 = vld [vmem:[%s9 + $0x18] sm:$0xff]
  %v1773 = vld [vmem:[%s9 + $0x20] sm:$0xff]
  %v1774 = vld [vmem:[%s9 + $0x28] sm:$0xff]
  %v1775 = vld [vmem:[%s9 + $0x30] sm:$0xff]
  %v1776 = vld [vmem:[%s9 + $0x38] sm:$0xff]
  %v1777 = vld [vmem:[%s9 + $0x40] sm:$0xff]
  %v1778 = vld [vmem:[%s9 + $0x48] sm:$0xff]
  %v1779 = vld [vmem:[%s9 + $0x50] sm:$0xff]
  %v1780 = vld [vmem:[%s9 + $0x58] sm:$0xff]
  %v1781 = vld [vmem:[%s9 + $0x60] sm:$0xff]
  %v1782 = vld [vmem:[%s9 + $0x68] sm:$0xff]
  %v1783 = vld [vmem:[%s9 + $0x70] sm:$0xff]
  %v1784 = vld [vmem:[%s9 + $0x78] sm:$0xff]
  %v1785 = vld [vmem:[%s9 + $0x80] sm:$0xff]
  %v1786 = vld [vmem:[%s9 + $0x88] sm:$0xff]
  %v1787 = vld [vmem:[%s9 + $0x90] sm:$0xff]
  %v1788 = vld [vmem:[%s9 + $0x98] sm:$0xff]
  %v1789 = vld [vmem:[%s9 + $0xa0] sm:$0xff]
  %vm1790 = vcmask 326656
  %v1792 = vsel %vm1790, %v1693, 0
  %v1795 = vsel %vm1790, %v1697, 0
  %v1798 = vsel %vm1790, %v1701, 0
  %v1801 = vsel %vm1790, %v1705, 0
  %v1804 = vsel %vm1790, %v1709, 0
  %v1807 = vsel %vm1790, %v1713, 0
  %v1810 = vsel %vm1790, %v1717, 0
  %v1813 = vsel %vm1790, %v1721, 0
  %v1816 = vsel %vm1790, %v1725, 0
  %v1819 = vsel %vm1790, %v1729, 0
  %v1822 = vsel %vm1790, %v1733, 0
  %v1825 = vsel %vm1790, %v1737, 0
  %v1828 = vsel %vm1790, %v1741, 0
  %v1831 = vsel %vm1790, %v1745, 0
  %1833 = vmatpush.msra.mxu0 %v1763
  %1834 = vmatpush.msra.mxu0 %v1762
  %1835 = vmatpush.msra.mxu0 %v1761
  %1836 = vmatpush.msra.mxu0 %v1760
  %1837 = vmatpush.msra.mxu0 %v1759
  %1838 = vmatpush.msra.mxu0 %v1758
  %1839 = vmatpush.msra.mxu0 %v1757
  %1840 = vmatpush.msra.mxu0 %v1756
  %1841 = vmatpush.msra.mxu0 %v1755
  %1842 = vmatpush.msra.mxu0 %v1754
  %1843 = vmatpush.msra.mxu0 %v1753
  %1844 = vmatpush.msra.mxu0 %v1752
  %1845 = vmatpush.msra.mxu0 %v1751
  %1846 = vmatpush.msra.mxu0 %v1750
  %1847 = vmatpush.msra.mxu0 %v1749
  %1848 = vmatpush.msra.mxu0 %v1748
  %1849 = vmatmul.f32.gmra.mxu0 %v1692
  %v1850 = vpop.f32.mrf.mxu0
  %v1851 = vadd.f32 0.0, %v1850
  %1852 = vmatmul.f32.gmra.mxu0 %v1696
  %v1853 = vpop.f32.mrf.mxu0
  %v1854 = vadd.f32 0.0, %v1853
  %1855 = vmatmul.f32.gmra.mxu0 %v1700
  %v1856 = vpop.f32.mrf.mxu0
  %v1857 = vadd.f32 0.0, %v1856
  %1858 = vmatmul.f32.gmra.mxu0 %v1704
  %v1859 = vpop.f32.mrf.mxu0
  %v1860 = vadd.f32 0.0, %v1859
  %1861 = vmatmul.f32.gmra.mxu0 %v1708
  %v1862 = vpop.f32.mrf.mxu0
  %v1863 = vadd.f32 0.0, %v1862
  %1864 = vmatmul.f32.gmra.mxu0 %v1712
  %v1865 = vpop.f32.mrf.mxu0
  %v1866 = vadd.f32 0.0, %v1865
  %1867 = vmatmul.f32.gmra.mxu0 %v1716
  %v1868 = vpop.f32.mrf.mxu0
  %v1869 = vadd.f32 0.0, %v1868
  %1870 = vmatmul.f32.gmra.mxu0 %v1720
  %v1871 = vpop.f32.mrf.mxu0
  %v1872 = vadd.f32 0.0, %v1871
  %1873 = vmatmul.f32.gmra.mxu0 %v1724
  %v1874 = vpop.f32.mrf.mxu0
  %v1875 = vadd.f32 0.0, %v1874
  %1876 = vmatmul.f32.gmra.mxu0 %v1728
  %v1877 = vpop.f32.mrf.mxu0
  %v1878 = vadd.f32 0.0, %v1877
  %1879 = vmatmul.f32.gmra.mxu0 %v1732
  %v1880 = vpop.f32.mrf.mxu0
  %v1881 = vadd.f32 0.0, %v1880
  %1882 = vmatmul.f32.gmra.mxu0 %v1736
  %v1883 = vpop.f32.mrf.mxu0
  %v1884 = vadd.f32 0.0, %v1883
  %1885 = vmatmul.f32.gmra.mxu0 %v1740
  %v1886 = vpop.f32.mrf.mxu0
  %v1887 = vadd.f32 0.0, %v1886
  %1888 = vmatmul.f32.gmra.mxu0 %v1744
  %v1889 = vpop.f32.mrf.mxu0
  %v1890 = vadd.f32 0.0, %v1889
  %1891 = vdwg.mxu0
  %1892 = vmatpush.msra.mxu0 0.0
  %1893 = vmatpush.msra.mxu0 0.0
  %1894 = vmatpush.msra.mxu0 0.0
  %1895 = vmatpush.msra.mxu0 0.0
  %1896 = vmatpush.msra.mxu0 0.0
  %1897 = vmatpush.msra.mxu0 0.0
  %1898 = vmatpush.msra.mxu0 0.0
  %1899 = vmatpush.msra.mxu0 0.0
  %1900 = vmatpush.msra.mxu0 0.0
  %1901 = vmatpush.msra.mxu0 0.0
  %1902 = vmatpush.msra.mxu0 0.0
  %1903 = vmatpush.msra.mxu0 %v1768
  %1904 = vmatpush.msra.mxu0 %v1767
  %1905 = vmatpush.msra.mxu0 %v1766
  %1906 = vmatpush.msra.mxu0 %v1765
  %1907 = vmatpush.msra.mxu0 %v1764
  %1908 = vmatmul.f32.gmra.mxu0 %v1792
  %v1909 = vpop.f32.mrf.mxu0
  %v1910 = vadd.f32 %v1851, %v1909
  %1911 = vmatmul.f32.gmra.mxu0 %v1795
  %v1912 = vpop.f32.mrf.mxu0
  %v1913 = vadd.f32 %v1854, %v1912
  %1914 = vmatmul.f32.gmra.mxu0 %v1798
  %v1915 = vpop.f32.mrf.mxu0
  %v1916 = vadd.f32 %v1857, %v1915
  %1917 = vmatmul.f32.gmra.mxu0 %v1801
  %v1918 = vpop.f32.mrf.mxu0
  %v1919 = vadd.f32 %v1860, %v1918
  %1920 = vmatmul.f32.gmra.mxu0 %v1804
  %v1921 = vpop.f32.mrf.mxu0
  %v1922 = vadd.f32 %v1863, %v1921
  %1923 = vmatmul.f32.gmra.mxu0 %v1807
  %v1924 = vpop.f32.mrf.mxu0
  %v1925 = vadd.f32 %v1866, %v1924
  %1926 = vmatmul.f32.gmra.mxu0 %v1810
  %v1927 = vpop.f32.mrf.mxu0
  %v1928 = vadd.f32 %v1869, %v1927
  %1929 = vmatmul.f32.gmra.mxu0 %v1813
  %v1930 = vpop.f32.mrf.mxu0
  %v1931 = vadd.f32 %v1872, %v1930
  %1932 = vmatmul.f32.gmra.mxu0 %v1816
  %v1933 = vpop.f32.mrf.mxu0
  %v1934 = vadd.f32 %v1875, %v1933
  %1935 = vmatmul.f32.gmra.mxu0 %v1819
  %v1936 = vpop.f32.mrf.mxu0
  %v1937 = vadd.f32 %v1878, %v1936
  %1938 = vmatmul.f32.gmra.mxu0 %v1822
  %v1939 = vpop.f32.mrf.mxu0
  %v1940 = vadd.f32 %v1881, %v1939
  %1941 = vmatmul.f32.gmra.mxu0 %v1825
  %v1942 = vpop.f32.mrf.mxu0
  %v1943 = vadd.f32 %v1884, %v1942
  %1944 = vmatmul.f32.gmra.mxu0 %v1828
  %v1945 = vpop.f32.mrf.mxu0
  %v1946 = vadd.f32 %v1887, %v1945
  %1947 = vmatmul.f32.gmra.mxu0 %v1831
  %v1948 = vpop.f32.mrf.mxu0
  %v1949 = vadd.f32 %v1890, %v1948
  %1950 = vdwg.mxu0
  %1951 = vmatpush.msra.mxu0 %v1784
  %1952 = vmatpush.msra.mxu0 %v1783
  %1953 = vmatpush.msra.mxu0 %v1782
  %1954 = vmatpush.msra.mxu0 %v1781
  %1955 = vmatpush.msra.mxu0 %v1780
  %1956 = vmatpush.msra.mxu0 %v1779
  %1957 = vmatpush.msra.mxu0 %v1778
  %1958 = vmatpush.msra.mxu0 %v1777
  %1959 = vmatpush.msra.mxu0 %v1776
  %1960 = vmatpush.msra.mxu0 %v1775
  %1961 = vmatpush.msra.mxu0 %v1774
  %1962 = vmatpush.msra.mxu0 %v1773
  %1963 = vmatpush.msra.mxu0 %v1772
  %1964 = vmatpush.msra.mxu0 %v1771
  %1965 = vmatpush.msra.mxu0 %v1770
  %1966 = vmatpush.msra.mxu0 %v1769
  %1967 = vmatmul.f32.gmra.mxu0 %v1692
  %v1968 = vpop.f32.mrf.mxu0
  %v1969 = vadd.f32 0.0, %v1968
  %1970 = vmatmul.f32.gmra.mxu0 %v1696
  %v1971 = vpop.f32.mrf.mxu0
  %v1972 = vadd.f32 0.0, %v1971
  %1973 = vmatmul.f32.gmra.mxu0 %v1700
  %v1974 = vpop.f32.mrf.mxu0
  %v1975 = vadd.f32 0.0, %v1974
  %1976 = vmatmul.f32.gmra.mxu0 %v1704
  %v1977 = vpop.f32.mrf.mxu0
  %v1978 = vadd.f32 0.0, %v1977
  %1979 = vmatmul.f32.gmra.mxu0 %v1708
  %v1980 = vpop.f32.mrf.mxu0
  %v1981 = vadd.f32 0.0, %v1980
  %1982 = vmatmul.f32.gmra.mxu0 %v1712
  %v1983 = vpop.f32.mrf.mxu0
  %v1984 = vadd.f32 0.0, %v1983
  %1985 = vmatmul.f32.gmra.mxu0 %v1716
  %v1986 = vpop.f32.mrf.mxu0
  %v1987 = vadd.f32 0.0, %v1986
  %1988 = vmatmul.f32.gmra.mxu0 %v1720
  %v1989 = vpop.f32.mrf.mxu0
  %v1990 = vadd.f32 0.0, %v1989
  %1991 = vmatmul.f32.gmra.mxu0 %v1724
  %v1992 = vpop.f32.mrf.mxu0
  %v1993 = vadd.f32 0.0, %v1992
  %1994 = vmatmul.f32.gmra.mxu0 %v1728
  %v1995 = vpop.f32.mrf.mxu0
  %v1996 = vadd.f32 0.0, %v1995
  %1997 = vmatmul.f32.gmra.mxu0 %v1732
  %v1998 = vpop.f32.mrf.mxu0
  %v1999 = vadd.f32 0.0, %v1998
  %2000 = vmatmul.f32.gmra.mxu0 %v1736
  %v2001 = vpop.f32.mrf.mxu0
  %v2002 = vadd.f32 0.0, %v2001
  %2003 = vmatmul.f32.gmra.mxu0 %v1740
  %v2004 = vpop.f32.mrf.mxu0
  %v2005 = vadd.f32 0.0, %v2004
  %2006 = vmatmul.f32.gmra.mxu0 %v1744
  %v2007 = vpop.f32.mrf.mxu0
  %v2008 = vadd.f32 0.0, %v2007
  %2009 = vdwg.mxu0
  %2010 = vmatpush.msra.mxu0 0.0
  %2011 = vmatpush.msra.mxu0 0.0
  %2012 = vmatpush.msra.mxu0 0.0
  %2013 = vmatpush.msra.mxu0 0.0
  %2014 = vmatpush.msra.mxu0 0.0
  %2015 = vmatpush.msra.mxu0 0.0
  %2016 = vmatpush.msra.mxu0 0.0
  %2017 = vmatpush.msra.mxu0 0.0
  %2018 = vmatpush.msra.mxu0 0.0
  %2019 = vmatpush.msra.mxu0 0.0
  %2020 = vmatpush.msra.mxu0 0.0
  %2021 = vmatpush.msra.mxu0 %v1789
  %2022 = vmatpush.msra.mxu0 %v1788
  %2023 = vmatpush.msra.mxu0 %v1787
  %2024 = vmatpush.msra.mxu0 %v1786
  %2025 = vmatpush.msra.mxu0 %v1785
  %2026 = vmatmul.f32.gmra.mxu0 %v1792
  %v2027 = vpop.f32.mrf.mxu0
  %v2028 = vadd.f32 %v1969, %v2027
  %2029 = vmatmul.f32.gmra.mxu0 %v1795
  %v2030 = vpop.f32.mrf.mxu0
  %v2031 = vadd.f32 %v1972, %v2030
  %2032 = vmatmul.f32.gmra.mxu0 %v1798
  %v2033 = vpop.f32.mrf.mxu0
  %v2034 = vadd.f32 %v1975, %v2033
  %2035 = vmatmul.f32.gmra.mxu0 %v1801
  %v2036 = vpop.f32.mrf.mxu0
  %v2037 = vadd.f32 %v1978, %v2036
  %2038 = vmatmul.f32.gmra.mxu0 %v1804
  %v2039 = vpop.f32.mrf.mxu0
  %v2040 = vadd.f32 %v1981, %v2039
  %2041 = vmatmul.f32.gmra.mxu0 %v1807
  %v2042 = vpop.f32.mrf.mxu0
  %v2043 = vadd.f32 %v1984, %v2042
  %2044 = vmatmul.f32.gmra.mxu0 %v1810
  %v2045 = vpop.f32.mrf.mxu0
  %v2046 = vadd.f32 %v1987, %v2045
  %2047 = vmatmul.f32.gmra.mxu0 %v1813
  %v2048 = vpop.f32.mrf.mxu0
  %v2049 = vadd.f32 %v1990, %v2048
  %2050 = vmatmul.f32.gmra.mxu0 %v1816
  %v2051 = vpop.f32.mrf.mxu0
  %v2052 = vadd.f32 %v1993, %v2051
  %2053 = vmatmul.f32.gmra.mxu0 %v1819
  %v2054 = vpop.f32.mrf.mxu0
  %v2055 = vadd.f32 %v1996, %v2054
  %2056 = vmatmul.f32.gmra.mxu0 %v1822
  %v2057 = vpop.f32.mrf.mxu0
  %v2058 = vadd.f32 %v1999, %v2057
  %2059 = vmatmul.f32.gmra.mxu0 %v1825
  %v2060 = vpop.f32.mrf.mxu0
  %v2061 = vadd.f32 %v2002, %v2060
  %2062 = vmatmul.f32.gmra.mxu0 %v1828
  %v2063 = vpop.f32.mrf.mxu0
  %v2064 = vadd.f32 %v2005, %v2063
  %2065 = vmatmul.f32.gmra.mxu0 %v1831
  %v2066 = vpop.f32.mrf.mxu0
  %v2067 = vadd.f32 %v2008, %v2066
  %2068 = vdwg.mxu0
  %v2070 = vsel %vm1790, %v1695, 0
  %v2073 = vsel %vm1790, %v1699, 0
  %v2076 = vsel %vm1790, %v1703, 0
  %v2079 = vsel %vm1790, %v1707, 0
  %v2082 = vsel %vm1790, %v1711, 0
  %v2085 = vsel %vm1790, %v1715, 0
  %v2088 = vsel %vm1790, %v1719, 0
  %v2091 = vsel %vm1790, %v1723, 0
  %v2094 = vsel %vm1790, %v1727, 0
  %v2097 = vsel %vm1790, %v1731, 0
  %v2100 = vsel %vm1790, %v1735, 0
  %v2103 = vsel %vm1790, %v1739, 0
  %v2106 = vsel %vm1790, %v1743, 0
  %v2109 = vsel %vm1790, %v1747, 0
  %2111 = vmatpush.msra.mxu0 %v1763
  %2112 = vmatpush.msra.mxu0 %v1762
  %2113 = vmatpush.msra.mxu0 %v1761
  %2114 = vmatpush.msra.mxu0 %v1760
  %2115 = vmatpush.msra.mxu0 %v1759
  %2116 = vmatpush.msra.mxu0 %v1758
  %2117 = vmatpush.msra.mxu0 %v1757
  %2118 = vmatpush.msra.mxu0 %v1756
  %2119 = vmatpush.msra.mxu0 %v1755
  %2120 = vmatpush.msra.mxu0 %v1754
  %2121 = vmatpush.msra.mxu0 %v1753
  %2122 = vmatpush.msra.mxu0 %v1752
  %2123 = vmatpush.msra.mxu0 %v1751
  %2124 = vmatpush.msra.mxu0 %v1750
  %2125 = vmatpush.msra.mxu0 %v1749
  %2126 = vmatpush.msra.mxu0 %v1748
  %2127 = vmatmul.f32.gmra.mxu0 %v1694
  %v2128 = vpop.f32.mrf.mxu0
  %v2129 = vadd.f32 0.0, %v2128
  %2130 = vmatmul.f32.gmra.mxu0 %v1698
  %v2131 = vpop.f32.mrf.mxu0
  %v2132 = vadd.f32 0.0, %v2131
  %2133 = vmatmul.f32.gmra.mxu0 %v1702
  %v2134 = vpop.f32.mrf.mxu0
  %v2135 = vadd.f32 0.0, %v2134
  %2136 = vmatmul.f32.gmra.mxu0 %v1706
  %v2137 = vpop.f32.mrf.mxu0
  %v2138 = vadd.f32 0.0, %v2137
  %2139 = vmatmul.f32.gmra.mxu0 %v1710
  %v2140 = vpop.f32.mrf.mxu0
  %v2141 = vadd.f32 0.0, %v2140
  %2142 = vmatmul.f32.gmra.mxu0 %v1714
  %v2143 = vpop.f32.mrf.mxu0
  %v2144 = vadd.f32 0.0, %v2143
  %2145 = vmatmul.f32.gmra.mxu0 %v1718
  %v2146 = vpop.f32.mrf.mxu0
  %v2147 = vadd.f32 0.0, %v2146
  %2148 = vmatmul.f32.gmra.mxu0 %v1722
  %v2149 = vpop.f32.mrf.mxu0
  %v2150 = vadd.f32 0.0, %v2149
  %2151 = vmatmul.f32.gmra.mxu0 %v1726
  %v2152 = vpop.f32.mrf.mxu0
  %v2153 = vadd.f32 0.0, %v2152
  %2154 = vmatmul.f32.gmra.mxu0 %v1730
  %v2155 = vpop.f32.mrf.mxu0
  %v2156 = vadd.f32 0.0, %v2155
  %2157 = vmatmul.f32.gmra.mxu0 %v1734
  %v2158 = vpop.f32.mrf.mxu0
  %v2159 = vadd.f32 0.0, %v2158
  %2160 = vmatmul.f32.gmra.mxu0 %v1738
  %v2161 = vpop.f32.mrf.mxu0
  %v2162 = vadd.f32 0.0, %v2161
  %2163 = vmatmul.f32.gmra.mxu0 %v1742
  %v2164 = vpop.f32.mrf.mxu0
  %v2165 = vadd.f32 0.0, %v2164
  %2166 = vmatmul.f32.gmra.mxu0 %v1746
  %v2167 = vpop.f32.mrf.mxu0
  %v2168 = vadd.f32 0.0, %v2167
  %2169 = vdwg.mxu0
  %2170 = vmatpush.msra.mxu0 0.0
  %2171 = vmatpush.msra.mxu0 0.0
  %2172 = vmatpush.msra.mxu0 0.0
  %2173 = vmatpush.msra.mxu0 0.0
  %2174 = vmatpush.msra.mxu0 0.0
  %2175 = vmatpush.msra.mxu0 0.0
  %2176 = vmatpush.msra.mxu0 0.0
  %2177 = vmatpush.msra.mxu0 0.0
  %2178 = vmatpush.msra.mxu0 0.0
  %2179 = vmatpush.msra.mxu0 0.0
  %2180 = vmatpush.msra.mxu0 0.0
  %2181 = vmatpush.msra.mxu0 %v1768
  %2182 = vmatpush.msra.mxu0 %v1767
  %2183 = vmatpush.msra.mxu0 %v1766
  %2184 = vmatpush.msra.mxu0 %v1765
  %2185 = vmatpush.msra.mxu0 %v1764
  %2186 = vmatmul.f32.gmra.mxu0 %v2070
  %v2187 = vpop.f32.mrf.mxu0
  %v2188 = vadd.f32 %v2129, %v2187
  %2189 = vmatmul.f32.gmra.mxu0 %v2073
  %v2190 = vpop.f32.mrf.mxu0
  %v2191 = vadd.f32 %v2132, %v2190
  %2192 = vmatmul.f32.gmra.mxu0 %v2076
  %v2193 = vpop.f32.mrf.mxu0
  %v2194 = vadd.f32 %v2135, %v2193
  %2195 = vmatmul.f32.gmra.mxu0 %v2079
  %v2196 = vpop.f32.mrf.mxu0
  %v2197 = vadd.f32 %v2138, %v2196
  %2198 = vmatmul.f32.gmra.mxu0 %v2082
  %v2199 = vpop.f32.mrf.mxu0
  %v2200 = vadd.f32 %v2141, %v2199
  %2201 = vmatmul.f32.gmra.mxu0 %v2085
  %v2202 = vpop.f32.mrf.mxu0
  %v2203 = vadd.f32 %v2144, %v2202
  %2204 = vmatmul.f32.gmra.mxu0 %v2088
  %v2205 = vpop.f32.mrf.mxu0
  %v2206 = vadd.f32 %v2147, %v2205
  %2207 = vmatmul.f32.gmra.mxu0 %v2091
  %v2208 = vpop.f32.mrf.mxu0
  %v2209 = vadd.f32 %v2150, %v2208
  %2210 = vmatmul.f32.gmra.mxu0 %v2094
  %v2211 = vpop.f32.mrf.mxu0
  %v2212 = vadd.f32 %v2153, %v2211
  %2213 = vmatmul.f32.gmra.mxu0 %v2097
  %v2214 = vpop.f32.mrf.mxu0
  %v2215 = vadd.f32 %v2156, %v2214
  %2216 = vmatmul.f32.gmra.mxu0 %v2100
  %v2217 = vpop.f32.mrf.mxu0
  %v2218 = vadd.f32 %v2159, %v2217
  %2219 = vmatmul.f32.gmra.mxu0 %v2103
  %v2220 = vpop.f32.mrf.mxu0
  %v2221 = vadd.f32 %v2162, %v2220
  %2222 = vmatmul.f32.gmra.mxu0 %v2106
  %v2223 = vpop.f32.mrf.mxu0
  %v2224 = vadd.f32 %v2165, %v2223
  %2225 = vmatmul.f32.gmra.mxu0 %v2109
  %v2226 = vpop.f32.mrf.mxu0
  %v2227 = vadd.f32 %v2168, %v2226
  %2228 = vdwg.mxu0
  %2229 = vmatpush.msra.mxu0 %v1784
  %2230 = vmatpush.msra.mxu0 %v1783
  %2231 = vmatpush.msra.mxu0 %v1782
  %2232 = vmatpush.msra.mxu0 %v1781
  %2233 = vmatpush.msra.mxu0 %v1780
  %2234 = vmatpush.msra.mxu0 %v1779
  %2235 = vmatpush.msra.mxu0 %v1778
  %2236 = vmatpush.msra.mxu0 %v1777
  %2237 = vmatpush.msra.mxu0 %v1776
  %2238 = vmatpush.msra.mxu0 %v1775
  %2239 = vmatpush.msra.mxu0 %v1774
  %2240 = vmatpush.msra.mxu0 %v1773
  %2241 = vmatpush.msra.mxu0 %v1772
  %2242 = vmatpush.msra.mxu0 %v1771
  %2243 = vmatpush.msra.mxu0 %v1770
  %2244 = vmatpush.msra.mxu0 %v1769
  %2245 = vmatmul.f32.gmra.mxu0 %v1694
  %v2246 = vpop.f32.mrf.mxu0
  %v2247 = vadd.f32 0.0, %v2246
  %2248 = vmatmul.f32.gmra.mxu0 %v1698
  %v2249 = vpop.f32.mrf.mxu0
  %v2250 = vadd.f32 0.0, %v2249
  %2251 = vmatmul.f32.gmra.mxu0 %v1702
  %v2252 = vpop.f32.mrf.mxu0
  %v2253 = vadd.f32 0.0, %v2252
  %2254 = vmatmul.f32.gmra.mxu0 %v1706
  %v2255 = vpop.f32.mrf.mxu0
  %v2256 = vadd.f32 0.0, %v2255
  %2257 = vmatmul.f32.gmra.mxu0 %v1710
  %v2258 = vpop.f32.mrf.mxu0
  %v2259 = vadd.f32 0.0, %v2258
  %2260 = vmatmul.f32.gmra.mxu0 %v1714
  %v2261 = vpop.f32.mrf.mxu0
  %v2262 = vadd.f32 0.0, %v2261
  %2263 = vmatmul.f32.gmra.mxu0 %v1718
  %v2264 = vpop.f32.mrf.mxu0
  %v2265 = vadd.f32 0.0, %v2264
  %2266 = vmatmul.f32.gmra.mxu0 %v1722
  %v2267 = vpop.f32.mrf.mxu0
  %v2268 = vadd.f32 0.0, %v2267
  %2269 = vmatmul.f32.gmra.mxu0 %v1726
  %v2270 = vpop.f32.mrf.mxu0
  %v2271 = vadd.f32 0.0, %v2270
  %2272 = vmatmul.f32.gmra.mxu0 %v1730
  %v2273 = vpop.f32.mrf.mxu0
  %v2274 = vadd.f32 0.0, %v2273
  %2275 = vmatmul.f32.gmra.mxu0 %v1734
  %v2276 = vpop.f32.mrf.mxu0
  %v2277 = vadd.f32 0.0, %v2276
  %2278 = vmatmul.f32.gmra.mxu0 %v1738
  %v2279 = vpop.f32.mrf.mxu0
  %v2280 = vadd.f32 0.0, %v2279
  %2281 = vmatmul.f32.gmra.mxu0 %v1742
  %v2282 = vpop.f32.mrf.mxu0
  %v2283 = vadd.f32 0.0, %v2282
  %2284 = vmatmul.f32.gmra.mxu0 %v1746
  %v2285 = vpop.f32.mrf.mxu0
  %v2286 = vadd.f32 0.0, %v2285
  %2287 = vdwg.mxu0
  %2288 = vmatpush.msra.mxu0 0.0
  %2289 = vmatpush.msra.mxu0 0.0
  %2290 = vmatpush.msra.mxu0 0.0
  %2291 = vmatpush.msra.mxu0 0.0
  %2292 = vmatpush.msra.mxu0 0.0
  %2293 = vmatpush.msra.mxu0 0.0
  %2294 = vmatpush.msra.mxu0 0.0
  %2295 = vmatpush.msra.mxu0 0.0
  %2296 = vmatpush.msra.mxu0 0.0
  %2297 = vmatpush.msra.mxu0 0.0
  %2298 = vmatpush.msra.mxu0 0.0
  %2299 = vmatpush.msra.mxu0 %v1789
  %2300 = vmatpush.msra.mxu0 %v1788
  %2301 = vmatpush.msra.mxu0 %v1787
  %2302 = vmatpush.msra.mxu0 %v1786
  %2303 = vmatpush.msra.mxu0 %v1785
  %2304 = vmatmul.f32.gmra.mxu0 %v2070
  %v2305 = vpop.f32.mrf.mxu0
  %v2306 = vadd.f32 %v2247, %v2305
  %2307 = vmatmul.f32.gmra.mxu0 %v2073
  %v2308 = vpop.f32.mrf.mxu0
  %v2309 = vadd.f32 %v2250, %v2308
  %2310 = vmatmul.f32.gmra.mxu0 %v2076
  %v2311 = vpop.f32.mrf.mxu0
  %v2312 = vadd.f32 %v2253, %v2311
  %2313 = vmatmul.f32.gmra.mxu0 %v2079
  %v2314 = vpop.f32.mrf.mxu0
  %v2315 = vadd.f32 %v2256, %v2314
  %2316 = vmatmul.f32.gmra.mxu0 %v2082
  %v2317 = vpop.f32.mrf.mxu0
  %v2318 = vadd.f32 %v2259, %v2317
  %2319 = vmatmul.f32.gmra.mxu0 %v2085
  %v2320 = vpop.f32.mrf.mxu0
  %v2321 = vadd.f32 %v2262, %v2320
  %2322 = vmatmul.f32.gmra.mxu0 %v2088
  %v2323 = vpop.f32.mrf.mxu0
  %v2324 = vadd.f32 %v2265, %v2323
  %2325 = vmatmul.f32.gmra.mxu0 %v2091
  %v2326 = vpop.f32.mrf.mxu0
  %v2327 = vadd.f32 %v2268, %v2326
  %2328 = vmatmul.f32.gmra.mxu0 %v2094
  %v2329 = vpop.f32.mrf.mxu0
  %v2330 = vadd.f32 %v2271, %v2329
  %2331 = vmatmul.f32.gmra.mxu0 %v2097
  %v2332 = vpop.f32.mrf.mxu0
  %v2333 = vadd.f32 %v2274, %v2332
  %2334 = vmatmul.f32.gmra.mxu0 %v2100
  %v2335 = vpop.f32.mrf.mxu0
  %v2336 = vadd.f32 %v2277, %v2335
  %2337 = vmatmul.f32.gmra.mxu0 %v2103
  %v2338 = vpop.f32.mrf.mxu0
  %v2339 = vadd.f32 %v2280, %v2338
  %2340 = vmatmul.f32.gmra.mxu0 %v2106
  %v2341 = vpop.f32.mrf.mxu0
  %v2342 = vadd.f32 %v2283, %v2341
  %2343 = vmatmul.f32.gmra.mxu0 %v2109
  %v2344 = vpop.f32.mrf.mxu0
  %v2345 = vadd.f32 %v2286, %v2344
  %2346 = vdwg.mxu0
  %vm2347 = vcmp.ge.f32.partialorder %v1910, %v2028
  %vm2348 = vcmp.ge.f32.partialorder %v1913, %v2031
  %vm2349 = vcmp.ge.f32.partialorder %v1916, %v2034
  %vm2350 = vcmp.ge.f32.partialorder %v1919, %v2037
  %vm2351 = vcmp.ge.f32.partialorder %v1922, %v2040
  %vm2352 = vcmp.ge.f32.partialorder %v1925, %v2043
  %vm2353 = vcmp.ge.f32.partialorder %v1928, %v2046
  %vm2354 = vcmp.ge.f32.partialorder %v1931, %v2049
  %vm2355 = vcmp.ge.f32.partialorder %v1934, %v2052
  %vm2356 = vcmp.ge.f32.partialorder %v1937, %v2055
  %vm2357 = vcmp.ge.f32.partialorder %v1940, %v2058
  %vm2358 = vcmp.ge.f32.partialorder %v1943, %v2061
  %vm2359 = vcmp.ge.f32.partialorder %v1946, %v2064
  %vm2360 = vcmp.ge.f32.partialorder %v1949, %v2067
  %vm2361 = vcmp.ge.f32.partialorder %v1910, %v2188
  %vm2362 = vcmp.ge.f32.partialorder %v1913, %v2191
  %vm2363 = vcmp.ge.f32.partialorder %v1916, %v2194
  %vm2364 = vcmp.ge.f32.partialorder %v1919, %v2197
  %vm2365 = vcmp.ge.f32.partialorder %v1922, %v2200
  %vm2366 = vcmp.ge.f32.partialorder %v1925, %v2203
  %vm2367 = vcmp.ge.f32.partialorder %v1928, %v2206
  %vm2368 = vcmp.ge.f32.partialorder %v1931, %v2209
  %vm2369 = vcmp.ge.f32.partialorder %v1934, %v2212
  %vm2370 = vcmp.ge.f32.partialorder %v1937, %v2215
  %vm2371 = vcmp.ge.f32.partialorder %v1940, %v2218
  %vm2372 = vcmp.ge.f32.partialorder %v1943, %v2221
  %vm2373 = vcmp.ge.f32.partialorder %v1946, %v2224
  %vm2374 = vcmp.ge.f32.partialorder %v1949, %v2227
  %vm2375 = vmand %vm2347, %vm2361
  %vm2376 = vmand %vm2348, %vm2362
  %vm2377 = vmand %vm2349, %vm2363
  %vm2378 = vmand %vm2350, %vm2364
  %vm2379 = vmand %vm2351, %vm2365
  %vm2380 = vmand %vm2352, %vm2366
  %vm2381 = vmand %vm2353, %vm2367
  %vm2382 = vmand %vm2354, %vm2368
  %vm2383 = vmand %vm2355, %vm2369
  %vm2384 = vmand %vm2356, %vm2370
  %vm2385 = vmand %vm2357, %vm2371
  %vm2386 = vmand %vm2358, %vm2372
  %vm2387 = vmand %vm2359, %vm2373
  %vm2388 = vmand %vm2360, %vm2374
  %vm2389 = vcmp.ge.f32.partialorder %v1910, %v2306
  %vm2390 = vcmp.ge.f32.partialorder %v1913, %v2309
  %vm2391 = vcmp.ge.f32.partialorder %v1916, %v2312
  %vm2392 = vcmp.ge.f32.partialorder %v1919, %v2315
  %vm2393 = vcmp.ge.f32.partialorder %v1922, %v2318
  %vm2394 = vcmp.ge.f32.partialorder %v1925, %v2321
  %vm2395 = vcmp.ge.f32.partialorder %v1928, %v2324
  %vm2396 = vcmp.ge.f32.partialorder %v1931, %v2327
  %vm2397 = vcmp.ge.f32.partialorder %v1934, %v2330
  %vm2398 = vcmp.ge.f32.partialorder %v1937, %v2333
  %vm2399 = vcmp.ge.f32.partialorder %v1940, %v2336
  %vm2400 = vcmp.ge.f32.partialorder %v1943, %v2339
  %vm2401 = vcmp.ge.f32.partialorder %v1946, %v2342
  %vm2402 = vcmp.ge.f32.partialorder %v1949, %v2345
  %vm2403 = vmand %vm2375, %vm2389
  %vm2404 = vmand %vm2376, %vm2390
  %vm2405 = vmand %vm2377, %vm2391
  %vm2406 = vmand %vm2378, %vm2392
  %vm2407 = vmand %vm2379, %vm2393
  %vm2408 = vmand %vm2380, %vm2394
  %vm2409 = vmand %vm2381, %vm2395
  %vm2410 = vmand %vm2382, %vm2396
  %vm2411 = vmand %vm2383, %vm2397
  %vm2412 = vmand %vm2384, %vm2398
  %vm2413 = vmand %vm2385, %vm2399
  %vm2414 = vmand %vm2386, %vm2400
  %vm2415 = vmand %vm2387, %vm2401
  %vm2416 = vmand %vm2388, %vm2402
  %vm2417 = vmxor %vm2403, 1
  %vm2418 = vmxor %vm2404, 1
  %vm2419 = vmxor %vm2405, 1
  %vm2420 = vmxor %vm2406, 1
  %vm2421 = vmxor %vm2407, 1
  %vm2422 = vmxor %vm2408, 1
  %vm2423 = vmxor %vm2409, 1
  %vm2424 = vmxor %vm2410, 1
  %vm2425 = vmxor %vm2411, 1
  %vm2426 = vmxor %vm2412, 1
  %vm2427 = vmxor %vm2413, 1
  %vm2428 = vmxor %vm2414, 1
  %vm2429 = vmxor %vm2415, 1
  %vm2430 = vmxor %vm2416, 1
  %vm2431 = vcmp.ge.f32.partialorder %v2028, %v2188
  %vm2432 = vcmp.ge.f32.partialorder %v2031, %v2191
  %vm2433 = vcmp.ge.f32.partialorder %v2034, %v2194
  %vm2434 = vcmp.ge.f32.partialorder %v2037, %v2197
  %vm2435 = vcmp.ge.f32.partialorder %v2040, %v2200
  %vm2436 = vcmp.ge.f32.partialorder %v2043, %v2203
  %vm2437 = vcmp.ge.f32.partialorder %v2046, %v2206
  %vm2438 = vcmp.ge.f32.partialorder %v2049, %v2209
  %vm2439 = vcmp.ge.f32.partialorder %v2052, %v2212
  %vm2440 = vcmp.ge.f32.partialorder %v2055, %v2215
  %vm2441 = vcmp.ge.f32.partialorder %v2058, %v2218
  %vm2442 = vcmp.ge.f32.partialorder %v2061, %v2221
  %vm2443 = vcmp.ge.f32.partialorder %v2064, %v2224
  %vm2444 = vcmp.ge.f32.partialorder %v2067, %v2227
  %vm2445 = vmand %vm2417, %vm2431
  %vm2446 = vmand %vm2418, %vm2432
  %vm2447 = vmand %vm2419, %vm2433
  %vm2448 = vmand %vm2420, %vm2434
  %vm2449 = vmand %vm2421, %vm2435
  %vm2450 = vmand %vm2422, %vm2436
  %vm2451 = vmand %vm2423, %vm2437
  %vm2452 = vmand %vm2424, %vm2438
  %vm2453 = vmand %vm2425, %vm2439
  %vm2454 = vmand %vm2426, %vm2440
  %vm2455 = vmand %vm2427, %vm2441
  %vm2456 = vmand %vm2428, %vm2442
  %vm2457 = vmand %vm2429, %vm2443
  %vm2458 = vmand %vm2430, %vm2444
  %vm2459 = vcmp.ge.f32.partialorder %v2028, %v2306
  %vm2460 = vcmp.ge.f32.partialorder %v2031, %v2309
  %vm2461 = vcmp.ge.f32.partialorder %v2034, %v2312
  %vm2462 = vcmp.ge.f32.partialorder %v2037, %v2315
  %vm2463 = vcmp.ge.f32.partialorder %v2040, %v2318
  %vm2464 = vcmp.ge.f32.partialorder %v2043, %v2321
  %vm2465 = vcmp.ge.f32.partialorder %v2046, %v2324
  %vm2466 = vcmp.ge.f32.partialorder %v2049, %v2327
  %vm2467 = vcmp.ge.f32.partialorder %v2052, %v2330
  %vm2468 = vcmp.ge.f32.partialorder %v2055, %v2333
  %vm2469 = vcmp.ge.f32.partialorder %v2058, %v2336
  %vm2470 = vcmp.ge.f32.partialorder %v2061, %v2339
  %vm2471 = vcmp.ge.f32.partialorder %v2064, %v2342
  %vm2472 = vcmp.ge.f32.partialorder %v2067, %v2345
  %vm2473 = vmand %vm2445, %vm2459
  %vm2474 = vmand %vm2446, %vm2460
  %vm2475 = vmand %vm2447, %vm2461
  %vm2476 = vmand %vm2448, %vm2462
  %vm2477 = vmand %vm2449, %vm2463
  %vm2478 = vmand %vm2450, %vm2464
  %vm2479 = vmand %vm2451, %vm2465
  %vm2480 = vmand %vm2452, %vm2466
  %vm2481 = vmand %vm2453, %vm2467
  %vm2482 = vmand %vm2454, %vm2468
  %vm2483 = vmand %vm2455, %vm2469
  %vm2484 = vmand %vm2456, %vm2470
  %vm2485 = vmand %vm2457, %vm2471
  %vm2486 = vmand %vm2458, %vm2472
  %vm2487 = vmor %vm2403, %vm2473
  %vm2488 = vmor %vm2404, %vm2474
  %vm2489 = vmor %vm2405, %vm2475
  %vm2490 = vmor %vm2406, %vm2476
  %vm2491 = vmor %vm2407, %vm2477
  %vm2492 = vmor %vm2408, %vm2478
  %vm2493 = vmor %vm2409, %vm2479
  %vm2494 = vmor %vm2410, %vm2480
  %vm2495 = vmor %vm2411, %vm2481
  %vm2496 = vmor %vm2412, %vm2482
  %vm2497 = vmor %vm2413, %vm2483
  %vm2498 = vmor %vm2414, %vm2484
  %vm2499 = vmor %vm2415, %vm2485
  %vm2500 = vmor %vm2416, %vm2486
  %vm2501 = vmxor %vm2487, 1
  %vm2502 = vmxor %vm2488, 1
  %vm2503 = vmxor %vm2489, 1
  %vm2504 = vmxor %vm2490, 1
  %vm2505 = vmxor %vm2491, 1
  %vm2506 = vmxor %vm2492, 1
  %vm2507 = vmxor %vm2493, 1
  %vm2508 = vmxor %vm2494, 1
  %vm2509 = vmxor %vm2495, 1
  %vm2510 = vmxor %vm2496, 1
  %vm2511 = vmxor %vm2497, 1
  %vm2512 = vmxor %vm2498, 1
  %vm2513 = vmxor %vm2499, 1
  %vm2514 = vmxor %vm2500, 1
  %vm2515 = vcmp.ge.f32.partialorder %v2188, %v2306
  %vm2516 = vcmp.ge.f32.partialorder %v2191, %v2309
  %vm2517 = vcmp.ge.f32.partialorder %v2194, %v2312
  %vm2518 = vcmp.ge.f32.partialorder %v2197, %v2315
  %vm2519 = vcmp.ge.f32.partialorder %v2200, %v2318
  %vm2520 = vcmp.ge.f32.partialorder %v2203, %v2321
  %vm2521 = vcmp.ge.f32.partialorder %v2206, %v2324
  %vm2522 = vcmp.ge.f32.partialorder %v2209, %v2327
  %vm2523 = vcmp.ge.f32.partialorder %v2212, %v2330
  %vm2524 = vcmp.ge.f32.partialorder %v2215, %v2333
  %vm2525 = vcmp.ge.f32.partialorder %v2218, %v2336
  %vm2526 = vcmp.ge.f32.partialorder %v2221, %v2339
  %vm2527 = vcmp.ge.f32.partialorder %v2224, %v2342
  %vm2528 = vcmp.ge.f32.partialorder %v2227, %v2345
  %vm2529 = vmand %vm2501, %vm2515
  %vm2530 = vmand %vm2502, %vm2516
  %vm2531 = vmand %vm2503, %vm2517
  %vm2532 = vmand %vm2504, %vm2518
  %vm2533 = vmand %vm2505, %vm2519
  %vm2534 = vmand %vm2506, %vm2520
  %vm2535 = vmand %vm2507, %vm2521
  %vm2536 = vmand %vm2508, %vm2522
  %vm2537 = vmand %vm2509, %vm2523
  %vm2538 = vmand %vm2510, %vm2524
  %vm2539 = vmand %vm2511, %vm2525
  %vm2540 = vmand %vm2512, %vm2526
  %vm2541 = vmand %vm2513, %vm2527
  %vm2542 = vmand %vm2514, %vm2528
  %vm2543 = vmor %vm2487, %vm2529
  %vm2544 = vmor %vm2488, %vm2530
  %vm2545 = vmor %vm2489, %vm2531
  %vm2546 = vmor %vm2490, %vm2532
  %vm2547 = vmor %vm2491, %vm2533
  %vm2548 = vmor %vm2492, %vm2534
  %vm2549 = vmor %vm2493, %vm2535
  %vm2550 = vmor %vm2494, %vm2536
  %vm2551 = vmor %vm2495, %vm2537
  %vm2552 = vmor %vm2496, %vm2538
  %vm2553 = vmor %vm2497, %vm2539
  %vm2554 = vmor %vm2498, %vm2540
  %vm2555 = vmor %vm2499, %vm2541
  %vm2556 = vmor %vm2500, %vm2542
  %vm2557 = vmxor %vm2543, 1
  %vm2558 = vmxor %vm2544, 1
  %vm2559 = vmxor %vm2545, 1
  %vm2560 = vmxor %vm2546, 1
  %vm2561 = vmxor %vm2547, 1
  %vm2562 = vmxor %vm2548, 1
  %vm2563 = vmxor %vm2549, 1
  %vm2564 = vmxor %vm2550, 1
  %vm2565 = vmxor %vm2551, 1
  %vm2566 = vmxor %vm2552, 1
  %vm2567 = vmxor %vm2553, 1
  %vm2568 = vmxor %vm2554, 1
  %vm2569 = vmxor %vm2555, 1
  %vm2570 = vmxor %vm2556, 1
  %v2571 = vmax.f32 %v1910, %v2028
  %v2572 = vmax.f32 %v1913, %v2031
  %v2573 = vmax.f32 %v1916, %v2034
  %v2574 = vmax.f32 %v1919, %v2037
  %v2575 = vmax.f32 %v1922, %v2040
  %v2576 = vmax.f32 %v1925, %v2043
  %v2577 = vmax.f32 %v1928, %v2046
  %v2578 = vmax.f32 %v1931, %v2049
  %v2579 = vmax.f32 %v1934, %v2052
  %v2580 = vmax.f32 %v1937, %v2055
  %v2581 = vmax.f32 %v1940, %v2058
  %v2582 = vmax.f32 %v1943, %v2061
  %v2583 = vmax.f32 %v1946, %v2064
  %v2584 = vmax.f32 %v1949, %v2067
  %v2585 = vmax.f32 %v2188, %v2306
  %v2586 = vmax.f32 %v2191, %v2309
  %v2587 = vmax.f32 %v2194, %v2312
  %v2588 = vmax.f32 %v2197, %v2315
  %v2589 = vmax.f32 %v2200, %v2318
  %v2590 = vmax.f32 %v2203, %v2321
  %v2591 = vmax.f32 %v2206, %v2324
  %v2592 = vmax.f32 %v2209, %v2327
  %v2593 = vmax.f32 %v2212, %v2330
  %v2594 = vmax.f32 %v2215, %v2333
  %v2595 = vmax.f32 %v2218, %v2336
  %v2596 = vmax.f32 %v2221, %v2339
  %v2597 = vmax.f32 %v2224, %v2342
  %v2598 = vmax.f32 %v2227, %v2345
  %v2599 = vmax.f32 %v2571, %v2585
  %v2600 = vmax.f32 %v2572, %v2586
  %v2601 = vmax.f32 %v2573, %v2587
  %v2602 = vmax.f32 %v2574, %v2588
  %v2603 = vmax.f32 %v2575, %v2589
  %v2604 = vmax.f32 %v2576, %v2590
  %v2605 = vmax.f32 %v2577, %v2591
  %v2606 = vmax.f32 %v2578, %v2592
  %v2607 = vmax.f32 %v2579, %v2593
  %v2608 = vmax.f32 %v2580, %v2594
  %v2609 = vmax.f32 %v2581, %v2595
  %v2610 = vmax.f32 %v2582, %v2596
  %v2611 = vmax.f32 %v2583, %v2597
  %v2612 = vmax.f32 %v2584, %v2598
  %v2613 = vtanh.pop %v2599
  %v2614 = vtanh.pop %v2600
  %v2615 = vtanh.pop %v2601
  %v2616 = vtanh.pop %v2602
  %v2617 = vtanh.pop %v2603
  %v2618 = vtanh.pop %v2604
  %v2619 = vtanh.pop %v2605
  %v2620 = vtanh.pop %v2606
  %v2621 = vtanh.pop %v2607
  %v2622 = vtanh.pop %v2608
  %v2623 = vtanh.pop %v2609
  %v2624 = vtanh.pop %v2610
  %v2625 = vtanh.pop %v2611
  %v2626 = vtanh.pop %v2612
  %v2627 = vpack.c.bf16 %v2613, %v2613
  %v2628 = vpack.c.bf16 %v2614, %v2614
  %v2629 = vpack.c.bf16 %v2615, %v2615
  %v2630 = vpack.c.bf16 %v2616, %v2616
  %v2631 = vpack.c.bf16 %v2617, %v2617
  %v2632 = vpack.c.bf16 %v2618, %v2618
  %v2633 = vpack.c.bf16 %v2619, %v2619
  %v2634 = vpack.c.bf16 %v2620, %v2620
  %v2635 = vpack.c.bf16 %v2621, %v2621
  %v2636 = vpack.c.bf16 %v2622, %v2622
  %v2637 = vpack.c.bf16 %v2623, %v2623
  %v2638 = vpack.c.bf16 %v2624, %v2624
  %v2639 = vpack.c.bf16 %v2625, %v2625
  %v2640 = vpack.c.bf16 %v2626, %v2626
  %v2641 = vld [vmem:[%s7 + $0x1] ss:$0 sm:$0xff]
  %v2642 = vld [vmem:[%s2] sm:$0xf]
  %v2643 = vld [vmem:[%s2 + $0x4] sm:$0xf]
  %v2644 = vld [vmem:[%s2 + $0x8] sm:$0xf]
  %v2645 = vld [vmem:[%s2 + $0xc] sm:$0xf]
  %v2646 = vld [vmem:[%s2 + $0x10] sm:$0xf]
  %v2647 = vld [vmem:[%s2 + $0x14] sm:$0xf]
  %v2648 = vld [vmem:[%s2 + $0x18] sm:$0xf]
  %v2649 = vld [vmem:[%s2 + $0x1c] sm:$0xf]
  %v2650 = vld [vmem:[%s2 + $0x20] sm:$0xf]
  %v2651 = vld [vmem:[%s2 + $0x24] sm:$0xf]
  %v2652 = vld [vmem:[%s2 + $0x28] sm:$0x3]
  %s2653 = scalar_lea.vmem %s2, 44
  %v2654 = vld [vmem:[%s2653] sm:$0xf]
  %v2655 = vld [vmem:[%s2653 + $0x4] sm:$0xf]
  %v2656 = vld [vmem:[%s2653 + $0x8] sm:$0xf]
  %v2657 = vld [vmem:[%s2653 + $0xc] sm:$0xf]
  %v2658 = vld [vmem:[%s2653 + $0x10] sm:$0xf]
  %v2659 = vld [vmem:[%s2653 + $0x14] sm:$0xf]
  %v2660 = vld [vmem:[%s2653 + $0x18] sm:$0xf]
  %v2661 = vld [vmem:[%s2653 + $0x1c] sm:$0xf]
  %v2662 = vld [vmem:[%s2653 + $0x20] sm:$0xf]
  %v2663 = vld [vmem:[%s2653 + $0x24] sm:$0xf]
  %v2664 = vld [vmem:[%s2653 + $0x28] sm:$0x3]
  %v2675 = vunpack.c.l.b16 %v2628
  %v2676 = vunpack.c.l.b16 %v2629
  %v2677 = vunpack.c.l.b16 %v2630
  %v2678 = vunpack.c.l.b16 %v2631
  %v2679 = vunpack.c.l.b16 %v2632
  %v2680 = vunpack.c.l.b16 %v2633
  %v2681 = vunpack.c.l.b16 %v2634
  %v2682 = vunpack.c.l.b16 %v2635
  %v2683 = vunpack.c.l.b16 %v2636
  %v2684 = vunpack.c.l.b16 %v2637
  %v2685 = vpack.c.b16 %v2676, %v2675
  %v2686 = vpack.c.b16 %v2678, %v2677
  %v2687 = vpack.c.b16 %v2680, %v2679
  %v2688 = vpack.c.b16 %v2682, %v2681
  %v2689 = vpack.c.b16 %v2684, %v2683
  %v2701 = vunpack.c.l.b16 %v2654
  %v2702 = vunpack.c.l.b16 %v2655
  %v2703 = vunpack.c.l.b16 %v2656
  %v2704 = vunpack.c.l.b16 %v2657
  %v2705 = vunpack.c.l.b16 %v2658
  %v2706 = vunpack.c.l.b16 %v2659
  %v2707 = vunpack.c.l.b16 %v2660
  %v2708 = vunpack.c.l.b16 %v2661
  %v2709 = vunpack.c.l.b16 %v2662
  %v2710 = vunpack.c.l.b16 %v2663
  %v2711 = vunpack.c.l.b16 %v2664
  %v2712 = vpack.c.b16 %v2702, %v2701
  %v2713 = vpack.c.b16 %v2704, %v2703
  %v2714 = vpack.c.b16 %v2706, %v2705
  %v2715 = vpack.c.b16 %v2708, %v2707
  %v2716 = vpack.c.b16 %v2710, %v2709
  %v2717 = vpack.c.b16 %v2711, %v2711
  %vm2723 = vcmask 687104
  %v2725 = vsel %vm2723, %v2685, 0
  %v2728 = vsel %vm2723, %v2686, 0
  %v2731 = vsel %vm2723, %v2687, 0
  %v2734 = vsel %vm2723, %v2688, 0
  %v2737 = vsel %vm2723, %v2689, 0
  %vm2739 = vcmask 1041408
  %v2741 = vsel %vm2739, %v2717, 0
  %2743 = vmatpush.bf16.msra.mxu0 0
  %2744 = vmatpush.bf16.msra.mxu0 0
  %2745 = vmatpush.bf16.msra.mxu0 %v2741
  %2746 = vmatpush.bf16.msra.mxu0 %v2716
  %2747 = vmatpush.bf16.msra.mxu0 %v2715
  %2748 = vmatpush.bf16.msra.mxu0 %v2714
  %2749 = vmatpush.bf16.msra.mxu0 %v2713
  %2750 = vmatpush.bf16.msra.mxu0 %v2712
  %2751 = vmatmul.bf16.gmra.mxu0 %v2725
  %v2752 = vpop.f32.mrf.mxu0
  %v2753 = vadd.f32 0.0, %v2752
  %v2754 = vpop.f32.mrf.mxu0
  %v2755 = vadd.f32 0.0, %v2754
  %2756 = vmatmul.bf16.gmra.mxu0 %v2728
  %v2757 = vpop.f32.mrf.mxu0
  %v2758 = vadd.f32 0.0, %v2757
  %v2759 = vpop.f32.mrf.mxu0
  %v2760 = vadd.f32 0.0, %v2759
  %2761 = vmatmul.bf16.gmra.mxu0 %v2731
  %v2762 = vpop.f32.mrf.mxu0
  %v2763 = vadd.f32 0.0, %v2762
  %v2764 = vpop.f32.mrf.mxu0
  %v2765 = vadd.f32 0.0, %v2764
  %2766 = vmatmul.bf16.gmra.mxu0 %v2734
  %v2767 = vpop.f32.mrf.mxu0
  %v2768 = vadd.f32 0.0, %v2767
  %v2769 = vpop.f32.mrf.mxu0
  %v2770 = vadd.f32 0.0, %v2769
  %2771 = vmatmul.bf16.gmra.mxu0 %v2737
  %v2772 = vpop.f32.mrf.mxu0
  %v2773 = vadd.f32 0.0, %v2772
  %v2774 = vpop.f32.mrf.mxu0
  %v2775 = vadd.f32 0.0, %v2774
  %2776 = vdwg.mxu0
  %v2778 = vunpack.c.l.b16 %v2627
  %v2779 = vpack.c.b16 %v2675, %v2778
  %v2780 = vpack.c.b16 %v2677, %v2676
  %v2781 = vpack.c.b16 %v2679, %v2678
  %v2782 = vpack.c.b16 %v2681, %v2680
  %v2783 = vpack.c.b16 %v2683, %v2682
  %v2795 = vunpack.c.l.b16 %v2642
  %v2796 = vunpack.c.l.b16 %v2643
  %v2797 = vunpack.c.l.b16 %v2644
  %v2798 = vunpack.c.l.b16 %v2645
  %v2799 = vunpack.c.l.b16 %v2646
  %v2800 = vunpack.c.l.b16 %v2647
  %v2801 = vunpack.c.l.b16 %v2648
  %v2802 = vunpack.c.l.b16 %v2649
  %v2803 = vunpack.c.l.b16 %v2650
  %v2804 = vunpack.c.l.b16 %v2651
  %v2805 = vunpack.c.l.b16 %v2652
  %v2806 = vpack.c.b16 %v2796, %v2795
  %v2807 = vpack.c.b16 %v2798, %v2797
  %v2808 = vpack.c.b16 %v2800, %v2799
  %v2809 = vpack.c.b16 %v2802, %v2801
  %v2810 = vpack.c.b16 %v2804, %v2803
  %v2811 = vpack.c.b16 %v2805, %v2805
  %v2818 = vsel %vm2723, %v2779, 0
  %v2821 = vsel %vm2723, %v2780, 0
  %v2824 = vsel %vm2723, %v2781, 0
  %v2827 = vsel %vm2723, %v2782, 0
  %v2830 = vsel %vm2723, %v2783, 0
  %v2833 = vsel %vm2739, %v2811, 0
  %2835 = vmatpush.bf16.msra.mxu0 0
  %2836 = vmatpush.bf16.msra.mxu0 0
  %2837 = vmatpush.bf16.msra.mxu0 %v2833
  %2838 = vmatpush.bf16.msra.mxu0 %v2810
  %2839 = vmatpush.bf16.msra.mxu0 %v2809
  %2840 = vmatpush.bf16.msra.mxu0 %v2808
  %2841 = vmatpush.bf16.msra.mxu0 %v2807
  %2842 = vmatpush.bf16.msra.mxu0 %v2806
  %2843 = vmatmul.bf16.gmra.mxu0 %v2818
  %v2844 = vpop.f32.mrf.mxu0
  %v2845 = vadd.f32 %v2753, %v2844
  %v2846 = vpop.f32.mrf.mxu0
  %v2847 = vadd.f32 %v2755, %v2846
  %2848 = vmatmul.bf16.gmra.mxu0 %v2821
  %v2849 = vpop.f32.mrf.mxu0
  %v2850 = vadd.f32 %v2758, %v2849
  %v2851 = vpop.f32.mrf.mxu0
  %v2852 = vadd.f32 %v2760, %v2851
  %2853 = vmatmul.bf16.gmra.mxu0 %v2824
  %v2854 = vpop.f32.mrf.mxu0
  %v2855 = vadd.f32 %v2763, %v2854
  %v2856 = vpop.f32.mrf.mxu0
  %v2857 = vadd.f32 %v2765, %v2856
  %2858 = vmatmul.bf16.gmra.mxu0 %v2827
  %v2859 = vpop.f32.mrf.mxu0
  %v2860 = vadd.f32 %v2768, %v2859
  %v2861 = vpop.f32.mrf.mxu0
  %v2862 = vadd.f32 %v2770, %v2861
  %2863 = vmatmul.bf16.gmra.mxu0 %v2830
  %v2864 = vpop.f32.mrf.mxu0
  %v2865 = vadd.f32 %v2773, %v2864
  %v2866 = vpop.f32.mrf.mxu0
  %v2867 = vadd.f32 %v2775, %v2866
  %2868 = vdwg.mxu0
  %s2869 = scalar_lea.vmem %s2, 88
  %v2870 = vld [vmem:[%s2869] sm:$0xf]
  %v2871 = vld [vmem:[%s2869 + $0x4] sm:$0xf]
  %v2872 = vld [vmem:[%s2869 + $0x8] sm:$0xf]
  %v2873 = vld [vmem:[%s2869 + $0xc] sm:$0xf]
  %v2874 = vld [vmem:[%s2869 + $0x10] sm:$0xf]
  %v2875 = vld [vmem:[%s2869 + $0x14] sm:$0xf]
  %v2876 = vld [vmem:[%s2869 + $0x18] sm:$0xf]
  %v2877 = vld [vmem:[%s2869 + $0x1c] sm:$0xf]
  %v2878 = vld [vmem:[%s2869 + $0x20] sm:$0xf]
  %v2879 = vld [vmem:[%s2869 + $0x24] sm:$0xf]
  %v2880 = vld [vmem:[%s2869 + $0x28] sm:$0x3]
  %v2882 = vunpack.c.l.b16 %v2638
  %v2883 = vpack.c.b16 %v2882, %v2684
  %v2895 = vunpack.c.l.b16 %v2870
  %v2896 = vunpack.c.l.b16 %v2871
  %v2897 = vunpack.c.l.b16 %v2872
  %v2898 = vunpack.c.l.b16 %v2873
  %v2899 = vunpack.c.l.b16 %v2874
  %v2900 = vunpack.c.l.b16 %v2875
  %v2901 = vunpack.c.l.b16 %v2876
  %v2902 = vunpack.c.l.b16 %v2877
  %v2903 = vunpack.c.l.b16 %v2878
  %v2904 = vunpack.c.l.b16 %v2879
  %v2905 = vunpack.c.l.b16 %v2880
  %v2906 = vpack.c.b16 %v2896, %v2895
  %v2907 = vpack.c.b16 %v2898, %v2897
  %v2908 = vpack.c.b16 %v2900, %v2899
  %v2909 = vpack.c.b16 %v2902, %v2901
  %v2910 = vpack.c.b16 %v2904, %v2903
  %v2911 = vpack.c.b16 %v2905, %v2905
  %v2918 = vsel %vm2723, %v2883, 0
  %v2921 = vsel %vm2739, %v2911, 0
  %2923 = vmatpush.bf16.msra.mxu0 0
  %2924 = vmatpush.bf16.msra.mxu0 0
  %2925 = vmatpush.bf16.msra.mxu0 %v2921
  %2926 = vmatpush.bf16.msra.mxu0 %v2910
  %2927 = vmatpush.bf16.msra.mxu0 %v2909
  %2928 = vmatpush.bf16.msra.mxu0 %v2908
  %2929 = vmatpush.bf16.msra.mxu0 %v2907
  %2930 = vmatpush.bf16.msra.mxu0 %v2906
  %2931 = vmatmul.bf16.gmra.mxu0 %v2821
  %v2932 = vpop.f32.mrf.mxu0
  %v2933 = vadd.f32 0.0, %v2932
  %v2934 = vpop.f32.mrf.mxu0
  %v2935 = vadd.f32 0.0, %v2934
  %2936 = vmatmul.bf16.gmra.mxu0 %v2824
  %v2937 = vpop.f32.mrf.mxu0
  %v2938 = vadd.f32 0.0, %v2937
  %v2939 = vpop.f32.mrf.mxu0
  %v2940 = vadd.f32 0.0, %v2939
  %2941 = vmatmul.bf16.gmra.mxu0 %v2827
  %v2942 = vpop.f32.mrf.mxu0
  %v2943 = vadd.f32 0.0, %v2942
  %v2944 = vpop.f32.mrf.mxu0
  %v2945 = vadd.f32 0.0, %v2944
  %2946 = vmatmul.bf16.gmra.mxu0 %v2830
  %v2947 = vpop.f32.mrf.mxu0
  %v2948 = vadd.f32 0.0, %v2947
  %v2949 = vpop.f32.mrf.mxu0
  %v2950 = vadd.f32 0.0, %v2949
  %2951 = vmatmul.bf16.gmra.mxu0 %v2918
  %v2952 = vpop.f32.mrf.mxu0
  %v2953 = vadd.f32 0.0, %v2952
  %v2954 = vpop.f32.mrf.mxu0
  %v2955 = vadd.f32 0.0, %v2954
  %2956 = vdwg.mxu0
  %v2957 = vadd.f32 %v2845, %v2933
  %v2958 = vadd.f32 %v2847, %v2935
  %v2959 = vadd.f32 %v2850, %v2938
  %v2960 = vadd.f32 %v2852, %v2940
  %v2961 = vadd.f32 %v2855, %v2943
  %v2962 = vadd.f32 %v2857, %v2945
  %v2963 = vadd.f32 %v2860, %v2948
  %v2964 = vadd.f32 %v2862, %v2950
  %v2965 = vadd.f32 %v2865, %v2953
  %v2966 = vadd.f32 %v2867, %v2955
  %s2967 = scalar_lea.vmem %s2, 132
  %v2968 = vld [vmem:[%s2967] sm:$0xf]
  %v2969 = vld [vmem:[%s2967 + $0x4] sm:$0xf]
  %v2970 = vld [vmem:[%s2967 + $0x8] sm:$0xf]
  %v2971 = vld [vmem:[%s2967 + $0xc] sm:$0xf]
  %v2972 = vld [vmem:[%s2967 + $0x10] sm:$0xf]
  %v2973 = vld [vmem:[%s2967 + $0x14] sm:$0xf]
  %v2974 = vld [vmem:[%s2967 + $0x18] sm:$0xf]
  %v2975 = vld [vmem:[%s2967 + $0x1c] sm:$0xf]
  %v2976 = vld [vmem:[%s2967 + $0x20] sm:$0xf]
  %v2977 = vld [vmem:[%s2967 + $0x24] sm:$0xf]
  %v2978 = vld [vmem:[%s2967 + $0x28] sm:$0x3]
  %v2980 = vunpack.c.l.b16 %v2639
  %v2981 = vpack.c.b16 %v2980, %v2882
  %v2993 = vunpack.c.l.b16 %v2968
  %v2994 = vunpack.c.l.b16 %v2969
  %v2995 = vunpack.c.l.b16 %v2970
  %v2996 = vunpack.c.l.b16 %v2971
  %v2997 = vunpack.c.l.b16 %v2972
  %v2998 = vunpack.c.l.b16 %v2973
  %v2999 = vunpack.c.l.b16 %v2974
  %v3000 = vunpack.c.l.b16 %v2975
  %v3001 = vunpack.c.l.b16 %v2976
  %v3002 = vunpack.c.l.b16 %v2977
  %v3003 = vunpack.c.l.b16 %v2978
  %v3004 = vpack.c.b16 %v2994, %v2993
  %v3005 = vpack.c.b16 %v2996, %v2995
  %v3006 = vpack.c.b16 %v2998, %v2997
  %v3007 = vpack.c.b16 %v3000, %v2999
  %v3008 = vpack.c.b16 %v3002, %v3001
  %v3009 = vpack.c.b16 %v3003, %v3003
  %v3016 = vsel %vm2723, %v2981, 0
  %v3019 = vsel %vm2739, %v3009, 0
  %3021 = vmatpush.bf16.msra.mxu0 0
  %3022 = vmatpush.bf16.msra.mxu0 0
  %3023 = vmatpush.bf16.msra.mxu0 %v3019
  %3024 = vmatpush.bf16.msra.mxu0 %v3008
  %3025 = vmatpush.bf16.msra.mxu0 %v3007
  %3026 = vmatpush.bf16.msra.mxu0 %v3006
  %3027 = vmatpush.bf16.msra.mxu0 %v3005
  %3028 = vmatpush.bf16.msra.mxu0 %v3004
  %3029 = vmatmul.bf16.gmra.mxu0 %v2728
  %v3030 = vpop.f32.mrf.mxu0
  %v3031 = vadd.f32 0.0, %v3030
  %v3032 = vpop.f32.mrf.mxu0
  %v3033 = vadd.f32 0.0, %v3032
  %3034 = vmatmul.bf16.gmra.mxu0 %v2731
  %v3035 = vpop.f32.mrf.mxu0
  %v3036 = vadd.f32 0.0, %v3035
  %v3037 = vpop.f32.mrf.mxu0
  %v3038 = vadd.f32 0.0, %v3037
  %3039 = vmatmul.bf16.gmra.mxu0 %v2734
  %v3040 = vpop.f32.mrf.mxu0
  %v3041 = vadd.f32 0.0, %v3040
  %v3042 = vpop.f32.mrf.mxu0
  %v3043 = vadd.f32 0.0, %v3042
  %3044 = vmatmul.bf16.gmra.mxu0 %v2737
  %v3045 = vpop.f32.mrf.mxu0
  %v3046 = vadd.f32 0.0, %v3045
  %v3047 = vpop.f32.mrf.mxu0
  %v3048 = vadd.f32 0.0, %v3047
  %3049 = vmatmul.bf16.gmra.mxu0 %v3016
  %v3050 = vpop.f32.mrf.mxu0
  %v3051 = vadd.f32 0.0, %v3050
  %v3052 = vpop.f32.mrf.mxu0
  %v3053 = vadd.f32 0.0, %v3052
  %3054 = vdwg.mxu0
  %v3055 = vadd.f32 %v2957, %v3031
  %v3056 = vadd.f32 %v2958, %v3033
  %v3057 = vadd.f32 %v2959, %v3036
  %v3058 = vadd.f32 %v2960, %v3038
  %v3059 = vadd.f32 %v2961, %v3041
  %v3060 = vadd.f32 %v2962, %v3043
  %v3061 = vadd.f32 %v2963, %v3046
  %v3062 = vadd.f32 %v2964, %v3048
  %v3063 = vadd.f32 %v2965, %v3051
  %v3064 = vadd.f32 %v2966, %v3053
  %s3065 = scalar_lea.vmem %s2, 176
  %v3066 = vld [vmem:[%s3065] sm:$0xf]
  %v3067 = vld [vmem:[%s3065 + $0x4] sm:$0xf]
  %v3068 = vld [vmem:[%s3065 + $0x8] sm:$0xf]
  %v3069 = vld [vmem:[%s3065 + $0xc] sm:$0xf]
  %v3070 = vld [vmem:[%s3065 + $0x10] sm:$0xf]
  %v3071 = vld [vmem:[%s3065 + $0x14] sm:$0xf]
  %v3072 = vld [vmem:[%s3065 + $0x18] sm:$0xf]
  %v3073 = vld [vmem:[%s3065 + $0x1c] sm:$0xf]
  %v3074 = vld [vmem:[%s3065 + $0x20] sm:$0xf]
  %v3075 = vld [vmem:[%s3065 + $0x24] sm:$0xf]
  %v3076 = vld [vmem:[%s3065 + $0x28] sm:$0x3]
  %v3078 = vunpack.c.l.b16 %v2640
  %v3079 = vpack.c.b16 %v3078, %v2980
  %v3091 = vunpack.c.l.b16 %v3066
  %v3092 = vunpack.c.l.b16 %v3067
  %v3093 = vunpack.c.l.b16 %v3068
  %v3094 = vunpack.c.l.b16 %v3069
  %v3095 = vunpack.c.l.b16 %v3070
  %v3096 = vunpack.c.l.b16 %v3071
  %v3097 = vunpack.c.l.b16 %v3072
  %v3098 = vunpack.c.l.b16 %v3073
  %v3099 = vunpack.c.l.b16 %v3074
  %v3100 = vunpack.c.l.b16 %v3075
  %v3101 = vunpack.c.l.b16 %v3076
  %v3102 = vpack.c.b16 %v3092, %v3091
  %v3103 = vpack.c.b16 %v3094, %v3093
  %v3104 = vpack.c.b16 %v3096, %v3095
  %v3105 = vpack.c.b16 %v3098, %v3097
  %v3106 = vpack.c.b16 %v3100, %v3099
  %v3107 = vpack.c.b16 %v3101, %v3101
  %v3114 = vsel %vm2723, %v3079, 0
  %v3117 = vsel %vm2739, %v3107, 0
  %3119 = vmatpush.bf16.msra.mxu0 0
  %3120 = vmatpush.bf16.msra.mxu0 0
  %3121 = vmatpush.bf16.msra.mxu0 %v3117
  %3122 = vmatpush.bf16.msra.mxu0 %v3106
  %3123 = vmatpush.bf16.msra.mxu0 %v3105
  %3124 = vmatpush.bf16.msra.mxu0 %v3104
  %3125 = vmatpush.bf16.msra.mxu0 %v3103
  %3126 = vmatpush.bf16.msra.mxu0 %v3102
  %3127 = vmatmul.bf16.gmra.mxu0 %v2824
  %v3128 = vpop.f32.mrf.mxu0
  %v3129 = vadd.f32 0.0, %v3128
  %v3130 = vpop.f32.mrf.mxu0
  %v3131 = vadd.f32 0.0, %v3130
  %3132 = vmatmul.bf16.gmra.mxu0 %v2827
  %v3133 = vpop.f32.mrf.mxu0
  %v3134 = vadd.f32 0.0, %v3133
  %v3135 = vpop.f32.mrf.mxu0
  %v3136 = vadd.f32 0.0, %v3135
  %3137 = vmatmul.bf16.gmra.mxu0 %v2830
  %v3138 = vpop.f32.mrf.mxu0
  %v3139 = vadd.f32 0.0, %v3138
  %v3140 = vpop.f32.mrf.mxu0
  %v3141 = vadd.f32 0.0, %v3140
  %3142 = vmatmul.bf16.gmra.mxu0 %v2918
  %v3143 = vpop.f32.mrf.mxu0
  %v3144 = vadd.f32 0.0, %v3143
  %v3145 = vpop.f32.mrf.mxu0
  %v3146 = vadd.f32 0.0, %v3145
  %3147 = vmatmul.bf16.gmra.mxu0 %v3114
  %v3148 = vpop.f32.mrf.mxu0
  %v3149 = vadd.f32 0.0, %v3148
  %v3150 = vpop.f32.mrf.mxu0
  %v3151 = vadd.f32 0.0, %v3150
  %3152 = vdwg.mxu0
  %v3153 = vadd.f32 %v3055, %v3129
  %v3154 = vadd.f32 %v3056, %v3131
  %v3155 = vadd.f32 %v3057, %v3134
  %v3156 = vadd.f32 %v3058, %v3136
  %v3157 = vadd.f32 %v3059, %v3139
  %v3158 = vadd.f32 %v3060, %v3141
  %v3159 = vadd.f32 %v3061, %v3144
  %v3160 = vadd.f32 %v3062, %v3146
  %v3161 = vadd.f32 %v3063, %v3149
  %v3162 = vadd.f32 %v3064, %v3151
  %v3163 = vadd.f32 %v3153, %v2641
  %v3164 = vadd.f32 %v3154, %v2641
  %v3165 = vadd.f32 %v3155, %v2641
  %v3166 = vadd.f32 %v3156, %v2641
  %v3167 = vadd.f32 %v3157, %v2641
  %v3168 = vadd.f32 %v3158, %v2641
  %v3169 = vadd.f32 %v3159, %v2641
  %v3170 = vadd.f32 %v3160, %v2641
  %v3171 = vadd.f32 %v3161, %v2641
  %v3172 = vadd.f32 %v3162, %v2641
  %v3173 = vld [vmem:[%s12] sm:$0xff]
  %v3174 = vld [vmem:[%s12 + $0x8] sm:$0xff]
  %v3175 = vld [vmem:[%s12 + $0x10] sm:$0xff]
  %v3176 = vld [vmem:[%s12 + $0x18] sm:$0xff]
  %v3177 = vld [vmem:[%s12 + $0x20] sm:$0xff]
  %v3178 = vld [vmem:[%s12 + $0x28] sm:$0xff]
  %v3179 = vld [vmem:[%s12 + $0x30] sm:$0xff]
  %v3180 = vld [vmem:[%s12 + $0x38] sm:$0xff]
  %v3181 = vld [vmem:[%s12 + $0x40] sm:$0xff]
  %v3182 = vld [vmem:[%s12 + $0x48] sm:$0xff]
  %v3183 = vld [vmem:[%s12 + $0x50] sm:$0xff]
  %v3184 = vld [vmem:[%s12 + $0x58] sm:$0xff]
  %v3185 = vld [vmem:[%s12 + $0x60] sm:$0xff]
  %v3186 = vld [vmem:[%s12 + $0x68] sm:$0xff]
  %v3187 = vld [vmem:[%s12 + $0x70] sm:$0xff]
  %v3188 = vld [vmem:[%s13] sm:$0xff]
  %v3189 = vld [vmem:[%s13 + $0x8] sm:$0xff]
  %v3190 = vld [vmem:[%s13 + $0x10] sm:$0xff]
  %v3191 = vld [vmem:[%s13 + $0x18] sm:$0xff]
  %v3192 = vld [vmem:[%s13 + $0x20] sm:$0xff]
  %v3193 = vld [vmem:[%s13 + $0x28] sm:$0xff]
  %v3194 = vld [vmem:[%s13 + $0x30] sm:$0xff]
  %v3195 = vld [vmem:[%s13 + $0x38] sm:$0xff]
  %v3196 = vld [vmem:[%s13 + $0x40] sm:$0xff]
  %v3197 = vld [vmem:[%s13 + $0x48] sm:$0xff]
  %v3198 = vld [vmem:[%s13 + $0x50] sm:$0xff]
  %v3199 = vld [vmem:[%s13 + $0x58] sm:$0xff]
  %v3200 = vld [vmem:[%s13 + $0x60] sm:$0xff]
  %v3201 = vld [vmem:[%s13 + $0x68] sm:$0xff]
  %v3202 = vld [vmem:[%s13 + $0x70] sm:$0xff]
  %vm3203 = vcmask 982016
  %v3205 = vsel %vm3203, %v3163, 0
  %v3208 = vsel %vm3203, %v3165, 0
  %v3211 = vsel %vm3203, %v3167, 0
  %v3214 = vsel %vm3203, %v3169, 0
  %v3217 = vsel %vm3203, %v3171, 0
  %3219 = vmatpush.msra.mxu0 0.0
  %3220 = vmatpush.msra.mxu0 %v3187
  %3221 = vmatpush.msra.mxu0 %v3186
  %3222 = vmatpush.msra.mxu0 %v3185
  %3223 = vmatpush.msra.mxu0 %v3184
  %3224 = vmatpush.msra.mxu0 %v3183
  %3225 = vmatpush.msra.mxu0 %v3182
  %3226 = vmatpush.msra.mxu0 %v3181
  %3227 = vmatpush.msra.mxu0 %v3180
  %3228 = vmatpush.msra.mxu0 %v3179
  %3229 = vmatpush.msra.mxu0 %v3178
  %3230 = vmatpush.msra.mxu0 %v3177
  %3231 = vmatpush.msra.mxu0 %v3176
  %3232 = vmatpush.msra.mxu0 %v3175
  %3233 = vmatpush.msra.mxu0 %v3174
  %3234 = vmatpush.msra.mxu0 %v3173
  %3235 = vmatmul.f32.gmra.mxu0 %v3205
  %v3236 = vpop.f32.mrf.mxu0
  %v3237 = vadd.f32 0.0, %v3236
  %3238 = vmatmul.f32.gmra.mxu0 %v3208
  %v3239 = vpop.f32.mrf.mxu0
  %v3240 = vadd.f32 0.0, %v3239
  %3241 = vmatmul.f32.gmra.mxu0 %v3211
  %v3242 = vpop.f32.mrf.mxu0
  %v3243 = vadd.f32 0.0, %v3242
  %3244 = vmatmul.f32.gmra.mxu0 %v3214
  %v3245 = vpop.f32.mrf.mxu0
  %v3246 = vadd.f32 0.0, %v3245
  %3247 = vmatmul.f32.gmra.mxu0 %v3217
  %v3248 = vpop.f32.mrf.mxu0
  %v3249 = vadd.f32 0.0, %v3248
  %3250 = vdwg.mxu0
  %3251 = vmatpush.msra.mxu0 0.0
  %3252 = vmatpush.msra.mxu0 %v3202
  %3253 = vmatpush.msra.mxu0 %v3201
  %3254 = vmatpush.msra.mxu0 %v3200
  %3255 = vmatpush.msra.mxu0 %v3199
  %3256 = vmatpush.msra.mxu0 %v3198
  %3257 = vmatpush.msra.mxu0 %v3197
  %3258 = vmatpush.msra.mxu0 %v3196
  %3259 = vmatpush.msra.mxu0 %v3195
  %3260 = vmatpush.msra.mxu0 %v3194
  %3261 = vmatpush.msra.mxu0 %v3193
  %3262 = vmatpush.msra.mxu0 %v3192
  %3263 = vmatpush.msra.mxu0 %v3191
  %3264 = vmatpush.msra.mxu0 %v3190
  %3265 = vmatpush.msra.mxu0 %v3189
  %3266 = vmatpush.msra.mxu0 %v3188
  %3267 = vmatmul.f32.gmra.mxu0 %v3205
  %v3268 = vpop.f32.mrf.mxu0
  %v3269 = vadd.f32 0.0, %v3268
  %3270 = vmatmul.f32.gmra.mxu0 %v3208
  %v3271 = vpop.f32.mrf.mxu0
  %v3272 = vadd.f32 0.0, %v3271
  %3273 = vmatmul.f32.gmra.mxu0 %v3211
  %v3274 = vpop.f32.mrf.mxu0
  %v3275 = vadd.f32 0.0, %v3274
  %3276 = vmatmul.f32.gmra.mxu0 %v3214
  %v3277 = vpop.f32.mrf.mxu0
  %v3278 = vadd.f32 0.0, %v3277
  %3279 = vmatmul.f32.gmra.mxu0 %v3217
  %v3280 = vpop.f32.mrf.mxu0
  %v3281 = vadd.f32 0.0, %v3280
  %3282 = vdwg.mxu0
  %v3284 = vsel %vm3203, %v3164, 0
  %v3287 = vsel %vm3203, %v3166, 0
  %v3290 = vsel %vm3203, %v3168, 0
  %v3293 = vsel %vm3203, %v3170, 0
  %v3296 = vsel %vm3203, %v3172, 0
  %3298 = vmatpush.msra.mxu0 0.0
  %3299 = vmatpush.msra.mxu0 %v3187
  %3300 = vmatpush.msra.mxu0 %v3186
  %3301 = vmatpush.msra.mxu0 %v3185
  %3302 = vmatpush.msra.mxu0 %v3184
  %3303 = vmatpush.msra.mxu0 %v3183
  %3304 = vmatpush.msra.mxu0 %v3182
  %3305 = vmatpush.msra.mxu0 %v3181
  %3306 = vmatpush.msra.mxu0 %v3180
  %3307 = vmatpush.msra.mxu0 %v3179
  %3308 = vmatpush.msra.mxu0 %v3178
  %3309 = vmatpush.msra.mxu0 %v3177
  %3310 = vmatpush.msra.mxu0 %v3176
  %3311 = vmatpush.msra.mxu0 %v3175
  %3312 = vmatpush.msra.mxu0 %v3174
  %3313 = vmatpush.msra.mxu0 %v3173
  %3314 = vmatmul.f32.gmra.mxu0 %v3284
  %v3315 = vpop.f32.mrf.mxu0
  %v3316 = vadd.f32 0.0, %v3315
  %3317 = vmatmul.f32.gmra.mxu0 %v3287
  %v3318 = vpop.f32.mrf.mxu0
  %v3319 = vadd.f32 0.0, %v3318
  %3320 = vmatmul.f32.gmra.mxu0 %v3290
  %v3321 = vpop.f32.mrf.mxu0
  %v3322 = vadd.f32 0.0, %v3321
  %3323 = vmatmul.f32.gmra.mxu0 %v3293
  %v3324 = vpop.f32.mrf.mxu0
  %v3325 = vadd.f32 0.0, %v3324
  %3326 = vmatmul.f32.gmra.mxu0 %v3296
  %v3327 = vpop.f32.mrf.mxu0
  %v3328 = vadd.f32 0.0, %v3327
  %3329 = vdwg.mxu0
  %3330 = vmatpush.msra.mxu0 0.0
  %3331 = vmatpush.msra.mxu0 %v3202
  %3332 = vmatpush.msra.mxu0 %v3201
  %3333 = vmatpush.msra.mxu0 %v3200
  %3334 = vmatpush.msra.mxu0 %v3199
  %3335 = vmatpush.msra.mxu0 %v3198
  %3336 = vmatpush.msra.mxu0 %v3197
  %3337 = vmatpush.msra.mxu0 %v3196
  %3338 = vmatpush.msra.mxu0 %v3195
  %3339 = vmatpush.msra.mxu0 %v3194
  %3340 = vmatpush.msra.mxu0 %v3193
  %3341 = vmatpush.msra.mxu0 %v3192
  %3342 = vmatpush.msra.mxu0 %v3191
  %3343 = vmatpush.msra.mxu0 %v3190
  %3344 = vmatpush.msra.mxu0 %v3189
  %3345 = vmatpush.msra.mxu0 %v3188
  %3346 = vmatmul.f32.gmra.mxu0 %v3284
  %v3347 = vpop.f32.mrf.mxu0
  %v3348 = vadd.f32 0.0, %v3347
  %3349 = vmatmul.f32.gmra.mxu0 %v3287
  %v3350 = vpop.f32.mrf.mxu0
  %v3351 = vadd.f32 0.0, %v3350
  %3352 = vmatmul.f32.gmra.mxu0 %v3290
  %v3353 = vpop.f32.mrf.mxu0
  %v3354 = vadd.f32 0.0, %v3353
  %3355 = vmatmul.f32.gmra.mxu0 %v3293
  %v3356 = vpop.f32.mrf.mxu0
  %v3357 = vadd.f32 0.0, %v3356
  %3358 = vmatmul.f32.gmra.mxu0 %v3296
  %v3359 = vpop.f32.mrf.mxu0
  %v3360 = vadd.f32 0.0, %v3359
  %3361 = vdwg.mxu0
  %vm3362 = vcmp.ge.f32.partialorder %v3237, %v3269
  %vm3363 = vcmp.ge.f32.partialorder %v3240, %v3272
  %vm3364 = vcmp.ge.f32.partialorder %v3243, %v3275
  %vm3365 = vcmp.ge.f32.partialorder %v3246, %v3278
  %vm3366 = vcmp.ge.f32.partialorder %v3249, %v3281
  %vm3367 = vcmp.ge.f32.partialorder %v3237, %v3316
  %vm3368 = vcmp.ge.f32.partialorder %v3240, %v3319
  %vm3369 = vcmp.ge.f32.partialorder %v3243, %v3322
  %vm3370 = vcmp.ge.f32.partialorder %v3246, %v3325
  %vm3371 = vcmp.ge.f32.partialorder %v3249, %v3328
  %vm3372 = vmand %vm3362, %vm3367
  %vm3373 = vmand %vm3363, %vm3368
  %vm3374 = vmand %vm3364, %vm3369
  %vm3375 = vmand %vm3365, %vm3370
  %vm3376 = vmand %vm3366, %vm3371
  %vm3377 = vcmp.ge.f32.partialorder %v3237, %v3348
  %vm3378 = vcmp.ge.f32.partialorder %v3240, %v3351
  %vm3379 = vcmp.ge.f32.partialorder %v3243, %v3354
  %vm3380 = vcmp.ge.f32.partialorder %v3246, %v3357
  %vm3381 = vcmp.ge.f32.partialorder %v3249, %v3360
  %vm3382 = vmand %vm3372, %vm3377
  %vm3383 = vmand %vm3373, %vm3378
  %vm3384 = vmand %vm3374, %vm3379
  %vm3385 = vmand %vm3375, %vm3380
  %vm3386 = vmand %vm3376, %vm3381
  %vm3387 = vmxor %vm3382, 1
  %vm3388 = vmxor %vm3383, 1
  %vm3389 = vmxor %vm3384, 1
  %vm3390 = vmxor %vm3385, 1
  %vm3391 = vmxor %vm3386, 1
  %vm3392 = vcmp.ge.f32.partialorder %v3269, %v3316
  %vm3393 = vcmp.ge.f32.partialorder %v3272, %v3319
  %vm3394 = vcmp.ge.f32.partialorder %v3275, %v3322
  %vm3395 = vcmp.ge.f32.partialorder %v3278, %v3325
  %vm3396 = vcmp.ge.f32.partialorder %v3281, %v3328
  %vm3397 = vmand %vm3387, %vm3392
  %vm3398 = vmand %vm3388, %vm3393
  %vm3399 = vmand %vm3389, %vm3394
  %vm3400 = vmand %vm3390, %vm3395
  %vm3401 = vmand %vm3391, %vm3396
  %vm3402 = vcmp.ge.f32.partialorder %v3269, %v3348
  %vm3403 = vcmp.ge.f32.partialorder %v3272, %v3351
  %vm3404 = vcmp.ge.f32.partialorder %v3275, %v3354
  %vm3405 = vcmp.ge.f32.partialorder %v3278, %v3357
  %vm3406 = vcmp.ge.f32.partialorder %v3281, %v3360
  %vm3407 = vmand %vm3397, %vm3402
  %vm3408 = vmand %vm3398, %vm3403
  %vm3409 = vmand %vm3399, %vm3404
  %vm3410 = vmand %vm3400, %vm3405
  %vm3411 = vmand %vm3401, %vm3406
  %vm3412 = vmor %vm3382, %vm3407
  %vm3413 = vmor %vm3383, %vm3408
  %vm3414 = vmor %vm3384, %vm3409
  %vm3415 = vmor %vm3385, %vm3410
  %vm3416 = vmor %vm3386, %vm3411
  %vm3417 = vmxor %vm3412, 1
  %vm3418 = vmxor %vm3413, 1
  %vm3419 = vmxor %vm3414, 1
  %vm3420 = vmxor %vm3415, 1
  %vm3421 = vmxor %vm3416, 1
  %vm3422 = vcmp.ge.f32.partialorder %v3316, %v3348
  %vm3423 = vcmp.ge.f32.partialorder %v3319, %v3351
  %vm3424 = vcmp.ge.f32.partialorder %v3322, %v3354
  %vm3425 = vcmp.ge.f32.partialorder %v3325, %v3357
  %vm3426 = vcmp.ge.f32.partialorder %v3328, %v3360
  %vm3427 = vmand %vm3417, %vm3422
  %vm3428 = vmand %vm3418, %vm3423
  %vm3429 = vmand %vm3419, %vm3424
  %vm3430 = vmand %vm3420, %vm3425
  %vm3431 = vmand %vm3421, %vm3426
  %vm3432 = vmor %vm3412, %vm3427
  %vm3433 = vmor %vm3413, %vm3428
  %vm3434 = vmor %vm3414, %vm3429
  %vm3435 = vmor %vm3415, %vm3430
  %vm3436 = vmor %vm3416, %vm3431
  %vm3437 = vmxor %vm3432, 1
  %vm3438 = vmxor %vm3433, 1
  %vm3439 = vmxor %vm3434, 1
  %vm3440 = vmxor %vm3435, 1
  %vm3441 = vmxor %vm3436, 1
  %v3442 = vmax.f32 %v3237, %v3269
  %v3443 = vmax.f32 %v3240, %v3272
  %v3444 = vmax.f32 %v3243, %v3275
  %v3445 = vmax.f32 %v3246, %v3278
  %v3446 = vmax.f32 %v3249, %v3281
  %v3447 = vmax.f32 %v3316, %v3348
  %v3448 = vmax.f32 %v3319, %v3351
  %v3449 = vmax.f32 %v3322, %v3354
  %v3450 = vmax.f32 %v3325, %v3357
  %v3451 = vmax.f32 %v3328, %v3360
  %v3452 = vmax.f32 %v3442, %v3447
  %v3453 = vmax.f32 %v3443, %v3448
  %v3454 = vmax.f32 %v3444, %v3449
  %v3455 = vmax.f32 %v3445, %v3450
  %v3456 = vmax.f32 %v3446, %v3451
  %v3457 = vtanh.pop %v3452
  %v3458 = vtanh.pop %v3453
  %v3459 = vtanh.pop %v3454
  %v3460 = vtanh.pop %v3455
  %v3461 = vtanh.pop %v3456
  %v3462 = vpack.c.bf16 %v3457, %v3457
  %v3463 = vpack.c.bf16 %v3458, %v3458
  %v3464 = vpack.c.bf16 %v3459, %v3459
  %v3465 = vpack.c.bf16 %v3460, %v3460
  %v3466 = vpack.c.bf16 %v3461, %v3461
  %v3467 = vld [vmem:[%s7 + $0x2] ss:$0 sm:$0xff]
  %v3468 = vld [vmem:[%s3] sm:$0xf]
  %v3469 = vld [vmem:[%s3 + $0x4] sm:$0xf]
  %v3470 = vld [vmem:[%s3 + $0x8] sm:$0xf]
  %v3471 = vld [vmem:[%s3 + $0xc] sm:$0xf]
  %v3472 = vld [vmem:[%s3 + $0x10] sm:$0xf]
  %v3473 = vld [vmem:[%s3 + $0x14] sm:$0xf]
  %v3474 = vld [vmem:[%s3 + $0x18] sm:$0xf]
  %v3475 = vld [vmem:[%s3 + $0x1c] sm:$0x3]
  %s3476 = scalar_lea.vmem %s3, 32
  %v3477 = vld [vmem:[%s3476] sm:$0xf]
  %v3478 = vld [vmem:[%s3476 + $0x4] sm:$0xf]
  %v3479 = vld [vmem:[%s3476 + $0x8] sm:$0xf]
  %v3480 = vld [vmem:[%s3476 + $0xc] sm:$0xf]
  %v3481 = vld [vmem:[%s3476 + $0x10] sm:$0xf]
  %v3482 = vld [vmem:[%s3476 + $0x14] sm:$0xf]
  %v3483 = vld [vmem:[%s3476 + $0x18] sm:$0xf]
  %v3484 = vld [vmem:[%s3476 + $0x1c] sm:$0x3]
  %v3493 = vunpack.c.l.b16 %v3477
  %v3494 = vunpack.c.l.b16 %v3478
  %v3495 = vunpack.c.l.b16 %v3479
  %v3496 = vunpack.c.l.b16 %v3480
  %v3497 = vunpack.c.l.b16 %v3481
  %v3498 = vunpack.c.l.b16 %v3482
  %v3499 = vunpack.c.l.b16 %v3483
  %v3500 = vunpack.c.l.b16 %v3484
  %v3501 = vpack.c.b16 %v3494, %v3493
  %v3502 = vpack.c.b16 %v3496, %v3495
  %v3503 = vpack.c.b16 %v3498, %v3497
  %v3504 = vpack.c.b16 %v3500, %v3499
  %vm3508 = vcmask 490496
  %v3510 = vsel %vm3508, %v3463, 0
  %vm3512 = vcmask 1045504
  %v3514 = vsel %vm3512, %v3504, 0
  %3516 = vmatpush.bf16.msra.mxu0 0
  %3517 = vmatpush.bf16.msra.mxu0 0
  %3518 = vmatpush.bf16.msra.mxu0 0
  %3519 = vmatpush.bf16.msra.mxu0 0
  %3520 = vmatpush.bf16.msra.mxu0 %v3514
  %3521 = vmatpush.bf16.msra.mxu0 %v3503
  %3522 = vmatpush.bf16.msra.mxu0 %v3502
  %3523 = vmatpush.bf16.msra.mxu0 %v3501
  %3524 = vmatmul.bf16.gmra.mxu0 %v3510
  %v3525 = vpop.f32.mrf.mxu0
  %v3526 = vadd.f32 0.0, %v3525
  %v3527 = vpop.f32.mrf.mxu0
  %3528 = vdwg.mxu0
  %v3537 = vunpack.c.l.b16 %v3468
  %v3538 = vunpack.c.l.b16 %v3469
  %v3539 = vunpack.c.l.b16 %v3470
  %v3540 = vunpack.c.l.b16 %v3471
  %v3541 = vunpack.c.l.b16 %v3472
  %v3542 = vunpack.c.l.b16 %v3473
  %v3543 = vunpack.c.l.b16 %v3474
  %v3544 = vunpack.c.l.b16 %v3475
  %v3545 = vpack.c.b16 %v3538, %v3537
  %v3546 = vpack.c.b16 %v3540, %v3539
  %v3547 = vpack.c.b16 %v3542, %v3541
  %v3548 = vpack.c.b16 %v3544, %v3543
  %v3553 = vsel %vm3508, %v3462, 0
  %v3556 = vsel %vm3512, %v3548, 0
  %3558 = vmatpush.bf16.msra.mxu0 0
  %3559 = vmatpush.bf16.msra.mxu0 0
  %3560 = vmatpush.bf16.msra.mxu0 0
  %3561 = vmatpush.bf16.msra.mxu0 0
  %3562 = vmatpush.bf16.msra.mxu0 %v3556
  %3563 = vmatpush.bf16.msra.mxu0 %v3547
  %3564 = vmatpush.bf16.msra.mxu0 %v3546
  %3565 = vmatpush.bf16.msra.mxu0 %v3545
  %3566 = vmatmul.bf16.gmra.mxu0 %v3553
  %v3567 = vpop.f32.mrf.mxu0
  %v3568 = vadd.f32 %v3526, %v3567
  %v3569 = vpop.f32.mrf.mxu0
  %3570 = vdwg.mxu0
  %s3571 = scalar_lea.vmem %s3, 64
  %v3572 = vld [vmem:[%s3571] sm:$0xf]
  %v3573 = vld [vmem:[%s3571 + $0x4] sm:$0xf]
  %v3574 = vld [vmem:[%s3571 + $0x8] sm:$0xf]
  %v3575 = vld [vmem:[%s3571 + $0xc] sm:$0xf]
  %v3576 = vld [vmem:[%s3571 + $0x10] sm:$0xf]
  %v3577 = vld [vmem:[%s3571 + $0x14] sm:$0xf]
  %v3578 = vld [vmem:[%s3571 + $0x18] sm:$0xf]
  %v3579 = vld [vmem:[%s3571 + $0x1c] sm:$0x3]
  %v3588 = vunpack.c.l.b16 %v3572
  %v3589 = vunpack.c.l.b16 %v3573
  %v3590 = vunpack.c.l.b16 %v3574
  %v3591 = vunpack.c.l.b16 %v3575
  %v3592 = vunpack.c.l.b16 %v3576
  %v3593 = vunpack.c.l.b16 %v3577
  %v3594 = vunpack.c.l.b16 %v3578
  %v3595 = vunpack.c.l.b16 %v3579
  %v3596 = vpack.c.b16 %v3589, %v3588
  %v3597 = vpack.c.b16 %v3591, %v3590
  %v3598 = vpack.c.b16 %v3593, %v3592
  %v3599 = vpack.c.b16 %v3595, %v3594
  %v3604 = vsel %vm3508, %v3464, 0
  %v3607 = vsel %vm3512, %v3599, 0
  %3609 = vmatpush.bf16.msra.mxu0 0
  %3610 = vmatpush.bf16.msra.mxu0 0
  %3611 = vmatpush.bf16.msra.mxu0 0
  %3612 = vmatpush.bf16.msra.mxu0 0
  %3613 = vmatpush.bf16.msra.mxu0 %v3607
  %3614 = vmatpush.bf16.msra.mxu0 %v3598
  %3615 = vmatpush.bf16.msra.mxu0 %v3597
  %3616 = vmatpush.bf16.msra.mxu0 %v3596
  %3617 = vmatmul.bf16.gmra.mxu0 %v3604
  %v3618 = vpop.f32.mrf.mxu0
  %v3619 = vadd.f32 0.0, %v3618
  %v3620 = vpop.f32.mrf.mxu0
  %3621 = vdwg.mxu0
  %v3622 = vadd.f32 %v3568, %v3619
  %s3623 = scalar_lea.vmem %s3, 96
  %v3624 = vld [vmem:[%s3623] sm:$0xf]
  %v3625 = vld [vmem:[%s3623 + $0x4] sm:$0xf]
  %v3626 = vld [vmem:[%s3623 + $0x8] sm:$0xf]
  %v3627 = vld [vmem:[%s3623 + $0xc] sm:$0xf]
  %v3628 = vld [vmem:[%s3623 + $0x10] sm:$0xf]
  %v3629 = vld [vmem:[%s3623 + $0x14] sm:$0xf]
  %v3630 = vld [vmem:[%s3623 + $0x18] sm:$0xf]
  %v3631 = vld [vmem:[%s3623 + $0x1c] sm:$0x3]
  %v3640 = vunpack.c.l.b16 %v3624
  %v3641 = vunpack.c.l.b16 %v3625
  %v3642 = vunpack.c.l.b16 %v3626
  %v3643 = vunpack.c.l.b16 %v3627
  %v3644 = vunpack.c.l.b16 %v3628
  %v3645 = vunpack.c.l.b16 %v3629
  %v3646 = vunpack.c.l.b16 %v3630
  %v3647 = vunpack.c.l.b16 %v3631
  %v3648 = vpack.c.b16 %v3641, %v3640
  %v3649 = vpack.c.b16 %v3643, %v3642
  %v3650 = vpack.c.b16 %v3645, %v3644
  %v3651 = vpack.c.b16 %v3647, %v3646
  %v3656 = vsel %vm3508, %v3465, 0
  %v3659 = vsel %vm3512, %v3651, 0
  %3661 = vmatpush.bf16.msra.mxu0 0
  %3662 = vmatpush.bf16.msra.mxu0 0
  %3663 = vmatpush.bf16.msra.mxu0 0
  %3664 = vmatpush.bf16.msra.mxu0 0
  %3665 = vmatpush.bf16.msra.mxu0 %v3659
  %3666 = vmatpush.bf16.msra.mxu0 %v3650
  %3667 = vmatpush.bf16.msra.mxu0 %v3649
  %3668 = vmatpush.bf16.msra.mxu0 %v3648
  %3669 = vmatmul.bf16.gmra.mxu0 %v3656
  %v3670 = vpop.f32.mrf.mxu0
  %v3671 = vadd.f32 0.0, %v3670
  %v3672 = vpop.f32.mrf.mxu0
  %3673 = vdwg.mxu0
  %v3674 = vadd.f32 %v3622, %v3671
  %s3675 = scalar_lea.vmem %s3, 128
  %v3676 = vld [vmem:[%s3675] sm:$0xf]
  %v3677 = vld [vmem:[%s3675 + $0x4] sm:$0xf]
  %v3678 = vld [vmem:[%s3675 + $0x8] sm:$0xf]
  %v3679 = vld [vmem:[%s3675 + $0xc] sm:$0xf]
  %v3680 = vld [vmem:[%s3675 + $0x10] sm:$0xf]
  %v3681 = vld [vmem:[%s3675 + $0x14] sm:$0xf]
  %v3682 = vld [vmem:[%s3675 + $0x18] sm:$0xf]
  %v3683 = vld [vmem:[%s3675 + $0x1c] sm:$0x3]
  %v3692 = vunpack.c.l.b16 %v3676
  %v3693 = vunpack.c.l.b16 %v3677
  %v3694 = vunpack.c.l.b16 %v3678
  %v3695 = vunpack.c.l.b16 %v3679
  %v3696 = vunpack.c.l.b16 %v3680
  %v3697 = vunpack.c.l.b16 %v3681
  %v3698 = vunpack.c.l.b16 %v3682
  %v3699 = vunpack.c.l.b16 %v3683
  %v3700 = vpack.c.b16 %v3693, %v3692
  %v3701 = vpack.c.b16 %v3695, %v3694
  %v3702 = vpack.c.b16 %v3697, %v3696
  %v3703 = vpack.c.b16 %v3699, %v3698
  %v3708 = vsel %vm3508, %v3466, 0
  %v3711 = vsel %vm3512, %v3703, 0
  %3713 = vmatpush.bf16.msra.mxu0 0
  %3714 = vmatpush.bf16.msra.mxu0 0
  %3715 = vmatpush.bf16.msra.mxu0 0
  %3716 = vmatpush.bf16.msra.mxu0 0
  %3717 = vmatpush.bf16.msra.mxu0 %v3711
  %3718 = vmatpush.bf16.msra.mxu0 %v3702
  %3719 = vmatpush.bf16.msra.mxu0 %v3701
  %3720 = vmatpush.bf16.msra.mxu0 %v3700
  %3721 = vmatmul.bf16.gmra.mxu0 %v3708
  %v3722 = vpop.f32.mrf.mxu0
  %v3723 = vadd.f32 0.0, %v3722
  %v3724 = vpop.f32.mrf.mxu0
  %3725 = vdwg.mxu0
  %v3726 = vadd.f32 %v3674, %v3723
  %v3727 = vadd.f32 %v3726, %v3467
  %v3728 = vtanh.pop %v3727
  %v3729 = vpack.c.bf16 0.0, 0.0
  %v3730 = vpack.c.bf16 %v3728, %v3728
  %v3731 = vld [vmem:[%s7 + $0x3] ss:$0 sm:$0xff]
  %v3732 = vld [vmem:[%s4] sm:$0xf]
  %v3733 = vld [vmem:[%s4 + $0x4] sm:$0xf]
  %s3734 = scalar_lea.vmem %s4, 8
  %v3735 = vld [vmem:[%s3734] sm:$0xf]
  %v3736 = vld [vmem:[%s3734 + $0x4] sm:$0xf]
  %v3739 = vunpack.c.l.b16 %v3729
  %v3740 = vunpack.c.l.b16 %v3730
  %v3741 = vpack.c.b16 %v3739, %v3739
  %v3742 = vpack.c.b16 %v3740, %v3739
  %v3745 = vunpack.c.l.b16 %v3735
  %v3746 = vunpack.c.l.b16 %v3736
  %v3747 = vpack.c.b16 %v3746, %v3745
  %vm3749 = vcmask 130048
  %v3751 = vsel %vm3749, %v3741, 0
  %v3754 = vsel %vm3749, %v3742, 0
  %3756 = vmatpush.bf16.msra.mxu0 0
  %3757 = vmatpush.bf16.msra.mxu0 0
  %3758 = vmatpush.bf16.msra.mxu0 0
  %3759 = vmatpush.bf16.msra.mxu0 0
  %3760 = vmatpush.bf16.msra.mxu0 0
  %3761 = vmatpush.bf16.msra.mxu0 0
  %3762 = vmatpush.bf16.msra.mxu0 0
  %3763 = vmatpush.bf16.msra.mxu0 %v3747
  %3764 = vmatmul.bf16.gmra.mxu0 %v3751
  %v3765 = vpop.f32.mrf.mxu0
  %v3766 = vadd.f32 0.0, %v3765
  %v3767 = vpop.f32.mrf.mxu0
  %v3768 = vadd.f32 0.0, %v3767
  %3769 = vmatmul.bf16.gmra.mxu0 %v3754
  %v3770 = vpop.f32.mrf.mxu0
  %v3771 = vadd.f32 0.0, %v3770
  %v3772 = vpop.f32.mrf.mxu0
  %v3773 = vadd.f32 0.0, %v3772
  %3774 = vmatmul.bf16.gmra.mxu0 %v3751
  %v3775 = vpop.f32.mrf.mxu0
  %v3776 = vadd.f32 0.0, %v3775
  %v3777 = vpop.f32.mrf.mxu0
  %3778 = vdwg.mxu0
  %v3779 = vpack.c.b16 %v3740, %v3740
  %v3782 = vunpack.c.l.b16 %v3732
  %v3783 = vunpack.c.l.b16 %v3733
  %v3784 = vpack.c.b16 %v3783, %v3782
  %v3787 = vsel %vm3749, %v3779, 0
  %3789 = vmatpush.bf16.msra.mxu0 0
  %3790 = vmatpush.bf16.msra.mxu0 0
  %3791 = vmatpush.bf16.msra.mxu0 0
  %3792 = vmatpush.bf16.msra.mxu0 0
  %3793 = vmatpush.bf16.msra.mxu0 0
  %3794 = vmatpush.bf16.msra.mxu0 0
  %3795 = vmatpush.bf16.msra.mxu0 0
  %3796 = vmatpush.bf16.msra.mxu0 %v3784
  %3797 = vmatmul.bf16.gmra.mxu0 %v3751
  %v3798 = vpop.f32.mrf.mxu0
  %v3799 = vadd.f32 %v3766, %v3798
  %v3800 = vpop.f32.mrf.mxu0
  %v3801 = vadd.f32 %v3768, %v3800
  %3802 = vmatmul.bf16.gmra.mxu0 %v3751
  %v3803 = vpop.f32.mrf.mxu0
  %v3804 = vadd.f32 %v3771, %v3803
  %v3805 = vpop.f32.mrf.mxu0
  %v3806 = vadd.f32 %v3773, %v3805
  %3807 = vmatmul.bf16.gmra.mxu0 %v3787
  %v3808 = vpop.f32.mrf.mxu0
  %v3809 = vadd.f32 %v3776, %v3808
  %v3810 = vpop.f32.mrf.mxu0
  %3811 = vdwg.mxu0
  %s3812 = scalar_lea.vmem %s4, 16
  %v3813 = vld [vmem:[%s3812] sm:$0xf]
  %v3814 = vld [vmem:[%s3812 + $0x4] sm:$0xf]
  %v3815 = vpack.c.b16 %v3739, %v3740
  %v3818 = vunpack.c.l.b16 %v3813
  %v3819 = vunpack.c.l.b16 %v3814
  %v3820 = vpack.c.b16 %v3819, %v3818
  %v3823 = vsel %vm3749, %v3815, 0
  %3825 = vmatpush.bf16.msra.mxu0 0
  %3826 = vmatpush.bf16.msra.mxu0 0
  %3827 = vmatpush.bf16.msra.mxu0 0
  %3828 = vmatpush.bf16.msra.mxu0 0
  %3829 = vmatpush.bf16.msra.mxu0 0
  %3830 = vmatpush.bf16.msra.mxu0 0
  %3831 = vmatpush.bf16.msra.mxu0 0
  %3832 = vmatpush.bf16.msra.mxu0 %v3820
  %3833 = vmatmul.bf16.gmra.mxu0 %v3751
  %v3834 = vpop.f32.mrf.mxu0
  %v3835 = vadd.f32 0.0, %v3834
  %v3836 = vpop.f32.mrf.mxu0
  %v3837 = vadd.f32 0.0, %v3836
  %3838 = vmatmul.bf16.gmra.mxu0 %v3823
  %v3839 = vpop.f32.mrf.mxu0
  %v3840 = vadd.f32 0.0, %v3839
  %v3841 = vpop.f32.mrf.mxu0
  %v3842 = vadd.f32 0.0, %v3841
  %3843 = vmatmul.bf16.gmra.mxu0 %v3751
  %v3844 = vpop.f32.mrf.mxu0
  %v3845 = vadd.f32 0.0, %v3844
  %v3846 = vpop.f32.mrf.mxu0
  %3847 = vdwg.mxu0
  %v3848 = vadd.f32 %v3799, %v3835
  %v3849 = vadd.f32 %v3801, %v3837
  %v3850 = vadd.f32 %v3804, %v3840
  %v3851 = vadd.f32 %v3806, %v3842
  %v3852 = vadd.f32 %v3809, %v3845
  %s3853 = scalar_lea.vmem %s4, 24
  %v3854 = vld [vmem:[%s3853] sm:$0xf]
  %v3855 = vld [vmem:[%s3853 + $0x4] sm:$0xf]
  %v3858 = vunpack.c.l.b16 %v3854
  %v3859 = vunpack.c.l.b16 %v3855
  %v3860 = vpack.c.b16 %v3859, %v3858
  %3862 = vmatpush.bf16.msra.mxu0 0
  %3863 = vmatpush.bf16.msra.mxu0 0
  %3864 = vmatpush.bf16.msra.mxu0 0
  %3865 = vmatpush.bf16.msra.mxu0 0
  %3866 = vmatpush.bf16.msra.mxu0 0
  %3867 = vmatpush.bf16.msra.mxu0 0
  %3868 = vmatpush.bf16.msra.mxu0 0
  %3869 = vmatpush.bf16.msra.mxu0 %v3860
  %3870 = vmatmul.bf16.gmra.mxu0 %v3754
  %v3871 = vpop.f32.mrf.mxu0
  %v3872 = vadd.f32 0.0, %v3871
  %v3873 = vpop.f32.mrf.mxu0
  %v3874 = vadd.f32 0.0, %v3873
  %3875 = vmatmul.bf16.gmra.mxu0 %v3751
  %v3876 = vpop.f32.mrf.mxu0
  %v3877 = vadd.f32 0.0, %v3876
  %v3878 = vpop.f32.mrf.mxu0
  %v3879 = vadd.f32 0.0, %v3878
  %3880 = vmatmul.bf16.gmra.mxu0 %v3751
  %v3881 = vpop.f32.mrf.mxu0
  %v3882 = vadd.f32 0.0, %v3881
  %v3883 = vpop.f32.mrf.mxu0
  %3884 = vdwg.mxu0
  %v3885 = vadd.f32 %v3848, %v3872
  %v3886 = vadd.f32 %v3849, %v3874
  %v3887 = vadd.f32 %v3850, %v3877
  %v3888 = vadd.f32 %v3851, %v3879
  %v3889 = vadd.f32 %v3852, %v3882
  %s3890 = scalar_lea.vmem %s4, 32
  %v3891 = vld [vmem:[%s3890] sm:$0xf]
  %v3892 = vld [vmem:[%s3890 + $0x4] sm:$0xf]
  %v3895 = vunpack.c.l.b16 %v3891
  %v3896 = vunpack.c.l.b16 %v3892
  %v3897 = vpack.c.b16 %v3896, %v3895
  %3899 = vmatpush.bf16.msra.mxu0 0
  %3900 = vmatpush.bf16.msra.mxu0 0
  %3901 = vmatpush.bf16.msra.mxu0 0
  %3902 = vmatpush.bf16.msra.mxu0 0
  %3903 = vmatpush.bf16.msra.mxu0 0
  %3904 = vmatpush.bf16.msra.mxu0 0
  %3905 = vmatpush.bf16.msra.mxu0 0
  %3906 = vmatpush.bf16.msra.mxu0 %v3897
  %3907 = vmatmul.bf16.gmra.mxu0 %v3823
  %v3908 = vpop.f32.mrf.mxu0
  %v3909 = vadd.f32 0.0, %v3908
  %v3910 = vpop.f32.mrf.mxu0
  %v3911 = vadd.f32 0.0, %v3910
  %3912 = vmatmul.bf16.gmra.mxu0 %v3751
  %v3913 = vpop.f32.mrf.mxu0
  %v3914 = vadd.f32 0.0, %v3913
  %v3915 = vpop.f32.mrf.mxu0
  %v3916 = vadd.f32 0.0, %v3915
  %3917 = vmatmul.bf16.gmra.mxu0 %v3751
  %v3918 = vpop.f32.mrf.mxu0
  %v3919 = vadd.f32 0.0, %v3918
  %v3920 = vpop.f32.mrf.mxu0
  %3921 = vdwg.mxu0
  %v3922 = vadd.f32 %v3885, %v3909
  %v3923 = vadd.f32 %v3886, %v3911
  %v3924 = vadd.f32 %v3887, %v3914
  %v3925 = vadd.f32 %v3888, %v3916
  %v3926 = vadd.f32 %v3889, %v3919
  %v3927 = vadd.f32 %v3922, %v3731
  %v3928 = vadd.f32 %v3923, %v3731
  %v3929 = vadd.f32 %v3924, %v3731
  %v3930 = vadd.f32 %v3925, %v3731
  %v3931 = vadd.f32 %v3926, %v3731
  %v3932 = vtanh.pop %v3927
  %v3933 = vtanh.pop %v3928
  %v3934 = vtanh.pop %v3929
  %v3935 = vtanh.pop %v3930
  %v3936 = vtanh.pop %v3931
  %v3937 = vld [vmem:[%s14] sm:$0xff]
  %v3938 = vld [vmem:[%s14 + $0x8] sm:$0xff]
  %v3939 = vld [vmem:[%s14 + $0x10] sm:$0xff]
  %v3940 = vld [vmem:[%s14 + $0x18] sm:$0xff]
  %v3941 = vld [vmem:[%s14 + $0x20] sm:$0xff]
  %v3942 = vld [vmem:[%s14 + $0x28] sm:$0xff]
  %v3943 = vld [vmem:[%s14 + $0x30] sm:$0xff]
  %v3944 = vld [vmem:[%s14 + $0x38] sm:$0xf]
  %v3945 = vld [vmem:[%s15] sm:$0xff]
  %v3946 = vld [vmem:[%s15 + $0x8] sm:$0xff]
  %v3947 = vld [vmem:[%s15 + $0x10] sm:$0xff]
  %v3948 = vld [vmem:[%s15 + $0x18] sm:$0xff]
  %v3949 = vld [vmem:[%s15 + $0x20] sm:$0xff]
  %v3950 = vld [vmem:[%s15 + $0x28] sm:$0xff]
  %v3951 = vld [vmem:[%s15 + $0x30] sm:$0xff]
  %v3952 = vld [vmem:[%s15 + $0x38] sm:$0xf]
  %v3953 = vsel %vm3382, %v3932, 0.0
  %v3954 = vsel %vm3383, %v3933, 0.0
  %v3955 = vsel %vm3384, %v3934, 0.0
  %v3956 = vsel %vm3385, %v3935, 0.0
  %v3957 = vsel %vm3386, %v3936, 0.0
  %v3958 = vsel %vm3407, %v3932, 0.0
  %v3959 = vsel %vm3408, %v3933, 0.0
  %v3960 = vsel %vm3409, %v3934, 0.0
  %v3961 = vsel %vm3410, %v3935, 0.0
  %v3962 = vsel %vm3411, %v3936, 0.0
  %v3964 = vsel %vm3508, %v3958, 0
  %v3967 = vsel %vm3508, %v3959, 0
  %v3970 = vsel %vm3508, %v3960, 0
  %v3973 = vsel %vm3508, %v3961, 0
  %v3976 = vsel %vm3508, %v3962, 0
  %vm3978 = vcmask 1043456
  %v3980 = vsel %vm3978, %v3952, 0
  %3982 = vmatpush.msra.mxu0 0.0
  %3983 = vmatpush.msra.mxu0 0.0
  %3984 = vmatpush.msra.mxu0 0.0
  %3985 = vmatpush.msra.mxu0 0.0
  %3986 = vmatpush.msra.mxu0 0.0
  %3987 = vmatpush.msra.mxu0 0.0
  %3988 = vmatpush.msra.mxu0 0.0
  %3989 = vmatpush.msra.mxu0 0.0
  %3990 = vmatpush.msra.mxu0 %v3980
  %3991 = vmatpush.msra.mxu0 %v3951
  %3992 = vmatpush.msra.mxu0 %v3950
  %3993 = vmatpush.msra.mxu0 %v3949
  %3994 = vmatpush.msra.mxu0 %v3948
  %3995 = vmatpush.msra.mxu0 %v3947
  %3996 = vmatpush.msra.mxu0 %v3946
  %3997 = vmatpush.msra.mxu0 %v3945
  %3998 = vmatmul.f32.gmra.mxu0 %v3964
  %v3999 = vpop.f32.mrf.mxu0
  %v4000 = vadd.f32 0.0, %v3999
  %4001 = vmatmul.f32.gmra.mxu0 %v3967
  %v4002 = vpop.f32.mrf.mxu0
  %v4003 = vadd.f32 0.0, %v4002
  %4004 = vmatmul.f32.gmra.mxu0 %v3970
  %v4005 = vpop.f32.mrf.mxu0
  %v4006 = vadd.f32 0.0, %v4005
  %4007 = vmatmul.f32.gmra.mxu0 %v3973
  %v4008 = vpop.f32.mrf.mxu0
  %v4009 = vadd.f32 0.0, %v4008
  %4010 = vmatmul.f32.gmra.mxu0 %v3976
  %v4011 = vpop.f32.mrf.mxu0
  %v4012 = vadd.f32 0.0, %v4011
  %4013 = vdwg.mxu0
  %v4015 = vsel %vm3508, %v3953, 0
  %v4018 = vsel %vm3508, %v3954, 0
  %v4021 = vsel %vm3508, %v3955, 0
  %v4024 = vsel %vm3508, %v3956, 0
  %v4027 = vsel %vm3508, %v3957, 0
  %v4030 = vsel %vm3978, %v3944, 0
  %4032 = vmatpush.msra.mxu0 0.0
  %4033 = vmatpush.msra.mxu0 0.0
  %4034 = vmatpush.msra.mxu0 0.0
  %4035 = vmatpush.msra.mxu0 0.0
  %4036 = vmatpush.msra.mxu0 0.0
  %4037 = vmatpush.msra.mxu0 0.0
  %4038 = vmatpush.msra.mxu0 0.0
  %4039 = vmatpush.msra.mxu0 0.0
  %4040 = vmatpush.msra.mxu0 %v4030
  %4041 = vmatpush.msra.mxu0 %v3943
  %4042 = vmatpush.msra.mxu0 %v3942
  %4043 = vmatpush.msra.mxu0 %v3941
  %4044 = vmatpush.msra.mxu0 %v3940
  %4045 = vmatpush.msra.mxu0 %v3939
  %4046 = vmatpush.msra.mxu0 %v3938
  %4047 = vmatpush.msra.mxu0 %v3937
  %4048 = vmatmul.f32.gmra.mxu0 %v4015
  %v4049 = vpop.f32.mrf.mxu0
  %v4050 = vadd.f32 %v4000, %v4049
  %4051 = vmatmul.f32.gmra.mxu0 %v4018
  %v4052 = vpop.f32.mrf.mxu0
  %v4053 = vadd.f32 %v4003, %v4052
  %4054 = vmatmul.f32.gmra.mxu0 %v4021
  %v4055 = vpop.f32.mrf.mxu0
  %v4056 = vadd.f32 %v4006, %v4055
  %4057 = vmatmul.f32.gmra.mxu0 %v4024
  %v4058 = vpop.f32.mrf.mxu0
  %v4059 = vadd.f32 %v4009, %v4058
  %4060 = vmatmul.f32.gmra.mxu0 %v4027
  %v4061 = vpop.f32.mrf.mxu0
  %v4062 = vadd.f32 %v4012, %v4061
  %4063 = vdwg.mxu0
  %v4064 = vsel %vm3427, %v3932, 0.0
  %v4065 = vsel %vm3428, %v3933, 0.0
  %v4066 = vsel %vm3429, %v3934, 0.0
  %v4067 = vsel %vm3430, %v3935, 0.0
  %v4068 = vsel %vm3431, %v3936, 0.0
  %v4069 = vsel %vm3437, %v3932, 0.0
  %v4070 = vsel %vm3438, %v3933, 0.0
  %v4071 = vsel %vm3439, %v3934, 0.0
  %v4072 = vsel %vm3440, %v3935, 0.0
  %v4073 = vsel %vm3441, %v3936, 0.0
  %v4075 = vsel %vm3508, %v4069, 0
  %v4078 = vsel %vm3508, %v4070, 0
  %v4081 = vsel %vm3508, %v4071, 0
  %v4084 = vsel %vm3508, %v4072, 0
  %v4087 = vsel %vm3508, %v4073, 0
  %4089 = vmatpush.msra.mxu0 0.0
  %4090 = vmatpush.msra.mxu0 0.0
  %4091 = vmatpush.msra.mxu0 0.0
  %4092 = vmatpush.msra.mxu0 0.0
  %4093 = vmatpush.msra.mxu0 0.0
  %4094 = vmatpush.msra.mxu0 0.0
  %4095 = vmatpush.msra.mxu0 0.0
  %4096 = vmatpush.msra.mxu0 0.0
  %4097 = vmatpush.msra.mxu0 %v3980
  %4098 = vmatpush.msra.mxu0 %v3951
  %4099 = vmatpush.msra.mxu0 %v3950
  %4100 = vmatpush.msra.mxu0 %v3949
  %4101 = vmatpush.msra.mxu0 %v3948
  %4102 = vmatpush.msra.mxu0 %v3947
  %4103 = vmatpush.msra.mxu0 %v3946
  %4104 = vmatpush.msra.mxu0 %v3945
  %4105 = vmatmul.f32.gmra.mxu0 %v4075
  %v4106 = vpop.f32.mrf.mxu0
  %v4107 = vadd.f32 0.0, %v4106
  %4108 = vmatmul.f32.gmra.mxu0 %v4078
  %v4109 = vpop.f32.mrf.mxu0
  %v4110 = vadd.f32 0.0, %v4109
  %4111 = vmatmul.f32.gmra.mxu0 %v4081
  %v4112 = vpop.f32.mrf.mxu0
  %v4113 = vadd.f32 0.0, %v4112
  %4114 = vmatmul.f32.gmra.mxu0 %v4084
  %v4115 = vpop.f32.mrf.mxu0
  %v4116 = vadd.f32 0.0, %v4115
  %4117 = vmatmul.f32.gmra.mxu0 %v4087
  %v4118 = vpop.f32.mrf.mxu0
  %v4119 = vadd.f32 0.0, %v4118
  %4120 = vdwg.mxu0
  %v4122 = vsel %vm3508, %v4064, 0
  %v4125 = vsel %vm3508, %v4065, 0
  %v4128 = vsel %vm3508, %v4066, 0
  %v4131 = vsel %vm3508, %v4067, 0
  %v4134 = vsel %vm3508, %v4068, 0
  %4136 = vmatpush.msra.mxu0 0.0
  %4137 = vmatpush.msra.mxu0 0.0
  %4138 = vmatpush.msra.mxu0 0.0
  %4139 = vmatpush.msra.mxu0 0.0
  %4140 = vmatpush.msra.mxu0 0.0
  %4141 = vmatpush.msra.mxu0 0.0
  %4142 = vmatpush.msra.mxu0 0.0
  %4143 = vmatpush.msra.mxu0 0.0
  %4144 = vmatpush.msra.mxu0 %v4030
  %4145 = vmatpush.msra.mxu0 %v3943
  %4146 = vmatpush.msra.mxu0 %v3942
  %4147 = vmatpush.msra.mxu0 %v3941
  %4148 = vmatpush.msra.mxu0 %v3940
  %4149 = vmatpush.msra.mxu0 %v3939
  %4150 = vmatpush.msra.mxu0 %v3938
  %4151 = vmatpush.msra.mxu0 %v3937
  %4152 = vmatmul.f32.gmra.mxu0 %v4122
  %v4153 = vpop.f32.mrf.mxu0
  %v4154 = vadd.f32 %v4107, %v4153
  %4155 = vmatmul.f32.gmra.mxu0 %v4125
  %v4156 = vpop.f32.mrf.mxu0
  %v4157 = vadd.f32 %v4110, %v4156
  %4158 = vmatmul.f32.gmra.mxu0 %v4128
  %v4159 = vpop.f32.mrf.mxu0
  %v4160 = vadd.f32 %v4113, %v4159
  %4161 = vmatmul.f32.gmra.mxu0 %v4131
  %v4162 = vpop.f32.mrf.mxu0
  %v4163 = vadd.f32 %v4116, %v4162
  %4164 = vmatmul.f32.gmra.mxu0 %v4134
  %v4165 = vpop.f32.mrf.mxu0
  %v4166 = vadd.f32 %v4119, %v4165
  %4167 = vdwg.mxu0
  %v4168 = vpack.c.bf16 %v4050, %v4050
  %v4169 = vpack.c.bf16 %v4154, %v4154
  %v4170 = vpack.c.bf16 %v4053, %v4053
  %v4171 = vpack.c.bf16 %v4157, %v4157
  %v4172 = vpack.c.bf16 %v4056, %v4056
  %v4173 = vpack.c.bf16 %v4160, %v4160
  %v4174 = vpack.c.bf16 %v4059, %v4059
  %v4175 = vpack.c.bf16 %v4163, %v4163
  %v4176 = vpack.c.bf16 %v4062, %v4062
  %v4177 = vpack.c.bf16 %v4166, %v4166
  %v4178 = vld [vmem:[%s7 + $0x4] ss:$0 sm:$0xff]
  %v4179 = vld [vmem:[%s5] sm:$0xf]
  %v4180 = vld [vmem:[%s5 + $0x4] sm:$0xf]
  %v4181 = vld [vmem:[%s5 + $0x8] sm:$0xf]
  %v4182 = vld [vmem:[%s5 + $0xc] sm:$0xf]
  %v4183 = vld [vmem:[%s5 + $0x10] sm:$0xf]
  %v4184 = vld [vmem:[%s5 + $0x14] sm:$0xf]
  %v4185 = vld [vmem:[%s5 + $0x18] sm:$0xf]
  %v4186 = vld [vmem:[%s5 + $0x1c] sm:$0xf]
  %v4187 = vld [vmem:[%s5 + $0x20] sm:$0xf]
  %v4188 = vld [vmem:[%s5 + $0x24] sm:$0xf]
  %v4189 = vld [vmem:[%s5 + $0x28] sm:$0xf]
  %v4190 = vld [vmem:[%s5 + $0x2c] sm:$0xf]
  %v4191 = vld [vmem:[%s5 + $0x30] sm:$0xf]
  %v4192 = vld [vmem:[%s5 + $0x34] sm:$0xf]
  %v4193 = vld [vmem:[%s5 + $0x38] sm:$0xf]
  %s4194 = scalar_lea.vmem %s5, 60
  %v4195 = vld [vmem:[%s4194] sm:$0xf]
  %v4196 = vld [vmem:[%s4194 + $0x4] sm:$0xf]
  %v4197 = vld [vmem:[%s4194 + $0x8] sm:$0xf]
  %v4198 = vld [vmem:[%s4194 + $0xc] sm:$0xf]
  %v4199 = vld [vmem:[%s4194 + $0x10] sm:$0xf]
  %v4200 = vld [vmem:[%s4194 + $0x14] sm:$0xf]
  %v4201 = vld [vmem:[%s4194 + $0x18] sm:$0xf]
  %v4202 = vld [vmem:[%s4194 + $0x1c] sm:$0xf]
  %v4203 = vld [vmem:[%s4194 + $0x20] sm:$0xf]
  %v4204 = vld [vmem:[%s4194 + $0x24] sm:$0xf]
  %v4205 = vld [vmem:[%s4194 + $0x28] sm:$0xf]
  %v4206 = vld [vmem:[%s4194 + $0x2c] sm:$0xf]
  %v4207 = vld [vmem:[%s4194 + $0x30] sm:$0xf]
  %v4208 = vld [vmem:[%s4194 + $0x34] sm:$0xf]
  %v4209 = vld [vmem:[%s4194 + $0x38] sm:$0xf]
  %v4220 = vunpack.c.l.b16 %v4168
  %v4221 = vunpack.c.l.b16 %v4169
  %v4222 = vunpack.c.l.b16 %v4170
  %v4223 = vunpack.c.l.b16 %v4171
  %v4224 = vunpack.c.l.b16 %v4172
  %v4225 = vunpack.c.l.b16 %v4173
  %v4226 = vunpack.c.l.b16 %v4174
  %v4227 = vunpack.c.l.b16 %v4175
  %v4228 = vunpack.c.l.b16 %v4176
  %v4229 = vunpack.c.l.b16 %v4177
  %v4230 = vpack.c.b16 %v4220, %v3739
  %v4231 = vpack.c.b16 %v4222, %v4221
  %v4232 = vpack.c.b16 %v4224, %v4223
  %v4233 = vpack.c.b16 %v4226, %v4225
  %v4234 = vpack.c.b16 %v4228, %v4227
  %v4235 = vpack.c.b16 %v3739, %v4229
  %v4251 = vunpack.c.l.b16 %v4195
  %v4252 = vunpack.c.l.b16 %v4196
  %v4253 = vunpack.c.l.b16 %v4197
  %v4254 = vunpack.c.l.b16 %v4198
  %v4255 = vunpack.c.l.b16 %v4199
  %v4256 = vunpack.c.l.b16 %v4200
  %v4257 = vunpack.c.l.b16 %v4201
  %v4258 = vunpack.c.l.b16 %v4202
  %v4259 = vunpack.c.l.b16 %v4203
  %v4260 = vunpack.c.l.b16 %v4204
  %v4261 = vunpack.c.l.b16 %v4205
  %v4262 = vunpack.c.l.b16 %v4206
  %v4263 = vunpack.c.l.b16 %v4207
  %v4264 = vunpack.c.l.b16 %v4208
  %v4265 = vunpack.c.l.b16 %v4209
  %v4266 = vpack.c.b16 %v4252, %v4251
  %v4267 = vpack.c.b16 %v4254, %v4253
  %v4268 = vpack.c.b16 %v4256, %v4255
  %v4269 = vpack.c.b16 %v4258, %v4257
  %v4270 = vpack.c.b16 %v4260, %v4259
  %v4271 = vpack.c.b16 %v4262, %v4261
  %v4272 = vpack.c.b16 %v4264, %v4263
  %v4273 = vpack.c.b16 %v4265, %v4265
  %v4281 = vsel %vm3203, %v3741, 0
  %v4284 = vsel %vm3203, %v4230, 0
  %v4287 = vsel %vm3203, %v4231, 0
  %v4290 = vsel %vm3203, %v4232, 0
  %v4293 = vsel %vm3203, %v4233, 0
  %v4296 = vsel %vm3203, %v4234, 0
  %v4299 = vsel %vm3203, %v4235, 0
  %v4302 = vsel %vm3978, %v4273, 0
  %4304 = vmatpush.bf16.msra.mxu0 %v4302
  %4305 = vmatpush.bf16.msra.mxu0 %v4272
  %4306 = vmatpush.bf16.msra.mxu0 %v4271
  %4307 = vmatpush.bf16.msra.mxu0 %v4270
  %4308 = vmatpush.bf16.msra.mxu0 %v4269
  %4309 = vmatpush.bf16.msra.mxu0 %v4268
  %4310 = vmatpush.bf16.msra.mxu0 %v4267
  %4311 = vmatpush.bf16.msra.mxu0 %v4266
  %4312 = vmatmul.bf16.gmra.mxu0 %v4281
  %v4313 = vpop.f32.mrf.mxu0
  %v4314 = vadd.f32 0.0, %v4313
  %v4315 = vpop.f32.mrf.mxu0
  %v4316 = vadd.f32 0.0, %v4315
  %4317 = vmatmul.bf16.gmra.mxu0 %v4284
  %v4318 = vpop.f32.mrf.mxu0
  %v4319 = vadd.f32 0.0, %v4318
  %v4320 = vpop.f32.mrf.mxu0
  %v4321 = vadd.f32 0.0, %v4320
  %4322 = vmatmul.bf16.gmra.mxu0 %v4287
  %v4323 = vpop.f32.mrf.mxu0
  %v4324 = vadd.f32 0.0, %v4323
  %v4325 = vpop.f32.mrf.mxu0
  %v4326 = vadd.f32 0.0, %v4325
  %4327 = vmatmul.bf16.gmra.mxu0 %v4290
  %v4328 = vpop.f32.mrf.mxu0
  %v4329 = vadd.f32 0.0, %v4328
  %v4330 = vpop.f32.mrf.mxu0
  %v4331 = vadd.f32 0.0, %v4330
  %4332 = vmatmul.bf16.gmra.mxu0 %v4293
  %v4333 = vpop.f32.mrf.mxu0
  %v4334 = vadd.f32 0.0, %v4333
  %v4335 = vpop.f32.mrf.mxu0
  %v4336 = vadd.f32 0.0, %v4335
  %4337 = vmatmul.bf16.gmra.mxu0 %v4296
  %v4338 = vpop.f32.mrf.mxu0
  %v4339 = vadd.f32 0.0, %v4338
  %v4340 = vpop.f32.mrf.mxu0
  %v4341 = vadd.f32 0.0, %v4340
  %4342 = vmatmul.bf16.gmra.mxu0 %v4299
  %v4343 = vpop.f32.mrf.mxu0
  %v4344 = vadd.f32 0.0, %v4343
  %v4345 = vpop.f32.mrf.mxu0
  %v4346 = vadd.f32 0.0, %v4345
  %4347 = vdwg.mxu0
  %v4348 = vpack.c.b16 %v4221, %v4220
  %v4349 = vpack.c.b16 %v4223, %v4222
  %v4350 = vpack.c.b16 %v4225, %v4224
  %v4351 = vpack.c.b16 %v4227, %v4226
  %v4352 = vpack.c.b16 %v4229, %v4228
  %v4368 = vunpack.c.l.b16 %v4179
  %v4369 = vunpack.c.l.b16 %v4180
  %v4370 = vunpack.c.l.b16 %v4181
  %v4371 = vunpack.c.l.b16 %v4182
  %v4372 = vunpack.c.l.b16 %v4183
  %v4373 = vunpack.c.l.b16 %v4184
  %v4374 = vunpack.c.l.b16 %v4185
  %v4375 = vunpack.c.l.b16 %v4186
  %v4376 = vunpack.c.l.b16 %v4187
  %v4377 = vunpack.c.l.b16 %v4188
  %v4378 = vunpack.c.l.b16 %v4189
  %v4379 = vunpack.c.l.b16 %v4190
  %v4380 = vunpack.c.l.b16 %v4191
  %v4381 = vunpack.c.l.b16 %v4192
  %v4382 = vunpack.c.l.b16 %v4193
  %v4383 = vpack.c.b16 %v4369, %v4368
  %v4384 = vpack.c.b16 %v4371, %v4370
  %v4385 = vpack.c.b16 %v4373, %v4372
  %v4386 = vpack.c.b16 %v4375, %v4374
  %v4387 = vpack.c.b16 %v4377, %v4376
  %v4388 = vpack.c.b16 %v4379, %v4378
  %v4389 = vpack.c.b16 %v4381, %v4380
  %v4390 = vpack.c.b16 %v4382, %v4382
  %v4399 = vsel %vm3203, %v4348, 0
  %v4402 = vsel %vm3203, %v4349, 0
  %v4405 = vsel %vm3203, %v4350, 0
  %v4408 = vsel %vm3203, %v4351, 0
  %v4411 = vsel %vm3203, %v4352, 0
  %v4414 = vsel %vm3978, %v4390, 0
  %4416 = vmatpush.bf16.msra.mxu0 %v4414
  %4417 = vmatpush.bf16.msra.mxu0 %v4389
  %4418 = vmatpush.bf16.msra.mxu0 %v4388
  %4419 = vmatpush.bf16.msra.mxu0 %v4387
  %4420 = vmatpush.bf16.msra.mxu0 %v4386
  %4421 = vmatpush.bf16.msra.mxu0 %v4385
  %4422 = vmatpush.bf16.msra.mxu0 %v4384
  %4423 = vmatpush.bf16.msra.mxu0 %v4383
  %4424 = vmatmul.bf16.gmra.mxu0 %v4281
  %v4425 = vpop.f32.mrf.mxu0
  %v4426 = vadd.f32 %v4314, %v4425
  %v4427 = vpop.f32.mrf.mxu0
  %v4428 = vadd.f32 %v4316, %v4427
  %4429 = vmatmul.bf16.gmra.mxu0 %v4281
  %v4430 = vpop.f32.mrf.mxu0
  %v4431 = vadd.f32 %v4319, %v4430
  %v4432 = vpop.f32.mrf.mxu0
  %v4433 = vadd.f32 %v4321, %v4432
  %4434 = vmatmul.bf16.gmra.mxu0 %v4399
  %v4435 = vpop.f32.mrf.mxu0
  %v4436 = vadd.f32 %v4324, %v4435
  %v4437 = vpop.f32.mrf.mxu0
  %v4438 = vadd.f32 %v4326, %v4437
  %4439 = vmatmul.bf16.gmra.mxu0 %v4402
  %v4440 = vpop.f32.mrf.mxu0
  %v4441 = vadd.f32 %v4329, %v4440
  %v4442 = vpop.f32.mrf.mxu0
  %v4443 = vadd.f32 %v4331, %v4442
  %4444 = vmatmul.bf16.gmra.mxu0 %v4405
  %v4445 = vpop.f32.mrf.mxu0
  %v4446 = vadd.f32 %v4334, %v4445
  %v4447 = vpop.f32.mrf.mxu0
  %v4448 = vadd.f32 %v4336, %v4447
  %4449 = vmatmul.bf16.gmra.mxu0 %v4408
  %v4450 = vpop.f32.mrf.mxu0
  %v4451 = vadd.f32 %v4339, %v4450
  %v4452 = vpop.f32.mrf.mxu0
  %v4453 = vadd.f32 %v4341, %v4452
  %4454 = vmatmul.bf16.gmra.mxu0 %v4411
  %v4455 = vpop.f32.mrf.mxu0
  %v4456 = vadd.f32 %v4344, %v4455
  %v4457 = vpop.f32.mrf.mxu0
  %v4458 = vadd.f32 %v4346, %v4457
  %4459 = vdwg.mxu0
  %s4460 = scalar_lea.vmem %s5, 120
  %v4461 = vld [vmem:[%s4460] sm:$0xf]
  %v4462 = vld [vmem:[%s4460 + $0x4] sm:$0xf]
  %v4463 = vld [vmem:[%s4460 + $0x8] sm:$0xf]
  %v4464 = vld [vmem:[%s4460 + $0xc] sm:$0xf]
  %v4465 = vld [vmem:[%s4460 + $0x10] sm:$0xf]
  %v4466 = vld [vmem:[%s4460 + $0x14] sm:$0xf]
  %v4467 = vld [vmem:[%s4460 + $0x18] sm:$0xf]
  %v4468 = vld [vmem:[%s4460 + $0x1c] sm:$0xf]
  %v4469 = vld [vmem:[%s4460 + $0x20] sm:$0xf]
  %v4470 = vld [vmem:[%s4460 + $0x24] sm:$0xf]
  %v4471 = vld [vmem:[%s4460 + $0x28] sm:$0xf]
  %v4472 = vld [vmem:[%s4460 + $0x2c] sm:$0xf]
  %v4473 = vld [vmem:[%s4460 + $0x30] sm:$0xf]
  %v4474 = vld [vmem:[%s4460 + $0x34] sm:$0xf]
  %v4475 = vld [vmem:[%s4460 + $0x38] sm:$0xf]
  %v4491 = vunpack.c.l.b16 %v4461
  %v4492 = vunpack.c.l.b16 %v4462
  %v4493 = vunpack.c.l.b16 %v4463
  %v4494 = vunpack.c.l.b16 %v4464
  %v4495 = vunpack.c.l.b16 %v4465
  %v4496 = vunpack.c.l.b16 %v4466
  %v4497 = vunpack.c.l.b16 %v4467
  %v4498 = vunpack.c.l.b16 %v4468
  %v4499 = vunpack.c.l.b16 %v4469
  %v4500 = vunpack.c.l.b16 %v4470
  %v4501 = vunpack.c.l.b16 %v4471
  %v4502 = vunpack.c.l.b16 %v4472
  %v4503 = vunpack.c.l.b16 %v4473
  %v4504 = vunpack.c.l.b16 %v4474
  %v4505 = vunpack.c.l.b16 %v4475
  %v4506 = vpack.c.b16 %v4492, %v4491
  %v4507 = vpack.c.b16 %v4494, %v4493
  %v4508 = vpack.c.b16 %v4496, %v4495
  %v4509 = vpack.c.b16 %v4498, %v4497
  %v4510 = vpack.c.b16 %v4500, %v4499
  %v4511 = vpack.c.b16 %v4502, %v4501
  %v4512 = vpack.c.b16 %v4504, %v4503
  %v4513 = vpack.c.b16 %v4505, %v4505
  %v4522 = vsel %vm3978, %v4513, 0
  %4524 = vmatpush.bf16.msra.mxu0 %v4522
  %4525 = vmatpush.bf16.msra.mxu0 %v4512
  %4526 = vmatpush.bf16.msra.mxu0 %v4511
  %4527 = vmatpush.bf16.msra.mxu0 %v4510
  %4528 = vmatpush.bf16.msra.mxu0 %v4509
  %4529 = vmatpush.bf16.msra.mxu0 %v4508
  %4530 = vmatpush.bf16.msra.mxu0 %v4507
  %4531 = vmatpush.bf16.msra.mxu0 %v4506
  %4532 = vmatmul.bf16.gmra.mxu0 %v4281
  %v4533 = vpop.f32.mrf.mxu0
  %v4534 = vadd.f32 0.0, %v4533
  %v4535 = vpop.f32.mrf.mxu0
  %v4536 = vadd.f32 0.0, %v4535
  %4537 = vmatmul.bf16.gmra.mxu0 %v4399
  %v4538 = vpop.f32.mrf.mxu0
  %v4539 = vadd.f32 0.0, %v4538
  %v4540 = vpop.f32.mrf.mxu0
  %v4541 = vadd.f32 0.0, %v4540
  %4542 = vmatmul.bf16.gmra.mxu0 %v4402
  %v4543 = vpop.f32.mrf.mxu0
  %v4544 = vadd.f32 0.0, %v4543
  %v4545 = vpop.f32.mrf.mxu0
  %v4546 = vadd.f32 0.0, %v4545
  %4547 = vmatmul.bf16.gmra.mxu0 %v4405
  %v4548 = vpop.f32.mrf.mxu0
  %v4549 = vadd.f32 0.0, %v4548
  %v4550 = vpop.f32.mrf.mxu0
  %v4551 = vadd.f32 0.0, %v4550
  %4552 = vmatmul.bf16.gmra.mxu0 %v4408
  %v4553 = vpop.f32.mrf.mxu0
  %v4554 = vadd.f32 0.0, %v4553
  %v4555 = vpop.f32.mrf.mxu0
  %v4556 = vadd.f32 0.0, %v4555
  %4557 = vmatmul.bf16.gmra.mxu0 %v4411
  %v4558 = vpop.f32.mrf.mxu0
  %v4559 = vadd.f32 0.0, %v4558
  %v4560 = vpop.f32.mrf.mxu0
  %v4561 = vadd.f32 0.0, %v4560
  %4562 = vmatmul.bf16.gmra.mxu0 %v4281
  %v4563 = vpop.f32.mrf.mxu0
  %v4564 = vadd.f32 0.0, %v4563
  %v4565 = vpop.f32.mrf.mxu0
  %v4566 = vadd.f32 0.0, %v4565
  %4567 = vdwg.mxu0
  %v4568 = vadd.f32 %v4426, %v4534
  %v4569 = vadd.f32 %v4428, %v4536
  %v4570 = vadd.f32 %v4431, %v4539
  %v4571 = vadd.f32 %v4433, %v4541
  %v4572 = vadd.f32 %v4436, %v4544
  %v4573 = vadd.f32 %v4438, %v4546
  %v4574 = vadd.f32 %v4441, %v4549
  %v4575 = vadd.f32 %v4443, %v4551
  %v4576 = vadd.f32 %v4446, %v4554
  %v4577 = vadd.f32 %v4448, %v4556
  %v4578 = vadd.f32 %v4451, %v4559
  %v4579 = vadd.f32 %v4453, %v4561
  %v4580 = vadd.f32 %v4456, %v4564
  %v4581 = vadd.f32 %v4458, %v4566
  %s4582 = scalar_lea.vmem %s5, 180
  %v4583 = vld [vmem:[%s4582] sm:$0xf]
  %v4584 = vld [vmem:[%s4582 + $0x4] sm:$0xf]
  %v4585 = vld [vmem:[%s4582 + $0x8] sm:$0xf]
  %v4586 = vld [vmem:[%s4582 + $0xc] sm:$0xf]
  %v4587 = vld [vmem:[%s4582 + $0x10] sm:$0xf]
  %v4588 = vld [vmem:[%s4582 + $0x14] sm:$0xf]
  %v4589 = vld [vmem:[%s4582 + $0x18] sm:$0xf]
  %v4590 = vld [vmem:[%s4582 + $0x1c] sm:$0xf]
  %v4591 = vld [vmem:[%s4582 + $0x20] sm:$0xf]
  %v4592 = vld [vmem:[%s4582 + $0x24] sm:$0xf]
  %v4593 = vld [vmem:[%s4582 + $0x28] sm:$0xf]
  %v4594 = vld [vmem:[%s4582 + $0x2c] sm:$0xf]
  %v4595 = vld [vmem:[%s4582 + $0x30] sm:$0xf]
  %v4596 = vld [vmem:[%s4582 + $0x34] sm:$0xf]
  %v4597 = vld [vmem:[%s4582 + $0x38] sm:$0xf]
  %v4613 = vunpack.c.l.b16 %v4583
  %v4614 = vunpack.c.l.b16 %v4584
  %v4615 = vunpack.c.l.b16 %v4585
  %v4616 = vunpack.c.l.b16 %v4586
  %v4617 = vunpack.c.l.b16 %v4587
  %v4618 = vunpack.c.l.b16 %v4588
  %v4619 = vunpack.c.l.b16 %v4589
  %v4620 = vunpack.c.l.b16 %v4590
  %v4621 = vunpack.c.l.b16 %v4591
  %v4622 = vunpack.c.l.b16 %v4592
  %v4623 = vunpack.c.l.b16 %v4593
  %v4624 = vunpack.c.l.b16 %v4594
  %v4625 = vunpack.c.l.b16 %v4595
  %v4626 = vunpack.c.l.b16 %v4596
  %v4627 = vunpack.c.l.b16 %v4597
  %v4628 = vpack.c.b16 %v4614, %v4613
  %v4629 = vpack.c.b16 %v4616, %v4615
  %v4630 = vpack.c.b16 %v4618, %v4617
  %v4631 = vpack.c.b16 %v4620, %v4619
  %v4632 = vpack.c.b16 %v4622, %v4621
  %v4633 = vpack.c.b16 %v4624, %v4623
  %v4634 = vpack.c.b16 %v4626, %v4625
  %v4635 = vpack.c.b16 %v4627, %v4627
  %v4644 = vsel %vm3978, %v4635, 0
  %4646 = vmatpush.bf16.msra.mxu0 %v4644
  %4647 = vmatpush.bf16.msra.mxu0 %v4634
  %4648 = vmatpush.bf16.msra.mxu0 %v4633
  %4649 = vmatpush.bf16.msra.mxu0 %v4632
  %4650 = vmatpush.bf16.msra.mxu0 %v4631
  %4651 = vmatpush.bf16.msra.mxu0 %v4630
  %4652 = vmatpush.bf16.msra.mxu0 %v4629
  %4653 = vmatpush.bf16.msra.mxu0 %v4628
  %4654 = vmatmul.bf16.gmra.mxu0 %v4284
  %v4655 = vpop.f32.mrf.mxu0
  %v4656 = vadd.f32 0.0, %v4655
  %v4657 = vpop.f32.mrf.mxu0
  %v4658 = vadd.f32 0.0, %v4657
  %4659 = vmatmul.bf16.gmra.mxu0 %v4287
  %v4660 = vpop.f32.mrf.mxu0
  %v4661 = vadd.f32 0.0, %v4660
  %v4662 = vpop.f32.mrf.mxu0
  %v4663 = vadd.f32 0.0, %v4662
  %4664 = vmatmul.bf16.gmra.mxu0 %v4290
  %v4665 = vpop.f32.mrf.mxu0
  %v4666 = vadd.f32 0.0, %v4665
  %v4667 = vpop.f32.mrf.mxu0
  %v4668 = vadd.f32 0.0, %v4667
  %4669 = vmatmul.bf16.gmra.mxu0 %v4293
  %v4670 = vpop.f32.mrf.mxu0
  %v4671 = vadd.f32 0.0, %v4670
  %v4672 = vpop.f32.mrf.mxu0
  %v4673 = vadd.f32 0.0, %v4672
  %4674 = vmatmul.bf16.gmra.mxu0 %v4296
  %v4675 = vpop.f32.mrf.mxu0
  %v4676 = vadd.f32 0.0, %v4675
  %v4677 = vpop.f32.mrf.mxu0
  %v4678 = vadd.f32 0.0, %v4677
  %4679 = vmatmul.bf16.gmra.mxu0 %v4299
  %v4680 = vpop.f32.mrf.mxu0
  %v4681 = vadd.f32 0.0, %v4680
  %v4682 = vpop.f32.mrf.mxu0
  %v4683 = vadd.f32 0.0, %v4682
  %4684 = vmatmul.bf16.gmra.mxu0 %v4281
  %v4685 = vpop.f32.mrf.mxu0
  %v4686 = vadd.f32 0.0, %v4685
  %v4687 = vpop.f32.mrf.mxu0
  %v4688 = vadd.f32 0.0, %v4687
  %4689 = vdwg.mxu0
  %v4690 = vadd.f32 %v4568, %v4656
  %v4691 = vadd.f32 %v4569, %v4658
  %v4692 = vadd.f32 %v4570, %v4661
  %v4693 = vadd.f32 %v4571, %v4663
  %v4694 = vadd.f32 %v4572, %v4666
  %v4695 = vadd.f32 %v4573, %v4668
  %v4696 = vadd.f32 %v4574, %v4671
  %v4697 = vadd.f32 %v4575, %v4673
  %v4698 = vadd.f32 %v4576, %v4676
  %v4699 = vadd.f32 %v4577, %v4678
  %v4700 = vadd.f32 %v4578, %v4681
  %v4701 = vadd.f32 %v4579, %v4683
  %v4702 = vadd.f32 %v4580, %v4686
  %v4703 = vadd.f32 %v4581, %v4688
  %s4704 = scalar_lea.vmem %s5, 240
  %v4705 = vld [vmem:[%s4704] sm:$0xf]
  %v4706 = vld [vmem:[%s4704 + $0x4] sm:$0xf]
  %v4707 = vld [vmem:[%s4704 + $0x8] sm:$0xf]
  %v4708 = vld [vmem:[%s4704 + $0xc] sm:$0xf]
  %v4709 = vld [vmem:[%s4704 + $0x10] sm:$0xf]
  %v4710 = vld [vmem:[%s4704 + $0x14] sm:$0xf]
  %v4711 = vld [vmem:[%s4704 + $0x18] sm:$0xf]
  %v4712 = vld [vmem:[%s4704 + $0x1c] sm:$0xf]
  %v4713 = vld [vmem:[%s4704 + $0x20] sm:$0xf]
  %v4714 = vld [vmem:[%s4704 + $0x24] sm:$0xf]
  %v4715 = vld [vmem:[%s4704 + $0x28] sm:$0xf]
  %v4716 = vld [vmem:[%s4704 + $0x2c] sm:$0xf]
  %v4717 = vld [vmem:[%s4704 + $0x30] sm:$0xf]
  %v4718 = vld [vmem:[%s4704 + $0x34] sm:$0xf]
  %v4719 = vld [vmem:[%s4704 + $0x38] sm:$0xf]
  %v4735 = vunpack.c.l.b16 %v4705
  %v4736 = vunpack.c.l.b16 %v4706
  %v4737 = vunpack.c.l.b16 %v4707
  %v4738 = vunpack.c.l.b16 %v4708
  %v4739 = vunpack.c.l.b16 %v4709
  %v4740 = vunpack.c.l.b16 %v4710
  %v4741 = vunpack.c.l.b16 %v4711
  %v4742 = vunpack.c.l.b16 %v4712
  %v4743 = vunpack.c.l.b16 %v4713
  %v4744 = vunpack.c.l.b16 %v4714
  %v4745 = vunpack.c.l.b16 %v4715
  %v4746 = vunpack.c.l.b16 %v4716
  %v4747 = vunpack.c.l.b16 %v4717
  %v4748 = vunpack.c.l.b16 %v4718
  %v4749 = vunpack.c.l.b16 %v4719
  %v4750 = vpack.c.b16 %v4736, %v4735
  %v4751 = vpack.c.b16 %v4738, %v4737
  %v4752 = vpack.c.b16 %v4740, %v4739
  %v4753 = vpack.c.b16 %v4742, %v4741
  %v4754 = vpack.c.b16 %v4744, %v4743
  %v4755 = vpack.c.b16 %v4746, %v4745
  %v4756 = vpack.c.b16 %v4748, %v4747
  %v4757 = vpack.c.b16 %v4749, %v4749
  %v4766 = vsel %vm3978, %v4757, 0
  %4768 = vmatpush.bf16.msra.mxu0 %v4766
  %4769 = vmatpush.bf16.msra.mxu0 %v4756
  %4770 = vmatpush.bf16.msra.mxu0 %v4755
  %4771 = vmatpush.bf16.msra.mxu0 %v4754
  %4772 = vmatpush.bf16.msra.mxu0 %v4753
  %4773 = vmatpush.bf16.msra.mxu0 %v4752
  %4774 = vmatpush.bf16.msra.mxu0 %v4751
  %4775 = vmatpush.bf16.msra.mxu0 %v4750
  %4776 = vmatmul.bf16.gmra.mxu0 %v4399
  %v4777 = vpop.f32.mrf.mxu0
  %v4778 = vadd.f32 0.0, %v4777
  %v4779 = vpop.f32.mrf.mxu0
  %v4780 = vadd.f32 0.0, %v4779
  %4781 = vmatmul.bf16.gmra.mxu0 %v4402
  %v4782 = vpop.f32.mrf.mxu0
  %v4783 = vadd.f32 0.0, %v4782
  %v4784 = vpop.f32.mrf.mxu0
  %v4785 = vadd.f32 0.0, %v4784
  %4786 = vmatmul.bf16.gmra.mxu0 %v4405
  %v4787 = vpop.f32.mrf.mxu0
  %v4788 = vadd.f32 0.0, %v4787
  %v4789 = vpop.f32.mrf.mxu0
  %v4790 = vadd.f32 0.0, %v4789
  %4791 = vmatmul.bf16.gmra.mxu0 %v4408
  %v4792 = vpop.f32.mrf.mxu0
  %v4793 = vadd.f32 0.0, %v4792
  %v4794 = vpop.f32.mrf.mxu0
  %v4795 = vadd.f32 0.0, %v4794
  %4796 = vmatmul.bf16.gmra.mxu0 %v4411
  %v4797 = vpop.f32.mrf.mxu0
  %v4798 = vadd.f32 0.0, %v4797
  %v4799 = vpop.f32.mrf.mxu0
  %v4800 = vadd.f32 0.0, %v4799
  %4801 = vmatmul.bf16.gmra.mxu0 %v4281
  %v4802 = vpop.f32.mrf.mxu0
  %v4803 = vadd.f32 0.0, %v4802
  %v4804 = vpop.f32.mrf.mxu0
  %v4805 = vadd.f32 0.0, %v4804
  %4806 = vmatmul.bf16.gmra.mxu0 %v4281
  %v4807 = vpop.f32.mrf.mxu0
  %v4808 = vadd.f32 0.0, %v4807
  %v4809 = vpop.f32.mrf.mxu0
  %v4810 = vadd.f32 0.0, %v4809
  %4811 = vdwg.mxu0
  %v4812 = vadd.f32 %v4690, %v4778
  %v4813 = vadd.f32 %v4691, %v4780
  %v4814 = vadd.f32 %v4692, %v4783
  %v4815 = vadd.f32 %v4693, %v4785
  %v4816 = vadd.f32 %v4694, %v4788
  %v4817 = vadd.f32 %v4695, %v4790
  %v4818 = vadd.f32 %v4696, %v4793
  %v4819 = vadd.f32 %v4697, %v4795
  %v4820 = vadd.f32 %v4698, %v4798
  %v4821 = vadd.f32 %v4699, %v4800
  %v4822 = vadd.f32 %v4700, %v4803
  %v4823 = vadd.f32 %v4701, %v4805
  %v4824 = vadd.f32 %v4702, %v4808
  %v4825 = vadd.f32 %v4703, %v4810
  %v4826 = vadd.f32 %v4812, %v4178
  %v4827 = vadd.f32 %v4813, %v4178
  %v4828 = vadd.f32 %v4814, %v4178
  %v4829 = vadd.f32 %v4815, %v4178
  %v4830 = vadd.f32 %v4816, %v4178
  %v4831 = vadd.f32 %v4817, %v4178
  %v4832 = vadd.f32 %v4818, %v4178
  %v4833 = vadd.f32 %v4819, %v4178
  %v4834 = vadd.f32 %v4820, %v4178
  %v4835 = vadd.f32 %v4821, %v4178
  %v4836 = vadd.f32 %v4822, %v4178
  %v4837 = vadd.f32 %v4823, %v4178
  %v4838 = vadd.f32 %v4824, %v4178
  %v4839 = vadd.f32 %v4825, %v4178
  %v4840 = vtanh.pop %v4826
  %v4841 = vtanh.pop %v4827
  %v4842 = vtanh.pop %v4828
  %v4843 = vtanh.pop %v4829
  %v4844 = vtanh.pop %v4830
  %v4845 = vtanh.pop %v4831
  %v4846 = vtanh.pop %v4832
  %v4847 = vtanh.pop %v4833
  %v4848 = vtanh.pop %v4834
  %v4849 = vtanh.pop %v4835
  %v4850 = vtanh.pop %v4836
  %v4851 = vtanh.pop %v4837
  %v4852 = vtanh.pop %v4838
  %v4853 = vtanh.pop %v4839
  %v4854 = vld [vmem:[%s10] sm:$0xff]
  %v4855 = vld [vmem:[%s10 + $0x8] sm:$0xff]
  %v4856 = vld [vmem:[%s10 + $0x10] sm:$0xff]
  %v4857 = vld [vmem:[%s10 + $0x18] sm:$0xff]
  %v4858 = vld [vmem:[%s10 + $0x20] sm:$0xff]
  %v4859 = vld [vmem:[%s10 + $0x28] sm:$0xff]
  %v4860 = vld [vmem:[%s10 + $0x30] sm:$0xff]
  %v4861 = vld [vmem:[%s10 + $0x38] sm:$0xff]
  %v4862 = vld [vmem:[%s10 + $0x40] sm:$0xff]
  %v4863 = vld [vmem:[%s10 + $0x48] sm:$0xff]
  %v4864 = vld [vmem:[%s10 + $0x50] sm:$0xff]
  %v4865 = vld [vmem:[%s10 + $0x58] sm:$0xff]
  %v4866 = vld [vmem:[%s10 + $0x60] sm:$0xff]
  %v4867 = vld [vmem:[%s10 + $0x68] sm:$0xff]
  %v4868 = vld [vmem:[%s10 + $0x70] sm:$0xff]
  %v4869 = vld [vmem:[%s10 + $0x78] sm:$0xff]
  %v4870 = vld [vmem:[%s10 + $0x80] sm:$0xff]
  %v4871 = vld [vmem:[%s10 + $0x88] sm:$0xff]
  %v4872 = vld [vmem:[%s10 + $0x90] sm:$0xff]
  %v4873 = vld [vmem:[%s10 + $0x98] sm:$0xff]
  %v4874 = vld [vmem:[%s10 + $0xa0] sm:$0xf]
  %v4875 = vld [vmem:[%s10 + $0xa8] sm:$0xf]
  %v4876 = vld [vmem:[%s11] sm:$0xff]
  %v4877 = vld [vmem:[%s11 + $0x8] sm:$0xff]
  %v4878 = vld [vmem:[%s11 + $0x10] sm:$0xff]
  %v4879 = vld [vmem:[%s11 + $0x18] sm:$0xff]
  %v4880 = vld [vmem:[%s11 + $0x20] sm:$0xff]
  %v4881 = vld [vmem:[%s11 + $0x28] sm:$0xff]
  %v4882 = vld [vmem:[%s11 + $0x30] sm:$0xff]
  %v4883 = vld [vmem:[%s11 + $0x38] sm:$0xff]
  %v4884 = vld [vmem:[%s11 + $0x40] sm:$0xff]
  %v4885 = vld [vmem:[%s11 + $0x48] sm:$0xff]
  %v4886 = vld [vmem:[%s11 + $0x50] sm:$0xff]
  %v4887 = vld [vmem:[%s11 + $0x58] sm:$0xff]
  %v4888 = vld [vmem:[%s11 + $0x60] sm:$0xff]
  %v4889 = vld [vmem:[%s11 + $0x68] sm:$0xff]
  %v4890 = vld [vmem:[%s11 + $0x70] sm:$0xff]
  %v4891 = vld [vmem:[%s11 + $0x78] sm:$0xff]
  %v4892 = vld [vmem:[%s11 + $0x80] sm:$0xff]
  %v4893 = vld [vmem:[%s11 + $0x88] sm:$0xff]
  %v4894 = vld [vmem:[%s11 + $0x90] sm:$0xff]
  %v4895 = vld [vmem:[%s11 + $0x98] sm:$0xff]
  %v4896 = vld [vmem:[%s11 + $0xa0] sm:$0xf]
  %v4897 = vld [vmem:[%s11 + $0xa8] sm:$0xf]
  %v4898 = vsel %vm2403, %v4840, 0.0
  %v4899 = vsel %vm2404, %v4841, 0.0
  %v4900 = vsel %vm2405, %v4842, 0.0
  %v4901 = vsel %vm2406, %v4843, 0.0
  %v4902 = vsel %vm2407, %v4844, 0.0
  %v4903 = vsel %vm2408, %v4845, 0.0
  %v4904 = vsel %vm2409, %v4846, 0.0
  %v4905 = vsel %vm2410, %v4847, 0.0
  %v4906 = vsel %vm2411, %v4848, 0.0
  %v4907 = vsel %vm2412, %v4849, 0.0
  %v4908 = vsel %vm2413, %v4850, 0.0
  %v4909 = vsel %vm2414, %v4851, 0.0
  %v4910 = vsel %vm2415, %v4852, 0.0
  %v4911 = vsel %vm2416, %v4853, 0.0
  %v4912 = vsel %vm2473, %v4840, 0.0
  %v4913 = vsel %vm2474, %v4841, 0.0
  %v4914 = vsel %vm2475, %v4842, 0.0
  %v4915 = vsel %vm2476, %v4843, 0.0
  %v4916 = vsel %vm2477, %v4844, 0.0
  %v4917 = vsel %vm2478, %v4845, 0.0
  %v4918 = vsel %vm2479, %v4846, 0.0
  %v4919 = vsel %vm2480, %v4847, 0.0
  %v4920 = vsel %vm2481, %v4848, 0.0
  %v4921 = vsel %vm2482, %v4849, 0.0
  %v4922 = vsel %vm2483, %v4850, 0.0
  %v4923 = vsel %vm2484, %v4851, 0.0
  %v4924 = vsel %vm2485, %v4852, 0.0
  %v4925 = vsel %vm2486, %v4853, 0.0
  %v4927 = vsel %vm2723, %v4912, 0
  %v4930 = vsel %vm2723, %v4913, 0
  %v4933 = vsel %vm2723, %v4914, 0
  %v4936 = vsel %vm2723, %v4915, 0
  %v4939 = vsel %vm2723, %v4916, 0
  %v4942 = vsel %vm2723, %v4917, 0
  %v4945 = vsel %vm2723, %v4918, 0
  %v4948 = vsel %vm2723, %v4919, 0
  %v4951 = vsel %vm2723, %v4920, 0
  %v4954 = vsel %vm2723, %v4921, 0
  %v4957 = vsel %vm2723, %v4922, 0
  %v4960 = vsel %vm2723, %v4923, 0
  %v4963 = vsel %vm2723, %v4924, 0
  %v4966 = vsel %vm2723, %v4925, 0
  %v4969 = vsel %vm3978, %v4896, 0
  %v4972 = vsel %vm3978, %v4897, 0
  %4974 = vmatpush.msra.mxu0 0.0
  %4975 = vmatpush.msra.mxu0 0.0
  %4976 = vmatpush.msra.mxu0 0.0
  %4977 = vmatpush.msra.mxu0 0.0
  %4978 = vmatpush.msra.mxu0 0.0
  %4979 = vmatpush.msra.mxu0 %v4969
  %4980 = vmatpush.msra.mxu0 %v4894
  %4981 = vmatpush.msra.mxu0 %v4892
  %4982 = vmatpush.msra.mxu0 %v4890
  %4983 = vmatpush.msra.mxu0 %v4888
  %4984 = vmatpush.msra.mxu0 %v4886
  %4985 = vmatpush.msra.mxu0 %v4884
  %4986 = vmatpush.msra.mxu0 %v4882
  %4987 = vmatpush.msra.mxu0 %v4880
  %4988 = vmatpush.msra.mxu0 %v4878
  %4989 = vmatpush.msra.mxu0 %v4876
  %4990 = vmatmul.f32.gmra.mxu0 %v4927
  %v4991 = vpop.f32.mrf.mxu0
  %v4992 = vadd.f32 0.0, %v4991
  %4993 = vmatmul.f32.gmra.mxu0 %v4930
  %v4994 = vpop.f32.mrf.mxu0
  %v4995 = vadd.f32 0.0, %v4994
  %4996 = vmatmul.f32.gmra.mxu0 %v4933
  %v4997 = vpop.f32.mrf.mxu0
  %v4998 = vadd.f32 0.0, %v4997
  %4999 = vmatmul.f32.gmra.mxu0 %v4936
  %v5000 = vpop.f32.mrf.mxu0
  %v5001 = vadd.f32 0.0, %v5000
  %5002 = vmatmul.f32.gmra.mxu0 %v4939
  %v5003 = vpop.f32.mrf.mxu0
  %v5004 = vadd.f32 0.0, %v5003
  %5005 = vmatmul.f32.gmra.mxu0 %v4942
  %v5006 = vpop.f32.mrf.mxu0
  %v5007 = vadd.f32 0.0, %v5006
  %5008 = vmatmul.f32.gmra.mxu0 %v4945
  %v5009 = vpop.f32.mrf.mxu0
  %v5010 = vadd.f32 0.0, %v5009
  %5011 = vmatmul.f32.gmra.mxu0 %v4948
  %v5012 = vpop.f32.mrf.mxu0
  %v5013 = vadd.f32 0.0, %v5012
  %5014 = vmatmul.f32.gmra.mxu0 %v4951
  %v5015 = vpop.f32.mrf.mxu0
  %v5016 = vadd.f32 0.0, %v5015
  %5017 = vmatmul.f32.gmra.mxu0 %v4954
  %v5018 = vpop.f32.mrf.mxu0
  %v5019 = vadd.f32 0.0, %v5018
  %5020 = vmatmul.f32.gmra.mxu0 %v4957
  %v5021 = vpop.f32.mrf.mxu0
  %v5022 = vadd.f32 0.0, %v5021
  %5023 = vmatmul.f32.gmra.mxu0 %v4960
  %v5024 = vpop.f32.mrf.mxu0
  %v5025 = vadd.f32 0.0, %v5024
  %5026 = vmatmul.f32.gmra.mxu0 %v4963
  %v5027 = vpop.f32.mrf.mxu0
  %v5028 = vadd.f32 0.0, %v5027
  %5029 = vmatmul.f32.gmra.mxu0 %v4966
  %v5030 = vpop.f32.mrf.mxu0
  %v5031 = vadd.f32 0.0, %v5030
  %5032 = vdwg.mxu0
  %5033 = vmatpush.msra.mxu0 0.0
  %5034 = vmatpush.msra.mxu0 0.0
  %5035 = vmatpush.msra.mxu0 0.0
  %5036 = vmatpush.msra.mxu0 0.0
  %5037 = vmatpush.msra.mxu0 0.0
  %5038 = vmatpush.msra.mxu0 %v4972
  %5039 = vmatpush.msra.mxu0 %v4895
  %5040 = vmatpush.msra.mxu0 %v4893
  %5041 = vmatpush.msra.mxu0 %v4891
  %5042 = vmatpush.msra.mxu0 %v4889
  %5043 = vmatpush.msra.mxu0 %v4887
  %5044 = vmatpush.msra.mxu0 %v4885
  %5045 = vmatpush.msra.mxu0 %v4883
  %5046 = vmatpush.msra.mxu0 %v4881
  %5047 = vmatpush.msra.mxu0 %v4879
  %5048 = vmatpush.msra.mxu0 %v4877
  %5049 = vmatmul.f32.gmra.mxu0 %v4927
  %v5050 = vpop.f32.mrf.mxu0
  %v5051 = vadd.f32 0.0, %v5050
  %5052 = vmatmul.f32.gmra.mxu0 %v4930
  %v5053 = vpop.f32.mrf.mxu0
  %v5054 = vadd.f32 0.0, %v5053
  %5055 = vmatmul.f32.gmra.mxu0 %v4933
  %v5056 = vpop.f32.mrf.mxu0
  %v5057 = vadd.f32 0.0, %v5056
  %5058 = vmatmul.f32.gmra.mxu0 %v4936
  %v5059 = vpop.f32.mrf.mxu0
  %v5060 = vadd.f32 0.0, %v5059
  %5061 = vmatmul.f32.gmra.mxu0 %v4939
  %v5062 = vpop.f32.mrf.mxu0
  %v5063 = vadd.f32 0.0, %v5062
  %5064 = vmatmul.f32.gmra.mxu0 %v4942
  %v5065 = vpop.f32.mrf.mxu0
  %v5066 = vadd.f32 0.0, %v5065
  %5067 = vmatmul.f32.gmra.mxu0 %v4945
  %v5068 = vpop.f32.mrf.mxu0
  %v5069 = vadd.f32 0.0, %v5068
  %5070 = vmatmul.f32.gmra.mxu0 %v4948
  %v5071 = vpop.f32.mrf.mxu0
  %v5072 = vadd.f32 0.0, %v5071
  %5073 = vmatmul.f32.gmra.mxu0 %v4951
  %v5074 = vpop.f32.mrf.mxu0
  %v5075 = vadd.f32 0.0, %v5074
  %5076 = vmatmul.f32.gmra.mxu0 %v4954
  %v5077 = vpop.f32.mrf.mxu0
  %v5078 = vadd.f32 0.0, %v5077
  %5079 = vmatmul.f32.gmra.mxu0 %v4957
  %v5080 = vpop.f32.mrf.mxu0
  %v5081 = vadd.f32 0.0, %v5080
  %5082 = vmatmul.f32.gmra.mxu0 %v4960
  %v5083 = vpop.f32.mrf.mxu0
  %v5084 = vadd.f32 0.0, %v5083
  %5085 = vmatmul.f32.gmra.mxu0 %v4963
  %v5086 = vpop.f32.mrf.mxu0
  %v5087 = vadd.f32 0.0, %v5086
  %5088 = vmatmul.f32.gmra.mxu0 %v4966
  %v5089 = vpop.f32.mrf.mxu0
  %v5090 = vadd.f32 0.0, %v5089
  %5091 = vdwg.mxu0
  %v5093 = vsel %vm2723, %v4898, 0
  %v5096 = vsel %vm2723, %v4899, 0
  %v5099 = vsel %vm2723, %v4900, 0
  %v5102 = vsel %vm2723, %v4901, 0
  %v5105 = vsel %vm2723, %v4902, 0
  %v5108 = vsel %vm2723, %v4903, 0
  %v5111 = vsel %vm2723, %v4904, 0
  %v5114 = vsel %vm2723, %v4905, 0
  %v5117 = vsel %vm2723, %v4906, 0
  %v5120 = vsel %vm2723, %v4907, 0
  %v5123 = vsel %vm2723, %v4908, 0
  %v5126 = vsel %vm2723, %v4909, 0
  %v5129 = vsel %vm2723, %v4910, 0
  %v5132 = vsel %vm2723, %v4911, 0
  %v5135 = vsel %vm3978, %v4874, 0
  %v5138 = vsel %vm3978, %v4875, 0
  %5140 = vmatpush.msra.mxu0 0.0
  %5141 = vmatpush.msra.mxu0 0.0
  %5142 = vmatpush.msra.mxu0 0.0
  %5143 = vmatpush.msra.mxu0 0.0
  %5144 = vmatpush.msra.mxu0 0.0
  %5145 = vmatpush.msra.mxu0 %v5135
  %5146 = vmatpush.msra.mxu0 %v4872
  %5147 = vmatpush.msra.mxu0 %v4870
  %5148 = vmatpush.msra.mxu0 %v4868
  %5149 = vmatpush.msra.mxu0 %v4866
  %5150 = vmatpush.msra.mxu0 %v4864
  %5151 = vmatpush.msra.mxu0 %v4862
  %5152 = vmatpush.msra.mxu0 %v4860
  %5153 = vmatpush.msra.mxu0 %v4858
  %5154 = vmatpush.msra.mxu0 %v4856
  %5155 = vmatpush.msra.mxu0 %v4854
  %5156 = vmatmul.f32.gmra.mxu0 %v5093
  %v5157 = vpop.f32.mrf.mxu0
  %v5158 = vadd.f32 %v4992, %v5157
  %5159 = vmatmul.f32.gmra.mxu0 %v5096
  %v5160 = vpop.f32.mrf.mxu0
  %v5161 = vadd.f32 %v4995, %v5160
  %5162 = vmatmul.f32.gmra.mxu0 %v5099
  %v5163 = vpop.f32.mrf.mxu0
  %v5164 = vadd.f32 %v4998, %v5163
  %5165 = vmatmul.f32.gmra.mxu0 %v5102
  %v5166 = vpop.f32.mrf.mxu0
  %v5167 = vadd.f32 %v5001, %v5166
  %5168 = vmatmul.f32.gmra.mxu0 %v5105
  %v5169 = vpop.f32.mrf.mxu0
  %v5170 = vadd.f32 %v5004, %v5169
  %5171 = vmatmul.f32.gmra.mxu0 %v5108
  %v5172 = vpop.f32.mrf.mxu0
  %v5173 = vadd.f32 %v5007, %v5172
  %5174 = vmatmul.f32.gmra.mxu0 %v5111
  %v5175 = vpop.f32.mrf.mxu0
  %v5176 = vadd.f32 %v5010, %v5175
  %5177 = vmatmul.f32.gmra.mxu0 %v5114
  %v5178 = vpop.f32.mrf.mxu0
  %v5179 = vadd.f32 %v5013, %v5178
  %5180 = vmatmul.f32.gmra.mxu0 %v5117
  %v5181 = vpop.f32.mrf.mxu0
  %v5182 = vadd.f32 %v5016, %v5181
  %5183 = vmatmul.f32.gmra.mxu0 %v5120
  %v5184 = vpop.f32.mrf.mxu0
  %v5185 = vadd.f32 %v5019, %v5184
  %5186 = vmatmul.f32.gmra.mxu0 %v5123
  %v5187 = vpop.f32.mrf.mxu0
  %v5188 = vadd.f32 %v5022, %v5187
  %5189 = vmatmul.f32.gmra.mxu0 %v5126
  %v5190 = vpop.f32.mrf.mxu0
  %v5191 = vadd.f32 %v5025, %v5190
  %5192 = vmatmul.f32.gmra.mxu0 %v5129
  %v5193 = vpop.f32.mrf.mxu0
  %v5194 = vadd.f32 %v5028, %v5193
  %5195 = vmatmul.f32.gmra.mxu0 %v5132
  %v5196 = vpop.f32.mrf.mxu0
  %v5197 = vadd.f32 %v5031, %v5196
  %5198 = vdwg.mxu0
  %5199 = vmatpush.msra.mxu0 0.0
  %5200 = vmatpush.msra.mxu0 0.0
  %5201 = vmatpush.msra.mxu0 0.0
  %5202 = vmatpush.msra.mxu0 0.0
  %5203 = vmatpush.msra.mxu0 0.0
  %5204 = vmatpush.msra.mxu0 %v5138
  %5205 = vmatpush.msra.mxu0 %v4873
  %5206 = vmatpush.msra.mxu0 %v4871
  %5207 = vmatpush.msra.mxu0 %v4869
  %5208 = vmatpush.msra.mxu0 %v4867
  %5209 = vmatpush.msra.mxu0 %v4865
  %5210 = vmatpush.msra.mxu0 %v4863
  %5211 = vmatpush.msra.mxu0 %v4861
  %5212 = vmatpush.msra.mxu0 %v4859
  %5213 = vmatpush.msra.mxu0 %v4857
  %5214 = vmatpush.msra.mxu0 %v4855
  %5215 = vmatmul.f32.gmra.mxu0 %v5093
  %v5216 = vpop.f32.mrf.mxu0
  %v5217 = vadd.f32 %v5051, %v5216
  %5218 = vmatmul.f32.gmra.mxu0 %v5096
  %v5219 = vpop.f32.mrf.mxu0
  %v5220 = vadd.f32 %v5054, %v5219
  %5221 = vmatmul.f32.gmra.mxu0 %v5099
  %v5222 = vpop.f32.mrf.mxu0
  %v5223 = vadd.f32 %v5057, %v5222
  %5224 = vmatmul.f32.gmra.mxu0 %v5102
  %v5225 = vpop.f32.mrf.mxu0
  %v5226 = vadd.f32 %v5060, %v5225
  %5227 = vmatmul.f32.gmra.mxu0 %v5105
  %v5228 = vpop.f32.mrf.mxu0
  %v5229 = vadd.f32 %v5063, %v5228
  %5230 = vmatmul.f32.gmra.mxu0 %v5108
  %v5231 = vpop.f32.mrf.mxu0
  %v5232 = vadd.f32 %v5066, %v5231
  %5233 = vmatmul.f32.gmra.mxu0 %v5111
  %v5234 = vpop.f32.mrf.mxu0
  %v5235 = vadd.f32 %v5069, %v5234
  %5236 = vmatmul.f32.gmra.mxu0 %v5114
  %v5237 = vpop.f32.mrf.mxu0
  %v5238 = vadd.f32 %v5072, %v5237
  %5239 = vmatmul.f32.gmra.mxu0 %v5117
  %v5240 = vpop.f32.mrf.mxu0
  %v5241 = vadd.f32 %v5075, %v5240
  %5242 = vmatmul.f32.gmra.mxu0 %v5120
  %v5243 = vpop.f32.mrf.mxu0
  %v5244 = vadd.f32 %v5078, %v5243
  %5245 = vmatmul.f32.gmra.mxu0 %v5123
  %v5246 = vpop.f32.mrf.mxu0
  %v5247 = vadd.f32 %v5081, %v5246
  %5248 = vmatmul.f32.gmra.mxu0 %v5126
  %v5249 = vpop.f32.mrf.mxu0
  %v5250 = vadd.f32 %v5084, %v5249
  %5251 = vmatmul.f32.gmra.mxu0 %v5129
  %v5252 = vpop.f32.mrf.mxu0
  %v5253 = vadd.f32 %v5087, %v5252
  %5254 = vmatmul.f32.gmra.mxu0 %v5132
  %v5255 = vpop.f32.mrf.mxu0
  %v5256 = vadd.f32 %v5090, %v5255
  %5257 = vdwg.mxu0
  %v5258 = vsel %vm2529, %v4840, 0.0
  %v5259 = vsel %vm2530, %v4841, 0.0
  %v5260 = vsel %vm2531, %v4842, 0.0
  %v5261 = vsel %vm2532, %v4843, 0.0
  %v5262 = vsel %vm2533, %v4844, 0.0
  %v5263 = vsel %vm2534, %v4845, 0.0
  %v5264 = vsel %vm2535, %v4846, 0.0
  %v5265 = vsel %vm2536, %v4847, 0.0
  %v5266 = vsel %vm2537, %v4848, 0.0
  %v5267 = vsel %vm2538, %v4849, 0.0
  %v5268 = vsel %vm2539, %v4850, 0.0
  %v5269 = vsel %vm2540, %v4851, 0.0
  %v5270 = vsel %vm2541, %v4852, 0.0
  %v5271 = vsel %vm2542, %v4853, 0.0
  %v5272 = vsel %vm2557, %v4840, 0.0
  %v5273 = vsel %vm2558, %v4841, 0.0
  %v5274 = vsel %vm2559, %v4842, 0.0
  %v5275 = vsel %vm2560, %v4843, 0.0
  %v5276 = vsel %vm2561, %v4844, 0.0
  %v5277 = vsel %vm2562, %v4845, 0.0
  %v5278 = vsel %vm2563, %v4846, 0.0
  %v5279 = vsel %vm2564, %v4847, 0.0
  %v5280 = vsel %vm2565, %v4848, 0.0
  %v5281 = vsel %vm2566, %v4849, 0.0
  %v5282 = vsel %vm2567, %v4850, 0.0
  %v5283 = vsel %vm2568, %v4851, 0.0
  %v5284 = vsel %vm2569, %v4852, 0.0
  %v5285 = vsel %vm2570, %v4853, 0.0
  %v5287 = vsel %vm2723, %v5272, 0
  %v5290 = vsel %vm2723, %v5273, 0
  %v5293 = vsel %vm2723, %v5274, 0
  %v5296 = vsel %vm2723, %v5275, 0
  %v5299 = vsel %vm2723, %v5276, 0
  %v5302 = vsel %vm2723, %v5277, 0
  %v5305 = vsel %vm2723, %v5278, 0
  %v5308 = vsel %vm2723, %v5279, 0
  %v5311 = vsel %vm2723, %v5280, 0
  %v5314 = vsel %vm2723, %v5281, 0
  %v5317 = vsel %vm2723, %v5282, 0
  %v5320 = vsel %vm2723, %v5283, 0
  %v5323 = vsel %vm2723, %v5284, 0
  %v5326 = vsel %vm2723, %v5285, 0
  %5328 = vmatpush.msra.mxu0 0.0
  %5329 = vmatpush.msra.mxu0 0.0
  %5330 = vmatpush.msra.mxu0 0.0
  %5331 = vmatpush.msra.mxu0 0.0
  %5332 = vmatpush.msra.mxu0 0.0
  %5333 = vmatpush.msra.mxu0 %v4969
  %5334 = vmatpush.msra.mxu0 %v4894
  %5335 = vmatpush.msra.mxu0 %v4892
  %5336 = vmatpush.msra.mxu0 %v4890
  %5337 = vmatpush.msra.mxu0 %v4888
  %5338 = vmatpush.msra.mxu0 %v4886
  %5339 = vmatpush.msra.mxu0 %v4884
  %5340 = vmatpush.msra.mxu0 %v4882
  %5341 = vmatpush.msra.mxu0 %v4880
  %5342 = vmatpush.msra.mxu0 %v4878
  %5343 = vmatpush.msra.mxu0 %v4876
  %5344 = vmatmul.f32.gmra.mxu0 %v5287
  %v5345 = vpop.f32.mrf.mxu0
  %v5346 = vadd.f32 0.0, %v5345
  %5347 = vmatmul.f32.gmra.mxu0 %v5290
  %v5348 = vpop.f32.mrf.mxu0
  %v5349 = vadd.f32 0.0, %v5348
  %5350 = vmatmul.f32.gmra.mxu0 %v5293
  %v5351 = vpop.f32.mrf.mxu0
  %v5352 = vadd.f32 0.0, %v5351
  %5353 = vmatmul.f32.gmra.mxu0 %v5296
  %v5354 = vpop.f32.mrf.mxu0
  %v5355 = vadd.f32 0.0, %v5354
  %5356 = vmatmul.f32.gmra.mxu0 %v5299
  %v5357 = vpop.f32.mrf.mxu0
  %v5358 = vadd.f32 0.0, %v5357
  %5359 = vmatmul.f32.gmra.mxu0 %v5302
  %v5360 = vpop.f32.mrf.mxu0
  %v5361 = vadd.f32 0.0, %v5360
  %5362 = vmatmul.f32.gmra.mxu0 %v5305
  %v5363 = vpop.f32.mrf.mxu0
  %v5364 = vadd.f32 0.0, %v5363
  %5365 = vmatmul.f32.gmra.mxu0 %v5308
  %v5366 = vpop.f32.mrf.mxu0
  %v5367 = vadd.f32 0.0, %v5366
  %5368 = vmatmul.f32.gmra.mxu0 %v5311
  %v5369 = vpop.f32.mrf.mxu0
  %v5370 = vadd.f32 0.0, %v5369
  %5371 = vmatmul.f32.gmra.mxu0 %v5314
  %v5372 = vpop.f32.mrf.mxu0
  %v5373 = vadd.f32 0.0, %v5372
  %5374 = vmatmul.f32.gmra.mxu0 %v5317
  %v5375 = vpop.f32.mrf.mxu0
  %v5376 = vadd.f32 0.0, %v5375
  %5377 = vmatmul.f32.gmra.mxu0 %v5320
  %v5378 = vpop.f32.mrf.mxu0
  %v5379 = vadd.f32 0.0, %v5378
  %5380 = vmatmul.f32.gmra.mxu0 %v5323
  %v5381 = vpop.f32.mrf.mxu0
  %v5382 = vadd.f32 0.0, %v5381
  %5383 = vmatmul.f32.gmra.mxu0 %v5326
  %v5384 = vpop.f32.mrf.mxu0
  %v5385 = vadd.f32 0.0, %v5384
  %5386 = vdwg.mxu0
  %5387 = vmatpush.msra.mxu0 0.0
  %5388 = vmatpush.msra.mxu0 0.0
  %5389 = vmatpush.msra.mxu0 0.0
  %5390 = vmatpush.msra.mxu0 0.0
  %5391 = vmatpush.msra.mxu0 0.0
  %5392 = vmatpush.msra.mxu0 %v4972
  %5393 = vmatpush.msra.mxu0 %v4895
  %5394 = vmatpush.msra.mxu0 %v4893
  %5395 = vmatpush.msra.mxu0 %v4891
  %5396 = vmatpush.msra.mxu0 %v4889
  %5397 = vmatpush.msra.mxu0 %v4887
  %5398 = vmatpush.msra.mxu0 %v4885
  %5399 = vmatpush.msra.mxu0 %v4883
  %5400 = vmatpush.msra.mxu0 %v4881
  %5401 = vmatpush.msra.mxu0 %v4879
  %5402 = vmatpush.msra.mxu0 %v4877
  %5403 = vmatmul.f32.gmra.mxu0 %v5287
  %v5404 = vpop.f32.mrf.mxu0
  %v5405 = vadd.f32 0.0, %v5404
  %5406 = vmatmul.f32.gmra.mxu0 %v5290
  %v5407 = vpop.f32.mrf.mxu0
  %v5408 = vadd.f32 0.0, %v5407
  %5409 = vmatmul.f32.gmra.mxu0 %v5293
  %v5410 = vpop.f32.mrf.mxu0
  %v5411 = vadd.f32 0.0, %v5410
  %5412 = vmatmul.f32.gmra.mxu0 %v5296
  %v5413 = vpop.f32.mrf.mxu0
  %v5414 = vadd.f32 0.0, %v5413
  %5415 = vmatmul.f32.gmra.mxu0 %v5299
  %v5416 = vpop.f32.mrf.mxu0
  %v5417 = vadd.f32 0.0, %v5416
  %5418 = vmatmul.f32.gmra.mxu0 %v5302
  %v5419 = vpop.f32.mrf.mxu0
  %v5420 = vadd.f32 0.0, %v5419
  %5421 = vmatmul.f32.gmra.mxu0 %v5305
  %v5422 = vpop.f32.mrf.mxu0
  %v5423 = vadd.f32 0.0, %v5422
  %5424 = vmatmul.f32.gmra.mxu0 %v5308
  %v5425 = vpop.f32.mrf.mxu0
  %v5426 = vadd.f32 0.0, %v5425
  %5427 = vmatmul.f32.gmra.mxu0 %v5311
  %v5428 = vpop.f32.mrf.mxu0
  %v5429 = vadd.f32 0.0, %v5428
  %5430 = vmatmul.f32.gmra.mxu0 %v5314
  %v5431 = vpop.f32.mrf.mxu0
  %v5432 = vadd.f32 0.0, %v5431
  %5433 = vmatmul.f32.gmra.mxu0 %v5317
  %v5434 = vpop.f32.mrf.mxu0
  %v5435 = vadd.f32 0.0, %v5434
  %5436 = vmatmul.f32.gmra.mxu0 %v5320
  %v5437 = vpop.f32.mrf.mxu0
  %v5438 = vadd.f32 0.0, %v5437
  %5439 = vmatmul.f32.gmra.mxu0 %v5323
  %v5440 = vpop.f32.mrf.mxu0
  %v5441 = vadd.f32 0.0, %v5440
  %5442 = vmatmul.f32.gmra.mxu0 %v5326
  %v5443 = vpop.f32.mrf.mxu0
  %v5444 = vadd.f32 0.0, %v5443
  %5445 = vdwg.mxu0
  %v5447 = vsel %vm2723, %v5258, 0
  %v5450 = vsel %vm2723, %v5259, 0
  %v5453 = vsel %vm2723, %v5260, 0
  %v5456 = vsel %vm2723, %v5261, 0
  %v5459 = vsel %vm2723, %v5262, 0
  %v5462 = vsel %vm2723, %v5263, 0
  %v5465 = vsel %vm2723, %v5264, 0
  %v5468 = vsel %vm2723, %v5265, 0
  %v5471 = vsel %vm2723, %v5266, 0
  %v5474 = vsel %vm2723, %v5267, 0
  %v5477 = vsel %vm2723, %v5268, 0
  %v5480 = vsel %vm2723, %v5269, 0
  %v5483 = vsel %vm2723, %v5270, 0
  %v5486 = vsel %vm2723, %v5271, 0
  %5488 = vmatpush.msra.mxu0 0.0
  %5489 = vmatpush.msra.mxu0 0.0
  %5490 = vmatpush.msra.mxu0 0.0
  %5491 = vmatpush.msra.mxu0 0.0
  %5492 = vmatpush.msra.mxu0 0.0
  %5493 = vmatpush.msra.mxu0 %v5135
  %5494 = vmatpush.msra.mxu0 %v4872
  %5495 = vmatpush.msra.mxu0 %v4870
  %5496 = vmatpush.msra.mxu0 %v4868
  %5497 = vmatpush.msra.mxu0 %v4866
  %5498 = vmatpush.msra.mxu0 %v4864
  %5499 = vmatpush.msra.mxu0 %v4862
  %5500 = vmatpush.msra.mxu0 %v4860
  %5501 = vmatpush.msra.mxu0 %v4858
  %5502 = vmatpush.msra.mxu0 %v4856
  %5503 = vmatpush.msra.mxu0 %v4854
  %5504 = vmatmul.f32.gmra.mxu0 %v5447
  %v5505 = vpop.f32.mrf.mxu0
  %v5506 = vadd.f32 %v5346, %v5505
  %5507 = vmatmul.f32.gmra.mxu0 %v5450
  %v5508 = vpop.f32.mrf.mxu0
  %v5509 = vadd.f32 %v5349, %v5508
  %5510 = vmatmul.f32.gmra.mxu0 %v5453
  %v5511 = vpop.f32.mrf.mxu0
  %v5512 = vadd.f32 %v5352, %v5511
  %5513 = vmatmul.f32.gmra.mxu0 %v5456
  %v5514 = vpop.f32.mrf.mxu0
  %v5515 = vadd.f32 %v5355, %v5514
  %5516 = vmatmul.f32.gmra.mxu0 %v5459
  %v5517 = vpop.f32.mrf.mxu0
  %v5518 = vadd.f32 %v5358, %v5517
  %5519 = vmatmul.f32.gmra.mxu0 %v5462
  %v5520 = vpop.f32.mrf.mxu0
  %v5521 = vadd.f32 %v5361, %v5520
  %5522 = vmatmul.f32.gmra.mxu0 %v5465
  %v5523 = vpop.f32.mrf.mxu0
  %v5524 = vadd.f32 %v5364, %v5523
  %5525 = vmatmul.f32.gmra.mxu0 %v5468
  %v5526 = vpop.f32.mrf.mxu0
  %v5527 = vadd.f32 %v5367, %v5526
  %5528 = vmatmul.f32.gmra.mxu0 %v5471
  %v5529 = vpop.f32.mrf.mxu0
  %v5530 = vadd.f32 %v5370, %v5529
  %5531 = vmatmul.f32.gmra.mxu0 %v5474
  %v5532 = vpop.f32.mrf.mxu0
  %v5533 = vadd.f32 %v5373, %v5532
  %5534 = vmatmul.f32.gmra.mxu0 %v5477
  %v5535 = vpop.f32.mrf.mxu0
  %v5536 = vadd.f32 %v5376, %v5535
  %5537 = vmatmul.f32.gmra.mxu0 %v5480
  %v5538 = vpop.f32.mrf.mxu0
  %v5539 = vadd.f32 %v5379, %v5538
  %5540 = vmatmul.f32.gmra.mxu0 %v5483
  %v5541 = vpop.f32.mrf.mxu0
  %v5542 = vadd.f32 %v5382, %v5541
  %5543 = vmatmul.f32.gmra.mxu0 %v5486
  %v5544 = vpop.f32.mrf.mxu0
  %v5545 = vadd.f32 %v5385, %v5544
  %5546 = vdwg.mxu0
  %5547 = vmatpush.msra.mxu0 0.0
  %5548 = vmatpush.msra.mxu0 0.0
  %5549 = vmatpush.msra.mxu0 0.0
  %5550 = vmatpush.msra.mxu0 0.0
  %5551 = vmatpush.msra.mxu0 0.0
  %5552 = vmatpush.msra.mxu0 %v5138
  %5553 = vmatpush.msra.mxu0 %v4873
  %5554 = vmatpush.msra.mxu0 %v4871
  %5555 = vmatpush.msra.mxu0 %v4869
  %5556 = vmatpush.msra.mxu0 %v4867
  %5557 = vmatpush.msra.mxu0 %v4865
  %5558 = vmatpush.msra.mxu0 %v4863
  %5559 = vmatpush.msra.mxu0 %v4861
  %5560 = vmatpush.msra.mxu0 %v4859
  %5561 = vmatpush.msra.mxu0 %v4857
  %5562 = vmatpush.msra.mxu0 %v4855
  %5563 = vmatmul.f32.gmra.mxu0 %v5447
  %v5564 = vpop.f32.mrf.mxu0
  %v5565 = vadd.f32 %v5405, %v5564
  %5566 = vmatmul.f32.gmra.mxu0 %v5450
  %v5567 = vpop.f32.mrf.mxu0
  %v5568 = vadd.f32 %v5408, %v5567
  %5569 = vmatmul.f32.gmra.mxu0 %v5453
  %v5570 = vpop.f32.mrf.mxu0
  %v5571 = vadd.f32 %v5411, %v5570
  %5572 = vmatmul.f32.gmra.mxu0 %v5456
  %v5573 = vpop.f32.mrf.mxu0
  %v5574 = vadd.f32 %v5414, %v5573
  %5575 = vmatmul.f32.gmra.mxu0 %v5459
  %v5576 = vpop.f32.mrf.mxu0
  %v5577 = vadd.f32 %v5417, %v5576
  %5578 = vmatmul.f32.gmra.mxu0 %v5462
  %v5579 = vpop.f32.mrf.mxu0
  %v5580 = vadd.f32 %v5420, %v5579
  %5581 = vmatmul.f32.gmra.mxu0 %v5465
  %v5582 = vpop.f32.mrf.mxu0
  %v5583 = vadd.f32 %v5423, %v5582
  %5584 = vmatmul.f32.gmra.mxu0 %v5468
  %v5585 = vpop.f32.mrf.mxu0
  %v5586 = vadd.f32 %v5426, %v5585
  %5587 = vmatmul.f32.gmra.mxu0 %v5471
  %v5588 = vpop.f32.mrf.mxu0
  %v5589 = vadd.f32 %v5429, %v5588
  %5590 = vmatmul.f32.gmra.mxu0 %v5474
  %v5591 = vpop.f32.mrf.mxu0
  %v5592 = vadd.f32 %v5432, %v5591
  %5593 = vmatmul.f32.gmra.mxu0 %v5477
  %v5594 = vpop.f32.mrf.mxu0
  %v5595 = vadd.f32 %v5435, %v5594
  %5596 = vmatmul.f32.gmra.mxu0 %v5480
  %v5597 = vpop.f32.mrf.mxu0
  %v5598 = vadd.f32 %v5438, %v5597
  %5599 = vmatmul.f32.gmra.mxu0 %v5483
  %v5600 = vpop.f32.mrf.mxu0
  %v5601 = vadd.f32 %v5441, %v5600
  %5602 = vmatmul.f32.gmra.mxu0 %v5486
  %v5603 = vpop.f32.mrf.mxu0
  %v5604 = vadd.f32 %v5444, %v5603
  %5605 = vdwg.mxu0
  %v5606 = vpack.c.bf16 %v5217, %v5158
  %v5607 = vpack.c.bf16 %v5565, %v5506
  %v5608 = vpack.c.bf16 %v5220, %v5161
  %v5609 = vpack.c.bf16 %v5568, %v5509
  %v5610 = vpack.c.bf16 %v5223, %v5164
  %v5611 = vpack.c.bf16 %v5571, %v5512
  %v5612 = vpack.c.bf16 %v5226, %v5167
  %v5613 = vpack.c.bf16 %v5574, %v5515
  %v5614 = vpack.c.bf16 %v5229, %v5170
  %v5615 = vpack.c.bf16 %v5577, %v5518
  %v5616 = vpack.c.bf16 %v5232, %v5173
  %v5617 = vpack.c.bf16 %v5580, %v5521
  %v5618 = vpack.c.bf16 %v5235, %v5176
  %v5619 = vpack.c.bf16 %v5583, %v5524
  %v5620 = vpack.c.bf16 %v5238, %v5179
  %v5621 = vpack.c.bf16 %v5586, %v5527
  %v5622 = vpack.c.bf16 %v5241, %v5182
  %v5623 = vpack.c.bf16 %v5589, %v5530
  %v5624 = vpack.c.bf16 %v5244, %v5185
  %v5625 = vpack.c.bf16 %v5592, %v5533
  %v5626 = vpack.c.bf16 %v5247, %v5188
  %v5627 = vpack.c.bf16 %v5595, %v5536
  %v5628 = vpack.c.bf16 %v5250, %v5191
  %v5629 = vpack.c.bf16 %v5598, %v5539
  %v5630 = vpack.c.bf16 %v5253, %v5194
  %v5631 = vpack.c.bf16 %v5601, %v5542
  %v5632 = vpack.c.bf16 %v5256, %v5197
  %v5633 = vpack.c.bf16 %v5604, %v5545
  %v5634 = vld [vmem:[%s7 + $0x5] ss:$0 sm:$0xff]
  %v5635 = vld [vmem:[%s6] sm:$0xf]
  %v5636 = vld [vmem:[%s6 + $0x4] sm:$0xf]
  %v5637 = vld [vmem:[%s6 + $0x8] sm:$0xf]
  %v5638 = vld [vmem:[%s6 + $0xc] sm:$0xf]
  %v5639 = vld [vmem:[%s6 + $0x10] sm:$0xf]
  %v5640 = vld [vmem:[%s6 + $0x14] sm:$0xf]
  %v5641 = vld [vmem:[%s6 + $0x18] sm:$0xf]
  %v5642 = vld [vmem:[%s6 + $0x1c] sm:$0xf]
  %v5643 = vld [vmem:[%s6 + $0x20] sm:$0xf]
  %v5644 = vld [vmem:[%s6 + $0x24] sm:$0xf]
  %v5645 = vld [vmem:[%s6 + $0x28] sm:$0xf]
  %v5646 = vld [vmem:[%s6 + $0x2c] sm:$0xf]
  %v5647 = vld [vmem:[%s6 + $0x30] sm:$0xf]
  %v5648 = vld [vmem:[%s6 + $0x34] sm:$0xf]
  %v5649 = vld [vmem:[%s6 + $0x38] sm:$0xf]
  %v5650 = vld [vmem:[%s6 + $0x3c] sm:$0xf]
  %v5651 = vld [vmem:[%s6 + $0x40] sm:$0xf]
  %v5652 = vld [vmem:[%s6 + $0x44] sm:$0xf]
  %v5653 = vld [vmem:[%s6 + $0x48] sm:$0xf]
  %v5654 = vld [vmem:[%s6 + $0x4c] sm:$0xf]
  %v5655 = vld [vmem:[%s6 + $0x50] sm:$0xf]
  %s5656 = scalar_lea.vmem %s6, 84
  %v5657 = vld [vmem:[%s5656] sm:$0xf]
  %v5658 = vld [vmem:[%s5656 + $0x4] sm:$0xf]
  %v5659 = vld [vmem:[%s5656 + $0x8] sm:$0xf]
  %v5660 = vld [vmem:[%s5656 + $0xc] sm:$0xf]
  %v5661 = vld [vmem:[%s5656 + $0x10] sm:$0xf]
  %v5662 = vld [vmem:[%s5656 + $0x14] sm:$0xf]
  %v5663 = vld [vmem:[%s5656 + $0x18] sm:$0xf]
  %v5664 = vld [vmem:[%s5656 + $0x1c] sm:$0xf]
  %v5665 = vld [vmem:[%s5656 + $0x20] sm:$0xf]
  %v5666 = vld [vmem:[%s5656 + $0x24] sm:$0xf]
  %v5667 = vld [vmem:[%s5656 + $0x28] sm:$0xf]
  %v5668 = vld [vmem:[%s5656 + $0x2c] sm:$0xf]
  %v5669 = vld [vmem:[%s5656 + $0x30] sm:$0xf]
  %v5670 = vld [vmem:[%s5656 + $0x34] sm:$0xf]
  %v5671 = vld [vmem:[%s5656 + $0x38] sm:$0xf]
  %v5672 = vld [vmem:[%s5656 + $0x3c] sm:$0xf]
  %v5673 = vld [vmem:[%s5656 + $0x40] sm:$0xf]
  %v5674 = vld [vmem:[%s5656 + $0x44] sm:$0xf]
  %v5675 = vld [vmem:[%s5656 + $0x48] sm:$0xf]
  %v5676 = vld [vmem:[%s5656 + $0x4c] sm:$0xf]
  %v5677 = vld [vmem:[%s5656 + $0x50] sm:$0xf]
  %v5706 = vunpack.c.h.b16 %v3729
  %v5707 = vunpack.c.l.b16 %v5606
  %v5708 = vunpack.c.h.b16 %v5606
  %v5709 = vunpack.c.l.b16 %v5607
  %v5710 = vunpack.c.h.b16 %v5607
  %v5711 = vunpack.c.l.b16 %v5608
  %v5712 = vunpack.c.h.b16 %v5608
  %v5713 = vunpack.c.l.b16 %v5609
  %v5714 = vunpack.c.h.b16 %v5609
  %v5715 = vunpack.c.l.b16 %v5610
  %v5716 = vunpack.c.h.b16 %v5610
  %v5717 = vunpack.c.l.b16 %v5611
  %v5718 = vunpack.c.h.b16 %v5611
  %v5719 = vunpack.c.l.b16 %v5612
  %v5720 = vunpack.c.h.b16 %v5612
  %v5721 = vunpack.c.l.b16 %v5613
  %v5722 = vunpack.c.h.b16 %v5613
  %v5723 = vunpack.c.l.b16 %v5614
  %v5724 = vunpack.c.h.b16 %v5614
  %v5725 = vunpack.c.l.b16 %v5615
  %v5726 = vunpack.c.h.b16 %v5615
  %v5727 = vunpack.c.l.b16 %v5616
  %v5728 = vunpack.c.h.b16 %v5616
  %v5729 = vunpack.c.l.b16 %v5617
  %v5730 = vunpack.c.h.b16 %v5617
  %v5731 = vunpack.c.l.b16 %v5618
  %v5732 = vunpack.c.h.b16 %v5618
  %v5733 = vunpack.c.l.b16 %v5619
  %v5734 = vunpack.c.h.b16 %v5619
  %v5735 = vunpack.c.l.b16 %v5620
  %v5736 = vunpack.c.h.b16 %v5620
  %v5737 = vunpack.c.l.b16 %v5621
  %v5738 = vunpack.c.h.b16 %v5621
  %v5739 = vunpack.c.l.b16 %v5622
  %v5740 = vunpack.c.h.b16 %v5622
  %v5741 = vunpack.c.l.b16 %v5623
  %v5742 = vunpack.c.h.b16 %v5623
  %v5743 = vunpack.c.l.b16 %v5624
  %v5744 = vunpack.c.h.b16 %v5624
  %v5745 = vunpack.c.l.b16 %v5625
  %v5746 = vunpack.c.h.b16 %v5625
  %v5747 = vunpack.c.l.b16 %v5626
  %v5748 = vunpack.c.h.b16 %v5626
  %v5749 = vunpack.c.l.b16 %v5627
  %v5750 = vunpack.c.h.b16 %v5627
  %v5751 = vunpack.c.l.b16 %v5628
  %v5752 = vunpack.c.h.b16 %v5628
  %v5753 = vunpack.c.l.b16 %v5629
  %v5754 = vunpack.c.h.b16 %v5629
  %v5755 = vunpack.c.l.b16 %v5630
  %v5756 = vunpack.c.h.b16 %v5630
  %v5757 = vunpack.c.l.b16 %v5631
  %v5758 = vunpack.c.h.b16 %v5631
  %v5759 = vunpack.c.l.b16 %v5632
  %v5760 = vunpack.c.h.b16 %v5632
  %v5761 = vunpack.c.l.b16 %v5633
  %v5762 = vunpack.c.h.b16 %v5633
  %v5763 = vpack.c.b16 %v5706, %v5706
  %v5764 = vpack.c.b16 %v5707, %v3739
  %v5765 = vpack.c.b16 %v5708, %v5706
  %v5766 = vpack.c.b16 %v5711, %v5709
  %v5767 = vpack.c.b16 %v5712, %v5710
  %v5768 = vpack.c.b16 %v5715, %v5713
  %v5769 = vpack.c.b16 %v5716, %v5714
  %v5770 = vpack.c.b16 %v5719, %v5717
  %v5771 = vpack.c.b16 %v5720, %v5718
  %v5772 = vpack.c.b16 %v5723, %v5721
  %v5773 = vpack.c.b16 %v5724, %v5722
  %v5774 = vpack.c.b16 %v5727, %v5725
  %v5775 = vpack.c.b16 %v5728, %v5726
  %v5776 = vpack.c.b16 %v5731, %v5729
  %v5777 = vpack.c.b16 %v5732, %v5730
  %v5778 = vpack.c.b16 %v5735, %v5733
  %v5779 = vpack.c.b16 %v5736, %v5734
  %v5780 = vpack.c.b16 %v5739, %v5737
  %v5781 = vpack.c.b16 %v5740, %v5738
  %v5782 = vpack.c.b16 %v5743, %v5741
  %v5783 = vpack.c.b16 %v5744, %v5742
  %v5784 = vpack.c.b16 %v5747, %v5745
  %v5785 = vpack.c.b16 %v5748, %v5746
  %v5786 = vpack.c.b16 %v5751, %v5749
  %v5787 = vpack.c.b16 %v5752, %v5750
  %v5788 = vpack.c.b16 %v5755, %v5753
  %v5789 = vpack.c.b16 %v5756, %v5754
  %v5790 = vpack.c.b16 %v5759, %v5757
  %v5791 = vpack.c.b16 %v5760, %v5758
  %v5792 = vpack.c.b16 %v3739, %v5761
  %v5793 = vpack.c.b16 %v5706, %v5762
  %v5831 = vunpack.c.l.b16 %v5657
  %v5832 = vunpack.c.l.b16 %v5658
  %v5833 = vunpack.c.l.b16 %v5659
  %v5834 = vunpack.c.l.b16 %v5660
  %v5835 = vunpack.c.l.b16 %v5661
  %v5836 = vunpack.c.l.b16 %v5662
  %v5837 = vunpack.c.l.b16 %v5663
  %v5838 = vunpack.c.l.b16 %v5664
  %v5839 = vunpack.c.l.b16 %v5665
  %v5840 = vunpack.c.l.b16 %v5666
  %v5841 = vunpack.c.l.b16 %v5667
  %v5842 = vunpack.c.l.b16 %v5668
  %v5843 = vunpack.c.l.b16 %v5669
  %v5844 = vunpack.c.l.b16 %v5670
  %v5845 = vunpack.c.l.b16 %v5671
  %v5846 = vunpack.c.l.b16 %v5672
  %v5847 = vunpack.c.l.b16 %v5673
  %v5848 = vunpack.c.l.b16 %v5674
  %v5849 = vunpack.c.l.b16 %v5675
  %v5850 = vunpack.c.l.b16 %v5676
  %v5851 = vunpack.c.l.b16 %v5677
  %v5852 = vpack.c.b16 %v5832, %v5831
  %v5853 = vpack.c.b16 %v5834, %v5833
  %v5854 = vpack.c.b16 %v5836, %v5835
  %v5855 = vpack.c.b16 %v5838, %v5837
  %v5856 = vpack.c.b16 %v5840, %v5839
  %v5857 = vpack.c.b16 %v5842, %v5841
  %v5858 = vpack.c.b16 %v5844, %v5843
  %v5859 = vpack.c.b16 %v5846, %v5845
  %v5860 = vpack.c.b16 %v5848, %v5847
  %v5861 = vpack.c.b16 %v5850, %v5849
  %v5862 = vpack.c.b16 %v5851, %v5851
  %v5874 = vsel %vm1790, %v5763, 0
  %v5877 = vsel %vm1790, %v5765, 0
  %v5880 = vsel %vm1790, %v5767, 0
  %v5883 = vsel %vm1790, %v5769, 0
  %v5886 = vsel %vm1790, %v5771, 0
  %v5889 = vsel %vm1790, %v5773, 0
  %v5892 = vsel %vm1790, %v5775, 0
  %v5895 = vsel %vm1790, %v5777, 0
  %v5898 = vsel %vm1790, %v5779, 0
  %v5901 = vsel %vm1790, %v5781, 0
  %v5904 = vsel %vm1790, %v5783, 0
  %v5907 = vsel %vm1790, %v5785, 0
  %v5910 = vsel %vm1790, %v5787, 0
  %v5913 = vsel %vm1790, %v5789, 0
  %v5916 = vsel %vm1790, %v5791, 0
  %v5919 = vsel %vm1790, %v5793, 0
  %v5922 = vsel %vm3978, %v5862, 0
  %5924 = vmatpush.bf16.msra.mxu0 %v5859
  %5925 = vmatpush.bf16.msra.mxu0 %v5858
  %5926 = vmatpush.bf16.msra.mxu0 %v5857
  %5927 = vmatpush.bf16.msra.mxu0 %v5856
  %5928 = vmatpush.bf16.msra.mxu0 %v5855
  %5929 = vmatpush.bf16.msra.mxu0 %v5854
  %5930 = vmatpush.bf16.msra.mxu0 %v5853
  %5931 = vmatpush.bf16.msra.mxu0 %v5852
  %5932 = vmatmul.bf16.gmra.mxu0 %v3741
  %v5933 = vpop.f32.mrf.mxu0
  %v5934 = vadd.f32 0.0, %v5933
  %v5935 = vpop.f32.mrf.mxu0
  %v5936 = vadd.f32 0.0, %v5935
  %5937 = vmatmul.bf16.gmra.mxu0 %v5764
  %v5938 = vpop.f32.mrf.mxu0
  %v5939 = vadd.f32 0.0, %v5938
  %v5940 = vpop.f32.mrf.mxu0
  %v5941 = vadd.f32 0.0, %v5940
  %5942 = vmatmul.bf16.gmra.mxu0 %v5766
  %v5943 = vpop.f32.mrf.mxu0
  %v5944 = vadd.f32 0.0, %v5943
  %v5945 = vpop.f32.mrf.mxu0
  %v5946 = vadd.f32 0.0, %v5945
  %5947 = vmatmul.bf16.gmra.mxu0 %v5768
  %v5948 = vpop.f32.mrf.mxu0
  %v5949 = vadd.f32 0.0, %v5948
  %v5950 = vpop.f32.mrf.mxu0
  %v5951 = vadd.f32 0.0, %v5950
  %5952 = vmatmul.bf16.gmra.mxu0 %v5770
  %v5953 = vpop.f32.mrf.mxu0
  %v5954 = vadd.f32 0.0, %v5953
  %v5955 = vpop.f32.mrf.mxu0
  %v5956 = vadd.f32 0.0, %v5955
  %5957 = vmatmul.bf16.gmra.mxu0 %v5772
  %v5958 = vpop.f32.mrf.mxu0
  %v5959 = vadd.f32 0.0, %v5958
  %v5960 = vpop.f32.mrf.mxu0
  %v5961 = vadd.f32 0.0, %v5960
  %5962 = vmatmul.bf16.gmra.mxu0 %v5774
  %v5963 = vpop.f32.mrf.mxu0
  %v5964 = vadd.f32 0.0, %v5963
  %v5965 = vpop.f32.mrf.mxu0
  %v5966 = vadd.f32 0.0, %v5965
  %5967 = vmatmul.bf16.gmra.mxu0 %v5776
  %v5968 = vpop.f32.mrf.mxu0
  %v5969 = vadd.f32 0.0, %v5968
  %v5970 = vpop.f32.mrf.mxu0
  %v5971 = vadd.f32 0.0, %v5970
  %5972 = vmatmul.bf16.gmra.mxu0 %v5778
  %v5973 = vpop.f32.mrf.mxu0
  %v5974 = vadd.f32 0.0, %v5973
  %v5975 = vpop.f32.mrf.mxu0
  %v5976 = vadd.f32 0.0, %v5975
  %5977 = vmatmul.bf16.gmra.mxu0 %v5780
  %v5978 = vpop.f32.mrf.mxu0
  %v5979 = vadd.f32 0.0, %v5978
  %v5980 = vpop.f32.mrf.mxu0
  %v5981 = vadd.f32 0.0, %v5980
  %5982 = vmatmul.bf16.gmra.mxu0 %v5782
  %v5983 = vpop.f32.mrf.mxu0
  %v5984 = vadd.f32 0.0, %v5983
  %v5985 = vpop.f32.mrf.mxu0
  %v5986 = vadd.f32 0.0, %v5985
  %5987 = vmatmul.bf16.gmra.mxu0 %v5784
  %v5988 = vpop.f32.mrf.mxu0
  %v5989 = vadd.f32 0.0, %v5988
  %v5990 = vpop.f32.mrf.mxu0
  %v5991 = vadd.f32 0.0, %v5990
  %5992 = vmatmul.bf16.gmra.mxu0 %v5786
  %v5993 = vpop.f32.mrf.mxu0
  %v5994 = vadd.f32 0.0, %v5993
  %v5995 = vpop.f32.mrf.mxu0
  %v5996 = vadd.f32 0.0, %v5995
  %5997 = vmatmul.bf16.gmra.mxu0 %v5788
  %v5998 = vpop.f32.mrf.mxu0
  %v5999 = vadd.f32 0.0, %v5998
  %v6000 = vpop.f32.mrf.mxu0
  %v6001 = vadd.f32 0.0, %v6000
  %6002 = vmatmul.bf16.gmra.mxu0 %v5790
  %v6003 = vpop.f32.mrf.mxu0
  %v6004 = vadd.f32 0.0, %v6003
  %v6005 = vpop.f32.mrf.mxu0
  %v6006 = vadd.f32 0.0, %v6005
  %6007 = vmatmul.bf16.gmra.mxu0 %v5792
  %v6008 = vpop.f32.mrf.mxu0
  %v6009 = vadd.f32 0.0, %v6008
  %v6010 = vpop.f32.mrf.mxu0
  %v6011 = vadd.f32 0.0, %v6010
  %6012 = vdwg.mxu0
  %6013 = vmatpush.bf16.msra.mxu0 0
  %6014 = vmatpush.bf16.msra.mxu0 0
  %6015 = vmatpush.bf16.msra.mxu0 0
  %6016 = vmatpush.bf16.msra.mxu0 0
  %6017 = vmatpush.bf16.msra.mxu0 0
  %6018 = vmatpush.bf16.msra.mxu0 %v5922
  %6019 = vmatpush.bf16.msra.mxu0 %v5861
  %6020 = vmatpush.bf16.msra.mxu0 %v5860
  %6021 = vmatmul.bf16.gmra.mxu0 %v5874
  %v6022 = vpop.f32.mrf.mxu0
  %v6023 = vadd.f32 %v5934, %v6022
  %v6024 = vpop.f32.mrf.mxu0
  %v6025 = vadd.f32 %v5936, %v6024
  %6026 = vmatmul.bf16.gmra.mxu0 %v5877
  %v6027 = vpop.f32.mrf.mxu0
  %v6028 = vadd.f32 %v5939, %v6027
  %v6029 = vpop.f32.mrf.mxu0
  %v6030 = vadd.f32 %v5941, %v6029
  %6031 = vmatmul.bf16.gmra.mxu0 %v5880
  %v6032 = vpop.f32.mrf.mxu0
  %v6033 = vadd.f32 %v5944, %v6032
  %v6034 = vpop.f32.mrf.mxu0
  %v6035 = vadd.f32 %v5946, %v6034
  %6036 = vmatmul.bf16.gmra.mxu0 %v5883
  %v6037 = vpop.f32.mrf.mxu0
  %v6038 = vadd.f32 %v5949, %v6037
  %v6039 = vpop.f32.mrf.mxu0
  %v6040 = vadd.f32 %v5951, %v6039
  %6041 = vmatmul.bf16.gmra.mxu0 %v5886
  %v6042 = vpop.f32.mrf.mxu0
  %v6043 = vadd.f32 %v5954, %v6042
  %v6044 = vpop.f32.mrf.mxu0
  %v6045 = vadd.f32 %v5956, %v6044
  %6046 = vmatmul.bf16.gmra.mxu0 %v5889
  %v6047 = vpop.f32.mrf.mxu0
  %v6048 = vadd.f32 %v5959, %v6047
  %v6049 = vpop.f32.mrf.mxu0
  %v6050 = vadd.f32 %v5961, %v6049
  %6051 = vmatmul.bf16.gmra.mxu0 %v5892
  %v6052 = vpop.f32.mrf.mxu0
  %v6053 = vadd.f32 %v5964, %v6052
  %v6054 = vpop.f32.mrf.mxu0
  %v6055 = vadd.f32 %v5966, %v6054
  %6056 = vmatmul.bf16.gmra.mxu0 %v5895
  %v6057 = vpop.f32.mrf.mxu0
  %v6058 = vadd.f32 %v5969, %v6057
  %v6059 = vpop.f32.mrf.mxu0
  %v6060 = vadd.f32 %v5971, %v6059
  %6061 = vmatmul.bf16.gmra.mxu0 %v5898
  %v6062 = vpop.f32.mrf.mxu0
  %v6063 = vadd.f32 %v5974, %v6062
  %v6064 = vpop.f32.mrf.mxu0
  %v6065 = vadd.f32 %v5976, %v6064
  %6066 = vmatmul.bf16.gmra.mxu0 %v5901
  %v6067 = vpop.f32.mrf.mxu0
  %v6068 = vadd.f32 %v5979, %v6067
  %v6069 = vpop.f32.mrf.mxu0
  %v6070 = vadd.f32 %v5981, %v6069
  %6071 = vmatmul.bf16.gmra.mxu0 %v5904
  %v6072 = vpop.f32.mrf.mxu0
  %v6073 = vadd.f32 %v5984, %v6072
  %v6074 = vpop.f32.mrf.mxu0
  %v6075 = vadd.f32 %v5986, %v6074
  %6076 = vmatmul.bf16.gmra.mxu0 %v5907
  %v6077 = vpop.f32.mrf.mxu0
  %v6078 = vadd.f32 %v5989, %v6077
  %v6079 = vpop.f32.mrf.mxu0
  %v6080 = vadd.f32 %v5991, %v6079
  %6081 = vmatmul.bf16.gmra.mxu0 %v5910
  %v6082 = vpop.f32.mrf.mxu0
  %v6083 = vadd.f32 %v5994, %v6082
  %v6084 = vpop.f32.mrf.mxu0
  %v6085 = vadd.f32 %v5996, %v6084
  %6086 = vmatmul.bf16.gmra.mxu0 %v5913
  %v6087 = vpop.f32.mrf.mxu0
  %v6088 = vadd.f32 %v5999, %v6087
  %v6089 = vpop.f32.mrf.mxu0
  %v6090 = vadd.f32 %v6001, %v6089
  %6091 = vmatmul.bf16.gmra.mxu0 %v5916
  %v6092 = vpop.f32.mrf.mxu0
  %v6093 = vadd.f32 %v6004, %v6092
  %v6094 = vpop.f32.mrf.mxu0
  %v6095 = vadd.f32 %v6006, %v6094
  %6096 = vmatmul.bf16.gmra.mxu0 %v5919
  %v6097 = vpop.f32.mrf.mxu0
  %v6098 = vadd.f32 %v6009, %v6097
  %v6099 = vpop.f32.mrf.mxu0
  %v6100 = vadd.f32 %v6011, %v6099
  %6101 = vdwg.mxu0
  %v6102 = vpack.c.b16 %v5709, %v5707
  %v6103 = vpack.c.b16 %v5710, %v5708
  %v6104 = vpack.c.b16 %v5713, %v5711
  %v6105 = vpack.c.b16 %v5714, %v5712
  %v6106 = vpack.c.b16 %v5717, %v5715
  %v6107 = vpack.c.b16 %v5718, %v5716
  %v6108 = vpack.c.b16 %v5721, %v5719
  %v6109 = vpack.c.b16 %v5722, %v5720
  %v6110 = vpack.c.b16 %v5725, %v5723
  %v6111 = vpack.c.b16 %v5726, %v5724
  %v6112 = vpack.c.b16 %v5729, %v5727
  %v6113 = vpack.c.b16 %v5730, %v5728
  %v6114 = vpack.c.b16 %v5733, %v5731
  %v6115 = vpack.c.b16 %v5734, %v5732
  %v6116 = vpack.c.b16 %v5737, %v5735
  %v6117 = vpack.c.b16 %v5738, %v5736
  %v6118 = vpack.c.b16 %v5741, %v5739
  %v6119 = vpack.c.b16 %v5742, %v5740
  %v6120 = vpack.c.b16 %v5745, %v5743
  %v6121 = vpack.c.b16 %v5746, %v5744
  %v6122 = vpack.c.b16 %v5749, %v5747
  %v6123 = vpack.c.b16 %v5750, %v5748
  %v6124 = vpack.c.b16 %v5753, %v5751
  %v6125 = vpack.c.b16 %v5754, %v5752
  %v6126 = vpack.c.b16 %v5757, %v5755
  %v6127 = vpack.c.b16 %v5758, %v5756
  %v6128 = vpack.c.b16 %v5761, %v5759
  %v6129 = vpack.c.b16 %v5762, %v5760
  %v6165 = vunpack.c.l.b16 %v5635
  %v6166 = vunpack.c.l.b16 %v5636
  %v6167 = vunpack.c.l.b16 %v5637
  %v6168 = vunpack.c.l.b16 %v5638
  %v6169 = vunpack.c.l.b16 %v5639
  %v6170 = vunpack.c.l.b16 %v5640
  %v6171 = vunpack.c.l.b16 %v5641
  %v6172 = vunpack.c.l.b16 %v5642
  %v6173 = vunpack.c.l.b16 %v5643
  %v6174 = vunpack.c.l.b16 %v5644
  %v6175 = vunpack.c.l.b16 %v5645
  %v6176 = vunpack.c.l.b16 %v5646
  %v6177 = vunpack.c.l.b16 %v5647
  %v6178 = vunpack.c.l.b16 %v5648
  %v6179 = vunpack.c.l.b16 %v5649
  %v6180 = vunpack.c.l.b16 %v5650
  %v6181 = vunpack.c.l.b16 %v5651
  %v6182 = vunpack.c.l.b16 %v5652
  %v6183 = vunpack.c.l.b16 %v5653
  %v6184 = vunpack.c.l.b16 %v5654
  %v6185 = vunpack.c.l.b16 %v5655
  %v6186 = vpack.c.b16 %v6166, %v6165
  %v6187 = vpack.c.b16 %v6168, %v6167
  %v6188 = vpack.c.b16 %v6170, %v6169
  %v6189 = vpack.c.b16 %v6172, %v6171
  %v6190 = vpack.c.b16 %v6174, %v6173
  %v6191 = vpack.c.b16 %v6176, %v6175
  %v6192 = vpack.c.b16 %v6178, %v6177
  %v6193 = vpack.c.b16 %v6180, %v6179
  %v6194 = vpack.c.b16 %v6182, %v6181
  %v6195 = vpack.c.b16 %v6184, %v6183
  %v6196 = vpack.c.b16 %v6185, %v6185
  %v6208 = vsel %vm1790, %v6103, 0
  %v6211 = vsel %vm1790, %v6105, 0
  %v6214 = vsel %vm1790, %v6107, 0
  %v6217 = vsel %vm1790, %v6109, 0
  %v6220 = vsel %vm1790, %v6111, 0
  %v6223 = vsel %vm1790, %v6113, 0
  %v6226 = vsel %vm1790, %v6115, 0
  %v6229 = vsel %vm1790, %v6117, 0
  %v6232 = vsel %vm1790, %v6119, 0
  %v6235 = vsel %vm1790, %v6121, 0
  %v6238 = vsel %vm1790, %v6123, 0
  %v6241 = vsel %vm1790, %v6125, 0
  %v6244 = vsel %vm1790, %v6127, 0
  %v6247 = vsel %vm1790, %v6129, 0
  %v6250 = vsel %vm3978, %v6196, 0
  %6252 = vmatpush.bf16.msra.mxu0 %v6193
  %6253 = vmatpush.bf16.msra.mxu0 %v6192
  %6254 = vmatpush.bf16.msra.mxu0 %v6191
  %6255 = vmatpush.bf16.msra.mxu0 %v6190
  %6256 = vmatpush.bf16.msra.mxu0 %v6189
  %6257 = vmatpush.bf16.msra.mxu0 %v6188
  %6258 = vmatpush.bf16.msra.mxu0 %v6187
  %6259 = vmatpush.bf16.msra.mxu0 %v6186
  %6260 = vmatmul.bf16.gmra.mxu0 %v3741
  %v6261 = vpop.f32.mrf.mxu0
  %v6262 = vadd.f32 %v6023, %v6261
  %v6263 = vpop.f32.mrf.mxu0
  %v6264 = vadd.f32 %v6025, %v6263
  %6265 = vmatmul.bf16.gmra.mxu0 %v3741
  %v6266 = vpop.f32.mrf.mxu0
  %v6267 = vadd.f32 %v6028, %v6266
  %v6268 = vpop.f32.mrf.mxu0
  %v6269 = vadd.f32 %v6030, %v6268
  %6270 = vmatmul.bf16.gmra.mxu0 %v6102
  %v6271 = vpop.f32.mrf.mxu0
  %v6272 = vadd.f32 %v6033, %v6271
  %v6273 = vpop.f32.mrf.mxu0
  %v6274 = vadd.f32 %v6035, %v6273
  %6275 = vmatmul.bf16.gmra.mxu0 %v6104
  %v6276 = vpop.f32.mrf.mxu0
  %v6277 = vadd.f32 %v6038, %v6276
  %v6278 = vpop.f32.mrf.mxu0
  %v6279 = vadd.f32 %v6040, %v6278
  %6280 = vmatmul.bf16.gmra.mxu0 %v6106
  %v6281 = vpop.f32.mrf.mxu0
  %v6282 = vadd.f32 %v6043, %v6281
  %v6283 = vpop.f32.mrf.mxu0
  %v6284 = vadd.f32 %v6045, %v6283
  %6285 = vmatmul.bf16.gmra.mxu0 %v6108
  %v6286 = vpop.f32.mrf.mxu0
  %v6287 = vadd.f32 %v6048, %v6286
  %v6288 = vpop.f32.mrf.mxu0
  %v6289 = vadd.f32 %v6050, %v6288
  %6290 = vmatmul.bf16.gmra.mxu0 %v6110
  %v6291 = vpop.f32.mrf.mxu0
  %v6292 = vadd.f32 %v6053, %v6291
  %v6293 = vpop.f32.mrf.mxu0
  %v6294 = vadd.f32 %v6055, %v6293
  %6295 = vmatmul.bf16.gmra.mxu0 %v6112
  %v6296 = vpop.f32.mrf.mxu0
  %v6297 = vadd.f32 %v6058, %v6296
  %v6298 = vpop.f32.mrf.mxu0
  %v6299 = vadd.f32 %v6060, %v6298
  %6300 = vmatmul.bf16.gmra.mxu0 %v6114
  %v6301 = vpop.f32.mrf.mxu0
  %v6302 = vadd.f32 %v6063, %v6301
  %v6303 = vpop.f32.mrf.mxu0
  %v6304 = vadd.f32 %v6065, %v6303
  %6305 = vmatmul.bf16.gmra.mxu0 %v6116
  %v6306 = vpop.f32.mrf.mxu0
  %v6307 = vadd.f32 %v6068, %v6306
  %v6308 = vpop.f32.mrf.mxu0
  %v6309 = vadd.f32 %v6070, %v6308
  %6310 = vmatmul.bf16.gmra.mxu0 %v6118
  %v6311 = vpop.f32.mrf.mxu0
  %v6312 = vadd.f32 %v6073, %v6311
  %v6313 = vpop.f32.mrf.mxu0
  %v6314 = vadd.f32 %v6075, %v6313
  %6315 = vmatmul.bf16.gmra.mxu0 %v6120
  %v6316 = vpop.f32.mrf.mxu0
  %v6317 = vadd.f32 %v6078, %v6316
  %v6318 = vpop.f32.mrf.mxu0
  %v6319 = vadd.f32 %v6080, %v6318
  %6320 = vmatmul.bf16.gmra.mxu0 %v6122
  %v6321 = vpop.f32.mrf.mxu0
  %v6322 = vadd.f32 %v6083, %v6321
  %v6323 = vpop.f32.mrf.mxu0
  %v6324 = vadd.f32 %v6085, %v6323
  %6325 = vmatmul.bf16.gmra.mxu0 %v6124
  %v6326 = vpop.f32.mrf.mxu0
  %v6327 = vadd.f32 %v6088, %v6326
  %v6328 = vpop.f32.mrf.mxu0
  %v6329 = vadd.f32 %v6090, %v6328
  %6330 = vmatmul.bf16.gmra.mxu0 %v6126
  %v6331 = vpop.f32.mrf.mxu0
  %v6332 = vadd.f32 %v6093, %v6331
  %v6333 = vpop.f32.mrf.mxu0
  %v6334 = vadd.f32 %v6095, %v6333
  %6335 = vmatmul.bf16.gmra.mxu0 %v6128
  %v6336 = vpop.f32.mrf.mxu0
  %v6337 = vadd.f32 %v6098, %v6336
  %v6338 = vpop.f32.mrf.mxu0
  %v6339 = vadd.f32 %v6100, %v6338
  %6340 = vdwg.mxu0
  %6341 = vmatpush.bf16.msra.mxu0 0
  %6342 = vmatpush.bf16.msra.mxu0 0
  %6343 = vmatpush.bf16.msra.mxu0 0
  %6344 = vmatpush.bf16.msra.mxu0 0
  %6345 = vmatpush.bf16.msra.mxu0 0
  %6346 = vmatpush.bf16.msra.mxu0 %v6250
  %6347 = vmatpush.bf16.msra.mxu0 %v6195
  %6348 = vmatpush.bf16.msra.mxu0 %v6194
  %6349 = vmatmul.bf16.gmra.mxu0 %v5874
  %v6350 = vpop.f32.mrf.mxu0
  %v6351 = vadd.f32 %v6262, %v6350
  %v6352 = vpop.f32.mrf.mxu0
  %v6353 = vadd.f32 %v6264, %v6352
  %6354 = vmatmul.bf16.gmra.mxu0 %v5874
  %v6355 = vpop.f32.mrf.mxu0
  %v6356 = vadd.f32 %v6267, %v6355
  %v6357 = vpop.f32.mrf.mxu0
  %v6358 = vadd.f32 %v6269, %v6357
  %6359 = vmatmul.bf16.gmra.mxu0 %v6208
  %v6360 = vpop.f32.mrf.mxu0
  %v6361 = vadd.f32 %v6272, %v6360
  %v6362 = vpop.f32.mrf.mxu0
  %v6363 = vadd.f32 %v6274, %v6362
  %6364 = vmatmul.bf16.gmra.mxu0 %v6211
  %v6365 = vpop.f32.mrf.mxu0
  %v6366 = vadd.f32 %v6277, %v6365
  %v6367 = vpop.f32.mrf.mxu0
  %v6368 = vadd.f32 %v6279, %v6367
  %6369 = vmatmul.bf16.gmra.mxu0 %v6214
  %v6370 = vpop.f32.mrf.mxu0
  %v6371 = vadd.f32 %v6282, %v6370
  %v6372 = vpop.f32.mrf.mxu0
  %v6373 = vadd.f32 %v6284, %v6372
  %6374 = vmatmul.bf16.gmra.mxu0 %v6217
  %v6375 = vpop.f32.mrf.mxu0
  %v6376 = vadd.f32 %v6287, %v6375
  %v6377 = vpop.f32.mrf.mxu0
  %v6378 = vadd.f32 %v6289, %v6377
  %6379 = vmatmul.bf16.gmra.mxu0 %v6220
  %v6380 = vpop.f32.mrf.mxu0
  %v6381 = vadd.f32 %v6292, %v6380
  %v6382 = vpop.f32.mrf.mxu0
  %v6383 = vadd.f32 %v6294, %v6382
  %6384 = vmatmul.bf16.gmra.mxu0 %v6223
  %v6385 = vpop.f32.mrf.mxu0
  %v6386 = vadd.f32 %v6297, %v6385
  %v6387 = vpop.f32.mrf.mxu0
  %v6388 = vadd.f32 %v6299, %v6387
  %6389 = vmatmul.bf16.gmra.mxu0 %v6226
  %v6390 = vpop.f32.mrf.mxu0
  %v6391 = vadd.f32 %v6302, %v6390
  %v6392 = vpop.f32.mrf.mxu0
  %v6393 = vadd.f32 %v6304, %v6392
  %6394 = vmatmul.bf16.gmra.mxu0 %v6229
  %v6395 = vpop.f32.mrf.mxu0
  %v6396 = vadd.f32 %v6307, %v6395
  %v6397 = vpop.f32.mrf.mxu0
  %v6398 = vadd.f32 %v6309, %v6397
  %6399 = vmatmul.bf16.gmra.mxu0 %v6232
  %v6400 = vpop.f32.mrf.mxu0
  %v6401 = vadd.f32 %v6312, %v6400
  %v6402 = vpop.f32.mrf.mxu0
  %v6403 = vadd.f32 %v6314, %v6402
  %6404 = vmatmul.bf16.gmra.mxu0 %v6235
  %v6405 = vpop.f32.mrf.mxu0
  %v6406 = vadd.f32 %v6317, %v6405
  %v6407 = vpop.f32.mrf.mxu0
  %v6408 = vadd.f32 %v6319, %v6407
  %6409 = vmatmul.bf16.gmra.mxu0 %v6238
  %v6410 = vpop.f32.mrf.mxu0
  %v6411 = vadd.f32 %v6322, %v6410
  %v6412 = vpop.f32.mrf.mxu0
  %v6413 = vadd.f32 %v6324, %v6412
  %6414 = vmatmul.bf16.gmra.mxu0 %v6241
  %v6415 = vpop.f32.mrf.mxu0
  %v6416 = vadd.f32 %v6327, %v6415
  %v6417 = vpop.f32.mrf.mxu0
  %v6418 = vadd.f32 %v6329, %v6417
  %6419 = vmatmul.bf16.gmra.mxu0 %v6244
  %v6420 = vpop.f32.mrf.mxu0
  %v6421 = vadd.f32 %v6332, %v6420
  %v6422 = vpop.f32.mrf.mxu0
  %v6423 = vadd.f32 %v6334, %v6422
  %6424 = vmatmul.bf16.gmra.mxu0 %v6247
  %v6425 = vpop.f32.mrf.mxu0
  %v6426 = vadd.f32 %v6337, %v6425
  %v6427 = vpop.f32.mrf.mxu0
  %v6428 = vadd.f32 %v6339, %v6427
  %6429 = vdwg.mxu0
  %s6430 = scalar_lea.vmem %s6, 168
  %v6431 = vld [vmem:[%s6430] sm:$0xf]
  %v6432 = vld [vmem:[%s6430 + $0x4] sm:$0xf]
  %v6433 = vld [vmem:[%s6430 + $0x8] sm:$0xf]
  %v6434 = vld [vmem:[%s6430 + $0xc] sm:$0xf]
  %v6435 = vld [vmem:[%s6430 + $0x10] sm:$0xf]
  %v6436 = vld [vmem:[%s6430 + $0x14] sm:$0xf]
  %v6437 = vld [vmem:[%s6430 + $0x18] sm:$0xf]
  %v6438 = vld [vmem:[%s6430 + $0x1c] sm:$0xf]
  %v6439 = vld [vmem:[%s6430 + $0x20] sm:$0xf]
  %v6440 = vld [vmem:[%s6430 + $0x24] sm:$0xf]
  %v6441 = vld [vmem:[%s6430 + $0x28] sm:$0xf]
  %v6442 = vld [vmem:[%s6430 + $0x2c] sm:$0xf]
  %v6443 = vld [vmem:[%s6430 + $0x30] sm:$0xf]
  %v6444 = vld [vmem:[%s6430 + $0x34] sm:$0xf]
  %v6445 = vld [vmem:[%s6430 + $0x38] sm:$0xf]
  %v6446 = vld [vmem:[%s6430 + $0x3c] sm:$0xf]
  %v6447 = vld [vmem:[%s6430 + $0x40] sm:$0xf]
  %v6448 = vld [vmem:[%s6430 + $0x44] sm:$0xf]
  %v6449 = vld [vmem:[%s6430 + $0x48] sm:$0xf]
  %v6450 = vld [vmem:[%s6430 + $0x4c] sm:$0xf]
  %v6451 = vld [vmem:[%s6430 + $0x50] sm:$0xf]
  %v6473 = vunpack.c.l.b16 %v6431
  %v6474 = vunpack.c.l.b16 %v6432
  %v6475 = vunpack.c.l.b16 %v6433
  %v6476 = vunpack.c.l.b16 %v6434
  %v6477 = vunpack.c.l.b16 %v6435
  %v6478 = vunpack.c.l.b16 %v6436
  %v6479 = vunpack.c.l.b16 %v6437
  %v6480 = vunpack.c.l.b16 %v6438
  %v6481 = vunpack.c.l.b16 %v6439
  %v6482 = vunpack.c.l.b16 %v6440
  %v6483 = vunpack.c.l.b16 %v6441
  %v6484 = vunpack.c.l.b16 %v6442
  %v6485 = vunpack.c.l.b16 %v6443
  %v6486 = vunpack.c.l.b16 %v6444
  %v6487 = vunpack.c.l.b16 %v6445
  %v6488 = vunpack.c.l.b16 %v6446
  %v6489 = vunpack.c.l.b16 %v6447
  %v6490 = vunpack.c.l.b16 %v6448
  %v6491 = vunpack.c.l.b16 %v6449
  %v6492 = vunpack.c.l.b16 %v6450
  %v6493 = vunpack.c.l.b16 %v6451
  %v6494 = vpack.c.b16 %v6474, %v6473
  %v6495 = vpack.c.b16 %v6476, %v6475
  %v6496 = vpack.c.b16 %v6478, %v6477
  %v6497 = vpack.c.b16 %v6480, %v6479
  %v6498 = vpack.c.b16 %v6482, %v6481
  %v6499 = vpack.c.b16 %v6484, %v6483
  %v6500 = vpack.c.b16 %v6486, %v6485
  %v6501 = vpack.c.b16 %v6488, %v6487
  %v6502 = vpack.c.b16 %v6490, %v6489
  %v6503 = vpack.c.b16 %v6492, %v6491
  %v6504 = vpack.c.b16 %v6493, %v6493
  %v6516 = vsel %vm3978, %v6504, 0
  %6518 = vmatpush.bf16.msra.mxu0 %v6501
  %6519 = vmatpush.bf16.msra.mxu0 %v6500
  %6520 = vmatpush.bf16.msra.mxu0 %v6499
  %6521 = vmatpush.bf16.msra.mxu0 %v6498
  %6522 = vmatpush.bf16.msra.mxu0 %v6497
  %6523 = vmatpush.bf16.msra.mxu0 %v6496
  %6524 = vmatpush.bf16.msra.mxu0 %v6495
  %6525 = vmatpush.bf16.msra.mxu0 %v6494
  %6526 = vmatmul.bf16.gmra.mxu0 %v3741
  %v6527 = vpop.f32.mrf.mxu0
  %v6528 = vadd.f32 0.0, %v6527
  %v6529 = vpop.f32.mrf.mxu0
  %v6530 = vadd.f32 0.0, %v6529
  %6531 = vmatmul.bf16.gmra.mxu0 %v6102
  %v6532 = vpop.f32.mrf.mxu0
  %v6533 = vadd.f32 0.0, %v6532
  %v6534 = vpop.f32.mrf.mxu0
  %v6535 = vadd.f32 0.0, %v6534
  %6536 = vmatmul.bf16.gmra.mxu0 %v6104
  %v6537 = vpop.f32.mrf.mxu0
  %v6538 = vadd.f32 0.0, %v6537
  %v6539 = vpop.f32.mrf.mxu0
  %v6540 = vadd.f32 0.0, %v6539
  %6541 = vmatmul.bf16.gmra.mxu0 %v6106
  %v6542 = vpop.f32.mrf.mxu0
  %v6543 = vadd.f32 0.0, %v6542
  %v6544 = vpop.f32.mrf.mxu0
  %v6545 = vadd.f32 0.0, %v6544
  %6546 = vmatmul.bf16.gmra.mxu0 %v6108
  %v6547 = vpop.f32.mrf.mxu0
  %v6548 = vadd.f32 0.0, %v6547
  %v6549 = vpop.f32.mrf.mxu0
  %v6550 = vadd.f32 0.0, %v6549
  %6551 = vmatmul.bf16.gmra.mxu0 %v6110
  %v6552 = vpop.f32.mrf.mxu0
  %v6553 = vadd.f32 0.0, %v6552
  %v6554 = vpop.f32.mrf.mxu0
  %v6555 = vadd.f32 0.0, %v6554
  %6556 = vmatmul.bf16.gmra.mxu0 %v6112
  %v6557 = vpop.f32.mrf.mxu0
  %v6558 = vadd.f32 0.0, %v6557
  %v6559 = vpop.f32.mrf.mxu0
  %v6560 = vadd.f32 0.0, %v6559
  %6561 = vmatmul.bf16.gmra.mxu0 %v6114
  %v6562 = vpop.f32.mrf.mxu0
  %v6563 = vadd.f32 0.0, %v6562
  %v6564 = vpop.f32.mrf.mxu0
  %v6565 = vadd.f32 0.0, %v6564
  %6566 = vmatmul.bf16.gmra.mxu0 %v6116
  %v6567 = vpop.f32.mrf.mxu0
  %v6568 = vadd.f32 0.0, %v6567
  %v6569 = vpop.f32.mrf.mxu0
  %v6570 = vadd.f32 0.0, %v6569
  %6571 = vmatmul.bf16.gmra.mxu0 %v6118
  %v6572 = vpop.f32.mrf.mxu0
  %v6573 = vadd.f32 0.0, %v6572
  %v6574 = vpop.f32.mrf.mxu0
  %v6575 = vadd.f32 0.0, %v6574
  %6576 = vmatmul.bf16.gmra.mxu0 %v6120
  %v6577 = vpop.f32.mrf.mxu0
  %v6578 = vadd.f32 0.0, %v6577
  %v6579 = vpop.f32.mrf.mxu0
  %v6580 = vadd.f32 0.0, %v6579
  %6581 = vmatmul.bf16.gmra.mxu0 %v6122
  %v6582 = vpop.f32.mrf.mxu0
  %v6583 = vadd.f32 0.0, %v6582
  %v6584 = vpop.f32.mrf.mxu0
  %v6585 = vadd.f32 0.0, %v6584
  %6586 = vmatmul.bf16.gmra.mxu0 %v6124
  %v6587 = vpop.f32.mrf.mxu0
  %v6588 = vadd.f32 0.0, %v6587
  %v6589 = vpop.f32.mrf.mxu0
  %v6590 = vadd.f32 0.0, %v6589
  %6591 = vmatmul.bf16.gmra.mxu0 %v6126
  %v6592 = vpop.f32.mrf.mxu0
  %v6593 = vadd.f32 0.0, %v6592
  %v6594 = vpop.f32.mrf.mxu0
  %v6595 = vadd.f32 0.0, %v6594
  %6596 = vmatmul.bf16.gmra.mxu0 %v6128
  %v6597 = vpop.f32.mrf.mxu0
  %v6598 = vadd.f32 0.0, %v6597
  %v6599 = vpop.f32.mrf.mxu0
  %v6600 = vadd.f32 0.0, %v6599
  %6601 = vmatmul.bf16.gmra.mxu0 %v3741
  %v6602 = vpop.f32.mrf.mxu0
  %v6603 = vadd.f32 0.0, %v6602
  %v6604 = vpop.f32.mrf.mxu0
  %v6605 = vadd.f32 0.0, %v6604
  %6606 = vdwg.mxu0
  %6607 = vmatpush.bf16.msra.mxu0 0
  %6608 = vmatpush.bf16.msra.mxu0 0
  %6609 = vmatpush.bf16.msra.mxu0 0
  %6610 = vmatpush.bf16.msra.mxu0 0
  %6611 = vmatpush.bf16.msra.mxu0 0
  %6612 = vmatpush.bf16.msra.mxu0 %v6516
  %6613 = vmatpush.bf16.msra.mxu0 %v6503
  %6614 = vmatpush.bf16.msra.mxu0 %v6502
  %6615 = vmatmul.bf16.gmra.mxu0 %v5874
  %v6616 = vpop.f32.mrf.mxu0
  %v6617 = vadd.f32 %v6528, %v6616
  %v6618 = vpop.f32.mrf.mxu0
  %v6619 = vadd.f32 %v6530, %v6618
  %6620 = vmatmul.bf16.gmra.mxu0 %v6208
  %v6621 = vpop.f32.mrf.mxu0
  %v6622 = vadd.f32 %v6533, %v6621
  %v6623 = vpop.f32.mrf.mxu0
  %v6624 = vadd.f32 %v6535, %v6623
  %6625 = vmatmul.bf16.gmra.mxu0 %v6211
  %v6626 = vpop.f32.mrf.mxu0
  %v6627 = vadd.f32 %v6538, %v6626
  %v6628 = vpop.f32.mrf.mxu0
  %v6629 = vadd.f32 %v6540, %v6628
  %6630 = vmatmul.bf16.gmra.mxu0 %v6214
  %v6631 = vpop.f32.mrf.mxu0
  %v6632 = vadd.f32 %v6543, %v6631
  %v6633 = vpop.f32.mrf.mxu0
  %v6634 = vadd.f32 %v6545, %v6633
  %6635 = vmatmul.bf16.gmra.mxu0 %v6217
  %v6636 = vpop.f32.mrf.mxu0
  %v6637 = vadd.f32 %v6548, %v6636
  %v6638 = vpop.f32.mrf.mxu0
  %v6639 = vadd.f32 %v6550, %v6638
  %6640 = vmatmul.bf16.gmra.mxu0 %v6220
  %v6641 = vpop.f32.mrf.mxu0
  %v6642 = vadd.f32 %v6553, %v6641
  %v6643 = vpop.f32.mrf.mxu0
  %v6644 = vadd.f32 %v6555, %v6643
  %6645 = vmatmul.bf16.gmra.mxu0 %v6223
  %v6646 = vpop.f32.mrf.mxu0
  %v6647 = vadd.f32 %v6558, %v6646
  %v6648 = vpop.f32.mrf.mxu0
  %v6649 = vadd.f32 %v6560, %v6648
  %6650 = vmatmul.bf16.gmra.mxu0 %v6226
  %v6651 = vpop.f32.mrf.mxu0
  %v6652 = vadd.f32 %v6563, %v6651
  %v6653 = vpop.f32.mrf.mxu0
  %v6654 = vadd.f32 %v6565, %v6653
  %6655 = vmatmul.bf16.gmra.mxu0 %v6229
  %v6656 = vpop.f32.mrf.mxu0
  %v6657 = vadd.f32 %v6568, %v6656
  %v6658 = vpop.f32.mrf.mxu0
  %v6659 = vadd.f32 %v6570, %v6658
  %6660 = vmatmul.bf16.gmra.mxu0 %v6232
  %v6661 = vpop.f32.mrf.mxu0
  %v6662 = vadd.f32 %v6573, %v6661
  %v6663 = vpop.f32.mrf.mxu0
  %v6664 = vadd.f32 %v6575, %v6663
  %6665 = vmatmul.bf16.gmra.mxu0 %v6235
  %v6666 = vpop.f32.mrf.mxu0
  %v6667 = vadd.f32 %v6578, %v6666
  %v6668 = vpop.f32.mrf.mxu0
  %v6669 = vadd.f32 %v6580, %v6668
  %6670 = vmatmul.bf16.gmra.mxu0 %v6238
  %v6671 = vpop.f32.mrf.mxu0
  %v6672 = vadd.f32 %v6583, %v6671
  %v6673 = vpop.f32.mrf.mxu0
  %v6674 = vadd.f32 %v6585, %v6673
  %6675 = vmatmul.bf16.gmra.mxu0 %v6241
  %v6676 = vpop.f32.mrf.mxu0
  %v6677 = vadd.f32 %v6588, %v6676
  %v6678 = vpop.f32.mrf.mxu0
  %v6679 = vadd.f32 %v6590, %v6678
  %6680 = vmatmul.bf16.gmra.mxu0 %v6244
  %v6681 = vpop.f32.mrf.mxu0
  %v6682 = vadd.f32 %v6593, %v6681
  %v6683 = vpop.f32.mrf.mxu0
  %v6684 = vadd.f32 %v6595, %v6683
  %6685 = vmatmul.bf16.gmra.mxu0 %v6247
  %v6686 = vpop.f32.mrf.mxu0
  %v6687 = vadd.f32 %v6598, %v6686
  %v6688 = vpop.f32.mrf.mxu0
  %v6689 = vadd.f32 %v6600, %v6688
  %6690 = vmatmul.bf16.gmra.mxu0 %v5874
  %v6691 = vpop.f32.mrf.mxu0
  %v6692 = vadd.f32 %v6603, %v6691
  %v6693 = vpop.f32.mrf.mxu0
  %v6694 = vadd.f32 %v6605, %v6693
  %6695 = vdwg.mxu0
  %v6696 = vadd.f32 %v6351, %v6617
  %v6697 = vadd.f32 %v6353, %v6619
  %v6698 = vadd.f32 %v6356, %v6622
  %v6699 = vadd.f32 %v6358, %v6624
  %v6700 = vadd.f32 %v6361, %v6627
  %v6701 = vadd.f32 %v6363, %v6629
  %v6702 = vadd.f32 %v6366, %v6632
  %v6703 = vadd.f32 %v6368, %v6634
  %v6704 = vadd.f32 %v6371, %v6637
  %v6705 = vadd.f32 %v6373, %v6639
  %v6706 = vadd.f32 %v6376, %v6642
  %v6707 = vadd.f32 %v6378, %v6644
  %v6708 = vadd.f32 %v6381, %v6647
  %v6709 = vadd.f32 %v6383, %v6649
  %v6710 = vadd.f32 %v6386, %v6652
  %v6711 = vadd.f32 %v6388, %v6654
  %v6712 = vadd.f32 %v6391, %v6657
  %v6713 = vadd.f32 %v6393, %v6659
  %v6714 = vadd.f32 %v6396, %v6662
  %v6715 = vadd.f32 %v6398, %v6664
  %v6716 = vadd.f32 %v6401, %v6667
  %v6717 = vadd.f32 %v6403, %v6669
  %v6718 = vadd.f32 %v6406, %v6672
  %v6719 = vadd.f32 %v6408, %v6674
  %v6720 = vadd.f32 %v6411, %v6677
  %v6721 = vadd.f32 %v6413, %v6679
  %v6722 = vadd.f32 %v6416, %v6682
  %v6723 = vadd.f32 %v6418, %v6684
  %v6724 = vadd.f32 %v6421, %v6687
  %v6725 = vadd.f32 %v6423, %v6689
  %v6726 = vadd.f32 %v6426, %v6692
  %v6727 = vadd.f32 %v6428, %v6694
  %s6728 = scalar_lea.vmem %s6, 252
  %v6729 = vld [vmem:[%s6728] sm:$0xf]
  %v6730 = vld [vmem:[%s6728 + $0x4] sm:$0xf]
  %v6731 = vld [vmem:[%s6728 + $0x8] sm:$0xf]
  %v6732 = vld [vmem:[%s6728 + $0xc] sm:$0xf]
  %v6733 = vld [vmem:[%s6728 + $0x10] sm:$0xf]
  %v6734 = vld [vmem:[%s6728 + $0x14] sm:$0xf]
  %v6735 = vld [vmem:[%s6728 + $0x18] sm:$0xf]
  %v6736 = vld [vmem:[%s6728 + $0x1c] sm:$0xf]
  %v6737 = vld [vmem:[%s6728 + $0x20] sm:$0xf]
  %v6738 = vld [vmem:[%s6728 + $0x24] sm:$0xf]
  %v6739 = vld [vmem:[%s6728 + $0x28] sm:$0xf]
  %v6740 = vld [vmem:[%s6728 + $0x2c] sm:$0xf]
  %v6741 = vld [vmem:[%s6728 + $0x30] sm:$0xf]
  %v6742 = vld [vmem:[%s6728 + $0x34] sm:$0xf]
  %v6743 = vld [vmem:[%s6728 + $0x38] sm:$0xf]
  %v6744 = vld [vmem:[%s6728 + $0x3c] sm:$0xf]
  %v6745 = vld [vmem:[%s6728 + $0x40] sm:$0xf]
  %v6746 = vld [vmem:[%s6728 + $0x44] sm:$0xf]
  %v6747 = vld [vmem:[%s6728 + $0x48] sm:$0xf]
  %v6748 = vld [vmem:[%s6728 + $0x4c] sm:$0xf]
  %v6749 = vld [vmem:[%s6728 + $0x50] sm:$0xf]
  %v6771 = vunpack.c.l.b16 %v6729
  %v6772 = vunpack.c.l.b16 %v6730
  %v6773 = vunpack.c.l.b16 %v6731
  %v6774 = vunpack.c.l.b16 %v6732
  %v6775 = vunpack.c.l.b16 %v6733
  %v6776 = vunpack.c.l.b16 %v6734
  %v6777 = vunpack.c.l.b16 %v6735
  %v6778 = vunpack.c.l.b16 %v6736
  %v6779 = vunpack.c.l.b16 %v6737
  %v6780 = vunpack.c.l.b16 %v6738
  %v6781 = vunpack.c.l.b16 %v6739
  %v6782 = vunpack.c.l.b16 %v6740
  %v6783 = vunpack.c.l.b16 %v6741
  %v6784 = vunpack.c.l.b16 %v6742
  %v6785 = vunpack.c.l.b16 %v6743
  %v6786 = vunpack.c.l.b16 %v6744
  %v6787 = vunpack.c.l.b16 %v6745
  %v6788 = vunpack.c.l.b16 %v6746
  %v6789 = vunpack.c.l.b16 %v6747
  %v6790 = vunpack.c.l.b16 %v6748
  %v6791 = vunpack.c.l.b16 %v6749
  %v6792 = vpack.c.b16 %v6772, %v6771
  %v6793 = vpack.c.b16 %v6774, %v6773
  %v6794 = vpack.c.b16 %v6776, %v6775
  %v6795 = vpack.c.b16 %v6778, %v6777
  %v6796 = vpack.c.b16 %v6780, %v6779
  %v6797 = vpack.c.b16 %v6782, %v6781
  %v6798 = vpack.c.b16 %v6784, %v6783
  %v6799 = vpack.c.b16 %v6786, %v6785
  %v6800 = vpack.c.b16 %v6788, %v6787
  %v6801 = vpack.c.b16 %v6790, %v6789
  %v6802 = vpack.c.b16 %v6791, %v6791
  %v6814 = vsel %vm3978, %v6802, 0
  %6816 = vmatpush.bf16.msra.mxu0 %v6799
  %6817 = vmatpush.bf16.msra.mxu0 %v6798
  %6818 = vmatpush.bf16.msra.mxu0 %v6797
  %6819 = vmatpush.bf16.msra.mxu0 %v6796
  %6820 = vmatpush.bf16.msra.mxu0 %v6795
  %6821 = vmatpush.bf16.msra.mxu0 %v6794
  %6822 = vmatpush.bf16.msra.mxu0 %v6793
  %6823 = vmatpush.bf16.msra.mxu0 %v6792
  %6824 = vmatmul.bf16.gmra.mxu0 %v5764
  %v6825 = vpop.f32.mrf.mxu0
  %v6826 = vadd.f32 0.0, %v6825
  %v6827 = vpop.f32.mrf.mxu0
  %v6828 = vadd.f32 0.0, %v6827
  %6829 = vmatmul.bf16.gmra.mxu0 %v5766
  %v6830 = vpop.f32.mrf.mxu0
  %v6831 = vadd.f32 0.0, %v6830
  %v6832 = vpop.f32.mrf.mxu0
  %v6833 = vadd.f32 0.0, %v6832
  %6834 = vmatmul.bf16.gmra.mxu0 %v5768
  %v6835 = vpop.f32.mrf.mxu0
  %v6836 = vadd.f32 0.0, %v6835
  %v6837 = vpop.f32.mrf.mxu0
  %v6838 = vadd.f32 0.0, %v6837
  %6839 = vmatmul.bf16.gmra.mxu0 %v5770
  %v6840 = vpop.f32.mrf.mxu0
  %v6841 = vadd.f32 0.0, %v6840
  %v6842 = vpop.f32.mrf.mxu0
  %v6843 = vadd.f32 0.0, %v6842
  %6844 = vmatmul.bf16.gmra.mxu0 %v5772
  %v6845 = vpop.f32.mrf.mxu0
  %v6846 = vadd.f32 0.0, %v6845
  %v6847 = vpop.f32.mrf.mxu0
  %v6848 = vadd.f32 0.0, %v6847
  %6849 = vmatmul.bf16.gmra.mxu0 %v5774
  %v6850 = vpop.f32.mrf.mxu0
  %v6851 = vadd.f32 0.0, %v6850
  %v6852 = vpop.f32.mrf.mxu0
  %v6853 = vadd.f32 0.0, %v6852
  %6854 = vmatmul.bf16.gmra.mxu0 %v5776
  %v6855 = vpop.f32.mrf.mxu0
  %v6856 = vadd.f32 0.0, %v6855
  %v6857 = vpop.f32.mrf.mxu0
  %v6858 = vadd.f32 0.0, %v6857
  %6859 = vmatmul.bf16.gmra.mxu0 %v5778
  %v6860 = vpop.f32.mrf.mxu0
  %v6861 = vadd.f32 0.0, %v6860
  %v6862 = vpop.f32.mrf.mxu0
  %v6863 = vadd.f32 0.0, %v6862
  %6864 = vmatmul.bf16.gmra.mxu0 %v5780
  %v6865 = vpop.f32.mrf.mxu0
  %v6866 = vadd.f32 0.0, %v6865
  %v6867 = vpop.f32.mrf.mxu0
  %v6868 = vadd.f32 0.0, %v6867
  %6869 = vmatmul.bf16.gmra.mxu0 %v5782
  %v6870 = vpop.f32.mrf.mxu0
  %v6871 = vadd.f32 0.0, %v6870
  %v6872 = vpop.f32.mrf.mxu0
  %v6873 = vadd.f32 0.0, %v6872
  %6874 = vmatmul.bf16.gmra.mxu0 %v5784
  %v6875 = vpop.f32.mrf.mxu0
  %v6876 = vadd.f32 0.0, %v6875
  %v6877 = vpop.f32.mrf.mxu0
  %v6878 = vadd.f32 0.0, %v6877
  %6879 = vmatmul.bf16.gmra.mxu0 %v5786
  %v6880 = vpop.f32.mrf.mxu0
  %v6881 = vadd.f32 0.0, %v6880
  %v6882 = vpop.f32.mrf.mxu0
  %v6883 = vadd.f32 0.0, %v6882
  %6884 = vmatmul.bf16.gmra.mxu0 %v5788
  %v6885 = vpop.f32.mrf.mxu0
  %v6886 = vadd.f32 0.0, %v6885
  %v6887 = vpop.f32.mrf.mxu0
  %v6888 = vadd.f32 0.0, %v6887
  %6889 = vmatmul.bf16.gmra.mxu0 %v5790
  %v6890 = vpop.f32.mrf.mxu0
  %v6891 = vadd.f32 0.0, %v6890
  %v6892 = vpop.f32.mrf.mxu0
  %v6893 = vadd.f32 0.0, %v6892
  %6894 = vmatmul.bf16.gmra.mxu0 %v5792
  %v6895 = vpop.f32.mrf.mxu0
  %v6896 = vadd.f32 0.0, %v6895
  %v6897 = vpop.f32.mrf.mxu0
  %v6898 = vadd.f32 0.0, %v6897
  %6899 = vmatmul.bf16.gmra.mxu0 %v3741
  %v6900 = vpop.f32.mrf.mxu0
  %v6901 = vadd.f32 0.0, %v6900
  %v6902 = vpop.f32.mrf.mxu0
  %v6903 = vadd.f32 0.0, %v6902
  %6904 = vdwg.mxu0
  %6905 = vmatpush.bf16.msra.mxu0 0
  %6906 = vmatpush.bf16.msra.mxu0 0
  %6907 = vmatpush.bf16.msra.mxu0 0
  %6908 = vmatpush.bf16.msra.mxu0 0
  %6909 = vmatpush.bf16.msra.mxu0 0
  %6910 = vmatpush.bf16.msra.mxu0 %v6814
  %6911 = vmatpush.bf16.msra.mxu0 %v6801
  %6912 = vmatpush.bf16.msra.mxu0 %v6800
  %6913 = vmatmul.bf16.gmra.mxu0 %v5877
  %v6914 = vpop.f32.mrf.mxu0
  %v6915 = vadd.f32 %v6826, %v6914
  %v6916 = vpop.f32.mrf.mxu0
  %v6917 = vadd.f32 %v6828, %v6916
  %6918 = vmatmul.bf16.gmra.mxu0 %v5880
  %v6919 = vpop.f32.mrf.mxu0
  %v6920 = vadd.f32 %v6831, %v6919
  %v6921 = vpop.f32.mrf.mxu0
  %v6922 = vadd.f32 %v6833, %v6921
  %6923 = vmatmul.bf16.gmra.mxu0 %v5883
  %v6924 = vpop.f32.mrf.mxu0
  %v6925 = vadd.f32 %v6836, %v6924
  %v6926 = vpop.f32.mrf.mxu0
  %v6927 = vadd.f32 %v6838, %v6926
  %6928 = vmatmul.bf16.gmra.mxu0 %v5886
  %v6929 = vpop.f32.mrf.mxu0
  %v6930 = vadd.f32 %v6841, %v6929
  %v6931 = vpop.f32.mrf.mxu0
  %v6932 = vadd.f32 %v6843, %v6931
  %6933 = vmatmul.bf16.gmra.mxu0 %v5889
  %v6934 = vpop.f32.mrf.mxu0
  %v6935 = vadd.f32 %v6846, %v6934
  %v6936 = vpop.f32.mrf.mxu0
  %v6937 = vadd.f32 %v6848, %v6936
  %6938 = vmatmul.bf16.gmra.mxu0 %v5892
  %v6939 = vpop.f32.mrf.mxu0
  %v6940 = vadd.f32 %v6851, %v6939
  %v6941 = vpop.f32.mrf.mxu0
  %v6942 = vadd.f32 %v6853, %v6941
  %6943 = vmatmul.bf16.gmra.mxu0 %v5895
  %v6944 = vpop.f32.mrf.mxu0
  %v6945 = vadd.f32 %v6856, %v6944
  %v6946 = vpop.f32.mrf.mxu0
  %v6947 = vadd.f32 %v6858, %v6946
  %6948 = vmatmul.bf16.gmra.mxu0 %v5898
  %v6949 = vpop.f32.mrf.mxu0
  %v6950 = vadd.f32 %v6861, %v6949
  %v6951 = vpop.f32.mrf.mxu0
  %v6952 = vadd.f32 %v6863, %v6951
  %6953 = vmatmul.bf16.gmra.mxu0 %v5901
  %v6954 = vpop.f32.mrf.mxu0
  %v6955 = vadd.f32 %v6866, %v6954
  %v6956 = vpop.f32.mrf.mxu0
  %v6957 = vadd.f32 %v6868, %v6956
  %6958 = vmatmul.bf16.gmra.mxu0 %v5904
  %v6959 = vpop.f32.mrf.mxu0
  %v6960 = vadd.f32 %v6871, %v6959
  %v6961 = vpop.f32.mrf.mxu0
  %v6962 = vadd.f32 %v6873, %v6961
  %6963 = vmatmul.bf16.gmra.mxu0 %v5907
  %v6964 = vpop.f32.mrf.mxu0
  %v6965 = vadd.f32 %v6876, %v6964
  %v6966 = vpop.f32.mrf.mxu0
  %v6967 = vadd.f32 %v6878, %v6966
  %6968 = vmatmul.bf16.gmra.mxu0 %v5910
  %v6969 = vpop.f32.mrf.mxu0
  %v6970 = vadd.f32 %v6881, %v6969
  %v6971 = vpop.f32.mrf.mxu0
  %v6972 = vadd.f32 %v6883, %v6971
  %6973 = vmatmul.bf16.gmra.mxu0 %v5913
  %v6974 = vpop.f32.mrf.mxu0
  %v6975 = vadd.f32 %v6886, %v6974
  %v6976 = vpop.f32.mrf.mxu0
  %v6977 = vadd.f32 %v6888, %v6976
  %6978 = vmatmul.bf16.gmra.mxu0 %v5916
  %v6979 = vpop.f32.mrf.mxu0
  %v6980 = vadd.f32 %v6891, %v6979
  %v6981 = vpop.f32.mrf.mxu0
  %v6982 = vadd.f32 %v6893, %v6981
  %6983 = vmatmul.bf16.gmra.mxu0 %v5919
  %v6984 = vpop.f32.mrf.mxu0
  %v6985 = vadd.f32 %v6896, %v6984
  %v6986 = vpop.f32.mrf.mxu0
  %v6987 = vadd.f32 %v6898, %v6986
  %6988 = vmatmul.bf16.gmra.mxu0 %v5874
  %v6989 = vpop.f32.mrf.mxu0
  %v6990 = vadd.f32 %v6901, %v6989
  %v6991 = vpop.f32.mrf.mxu0
  %v6992 = vadd.f32 %v6903, %v6991
  %6993 = vdwg.mxu0
  %v6994 = vadd.f32 %v6696, %v6915
  %v6995 = vadd.f32 %v6697, %v6917
  %v6996 = vadd.f32 %v6698, %v6920
  %v6997 = vadd.f32 %v6699, %v6922
  %v6998 = vadd.f32 %v6700, %v6925
  %v6999 = vadd.f32 %v6701, %v6927
  %v7000 = vadd.f32 %v6702, %v6930
  %v7001 = vadd.f32 %v6703, %v6932
  %v7002 = vadd.f32 %v6704, %v6935
  %v7003 = vadd.f32 %v6705, %v6937
  %v7004 = vadd.f32 %v6706, %v6940
  %v7005 = vadd.f32 %v6707, %v6942
  %v7006 = vadd.f32 %v6708, %v6945
  %v7007 = vadd.f32 %v6709, %v6947
  %v7008 = vadd.f32 %v6710, %v6950
  %v7009 = vadd.f32 %v6711, %v6952
  %v7010 = vadd.f32 %v6712, %v6955
  %v7011 = vadd.f32 %v6713, %v6957
  %v7012 = vadd.f32 %v6714, %v6960
  %v7013 = vadd.f32 %v6715, %v6962
  %v7014 = vadd.f32 %v6716, %v6965
  %v7015 = vadd.f32 %v6717, %v6967
  %v7016 = vadd.f32 %v6718, %v6970
  %v7017 = vadd.f32 %v6719, %v6972
  %v7018 = vadd.f32 %v6720, %v6975
  %v7019 = vadd.f32 %v6721, %v6977
  %v7020 = vadd.f32 %v6722, %v6980
  %v7021 = vadd.f32 %v6723, %v6982
  %v7022 = vadd.f32 %v6724, %v6985
  %v7023 = vadd.f32 %v6725, %v6987
  %v7024 = vadd.f32 %v6726, %v6990
  %v7025 = vadd.f32 %v6727, %v6992
  %s7026 = scalar_lea.vmem %s6, 336
  %v7027 = vld [vmem:[%s7026] sm:$0xf]
  %v7028 = vld [vmem:[%s7026 + $0x4] sm:$0xf]
  %v7029 = vld [vmem:[%s7026 + $0x8] sm:$0xf]
  %v7030 = vld [vmem:[%s7026 + $0xc] sm:$0xf]
  %v7031 = vld [vmem:[%s7026 + $0x10] sm:$0xf]
  %v7032 = vld [vmem:[%s7026 + $0x14] sm:$0xf]
  %v7033 = vld [vmem:[%s7026 + $0x18] sm:$0xf]
  %v7034 = vld [vmem:[%s7026 + $0x1c] sm:$0xf]
  %v7035 = vld [vmem:[%s7026 + $0x20] sm:$0xf]
  %v7036 = vld [vmem:[%s7026 + $0x24] sm:$0xf]
  %v7037 = vld [vmem:[%s7026 + $0x28] sm:$0xf]
  %v7038 = vld [vmem:[%s7026 + $0x2c] sm:$0xf]
  %v7039 = vld [vmem:[%s7026 + $0x30] sm:$0xf]
  %v7040 = vld [vmem:[%s7026 + $0x34] sm:$0xf]
  %v7041 = vld [vmem:[%s7026 + $0x38] sm:$0xf]
  %v7042 = vld [vmem:[%s7026 + $0x3c] sm:$0xf]
  %v7043 = vld [vmem:[%s7026 + $0x40] sm:$0xf]
  %v7044 = vld [vmem:[%s7026 + $0x44] sm:$0xf]
  %v7045 = vld [vmem:[%s7026 + $0x48] sm:$0xf]
  %v7046 = vld [vmem:[%s7026 + $0x4c] sm:$0xf]
  %v7047 = vld [vmem:[%s7026 + $0x50] sm:$0xf]
  %v7069 = vunpack.c.l.b16 %v7027
  %v7070 = vunpack.c.l.b16 %v7028
  %v7071 = vunpack.c.l.b16 %v7029
  %v7072 = vunpack.c.l.b16 %v7030
  %v7073 = vunpack.c.l.b16 %v7031
  %v7074 = vunpack.c.l.b16 %v7032
  %v7075 = vunpack.c.l.b16 %v7033
  %v7076 = vunpack.c.l.b16 %v7034
  %v7077 = vunpack.c.l.b16 %v7035
  %v7078 = vunpack.c.l.b16 %v7036
  %v7079 = vunpack.c.l.b16 %v7037
  %v7080 = vunpack.c.l.b16 %v7038
  %v7081 = vunpack.c.l.b16 %v7039
  %v7082 = vunpack.c.l.b16 %v7040
  %v7083 = vunpack.c.l.b16 %v7041
  %v7084 = vunpack.c.l.b16 %v7042
  %v7085 = vunpack.c.l.b16 %v7043
  %v7086 = vunpack.c.l.b16 %v7044
  %v7087 = vunpack.c.l.b16 %v7045
  %v7088 = vunpack.c.l.b16 %v7046
  %v7089 = vunpack.c.l.b16 %v7047
  %v7090 = vpack.c.b16 %v7070, %v7069
  %v7091 = vpack.c.b16 %v7072, %v7071
  %v7092 = vpack.c.b16 %v7074, %v7073
  %v7093 = vpack.c.b16 %v7076, %v7075
  %v7094 = vpack.c.b16 %v7078, %v7077
  %v7095 = vpack.c.b16 %v7080, %v7079
  %v7096 = vpack.c.b16 %v7082, %v7081
  %v7097 = vpack.c.b16 %v7084, %v7083
  %v7098 = vpack.c.b16 %v7086, %v7085
  %v7099 = vpack.c.b16 %v7088, %v7087
  %v7100 = vpack.c.b16 %v7089, %v7089
  %v7112 = vsel %vm3978, %v7100, 0
  %7114 = vmatpush.bf16.msra.mxu0 %v7097
  %7115 = vmatpush.bf16.msra.mxu0 %v7096
  %7116 = vmatpush.bf16.msra.mxu0 %v7095
  %7117 = vmatpush.bf16.msra.mxu0 %v7094
  %7118 = vmatpush.bf16.msra.mxu0 %v7093
  %7119 = vmatpush.bf16.msra.mxu0 %v7092
  %7120 = vmatpush.bf16.msra.mxu0 %v7091
  %7121 = vmatpush.bf16.msra.mxu0 %v7090
  %7122 = vmatmul.bf16.gmra.mxu0 %v6102
  %v7123 = vpop.f32.mrf.mxu0
  %v7124 = vadd.f32 0.0, %v7123
  %v7125 = vpop.f32.mrf.mxu0
  %v7126 = vadd.f32 0.0, %v7125
  %7127 = vmatmul.bf16.gmra.mxu0 %v6104
  %v7128 = vpop.f32.mrf.mxu0
  %v7129 = vadd.f32 0.0, %v7128
  %v7130 = vpop.f32.mrf.mxu0
  %v7131 = vadd.f32 0.0, %v7130
  %7132 = vmatmul.bf16.gmra.mxu0 %v6106
  %v7133 = vpop.f32.mrf.mxu0
  %v7134 = vadd.f32 0.0, %v7133
  %v7135 = vpop.f32.mrf.mxu0
  %v7136 = vadd.f32 0.0, %v7135
  %7137 = vmatmul.bf16.gmra.mxu0 %v6108
  %v7138 = vpop.f32.mrf.mxu0
  %v7139 = vadd.f32 0.0, %v7138
  %v7140 = vpop.f32.mrf.mxu0
  %v7141 = vadd.f32 0.0, %v7140
  %7142 = vmatmul.bf16.gmra.mxu0 %v6110
  %v7143 = vpop.f32.mrf.mxu0
  %v7144 = vadd.f32 0.0, %v7143
  %v7145 = vpop.f32.mrf.mxu0
  %v7146 = vadd.f32 0.0, %v7145
  %7147 = vmatmul.bf16.gmra.mxu0 %v6112
  %v7148 = vpop.f32.mrf.mxu0
  %v7149 = vadd.f32 0.0, %v7148
  %v7150 = vpop.f32.mrf.mxu0
  %v7151 = vadd.f32 0.0, %v7150
  %7152 = vmatmul.bf16.gmra.mxu0 %v6114
  %v7153 = vpop.f32.mrf.mxu0
  %v7154 = vadd.f32 0.0, %v7153
  %v7155 = vpop.f32.mrf.mxu0
  %v7156 = vadd.f32 0.0, %v7155
  %7157 = vmatmul.bf16.gmra.mxu0 %v6116
  %v7158 = vpop.f32.mrf.mxu0
  %v7159 = vadd.f32 0.0, %v7158
  %v7160 = vpop.f32.mrf.mxu0
  %v7161 = vadd.f32 0.0, %v7160
  %7162 = vmatmul.bf16.gmra.mxu0 %v6118
  %v7163 = vpop.f32.mrf.mxu0
  %v7164 = vadd.f32 0.0, %v7163
  %v7165 = vpop.f32.mrf.mxu0
  %v7166 = vadd.f32 0.0, %v7165
  %7167 = vmatmul.bf16.gmra.mxu0 %v6120
  %v7168 = vpop.f32.mrf.mxu0
  %v7169 = vadd.f32 0.0, %v7168
  %v7170 = vpop.f32.mrf.mxu0
  %v7171 = vadd.f32 0.0, %v7170
  %7172 = vmatmul.bf16.gmra.mxu0 %v6122
  %v7173 = vpop.f32.mrf.mxu0
  %v7174 = vadd.f32 0.0, %v7173
  %v7175 = vpop.f32.mrf.mxu0
  %v7176 = vadd.f32 0.0, %v7175
  %7177 = vmatmul.bf16.gmra.mxu0 %v6124
  %v7178 = vpop.f32.mrf.mxu0
  %v7179 = vadd.f32 0.0, %v7178
  %v7180 = vpop.f32.mrf.mxu0
  %v7181 = vadd.f32 0.0, %v7180
  %7182 = vmatmul.bf16.gmra.mxu0 %v6126
  %v7183 = vpop.f32.mrf.mxu0
  %v7184 = vadd.f32 0.0, %v7183
  %v7185 = vpop.f32.mrf.mxu0
  %v7186 = vadd.f32 0.0, %v7185
  %7187 = vmatmul.bf16.gmra.mxu0 %v6128
  %v7188 = vpop.f32.mrf.mxu0
  %v7189 = vadd.f32 0.0, %v7188
  %v7190 = vpop.f32.mrf.mxu0
  %v7191 = vadd.f32 0.0, %v7190
  %7192 = vmatmul.bf16.gmra.mxu0 %v3741
  %v7193 = vpop.f32.mrf.mxu0
  %v7194 = vadd.f32 0.0, %v7193
  %v7195 = vpop.f32.mrf.mxu0
  %v7196 = vadd.f32 0.0, %v7195
  %7197 = vmatmul.bf16.gmra.mxu0 %v3741
  %v7198 = vpop.f32.mrf.mxu0
  %v7199 = vadd.f32 0.0, %v7198
  %v7200 = vpop.f32.mrf.mxu0
  %v7201 = vadd.f32 0.0, %v7200
  %7202 = vdwg.mxu0
  %7203 = vmatpush.bf16.msra.mxu0 0
  %7204 = vmatpush.bf16.msra.mxu0 0
  %7205 = vmatpush.bf16.msra.mxu0 0
  %7206 = vmatpush.bf16.msra.mxu0 0
  %7207 = vmatpush.bf16.msra.mxu0 0
  %7208 = vmatpush.bf16.msra.mxu0 %v7112
  %7209 = vmatpush.bf16.msra.mxu0 %v7099
  %7210 = vmatpush.bf16.msra.mxu0 %v7098
  %7211 = vmatmul.bf16.gmra.mxu0 %v6208
  %v7212 = vpop.f32.mrf.mxu0
  %v7213 = vadd.f32 %v7124, %v7212
  %v7214 = vpop.f32.mrf.mxu0
  %v7215 = vadd.f32 %v7126, %v7214
  %7216 = vmatmul.bf16.gmra.mxu0 %v6211
  %v7217 = vpop.f32.mrf.mxu0
  %v7218 = vadd.f32 %v7129, %v7217
  %v7219 = vpop.f32.mrf.mxu0
  %v7220 = vadd.f32 %v7131, %v7219
  %7221 = vmatmul.bf16.gmra.mxu0 %v6214
  %v7222 = vpop.f32.mrf.mxu0
  %v7223 = vadd.f32 %v7134, %v7222
  %v7224 = vpop.f32.mrf.mxu0
  %v7225 = vadd.f32 %v7136, %v7224
  %7226 = vmatmul.bf16.gmra.mxu0 %v6217
  %v7227 = vpop.f32.mrf.mxu0
  %v7228 = vadd.f32 %v7139, %v7227
  %v7229 = vpop.f32.mrf.mxu0
  %v7230 = vadd.f32 %v7141, %v7229
  %7231 = vmatmul.bf16.gmra.mxu0 %v6220
  %v7232 = vpop.f32.mrf.mxu0
  %v7233 = vadd.f32 %v7144, %v7232
  %v7234 = vpop.f32.mrf.mxu0
  %v7235 = vadd.f32 %v7146, %v7234
  %7236 = vmatmul.bf16.gmra.mxu0 %v6223
  %v7237 = vpop.f32.mrf.mxu0
  %v7238 = vadd.f32 %v7149, %v7237
  %v7239 = vpop.f32.mrf.mxu0
  %v7240 = vadd.f32 %v7151, %v7239
  %7241 = vmatmul.bf16.gmra.mxu0 %v6226
  %v7242 = vpop.f32.mrf.mxu0
  %v7243 = vadd.f32 %v7154, %v7242
  %v7244 = vpop.f32.mrf.mxu0
  %v7245 = vadd.f32 %v7156, %v7244
  %7246 = vmatmul.bf16.gmra.mxu0 %v6229
  %v7247 = vpop.f32.mrf.mxu0
  %v7248 = vadd.f32 %v7159, %v7247
  %v7249 = vpop.f32.mrf.mxu0
  %v7250 = vadd.f32 %v7161, %v7249
  %7251 = vmatmul.bf16.gmra.mxu0 %v6232
  %v7252 = vpop.f32.mrf.mxu0
  %v7253 = vadd.f32 %v7164, %v7252
  %v7254 = vpop.f32.mrf.mxu0
  %v7255 = vadd.f32 %v7166, %v7254
  %7256 = vmatmul.bf16.gmra.mxu0 %v6235
  %v7257 = vpop.f32.mrf.mxu0
  %v7258 = vadd.f32 %v7169, %v7257
  %v7259 = vpop.f32.mrf.mxu0
  %v7260 = vadd.f32 %v7171, %v7259
  %7261 = vmatmul.bf16.gmra.mxu0 %v6238
  %v7262 = vpop.f32.mrf.mxu0
  %v7263 = vadd.f32 %v7174, %v7262
  %v7264 = vpop.f32.mrf.mxu0
  %v7265 = vadd.f32 %v7176, %v7264
  %7266 = vmatmul.bf16.gmra.mxu0 %v6241
  %v7267 = vpop.f32.mrf.mxu0
  %v7268 = vadd.f32 %v7179, %v7267
  %v7269 = vpop.f32.mrf.mxu0
  %v7270 = vadd.f32 %v7181, %v7269
  %7271 = vmatmul.bf16.gmra.mxu0 %v6244
  %v7272 = vpop.f32.mrf.mxu0
  %v7273 = vadd.f32 %v7184, %v7272
  %v7274 = vpop.f32.mrf.mxu0
  %v7275 = vadd.f32 %v7186, %v7274
  %7276 = vmatmul.bf16.gmra.mxu0 %v6247
  %v7277 = vpop.f32.mrf.mxu0
  %v7278 = vadd.f32 %v7189, %v7277
  %v7279 = vpop.f32.mrf.mxu0
  %v7280 = vadd.f32 %v7191, %v7279
  %7281 = vmatmul.bf16.gmra.mxu0 %v5874
  %v7282 = vpop.f32.mrf.mxu0
  %v7283 = vadd.f32 %v7194, %v7282
  %v7284 = vpop.f32.mrf.mxu0
  %v7285 = vadd.f32 %v7196, %v7284
  %7286 = vmatmul.bf16.gmra.mxu0 %v5874
  %v7287 = vpop.f32.mrf.mxu0
  %v7288 = vadd.f32 %v7199, %v7287
  %v7289 = vpop.f32.mrf.mxu0
  %v7290 = vadd.f32 %v7201, %v7289
  %7291 = vdwg.mxu0
  %v7292 = vadd.f32 %v6994, %v7213
  %v7293 = vadd.f32 %v6995, %v7215
  %v7294 = vadd.f32 %v6996, %v7218
  %v7295 = vadd.f32 %v6997, %v7220
  %v7296 = vadd.f32 %v6998, %v7223
  %v7297 = vadd.f32 %v6999, %v7225
  %v7298 = vadd.f32 %v7000, %v7228
  %v7299 = vadd.f32 %v7001, %v7230
  %v7300 = vadd.f32 %v7002, %v7233
  %v7301 = vadd.f32 %v7003, %v7235
  %v7302 = vadd.f32 %v7004, %v7238
  %v7303 = vadd.f32 %v7005, %v7240
  %v7304 = vadd.f32 %v7006, %v7243
  %v7305 = vadd.f32 %v7007, %v7245
  %v7306 = vadd.f32 %v7008, %v7248
  %v7307 = vadd.f32 %v7009, %v7250
  %v7308 = vadd.f32 %v7010, %v7253
  %v7309 = vadd.f32 %v7011, %v7255
  %v7310 = vadd.f32 %v7012, %v7258
  %v7311 = vadd.f32 %v7013, %v7260
  %v7312 = vadd.f32 %v7014, %v7263
  %v7313 = vadd.f32 %v7015, %v7265
  %v7314 = vadd.f32 %v7016, %v7268
  %v7315 = vadd.f32 %v7017, %v7270
  %v7316 = vadd.f32 %v7018, %v7273
  %v7317 = vadd.f32 %v7019, %v7275
  %v7318 = vadd.f32 %v7020, %v7278
  %v7319 = vadd.f32 %v7021, %v7280
  %v7320 = vadd.f32 %v7022, %v7283
  %v7321 = vadd.f32 %v7023, %v7285
  %v7322 = vadd.f32 %v7024, %v7288
  %v7323 = vadd.f32 %v7025, %v7290
  %v7324 = vadd.f32 %v7292, %v5634
  %v7325 = vadd.f32 %v7293, %v5634
  %v7326 = vadd.f32 %v7294, %v5634
  %v7327 = vadd.f32 %v7295, %v5634
  %v7328 = vadd.f32 %v7296, %v5634
  %v7329 = vadd.f32 %v7297, %v5634
  %v7330 = vadd.f32 %v7298, %v5634
  %v7331 = vadd.f32 %v7299, %v5634
  %v7332 = vadd.f32 %v7300, %v5634
  %v7333 = vadd.f32 %v7301, %v5634
  %v7334 = vadd.f32 %v7302, %v5634
  %v7335 = vadd.f32 %v7303, %v5634
  %v7336 = vadd.f32 %v7304, %v5634
  %v7337 = vadd.f32 %v7305, %v5634
  %v7338 = vadd.f32 %v7306, %v5634
  %v7339 = vadd.f32 %v7307, %v5634
  %v7340 = vadd.f32 %v7308, %v5634
  %v7341 = vadd.f32 %v7309, %v5634
  %v7342 = vadd.f32 %v7310, %v5634
  %v7343 = vadd.f32 %v7311, %v5634
  %v7344 = vadd.f32 %v7312, %v5634
  %v7345 = vadd.f32 %v7313, %v5634
  %v7346 = vadd.f32 %v7314, %v5634
  %v7347 = vadd.f32 %v7315, %v5634
  %v7348 = vadd.f32 %v7316, %v5634
  %v7349 = vadd.f32 %v7317, %v5634
  %v7350 = vadd.f32 %v7318, %v5634
  %v7351 = vadd.f32 %v7319, %v5634
  %v7352 = vadd.f32 %v7320, %v5634
  %v7353 = vadd.f32 %v7321, %v5634
  %v7354 = vadd.f32 %v7322, %v5634
  %v7355 = vadd.f32 %v7323, %v5634
  %v7356 = vmax.f32 %v7324, 0.0
  %v7357 = vmax.f32 %v7325, 0.0
  %v7358 = vmax.f32 %v7326, 0.0
  %v7359 = vmax.f32 %v7327, 0.0
  %v7360 = vmax.f32 %v7328, 0.0
  %v7361 = vmax.f32 %v7329, 0.0
  %v7362 = vmax.f32 %v7330, 0.0
  %v7363 = vmax.f32 %v7331, 0.0
  %v7364 = vmax.f32 %v7332, 0.0
  %v7365 = vmax.f32 %v7333, 0.0
  %v7366 = vmax.f32 %v7334, 0.0
  %v7367 = vmax.f32 %v7335, 0.0
  %v7368 = vmax.f32 %v7336, 0.0
  %v7369 = vmax.f32 %v7337, 0.0
  %v7370 = vmax.f32 %v7338, 0.0
  %v7371 = vmax.f32 %v7339, 0.0
  %v7372 = vmax.f32 %v7340, 0.0
  %v7373 = vmax.f32 %v7341, 0.0
  %v7374 = vmax.f32 %v7342, 0.0
  %v7375 = vmax.f32 %v7343, 0.0
  %v7376 = vmax.f32 %v7344, 0.0
  %v7377 = vmax.f32 %v7345, 0.0
  %v7378 = vmax.f32 %v7346, 0.0
  %v7379 = vmax.f32 %v7347, 0.0
  %v7380 = vmax.f32 %v7348, 0.0
  %v7381 = vmax.f32 %v7349, 0.0
  %v7382 = vmax.f32 %v7350, 0.0
  %v7383 = vmax.f32 %v7351, 0.0
  %v7384 = vmax.f32 %v7352, 0.0
  %v7385 = vmax.f32 %v7353, 0.0
  %v7386 = vmax.f32 %v7354, 0.0
  %v7387 = vmax.f32 %v7355, 0.0
  %7388 = vst [vmem:[%s16] sm:$0xff] %v7356
  %7389 = vst [vmem:[%s16 + $0x8] sm:$0xff] %v7357
  %7390 = vst [vmem:[%s16 + $0x10] sm:$0xff] %v7358
  %7391 = vst [vmem:[%s16 + $0x18] sm:$0xff] %v7359
  %7392 = vst [vmem:[%s16 + $0x20] sm:$0xff] %v7360
  %7393 = vst [vmem:[%s16 + $0x28] sm:$0xff] %v7361
  %7394 = vst [vmem:[%s16 + $0x30] sm:$0xff] %v7362
  %7395 = vst [vmem:[%s16 + $0x38] sm:$0xff] %v7363
  %7396 = vst [vmem:[%s16 + $0x40] sm:$0xff] %v7364
  %7397 = vst [vmem:[%s16 + $0x48] sm:$0xff] %v7365
  %7398 = vst [vmem:[%s16 + $0x50] sm:$0xff] %v7366
  %7399 = vst [vmem:[%s16 + $0x58] sm:$0xff] %v7367
  %7400 = vst [vmem:[%s16 + $0x60] sm:$0xff] %v7368
  %7401 = vst [vmem:[%s16 + $0x68] sm:$0xff] %v7369
  %7402 = vst [vmem:[%s16 + $0x70] sm:$0xff] %v7370
  %7403 = vst [vmem:[%s16 + $0x78] sm:$0xff] %v7371
  %7404 = vst [vmem:[%s16 + $0x80] sm:$0xff] %v7372
  %7405 = vst [vmem:[%s16 + $0x88] sm:$0xff] %v7373
  %7406 = vst [vmem:[%s16 + $0x90] sm:$0xff] %v7374
  %7407 = vst [vmem:[%s16 + $0x98] sm:$0xff] %v7375
  %7408 = vst [vmem:[%s16 + $0xa0] sm:$0xff] %v7376
  %7409 = vst [vmem:[%s16 + $0xa8] sm:$0xff] %v7377
  %7410 = vst [vmem:[%s16 + $0xb0] sm:$0xff] %v7378
  %7411 = vst [vmem:[%s16 + $0xb8] sm:$0xff] %v7379
  %7412 = vst [vmem:[%s16 + $0xc0] sm:$0xff] %v7380
  %7413 = vst [vmem:[%s16 + $0xc8] sm:$0xff] %v7381
  %7414 = vst [vmem:[%s16 + $0xd0] sm:$0xff] %v7382
  %7415 = vst [vmem:[%s16 + $0xd8] sm:$0xff] %v7383
  %7416 = vst [vmem:[%s16 + $0xe0] sm:$0xff] %v7384
  %7417 = vst [vmem:[%s16 + $0xe8] sm:$0xff] %v7385
  %7418 = vst [vmem:[%s16 + $0xf0] sm:$0xff] %v7386
  %7419 = vst [vmem:[%s16 + $0xf8] sm:$0xff] %v7387
  // Predicated region
  $region66: #{autoencoder_forward.1} parent=0 // pred_check
    _
  $region67: #{autoencoder_forward.1} parent=0 // pred_check_branch
    %7421 = sbr.rel (0) target = $region69
  $region68: #{autoencoder_forward.1} parent=0 // pred_region
    _
  $region69: #{autoencoder_forward.1} parent=0 // pred_fallthru
    _
  // Predicated region
  $region70: #{autoencoder_forward.1} parent=0 // pred_check
    _
  $region71: #{autoencoder_forward.1} parent=0 // pred_check_branch
    %7423 = sbr.rel (0) target = $region73
  $region72: #{autoencoder_forward.1} parent=0 // pred_region
    _
  $region73: #{autoencoder_forward.1} parent=0 // pred_fallthru
    _

</llo_original>
